<compile_context>
chip_gen: v5e
topology: v5e:2x2
jax: 0.10.0
libtpu: 0.0.40
codegen_flags: <defaults>
</compile_context>

<pallas_src>
import functools
import math
import numpy as np

import jax
import jax.numpy as jnp
from jax.experimental import pallas as pl
from jax.experimental.pallas import tpu as pltpu

LEAKY_SLOPE = 0.2   # activate = nn.LeakyReLU(0.2)
BN_EPS = 1e-5       # nn.BatchNorm2d default
VMEM_LIMIT = 32 * 1024 * 1024   # explicit scoped-VMEM budget (safe on v5e/v6e/v7x)


def _round_up(x, m):
    return (x + m - 1) // m * m


# ---------------------------------------------------------------------------
# Pallas matmul: bf16 operands, f32 MXU accumulation
# ---------------------------------------------------------------------------

def _matmul_kernel(a_ref, b_ref, o_ref, acc_ref):
    k = pl.program_id(2)

    @pl.when(k == 0)
    def _():
        acc_ref[...] = jnp.zeros_like(acc_ref)

    acc_ref[...] += jnp.dot(a_ref[...], b_ref[...],
                            preferred_element_type=jnp.float32)

    @pl.when(k == pl.num_programs(2) - 1)
    def _():
        o_ref[...] = acc_ref[...].astype(o_ref.dtype)


def matmul(a, b):
    """(M, K) @ (K, N) -> (M, N) float32.  Operands cast to bf16 for the MXU."""
    M, K = a.shape
    K2, N = b.shape
    assert K == K2
    a = a.astype(jnp.bfloat16)
    b = b.astype(jnp.bfloat16)

    # Adaptive tiles: collapse K when small (all convs here have K <= ~1.2K),
    # cap tiles so double-buffered blocks stay far below the scoped VMEM limit.
    tm = min(256, _round_up(M, 8))
    tn = min(256, _round_up(N, 128))
    tk = min(2048, _round_up(K, 128))

    Mp, Kp, Np = _round_up(M, tm), _round_up(K, tk), _round_up(N, tn)
    a_p = jnp.pad(a, ((0, Mp - M), (0, Kp - K)))
    b_p = jnp.pad(b, ((0, Kp - K), (0, Np - N)))

    out = pl.pallas_call(
        _matmul_kernel,
        out_shape=jax.ShapeDtypeStruct((Mp, Np), jnp.float32),
        grid=(Mp // tm, Np // tn, Kp // tk),
        in_specs=[pl.BlockSpec((tm, tk), lambda i, j, k: (i, k)),
                  pl.BlockSpec((tk, tn), lambda i, j, k: (k, j))],
        out_specs=pl.BlockSpec((tm, tn), lambda i, j, k: (i, j)),
        scratch_shapes=[pltpu.VMEM((tm, tn), jnp.float32)],
        compiler_params=pltpu.CompilerParams(
            dimension_semantics=("parallel", "parallel", "arbitrary"),
            vmem_limit_bytes=VMEM_LIMIT),
    )(a_p, b_p)
    return out[:M, :N]


# ---------------------------------------------------------------------------
# Fused per-channel affine (BN folded) [+ residual add] + LeakyReLU kernels
# ---------------------------------------------------------------------------

def _affine_act_kernel(x_ref, s_ref, b_ref, o_ref, *, slope, apply_act):
    y = x_ref[...] * s_ref[...] + b_ref[...]
    if apply_act:
        y = jnp.where(y >= 0, y, slope * y)
    o_ref[...] = y


def _affine_add_act_kernel(x_ref, s_ref, b_ref, r_ref, o_ref, *, slope):
    y = x_ref[...] * s_ref[...] + b_ref[...] + r_ref[...]
    o_ref[...] = jnp.where(y >= 0, y, slope * y)


def _affine_act_2d(x2d, scale, shift, residual=None, apply_act=True):
    """Row-tiled, lane-densified elementwise pass: y = x*scale + shift (+ res) [+ LeakyReLU]."""
    M, C = x2d.shape

    # Fold spatial rows into the lane axis so the last dim is a multiple of 128.
    k = 128 // math.gcd(C, 128)
    if M % k:
        k = 1
    Mf, Cf = M // k, C * k
    xf = x2d.reshape(Mf, Cf)
    sf = jnp.tile(scale, k).reshape(1, Cf)
    bf = jnp.tile(shift, k).reshape(1, Cf)
    rf = residual.reshape(Mf, Cf) if residual is not None else None

    block_rows = min(256, _round_up(Mf, 8))
    Mp = _round_up(Mf, block_rows)
    if Mp != Mf:
        xf = jnp.pad(xf, ((0, Mp - Mf), (0, 0)))
        if rf is not None:
            rf = jnp.pad(rf, ((0, Mp - Mf), (0, 0)))

    in_specs = [pl.BlockSpec((block_rows, Cf), lambda i: (i, 0)),
                pl.BlockSpec((1, Cf), lambda i: (0, 0)),
                pl.BlockSpec((1, Cf), lambda i: (0, 0))]
    args = [xf, sf, bf]
    if rf is not None:
        in_specs.append(pl.BlockSpec((block_rows, Cf), lambda i: (i, 0)))
        args.append(rf)
        kern = functools.partial(_affine_add_act_kernel, slope=LEAKY_SLOPE)
    else:
        kern = functools.partial(_affine_act_kernel, slope=LEAKY_SLOPE,
                                 apply_act=apply_act)

    out = pl.pallas_call(
        kern,
        out_shape=jax.ShapeDtypeStruct((Mp, Cf), x2d.dtype),
        grid=(Mp // block_rows,),
        in_specs=in_specs,
        out_specs=pl.BlockSpec((block_rows, Cf), lambda i: (i, 0)),
        compiler_params=pltpu.CompilerParams(
            dimension_semantics=("parallel",),
            vmem_limit_bytes=VMEM_LIMIT),
    )(*args)
    return out[:Mf].reshape(M, C)


def batchnorm_act(x, gamma, beta, apply_act=True, residual=None):
    """Training-mode BatchNorm2d (batch statistics) folded to an affine, fused with
    an optional residual add and LeakyReLU.  NHWC."""
    N, H, W, C = x.shape
    x2 = x.reshape(N * H * W, C)
    # Per-channel batch statistics: tiny reduction, kept in f32 plain XLA.
    mean = jnp.mean(x2, axis=0)
    var = jnp.mean(jnp.square(x2 - mean[None, :]), axis=0)     # biased var (training BN)
    scale = gamma * jax.lax.rsqrt(var + BN_EPS)
    shift = beta - mean * scale
    r2 = residual.reshape(N * H * W, C) if residual is not None else None
    out = _affine_act_2d(x2, scale, shift, residual=r2, apply_act=apply_act)
    return out.reshape(N, H, W, C)


# ---------------------------------------------------------------------------
# MaxPool2d(3, stride=2, padding=1)
# TODO(synk): strided 3x3/s2 windows are not expressible as rectangular BlockSpec
# tiles; kept as a running jnp.maximum over 9 shifted strided views (XLA fuses it
# into a single pass over the padded input, no 9x HBM stack).
# ---------------------------------------------------------------------------

def maxpool_3x3_s2(x):
    N, H, W, C = x.shape
    k, s, pad = 3, 2, 1
    Ho = (H + 2 * pad - k) // s + 1
    Wo = (W + 2 * pad - k) // s + 1
    xp = jnp.pad(x, ((0, 0), (pad, pad), (pad, pad), (0, 0)),
                 constant_values=-jnp.inf)
    out = None
    for dy in range(k):
        for dx in range(k):
            v = xp[:, dy:dy + s * Ho:s, dx:dx + s * Wo:s, :]
            out = v if out is None else jnp.maximum(out, v)
    return out


# ---------------------------------------------------------------------------
# Conv via (1x1: reshape) / (kxk: bf16 im2col) + Pallas matmul
# ---------------------------------------------------------------------------

def conv2d(x, w, stride=1, padding=0):
    """x: NHWC, w: (Cout, Cin, kh, kw) PyTorch layout, no bias, groups=1."""
    N, H, W, Cin = x.shape
    Cout, Cin_w, kh, kw = w.shape
    assert Cin == Cin_w
    Ho = (H + 2 * padding - kh) // stride + 1
    Wo = (W + 2 * padding - kw) // stride + 1
    w_r = jnp.transpose(w, (2, 3, 1, 0)).reshape(kh * kw * Cin, Cout)

    if kh == 1 and kw == 1 and padding == 0:
        if stride != 1:
            x = x[:, ::stride, ::stride, :]
        a = x.reshape(N * Ho * Wo, Cin)
    else:
        xb = x.astype(jnp.bfloat16)        # patches materialize in bf16 (half HBM bytes)
        xp = jnp.pad(xb, ((0, 0), (padding, padding), (padding, padding), (0, 0)))
        patches = []
        for dy in range(kh):
            for dx in range(kw):
                patches.append(xp[:, dy:dy + stride * Ho:stride,
                                  dx:dx + stride * Wo:stride, :])
        a = jnp.concatenate(patches, axis=-1).reshape(N * Ho * Wo, kh * kw * Cin)

    out = matmul(a, w_r)
    return out.reshape(N, Ho, Wo, Cout)


# ---------------------------------------------------------------------------
# Adaptive average pool (tiny; plain JAX glue)
# ---------------------------------------------------------------------------

def _pool_matrix(in_size, out_size):
    P = np.zeros((out_size, in_size), dtype=np.float32)
    for i in range(out_size):
        start = (i * in_size) // out_size
        end = -(-((i + 1) * in_size) // out_size)
        P[i, start:end] = 1.0 / (end - start)
    return jnp.asarray(P)


def adaptive_avg_pool(x, out_size):
    N, H, W, C = x.shape
    Ph = _pool_matrix(H, out_size)
    Pw = _pool_matrix(W, out_size)
    y = jnp.einsum('oh,nhwc->nowc', Ph, x)
    y = jnp.einsum('pw,nowc->nopc', Pw, y)
    return y


# ---------------------------------------------------------------------------
# Parameter initialization (arrays only; static config returned separately)
# ---------------------------------------------------------------------------

class _Keys:
    def __init__(self, key):
        self.key = key

    def next(self):
        self.key, sub = jax.random.split(self.key)
        return sub


def _conv_init(kit, cout, cin, kh, kw):
    fan_out = cout * kh * kw                              # kaiming_normal_, mode='fan_out'
    std = (2.0 / fan_out) ** 0.5
    return std * jax.random.normal(kit.next(), (cout, cin, kh, kw), jnp.float32)


def _bn_init(c):
    return (jnp.ones((c,), jnp.float32), jnp.zeros((c,), jnp.float32))


def _block_init(kit, inplanes, planes, stride, scales, expansion=4):
    bottleneck = planes                                   # groups * planes, groups=1
    p = {
        'conv1': _conv_init(kit, bottleneck, inplanes, 1, 1),
        'bn1': _bn_init(bottleneck),
        'conv2': [_conv_init(kit, bottleneck // scales, bottleneck // scales, 3, 3)
                  for _ in range(scales - 1)],
        'bn2': [_bn_init(bottleneck // scales) for _ in range(scales - 1)],
        'conv3': _conv_init(kit, planes * expansion, bottleneck, 1, 1),
        'bn3': _bn_init(planes * expansion),
    }
    if stride != 1 or inplanes != planes * expansion:
        p['down_conv'] = _conv_init(kit, planes * expansion, inplanes, 1, 1)
        p['down_bn'] = _bn_init(planes * expansion)
    return p


def init_params(key, layers=(1, 1, 1, 1), num_classes=10, width=8, scales=2):
    kit = _Keys(key)
    expansion = 4
    planes = [int(width * scales * 2 ** i) for i in range(4)]   # [16, 32, 64, 128]
    params = {
        'conv1': _conv_init(kit, 6, 3, 3, 3),
        'conv2': _conv_init(kit, 16, 6, 3, 3),
        'conv3': _conv_init(kit, 16, 16, 3, 3),
        'bn1': _bn_init(planes[0]),
    }
    strides = (1, 2, 2, 2)
    inplanes = planes[0]
    for li, (pl_, nblocks, stride) in enumerate(zip(planes, layers, strides), start=1):
        blocks = [_block_init(kit, inplanes, pl_, stride, scales)]
        inplanes = pl_ * expansion
        for _ in range(1, nblocks):
            blocks.append(_block_init(kit, inplanes, pl_, 1, scales))
        params[f'layer{li}'] = blocks

    # TODO(synk): the reference module declares fc = Linear(planes[3]*4, num_classes) but
    # flattens a 7x7 adaptive-pooled map (planes[3]*4*49 features); as written its forward
    # raises a shape error.  fc is sized to the flattened features so the forward runs.
    in_feat = planes[3] * expansion * 7 * 7
    bound = 1.0 / (in_feat ** 0.5)
    params['fc_w'] = jax.random.uniform(kit.next(), (num_classes, in_feat),
                                        jnp.float32, -bound, bound)
    params['fc_b'] = jax.random.uniform(kit.next(), (num_classes,),
                                        jnp.float32, -bound, bound)

    cfg = {'strides': strides, 'scales': scales}          # static (never traced)
    return params, cfg


# ---------------------------------------------------------------------------
# Forward pass
# ---------------------------------------------------------------------------

def bottleneck_forward(x, p, stride, scales):
    identity = x

    out = conv2d(x, p['conv1'], stride=stride, padding=0)
    out = batchnorm_act(out, *p['bn1'], apply_act=True)

    c = out.shape[-1]
    cs = c // scales
    xs = [out[..., s * cs:(s + 1) * cs] for s in range(scales)]
    ys = []
    for s in range(scales):
        if s == 0:
            ys.append(xs[0])
        elif s == 1:
            t = conv2d(xs[1], p['conv2'][0], stride=1, padding=1)
            ys.append(batchnorm_act(t, *p['bn2'][0], apply_act=True))
        else:
            t = conv2d(xs[s] + ys[-1], p['conv2'][s - 1], stride=1, padding=1)
            ys.append(batchnorm_act(t, *p['bn2'][s - 1], apply_act=True))
    out = jnp.concatenate(ys, axis=-1)

    out = conv2d(out, p['conv3'], stride=1, padding=0)

    if 'down_conv' in p:
        identity = conv2d(identity, p['down_conv'], stride=stride, padding=0)
        identity = batchnorm_act(identity, *p['down_bn'], apply_act=False)

    # bn3 + residual add + LeakyReLU fused in a single Pallas pass
    return batchnorm_act(out, *p['bn3'], apply_act=True, residual=identity)


def forward(params, x_nchw, cfg):
    scales = cfg['scales']
    strides = cfg['strides']

    x = jnp.transpose(x_nchw, (0, 2, 3, 1))               # NCHW -> NHWC

    x = conv2d(x, params['conv1'], stride=1, padding=1)
    x = conv2d(x, params['conv2'], stride=1, padding=1)
    x = conv2d(x, params['conv3'], stride=1, padding=1)
    x = batchnorm_act(x, *params['bn1'], apply_act=True)  # bn1 + LeakyReLU
    x = maxpool_3x3_s2(x)

    for li in range(1, 5):
        layer_stride = strides[li - 1]
        for bi, blk in enumerate(params[f'layer{li}']):
            stride = layer_stride if bi == 0 else 1
            x = bottleneck_forward(x, blk, stride=stride, scales=scales)

    x = adaptive_avg_pool(x, 7)                           # (N, 7, 7, C)
    N = x.shape[0]
    x = jnp.transpose(x, (0, 3, 1, 2)).reshape(N, -1)     # torch x.view(N, -1) order (NCHW)

    logits = matmul(x, params['fc_w'].T) + params['fc_b'][None, :]
    return logits


# ---------------------------------------------------------------------------
if __name__ == "__main__":
    key = jax.random.PRNGKey(0)
    k_params, k_x = jax.random.split(key)

    params, cfg = init_params(k_params, layers=(1, 1, 1, 1), num_classes=10)
    x = jax.random.normal(k_x, (2, 3, 32, 32), jnp.float32)   # NCHW, like PyTorch

    fwd = jax.jit(functools.partial(forward, cfg=cfg))        # cfg is static (closed over)
    logits = jax.block_until_ready(fwd(params, x))
    assert logits.shape == (2, 10)
    assert bool(jnp.all(jnp.isfinite(logits)))
    print("KERNEL_OK")
</pallas_src>

<mosaic_0001>
module attributes {stable_mosaic.version = 11 : i64} {
  func.func @_matmul_kernel(%arg0: i32, %arg1: i32, %arg2: i32, %arg3: memref<256x128xbf16, #tpu.memory_space<vmem>>, %arg4: memref<128x128xbf16, #tpu.memory_space<vmem>>, %arg5: memref<256x128xf32, #tpu.memory_space<vmem>>, %arg6: memref<256x128xf32, #tpu.memory_space<vmem>>) attributes {dimension_semantics = [#tpu.dimension_semantics<parallel>, #tpu.dimension_semantics<parallel>, #tpu.dimension_semantics<arbitrary>], iteration_bounds = array<i64: 8, 1, 1>, scalar_prefetch = 0 : i64, scratch_operands = 1 : i64, tpu.core_type = #tpu.core_type<tc>, window_params = [{transform_indices = @transform_0, window_bounds = array<i64: 256, 128>}, {transform_indices = @transform_1, window_bounds = array<i64: 128, 128>}, {transform_indices = @transform_2, window_bounds = array<i64: 256, 128>}]} {
    %c0_i32 = arith.constant 0 : i32
    %0 = arith.cmpi eq, %arg2, %c0_i32 : i32
    %1 = arith.extui %0 : i1 to i32
    %c0_i32_0 = arith.constant 0 : i32
    %2 = arith.cmpi ne, %1, %c0_i32_0 : i32
    scf.if %2 {
      %cst_10 = arith.constant 0.000000e+00 : f32
      %12 = vector.broadcast %cst_10 : f32 to vector<256x128xf32>
      %c0_11 = arith.constant 0 : index
      %c0_12 = arith.constant 0 : index
      %13 = vector.load %arg6[%c0_11, %c0_12] : memref<256x128xf32, #tpu.memory_space<vmem>>, vector<256x128xf32>
      tpu.vector_store %arg6[%c0_11, %c0_12], %12 {strides = array<i32>} : memref<256x128xf32, #tpu.memory_space<vmem>>, vector<256x128xf32>,
    } else {
    }
    %c0 = arith.constant 0 : index
    %c0_1 = arith.constant 0 : index
    %3 = vector.load %arg6[%c0, %c0_1] : memref<256x128xf32, #tpu.memory_space<vmem>>, vector<256x128xf32>
    %c0_2 = arith.constant 0 : index
    %c0_3 = arith.constant 0 : index
    %4 = vector.load %arg3[%c0_2, %c0_3] : memref<256x128xbf16, #tpu.memory_space<vmem>>, vector<256x128xbf16>
    %c0_4 = arith.constant 0 : index
    %c0_5 = arith.constant 0 : index
    %5 = vector.load %arg4[%c0_4, %c0_5] : memref<128x128xbf16, #tpu.memory_space<vmem>>, vector<128x128xbf16>
    %cst = arith.constant dense<0.000000e+00> : vector<256x128xf32>
    %6 = tpu.matmul %4, %5, %cst {dimension_numbers = #tpu.dot_dimension_numbers<[1], [0], [0], [1], [0, 0, 1, 1], [], []>} : vector<256x128xbf16>, vector<128x128xbf16>, vector<256x128xf32> -> vector<256x128xf32>
    %7 = arith.addf %3, %6 : vector<256x128xf32>
    %c0_6 = arith.constant 0 : index
    %c0_7 = arith.constant 0 : index
    %8 = vector.load %arg6[%c0_6, %c0_7] : memref<256x128xf32, #tpu.memory_space<vmem>>, vector<256x128xf32>
    tpu.vector_store %arg6[%c0_6, %c0_7], %7 {strides = array<i32>} : memref<256x128xf32, #tpu.memory_space<vmem>>, vector<256x128xf32>,
    %c0_i32_8 = arith.constant 0 : i32
    %9 = arith.cmpi eq, %arg2, %c0_i32_8 : i32
    %10 = arith.extui %9 : i1 to i32
    %c0_i32_9 = arith.constant 0 : i32
    %11 = arith.cmpi ne, %10, %c0_i32_9 : i32
    scf.if %11 {
      %c0_10 = arith.constant 0 : index
      %c0_11 = arith.constant 0 : index
      %12 = vector.load %arg6[%c0_10, %c0_11] : memref<256x128xf32, #tpu.memory_space<vmem>>, vector<256x128xf32>
      %c0_12 = arith.constant 0 : index
      %c0_13 = arith.constant 0 : index
      %13 = vector.load %arg5[%c0_12, %c0_13] : memref<256x128xf32, #tpu.memory_space<vmem>>, vector<256x128xf32>
      tpu.vector_store %arg5[%c0_12, %c0_13], %12 {strides = array<i32>} : memref<256x128xf32, #tpu.memory_space<vmem>>, vector<256x128xf32>,
    } else {
    }
    return
  }
  func.func @transform_0(%arg0: i32, %arg1: i32, %arg2: i32) -> (i32, i32) {
    %c0_i32 = arith.constant 0 : i32
    return %arg0, %arg2 : i32, i32
  }
  func.func @transform_1(%arg0: i32, %arg1: i32, %arg2: i32) -> (i32, i32) {
    %c0_i32 = arith.constant 0 : i32
    return %arg2, %arg1 : i32, i32
  }
  func.func @transform_2(%arg0: i32, %arg1: i32, %arg2: i32) -> (i32, i32) {
    %c0_i32 = arith.constant 0 : i32
    return %arg0, %arg1 : i32, i32
  }
}

module attributes {stable_mosaic.version = 11 : i64} {
  func.func @_matmul_kernel(%arg0: i32, %arg1: i32, %arg2: i32, %arg3: memref<256x256xbf16, #tpu.memory_space<vmem>>, %arg4: memref<256x128xbf16, #tpu.memory_space<vmem>>, %arg5: memref<256x128xf32, #tpu.memory_space<vmem>>, %arg6: memref<256x128xf32, #tpu.memory_space<vmem>>) attributes {dimension_semantics = [#tpu.dimension_semantics<parallel>, #tpu.dimension_semantics<parallel>, #tpu.dimension_semantics<arbitrary>], iteration_bounds = array<i64: 8, 1, 1>, scalar_prefetch = 0 : i64, scratch_operands = 1 : i64, tpu.core_type = #tpu.core_type<tc>, window_params = [{transform_indices = @transform_0, window_bounds = array<i64: 256, 256>}, {transform_indices = @transform_1, window_bounds = array<i64: 256, 128>}, {transform_indices = @transform_2, window_bounds = array<i64: 256, 128>}]} {
    %c0_i32 = arith.constant 0 : i32
    %0 = arith.cmpi eq, %arg2, %c0_i32 : i32
    %1 = arith.extui %0 : i1 to i32
    %c0_i32_0 = arith.constant 0 : i32
    %2 = arith.cmpi ne, %1, %c0_i32_0 : i32
    scf.if %2 {
      %cst_10 = arith.constant 0.000000e+00 : f32
      %12 = vector.broadcast %cst_10 : f32 to vector<256x128xf32>
      %c0_11 = arith.constant 0 : index
      %c0_12 = arith.constant 0 : index
      %13 = vector.load %arg6[%c0_11, %c0_12] : memref<256x128xf32, #tpu.memory_space<vmem>>, vector<256x128xf32>
      tpu.vector_store %arg6[%c0_11, %c0_12], %12 {strides = array<i32>} : memref<256x128xf32, #tpu.memory_space<vmem>>, vector<256x128xf32>,
    } else {
    }
    %c0 = arith.constant 0 : index
    %c0_1 = arith.constant 0 : index
    %3 = vector.load %arg6[%c0, %c0_1] : memref<256x128xf32, #tpu.memory_space<vmem>>, vector<256x128xf32>
    %c0_2 = arith.constant 0 : index
    %c0_3 = arith.constant 0 : index
    %4 = vector.load %arg3[%c0_2, %c0_3] : memref<256x256xbf16, #tpu.memory_space<vmem>>, vector<256x256xbf16>
    %c0_4 = arith.constant 0 : index
    %c0_5 = arith.constant 0 : index
    %5 = vector.load %arg4[%c0_4, %c0_5] : memref<256x128xbf16, #tpu.memory_space<vmem>>, vector<256x128xbf16>
    %cst = arith.constant dense<0.000000e+00> : vector<256x128xf32>
    %6 = tpu.matmul %4, %5, %cst {dimension_numbers = #tpu.dot_dimension_numbers<[1], [0], [0], [1], [0, 0, 1, 1], [], []>} : vector<256x256xbf16>, vector<256x128xbf16>, vector<256x128xf32> -> vector<256x128xf32>
    %7 = arith.addf %3, %6 : vector<256x128xf32>
    %c0_6 = arith.constant 0 : index
    %c0_7 = arith.constant 0 : index
    %8 = vector.load %arg6[%c0_6, %c0_7] : memref<256x128xf32, #tpu.memory_space<vmem>>, vector<256x128xf32>
    tpu.vector_store %arg6[%c0_6, %c0_7], %7 {strides = array<i32>} : memref<256x128xf32, #tpu.memory_space<vmem>>, vector<256x128xf32>,
    %c0_i32_8 = arith.constant 0 : i32
    %9 = arith.cmpi eq, %arg2, %c0_i32_8 : i32
    %10 = arith.extui %9 : i1 to i32
    %c0_i32_9 = arith.constant 0 : i32
    %11 = arith.cmpi ne, %10, %c0_i32_9 : i32
    scf.if %11 {
      %c0_10 = arith.constant 0 : index
      %c0_11 = arith.constant 0 : index
      %12 = vector.load %arg6[%c0_10, %c0_11] : memref<256x128xf32, #tpu.memory_space<vmem>>, vector<256x128xf32>
      %c0_12 = arith.constant 0 : index
      %c0_13 = arith.constant 0 : index
      %13 = vector.load %arg5[%c0_12, %c0_13] : memref<256x128xf32, #tpu.memory_space<vmem>>, vector<256x128xf32>
      tpu.vector_store %arg5[%c0_12, %c0_13], %12 {strides = array<i32>} : memref<256x128xf32, #tpu.memory_space<vmem>>, vector<256x128xf32>,
    } else {
    }
    return
  }
  func.func @transform_0(%arg0: i32, %arg1: i32, %arg2: i32) -> (i32, i32) {
    %c0_i32 = arith.constant 0 : i32
    return %arg0, %arg2 : i32, i32
  }
  func.func @transform_1(%arg0: i32, %arg1: i32, %arg2: i32) -> (i32, i32) {
    %c0_i32 = arith.constant 0 : i32
    return %arg2, %arg1 : i32, i32
  }
  func.func @transform_2(%arg0: i32, %arg1: i32, %arg2: i32) -> (i32, i32) {
    %c0_i32 = arith.constant 0 : i32
    return %arg0, %arg1 : i32, i32
  }
}

module attributes {stable_mosaic.version = 11 : i64} {
  func.func @_affine_act_kernel(%arg0: i32, %arg1: memref<256x128xf32, #tpu.memory_space<vmem>>, %arg2: memref<1x128xf32, #tpu.memory_space<vmem>>, %arg3: memref<1x128xf32, #tpu.memory_space<vmem>>, %arg4: memref<256x128xf32, #tpu.memory_space<vmem>>) attributes {dimension_semantics = [#tpu.dimension_semantics<parallel>], iteration_bounds = array<i64: 1>, scalar_prefetch = 0 : i64, scratch_operands = 0 : i64, tpu.core_type = #tpu.core_type<tc>, window_params = [{transform_indices = @transform_0, window_bounds = array<i64: 256, 128>}, {pipeline_mode = #tpu.pipeline_mode<synchronous>, transform_indices = @transform_1, window_bounds = array<i64: 1, 128>}, {pipeline_mode = #tpu.pipeline_mode<synchronous>, transform_indices = @transform_2, window_bounds = array<i64: 1, 128>}, {transform_indices = @transform_3, window_bounds = array<i64: 256, 128>}]} {
    %c0 = arith.constant 0 : index
    %c0_0 = arith.constant 0 : index
    %0 = vector.load %arg1[%c0, %c0_0] : memref<256x128xf32, #tpu.memory_space<vmem>>, vector<256x128xf32>
    %c0_1 = arith.constant 0 : index
    %c0_2 = arith.constant 0 : index
    %1 = vector.load %arg2[%c0_1, %c0_2] : memref<1x128xf32, #tpu.memory_space<vmem>>, vector<1x128xf32>
    %2 = vector.broadcast %1 : vector<1x128xf32> to vector<256x128xf32>
    %3 = arith.mulf %0, %2 : vector<256x128xf32>
    %c0_3 = arith.constant 0 : index
    %c0_4 = arith.constant 0 : index
    %4 = vector.load %arg3[%c0_3, %c0_4] : memref<1x128xf32, #tpu.memory_space<vmem>>, vector<1x128xf32>
    %5 = vector.broadcast %4 : vector<1x128xf32> to vector<256x128xf32>
    %6 = arith.addf %3, %5 : vector<256x128xf32>
    %cst = arith.constant 0.000000e+00 : f32
    %7 = vector.broadcast %cst : f32 to vector<256x128xf32>
    %8 = arith.cmpf oge, %6, %7 : vector<256x128xf32>
    %cst_5 = arith.constant 2.000000e-01 : f32
    %9 = vector.broadcast %cst_5 : f32 to vector<256x128xf32>
    %10 = arith.mulf %9, %6 : vector<256x128xf32>
    %11 = arith.select %8, %6, %10 : vector<256x128xi1>, vector<256x128xf32>
    %c0_6 = arith.constant 0 : index
    %c0_7 = arith.constant 0 : index
    %12 = vector.load %arg4[%c0_6, %c0_7] : memref<256x128xf32, #tpu.memory_space<vmem>>, vector<256x128xf32>
    tpu.vector_store %arg4[%c0_6, %c0_7], %11 {strides = array<i32>} : memref<256x128xf32, #tpu.memory_space<vmem>>, vector<256x128xf32>,
    return
  }
  func.func @transform_0(%arg0: i32) -> (i32, i32) {
    %c0_i32 = arith.constant 0 : i32
    %c0_i32_0 = arith.constant 0 : i32
    return %arg0, %c0_i32 : i32, i32
  }
  func.func @transform_1(%arg0: i32) -> (i32, i32) {
    %c0_i32 = arith.constant 0 : i32
    %c0_i32_0 = arith.constant 0 : i32
    %c0_i32_1 = arith.constant 0 : i32
    return %c0_i32, %c0_i32_0 : i32, i32
  }
  func.func @transform_2(%arg0: i32) -> (i32, i32) {
    %c0_i32 = arith.constant 0 : i32
    %c0_i32_0 = arith.constant 0 : i32
    %c0_i32_1 = arith.constant 0 : i32
    return %c0_i32, %c0_i32_0 : i32, i32
  }
  func.func @transform_3(%arg0: i32) -> (i32, i32) {
    %c0_i32 = arith.constant 0 : i32
    %c0_i32_0 = arith.constant 0 : i32
    return %arg0, %c0_i32 : i32, i32
  }
}

module attributes {stable_mosaic.version = 11 : i64} {
  func.func @_matmul_kernel(%arg0: i32, %arg1: i32, %arg2: i32, %arg3: memref<256x128xbf16, #tpu.memory_space<vmem>>, %arg4: memref<128x128xbf16, #tpu.memory_space<vmem>>, %arg5: memref<256x128xf32, #tpu.memory_space<vmem>>, %arg6: memref<256x128xf32, #tpu.memory_space<vmem>>) attributes {dimension_semantics = [#tpu.dimension_semantics<parallel>, #tpu.dimension_semantics<parallel>, #tpu.dimension_semantics<arbitrary>], iteration_bounds = array<i64: 2, 1, 1>, scalar_prefetch = 0 : i64, scratch_operands = 1 : i64, tpu.core_type = #tpu.core_type<tc>, window_params = [{transform_indices = @transform_0, window_bounds = array<i64: 256, 128>}, {transform_indices = @transform_1, window_bounds = array<i64: 128, 128>}, {transform_indices = @transform_2, window_bounds = array<i64: 256, 128>}]} {
    %c0_i32 = arith.constant 0 : i32
    %0 = arith.cmpi eq, %arg2, %c0_i32 : i32
    %1 = arith.extui %0 : i1 to i32
    %c0_i32_0 = arith.constant 0 : i32
    %2 = arith.cmpi ne, %1, %c0_i32_0 : i32
    scf.if %2 {
      %cst_10 = arith.constant 0.000000e+00 : f32
      %12 = vector.broadcast %cst_10 : f32 to vector<256x128xf32>
      %c0_11 = arith.constant 0 : index
      %c0_12 = arith.constant 0 : index
      %13 = vector.load %arg6[%c0_11, %c0_12] : memref<256x128xf32, #tpu.memory_space<vmem>>, vector<256x128xf32>
      tpu.vector_store %arg6[%c0_11, %c0_12], %12 {strides = array<i32>} : memref<256x128xf32, #tpu.memory_space<vmem>>, vector<256x128xf32>,
    } else {
    }
    %c0 = arith.constant 0 : index
    %c0_1 = arith.constant 0 : index
    %3 = vector.load %arg6[%c0, %c0_1] : memref<256x128xf32, #tpu.memory_space<vmem>>, vector<256x128xf32>
    %c0_2 = arith.constant 0 : index
    %c0_3 = arith.constant 0 : index
    %4 = vector.load %arg3[%c0_2, %c0_3] : memref<256x128xbf16, #tpu.memory_space<vmem>>, vector<256x128xbf16>
    %c0_4 = arith.constant 0 : index
    %c0_5 = arith.constant 0 : index
    %5 = vector.load %arg4[%c0_4, %c0_5] : memref<128x128xbf16, #tpu.memory_space<vmem>>, vector<128x128xbf16>
    %cst = arith.constant dense<0.000000e+00> : vector<256x128xf32>
    %6 = tpu.matmul %4, %5, %cst {dimension_numbers = #tpu.dot_dimension_numbers<[1], [0], [0], [1], [0, 0, 1, 1], [], []>} : vector<256x128xbf16>, vector<128x128xbf16>, vector<256x128xf32> -> vector<256x128xf32>
    %7 = arith.addf %3, %6 : vector<256x128xf32>
    %c0_6 = arith.constant 0 : index
    %c0_7 = arith.constant 0 : index
    %8 = vector.load %arg6[%c0_6, %c0_7] : memref<256x128xf32, #tpu.memory_space<vmem>>, vector<256x128xf32>
    tpu.vector_store %arg6[%c0_6, %c0_7], %7 {strides = array<i32>} : memref<256x128xf32, #tpu.memory_space<vmem>>, vector<256x128xf32>,
    %c0_i32_8 = arith.constant 0 : i32
    %9 = arith.cmpi eq, %arg2, %c0_i32_8 : i32
    %10 = arith.extui %9 : i1 to i32
    %c0_i32_9 = arith.constant 0 : i32
    %11 = arith.cmpi ne, %10, %c0_i32_9 : i32
    scf.if %11 {
      %c0_10 = arith.constant 0 : index
      %c0_11 = arith.constant 0 : index
      %12 = vector.load %arg6[%c0_10, %c0_11] : memref<256x128xf32, #tpu.memory_space<vmem>>, vector<256x128xf32>
      %c0_12 = arith.constant 0 : index
      %c0_13 = arith.constant 0 : index
      %13 = vector.load %arg5[%c0_12, %c0_13] : memref<256x128xf32, #tpu.memory_space<vmem>>, vector<256x128xf32>
      tpu.vector_store %arg5[%c0_12, %c0_13], %12 {strides = array<i32>} : memref<256x128xf32, #tpu.memory_space<vmem>>, vector<256x128xf32>,
    } else {
    }
    return
  }
  func.func @transform_0(%arg0: i32, %arg1: i32, %arg2: i32) -> (i32, i32) {
    %c0_i32 = arith.constant 0 : i32
    return %arg0, %arg2 : i32, i32
  }
  func.func @transform_1(%arg0: i32, %arg1: i32, %arg2: i32) -> (i32, i32) {
    %c0_i32 = arith.constant 0 : i32
    return %arg2, %arg1 : i32, i32
  }
  func.func @transform_2(%arg0: i32, %arg1: i32, %arg2: i32) -> (i32, i32) {
    %c0_i32 = arith.constant 0 : i32
    return %arg0, %arg1 : i32, i32
  }
}

module attributes {stable_mosaic.version = 11 : i64} {
  func.func @_affine_act_kernel(%arg0: i32, %arg1: memref<64x128xf32, #tpu.memory_space<vmem>>, %arg2: memref<1x128xf32, #tpu.memory_space<vmem>>, %arg3: memref<1x128xf32, #tpu.memory_space<vmem>>, %arg4: memref<64x128xf32, #tpu.memory_space<vmem>>) attributes {dimension_semantics = [#tpu.dimension_semantics<parallel>], iteration_bounds = array<i64: 1>, scalar_prefetch = 0 : i64, scratch_operands = 0 : i64, tpu.core_type = #tpu.core_type<tc>, window_params = [{transform_indices = @transform_0, window_bounds = array<i64: 64, 128>}, {pipeline_mode = #tpu.pipeline_mode<synchronous>, transform_indices = @transform_1, window_bounds = array<i64: 1, 128>}, {pipeline_mode = #tpu.pipeline_mode<synchronous>, transform_indices = @transform_2, window_bounds = array<i64: 1, 128>}, {transform_indices = @transform_3, window_bounds = array<i64: 64, 128>}]} {
    %c0 = arith.constant 0 : index
    %c0_0 = arith.constant 0 : index
    %0 = vector.load %arg1[%c0, %c0_0] : memref<64x128xf32, #tpu.memory_space<vmem>>, vector<64x128xf32>
    %c0_1 = arith.constant 0 : index
    %c0_2 = arith.constant 0 : index
    %1 = vector.load %arg2[%c0_1, %c0_2] : memref<1x128xf32, #tpu.memory_space<vmem>>, vector<1x128xf32>
    %2 = vector.broadcast %1 : vector<1x128xf32> to vector<64x128xf32>
    %3 = arith.mulf %0, %2 : vector<64x128xf32>
    %c0_3 = arith.constant 0 : index
    %c0_4 = arith.constant 0 : index
    %4 = vector.load %arg3[%c0_3, %c0_4] : memref<1x128xf32, #tpu.memory_space<vmem>>, vector<1x128xf32>
    %5 = vector.broadcast %4 : vector<1x128xf32> to vector<64x128xf32>
    %6 = arith.addf %3, %5 : vector<64x128xf32>
    %cst = arith.constant 0.000000e+00 : f32
    %7 = vector.broadcast %cst : f32 to vector<64x128xf32>
    %8 = arith.cmpf oge, %6, %7 : vector<64x128xf32>
    %cst_5 = arith.constant 2.000000e-01 : f32
    %9 = vector.broadcast %cst_5 : f32 to vector<64x128xf32>
    %10 = arith.mulf %9, %6 : vector<64x128xf32>
    %11 = arith.select %8, %6, %10 : vector<64x128xi1>, vector<64x128xf32>
    %c0_6 = arith.constant 0 : index
    %c0_7 = arith.constant 0 : index
    %12 = vector.load %arg4[%c0_6, %c0_7] : memref<64x128xf32, #tpu.memory_space<vmem>>, vector<64x128xf32>
    tpu.vector_store %arg4[%c0_6, %c0_7], %11 {strides = array<i32>} : memref<64x128xf32, #tpu.memory_space<vmem>>, vector<64x128xf32>,
    return
  }
  func.func @transform_0(%arg0: i32) -> (i32, i32) {
    %c0_i32 = arith.constant 0 : i32
    %c0_i32_0 = arith.constant 0 : i32
    return %arg0, %c0_i32 : i32, i32
  }
  func.func @transform_1(%arg0: i32) -> (i32, i32) {
    %c0_i32 = arith.constant 0 : i32
    %c0_i32_0 = arith.constant 0 : i32
    %c0_i32_1 = arith.constant 0 : i32
    return %c0_i32, %c0_i32_0 : i32, i32
  }
  func.func @transform_2(%arg0: i32) -> (i32, i32) {
    %c0_i32 = arith.constant 0 : i32
    %c0_i32_0 = arith.constant 0 : i32
    %c0_i32_1 = arith.constant 0 : i32
    return %c0_i32, %c0_i32_0 : i32, i32
  }
  func.func @transform_3(%arg0: i32) -> (i32, i32) {
    %c0_i32 = arith.constant 0 : i32
    %c0_i32_0 = arith.constant 0 : i32
    return %arg0, %c0_i32 : i32, i32
  }
}

module attributes {stable_mosaic.version = 11 : i64} {
  func.func @_affine_act_kernel(%arg0: i32, %arg1: memref<256x128xf32, #tpu.memory_space<vmem>>, %arg2: memref<1x128xf32, #tpu.memory_space<vmem>>, %arg3: memref<1x128xf32, #tpu.memory_space<vmem>>, %arg4: memref<256x128xf32, #tpu.memory_space<vmem>>) attributes {dimension_semantics = [#tpu.dimension_semantics<parallel>], iteration_bounds = array<i64: 1>, scalar_prefetch = 0 : i64, scratch_operands = 0 : i64, tpu.core_type = #tpu.core_type<tc>, window_params = [{transform_indices = @transform_0, window_bounds = array<i64: 256, 128>}, {pipeline_mode = #tpu.pipeline_mode<synchronous>, transform_indices = @transform_1, window_bounds = array<i64: 1, 128>}, {pipeline_mode = #tpu.pipeline_mode<synchronous>, transform_indices = @transform_2, window_bounds = array<i64: 1, 128>}, {transform_indices = @transform_3, window_bounds = array<i64: 256, 128>}]} {
    %c0 = arith.constant 0 : index
    %c0_0 = arith.constant 0 : index
    %0 = vector.load %arg1[%c0, %c0_0] : memref<256x128xf32, #tpu.memory_space<vmem>>, vector<256x128xf32>
    %c0_1 = arith.constant 0 : index
    %c0_2 = arith.constant 0 : index
    %1 = vector.load %arg2[%c0_1, %c0_2] : memref<1x128xf32, #tpu.memory_space<vmem>>, vector<1x128xf32>
    %2 = vector.broadcast %1 : vector<1x128xf32> to vector<256x128xf32>
    %3 = arith.mulf %0, %2 : vector<256x128xf32>
    %c0_3 = arith.constant 0 : index
    %c0_4 = arith.constant 0 : index
    %4 = vector.load %arg3[%c0_3, %c0_4] : memref<1x128xf32, #tpu.memory_space<vmem>>, vector<1x128xf32>
    %5 = vector.broadcast %4 : vector<1x128xf32> to vector<256x128xf32>
    %6 = arith.addf %3, %5 : vector<256x128xf32>
    %c0_5 = arith.constant 0 : index
    %c0_6 = arith.constant 0 : index
    %7 = vector.load %arg4[%c0_5, %c0_6] : memref<256x128xf32, #tpu.memory_space<vmem>>, vector<256x128xf32>
    tpu.vector_store %arg4[%c0_5, %c0_6], %6 {strides = array<i32>} : memref<256x128xf32, #tpu.memory_space<vmem>>, vector<256x128xf32>,
    return
  }
  func.func @transform_0(%arg0: i32) -> (i32, i32) {
    %c0_i32 = arith.constant 0 : i32
    %c0_i32_0 = arith.constant 0 : i32
    return %arg0, %c0_i32 : i32, i32
  }
  func.func @transform_1(%arg0: i32) -> (i32, i32) {
    %c0_i32 = arith.constant 0 : i32
    %c0_i32_0 = arith.constant 0 : i32
    %c0_i32_1 = arith.constant 0 : i32
    return %c0_i32, %c0_i32_0 : i32, i32
  }
  func.func @transform_2(%arg0: i32) -> (i32, i32) {
    %c0_i32 = arith.constant 0 : i32
    %c0_i32_0 = arith.constant 0 : i32
    %c0_i32_1 = arith.constant 0 : i32
    return %c0_i32, %c0_i32_0 : i32, i32
  }
  func.func @transform_3(%arg0: i32) -> (i32, i32) {
    %c0_i32 = arith.constant 0 : i32
    %c0_i32_0 = arith.constant 0 : i32
    return %arg0, %c0_i32 : i32, i32
  }
}

module attributes {stable_mosaic.version = 11 : i64} {
  func.func @_affine_act_kernel(%arg0: i32, %arg1: memref<32x128xf32, #tpu.memory_space<vmem>>, %arg2: memref<1x128xf32, #tpu.memory_space<vmem>>, %arg3: memref<1x128xf32, #tpu.memory_space<vmem>>, %arg4: memref<32x128xf32, #tpu.memory_space<vmem>>) attributes {dimension_semantics = [#tpu.dimension_semantics<parallel>], iteration_bounds = array<i64: 1>, scalar_prefetch = 0 : i64, scratch_operands = 0 : i64, tpu.core_type = #tpu.core_type<tc>, window_params = [{transform_indices = @transform_0, window_bounds = array<i64: 32, 128>}, {pipeline_mode = #tpu.pipeline_mode<synchronous>, transform_indices = @transform_1, window_bounds = array<i64: 1, 128>}, {pipeline_mode = #tpu.pipeline_mode<synchronous>, transform_indices = @transform_2, window_bounds = array<i64: 1, 128>}, {transform_indices = @transform_3, window_bounds = array<i64: 32, 128>}]} {
    %c0 = arith.constant 0 : index
    %c0_0 = arith.constant 0 : index
    %0 = vector.load %arg1[%c0, %c0_0] : memref<32x128xf32, #tpu.memory_space<vmem>>, vector<32x128xf32>
    %c0_1 = arith.constant 0 : index
    %c0_2 = arith.constant 0 : index
    %1 = vector.load %arg2[%c0_1, %c0_2] : memref<1x128xf32, #tpu.memory_space<vmem>>, vector<1x128xf32>
    %2 = vector.broadcast %1 : vector<1x128xf32> to vector<32x128xf32>
    %3 = arith.mulf %0, %2 : vector<32x128xf32>
    %c0_3 = arith.constant 0 : index
    %c0_4 = arith.constant 0 : index
    %4 = vector.load %arg3[%c0_3, %c0_4] : memref<1x128xf32, #tpu.memory_space<vmem>>, vector<1x128xf32>
    %5 = vector.broadcast %4 : vector<1x128xf32> to vector<32x128xf32>
    %6 = arith.addf %3, %5 : vector<32x128xf32>
    %cst = arith.constant 0.000000e+00 : f32
    %7 = vector.broadcast %cst : f32 to vector<32x128xf32>
    %8 = arith.cmpf oge, %6, %7 : vector<32x128xf32>
    %cst_5 = arith.constant 2.000000e-01 : f32
    %9 = vector.broadcast %cst_5 : f32 to vector<32x128xf32>
    %10 = arith.mulf %9, %6 : vector<32x128xf32>
    %11 = arith.select %8, %6, %10 : vector<32x128xi1>, vector<32x128xf32>
    %c0_6 = arith.constant 0 : index
    %c0_7 = arith.constant 0 : index
    %12 = vector.load %arg4[%c0_6, %c0_7] : memref<32x128xf32, #tpu.memory_space<vmem>>, vector<32x128xf32>
    tpu.vector_store %arg4[%c0_6, %c0_7], %11 {strides = array<i32>} : memref<32x128xf32, #tpu.memory_space<vmem>>, vector<32x128xf32>,
    return
  }
  func.func @transform_0(%arg0: i32) -> (i32, i32) {
    %c0_i32 = arith.constant 0 : i32
    %c0_i32_0 = arith.constant 0 : i32
    return %arg0, %c0_i32 : i32, i32
  }
  func.func @transform_1(%arg0: i32) -> (i32, i32) {
    %c0_i32 = arith.constant 0 : i32
    %c0_i32_0 = arith.constant 0 : i32
    %c0_i32_1 = arith.constant 0 : i32
    return %c0_i32, %c0_i32_0 : i32, i32
  }
  func.func @transform_2(%arg0: i32) -> (i32, i32) {
    %c0_i32 = arith.constant 0 : i32
    %c0_i32_0 = arith.constant 0 : i32
    %c0_i32_1 = arith.constant 0 : i32
    return %c0_i32, %c0_i32_0 : i32, i32
  }
  func.func @transform_3(%arg0: i32) -> (i32, i32) {
    %c0_i32 = arith.constant 0 : i32
    %c0_i32_0 = arith.constant 0 : i32
    return %arg0, %c0_i32 : i32, i32
  }
}

module attributes {stable_mosaic.version = 11 : i64} {
  func.func @_affine_add_act_kernel(%arg0: i32, %arg1: memref<256x128xf32, #tpu.memory_space<vmem>>, %arg2: memref<1x128xf32, #tpu.memory_space<vmem>>, %arg3: memref<1x128xf32, #tpu.memory_space<vmem>>, %arg4: memref<256x128xf32, #tpu.memory_space<vmem>>, %arg5: memref<256x128xf32, #tpu.memory_space<vmem>>) attributes {dimension_semantics = [#tpu.dimension_semantics<parallel>], iteration_bounds = array<i64: 1>, scalar_prefetch = 0 : i64, scratch_operands = 0 : i64, tpu.core_type = #tpu.core_type<tc>, window_params = [{transform_indices = @transform_0, window_bounds = array<i64: 256, 128>}, {pipeline_mode = #tpu.pipeline_mode<synchronous>, transform_indices = @transform_1, window_bounds = array<i64: 1, 128>}, {pipeline_mode = #tpu.pipeline_mode<synchronous>, transform_indices = @transform_2, window_bounds = array<i64: 1, 128>}, {transform_indices = @transform_3, window_bounds = array<i64: 256, 128>}, {transform_indices = @transform_4, window_bounds = array<i64: 256, 128>}]} {
    %c0 = arith.constant 0 : index
    %c0_0 = arith.constant 0 : index
    %0 = vector.load %arg1[%c0, %c0_0] : memref<256x128xf32, #tpu.memory_space<vmem>>, vector<256x128xf32>
    %c0_1 = arith.constant 0 : index
    %c0_2 = arith.constant 0 : index
    %1 = vector.load %arg2[%c0_1, %c0_2] : memref<1x128xf32, #tpu.memory_space<vmem>>, vector<1x128xf32>
    %2 = vector.broadcast %1 : vector<1x128xf32> to vector<256x128xf32>
    %3 = arith.mulf %0, %2 : vector<256x128xf32>
    %c0_3 = arith.constant 0 : index
    %c0_4 = arith.constant 0 : index
    %4 = vector.load %arg3[%c0_3, %c0_4] : memref<1x128xf32, #tpu.memory_space<vmem>>, vector<1x128xf32>
    %5 = vector.broadcast %4 : vector<1x128xf32> to vector<256x128xf32>
    %6 = arith.addf %3, %5 : vector<256x128xf32>
    %c0_5 = arith.constant 0 : index
    %c0_6 = arith.constant 0 : index
    %7 = vector.load %arg4[%c0_5, %c0_6] : memref<256x128xf32, #tpu.memory_space<vmem>>, vector<256x128xf32>
    %8 = arith.addf %6, %7 : vector<256x128xf32>
    %cst = arith.constant 0.000000e+00 : f32
    %9 = vector.broadcast %cst : f32 to vector<256x128xf32>
    %10 = arith.cmpf oge, %8, %9 : vector<256x128xf32>
    %cst_7 = arith.constant 2.000000e-01 : f32
    %11 = vector.broadcast %cst_7 : f32 to vector<256x128xf32>
    %12 = arith.mulf %11, %8 : vector<256x128xf32>
    %13 = arith.select %10, %8, %12 : vector<256x128xi1>, vector<256x128xf32>
    %c0_8 = arith.constant 0 : index
    %c0_9 = arith.constant 0 : index
    %14 = vector.load %arg5[%c0_8, %c0_9] : memref<256x128xf32, #tpu.memory_space<vmem>>, vector<256x128xf32>
    tpu.vector_store %arg5[%c0_8, %c0_9], %13 {strides = array<i32>} : memref<256x128xf32, #tpu.memory_space<vmem>>, vector<256x128xf32>,
    return
  }
  func.func @transform_0(%arg0: i32) -> (i32, i32) {
    %c0_i32 = arith.constant 0 : i32
    %c0_i32_0 = arith.constant 0 : i32
    return %arg0, %c0_i32 : i32, i32
  }
  func.func @transform_1(%arg0: i32) -> (i32, i32) {
    %c0_i32 = arith.constant 0 : i32
    %c0_i32_0 = arith.constant 0 : i32
    %c0_i32_1 = arith.constant 0 : i32
    return %c0_i32, %c0_i32_0 : i32, i32
  }
  func.func @transform_2(%arg0: i32) -> (i32, i32) {
    %c0_i32 = arith.constant 0 : i32
    %c0_i32_0 = arith.constant 0 : i32
    %c0_i32_1 = arith.constant 0 : i32
    return %c0_i32, %c0_i32_0 : i32, i32
  }
  func.func @transform_3(%arg0: i32) -> (i32, i32) {
    %c0_i32 = arith.constant 0 : i32
    %c0_i32_0 = arith.constant 0 : i32
    return %arg0, %c0_i32 : i32, i32
  }
  func.func @transform_4(%arg0: i32) -> (i32, i32) {
    %c0_i32 = arith.constant 0 : i32
    %c0_i32_0 = arith.constant 0 : i32
    return %arg0, %c0_i32 : i32, i32
  }
}

module attributes {stable_mosaic.version = 11 : i64} {
  func.func @_matmul_kernel(%arg0: i32, %arg1: i32, %arg2: i32, %arg3: memref<128x128xbf16, #tpu.memory_space<vmem>>, %arg4: memref<128x128xbf16, #tpu.memory_space<vmem>>, %arg5: memref<128x128xf32, #tpu.memory_space<vmem>>, %arg6: memref<128x128xf32, #tpu.memory_space<vmem>>) attributes {dimension_semantics = [#tpu.dimension_semantics<parallel>, #tpu.dimension_semantics<parallel>, #tpu.dimension_semantics<arbitrary>], iteration_bounds = array<i64: 1, 1, 1>, scalar_prefetch = 0 : i64, scratch_operands = 1 : i64, tpu.core_type = #tpu.core_type<tc>, window_params = [{transform_indices = @transform_0, window_bounds = array<i64: 128, 128>}, {transform_indices = @transform_1, window_bounds = array<i64: 128, 128>}, {transform_indices = @transform_2, window_bounds = array<i64: 128, 128>}]} {
    %c0_i32 = arith.constant 0 : i32
    %0 = arith.cmpi eq, %arg2, %c0_i32 : i32
    %1 = arith.extui %0 : i1 to i32
    %c0_i32_0 = arith.constant 0 : i32
    %2 = arith.cmpi ne, %1, %c0_i32_0 : i32
    scf.if %2 {
      %cst_10 = arith.constant 0.000000e+00 : f32
      %12 = vector.broadcast %cst_10 : f32 to vector<128x128xf32>
      %c0_11 = arith.constant 0 : index
      %c0_12 = arith.constant 0 : index
      %13 = vector.load %arg6[%c0_11, %c0_12] : memref<128x128xf32, #tpu.memory_space<vmem>>, vector<128x128xf32>
      tpu.vector_store %arg6[%c0_11, %c0_12], %12 {strides = array<i32>} : memref<128x128xf32, #tpu.memory_space<vmem>>, vector<128x128xf32>,
    } else {
    }
    %c0 = arith.constant 0 : index
    %c0_1 = arith.constant 0 : index
    %3 = vector.load %arg6[%c0, %c0_1] : memref<128x128xf32, #tpu.memory_space<vmem>>, vector<128x128xf32>
    %c0_2 = arith.constant 0 : index
    %c0_3 = arith.constant 0 : index
    %4 = vector.load %arg3[%c0_2, %c0_3] : memref<128x128xbf16, #tpu.memory_space<vmem>>, vector<128x128xbf16>
    %c0_4 = arith.constant 0 : index
    %c0_5 = arith.constant 0 : index
    %5 = vector.load %arg4[%c0_4, %c0_5] : memref<128x128xbf16, #tpu.memory_space<vmem>>, vector<128x128xbf16>
    %cst = arith.constant dense<0.000000e+00> : vector<128x128xf32>
    %6 = tpu.matmul %4, %5, %cst {dimension_numbers = #tpu.dot_dimension_numbers<[1], [0], [0], [1], [0, 0, 1, 1], [], []>} : vector<128x128xbf16>, vector<128x128xbf16>, vector<128x128xf32> -> vector<128x128xf32>
    %7 = arith.addf %3, %6 : vector<128x128xf32>
    %c0_6 = arith.constant 0 : index
    %c0_7 = arith.constant 0 : index
    %8 = vector.load %arg6[%c0_6, %c0_7] : memref<128x128xf32, #tpu.memory_space<vmem>>, vector<128x128xf32>
    tpu.vector_store %arg6[%c0_6, %c0_7], %7 {strides = array<i32>} : memref<128x128xf32, #tpu.memory_space<vmem>>, vector<128x128xf32>,
    %c0_i32_8 = arith.constant 0 : i32
    %9 = arith.cmpi eq, %arg2, %c0_i32_8 : i32
    %10 = arith.extui %9 : i1 to i32
    %c0_i32_9 = arith.constant 0 : i32
    %11 = arith.cmpi ne, %10, %c0_i32_9 : i32
    scf.if %11 {
      %c0_10 = arith.constant 0 : index
      %c0_11 = arith.constant 0 : index
      %12 = vector.load %arg6[%c0_10, %c0_11] : memref<128x128xf32, #tpu.memory_space<vmem>>, vector<128x128xf32>
      %c0_12 = arith.constant 0 : index
      %c0_13 = arith.constant 0 : index
      %13 = vector.load %arg5[%c0_12, %c0_13] : memref<128x128xf32, #tpu.memory_space<vmem>>, vector<128x128xf32>
      tpu.vector_store %arg5[%c0_12, %c0_13], %12 {strides = array<i32>} : memref<128x128xf32, #tpu.memory_space<vmem>>, vector<128x128xf32>,
    } else {
    }
    return
  }
  func.func @transform_0(%arg0: i32, %arg1: i32, %arg2: i32) -> (i32, i32) {
    %c0_i32 = arith.constant 0 : i32
    return %arg0, %arg2 : i32, i32
  }
  func.func @transform_1(%arg0: i32, %arg1: i32, %arg2: i32) -> (i32, i32) {
    %c0_i32 = arith.constant 0 : i32
    return %arg2, %arg1 : i32, i32
  }
  func.func @transform_2(%arg0: i32, %arg1: i32, %arg2: i32) -> (i32, i32) {
    %c0_i32 = arith.constant 0 : i32
    return %arg0, %arg1 : i32, i32
  }
}

module attributes {stable_mosaic.version = 11 : i64} {
  func.func @_affine_act_kernel(%arg0: i32, %arg1: memref<128x128xf32, #tpu.memory_space<vmem>>, %arg2: memref<1x128xf32, #tpu.memory_space<vmem>>, %arg3: memref<1x128xf32, #tpu.memory_space<vmem>>, %arg4: memref<128x128xf32, #tpu.memory_space<vmem>>) attributes {dimension_semantics = [#tpu.dimension_semantics<parallel>], iteration_bounds = array<i64: 1>, scalar_prefetch = 0 : i64, scratch_operands = 0 : i64, tpu.core_type = #tpu.core_type<tc>, window_params = [{transform_indices = @transform_0, window_bounds = array<i64: 128, 128>}, {pipeline_mode = #tpu.pipeline_mode<synchronous>, transform_indices = @transform_1, window_bounds = array<i64: 1, 128>}, {pipeline_mode = #tpu.pipeline_mode<synchronous>, transform_indices = @transform_2, window_bounds = array<i64: 1, 128>}, {transform_indices = @transform_3, window_bounds = array<i64: 128, 128>}]} {
    %c0 = arith.constant 0 : index
    %c0_0 = arith.constant 0 : index
    %0 = vector.load %arg1[%c0, %c0_0] : memref<128x128xf32, #tpu.memory_space<vmem>>, vector<128x128xf32>
    %c0_1 = arith.constant 0 : index
    %c0_2 = arith.constant 0 : index
    %1 = vector.load %arg2[%c0_1, %c0_2] : memref<1x128xf32, #tpu.memory_space<vmem>>, vector<1x128xf32>
    %2 = vector.broadcast %1 : vector<1x128xf32> to vector<128x128xf32>
    %3 = arith.mulf %0, %2 : vector<128x128xf32>
    %c0_3 = arith.constant 0 : index
    %c0_4 = arith.constant 0 : index
    %4 = vector.load %arg3[%c0_3, %c0_4] : memref<1x128xf32, #tpu.memory_space<vmem>>, vector<1x128xf32>
    %5 = vector.broadcast %4 : vector<1x128xf32> to vector<128x128xf32>
    %6 = arith.addf %3, %5 : vector<128x128xf32>
    %c0_5 = arith.constant 0 : index
    %c0_6 = arith.constant 0 : index
    %7 = vector.load %arg4[%c0_5, %c0_6] : memref<128x128xf32, #tpu.memory_space<vmem>>, vector<128x128xf32>
    tpu.vector_store %arg4[%c0_5, %c0_6], %6 {strides = array<i32>} : memref<128x128xf32, #tpu.memory_space<vmem>>, vector<128x128xf32>,
    return
  }
  func.func @transform_0(%arg0: i32) -> (i32, i32) {
    %c0_i32 = arith.constant 0 : i32
    %c0_i32_0 = arith.constant 0 : i32
    return %arg0, %c0_i32 : i32, i32
  }
  func.func @transform_1(%arg0: i32) -> (i32, i32) {
    %c0_i32 = arith.constant 0 : i32
    %c0_i32_0 = arith.constant 0 : i32
    %c0_i32_1 = arith.constant 0 : i32
    return %c0_i32, %c0_i32_0 : i32, i32
  }
  func.func @transform_2(%arg0: i32) -> (i32, i32) {
    %c0_i32 = arith.constant 0 : i32
    %c0_i32_0 = arith.constant 0 : i32
    %c0_i32_1 = arith.constant 0 : i32
    return %c0_i32, %c0_i32_0 : i32, i32
  }
  func.func @transform_3(%arg0: i32) -> (i32, i32) {
    %c0_i32 = arith.constant 0 : i32
    %c0_i32_0 = arith.constant 0 : i32
    return %arg0, %c0_i32 : i32, i32
  }
}

module attributes {stable_mosaic.version = 11 : i64} {
  func.func @_matmul_kernel(%arg0: i32, %arg1: i32, %arg2: i32, %arg3: memref<128x256xbf16, #tpu.memory_space<vmem>>, %arg4: memref<256x128xbf16, #tpu.memory_space<vmem>>, %arg5: memref<128x128xf32, #tpu.memory_space<vmem>>, %arg6: memref<128x128xf32, #tpu.memory_space<vmem>>) attributes {dimension_semantics = [#tpu.dimension_semantics<parallel>, #tpu.dimension_semantics<parallel>, #tpu.dimension_semantics<arbitrary>], iteration_bounds = array<i64: 1, 1, 1>, scalar_prefetch = 0 : i64, scratch_operands = 1 : i64, tpu.core_type = #tpu.core_type<tc>, window_params = [{transform_indices = @transform_0, window_bounds = array<i64: 128, 256>}, {transform_indices = @transform_1, window_bounds = array<i64: 256, 128>}, {transform_indices = @transform_2, window_bounds = array<i64: 128, 128>}]} {
    %c0_i32 = arith.constant 0 : i32
    %0 = arith.cmpi eq, %arg2, %c0_i32 : i32
    %1 = arith.extui %0 : i1 to i32
    %c0_i32_0 = arith.constant 0 : i32
    %2 = arith.cmpi ne, %1, %c0_i32_0 : i32
    scf.if %2 {
      %cst_10 = arith.constant 0.000000e+00 : f32
      %12 = vector.broadcast %cst_10 : f32 to vector<128x128xf32>
      %c0_11 = arith.constant 0 : index
      %c0_12 = arith.constant 0 : index
      %13 = vector.load %arg6[%c0_11, %c0_12] : memref<128x128xf32, #tpu.memory_space<vmem>>, vector<128x128xf32>
      tpu.vector_store %arg6[%c0_11, %c0_12], %12 {strides = array<i32>} : memref<128x128xf32, #tpu.memory_space<vmem>>, vector<128x128xf32>,
    } else {
    }
    %c0 = arith.constant 0 : index
    %c0_1 = arith.constant 0 : index
    %3 = vector.load %arg6[%c0, %c0_1] : memref<128x128xf32, #tpu.memory_space<vmem>>, vector<128x128xf32>
    %c0_2 = arith.constant 0 : index
    %c0_3 = arith.constant 0 : index
    %4 = vector.load %arg3[%c0_2, %c0_3] : memref<128x256xbf16, #tpu.memory_space<vmem>>, vector<128x256xbf16>
    %c0_4 = arith.constant 0 : index
    %c0_5 = arith.constant 0 : index
    %5 = vector.load %arg4[%c0_4, %c0_5] : memref<256x128xbf16, #tpu.memory_space<vmem>>, vector<256x128xbf16>
    %cst = arith.constant dense<0.000000e+00> : vector<128x128xf32>
    %6 = tpu.matmul %4, %5, %cst {dimension_numbers = #tpu.dot_dimension_numbers<[1], [0], [0], [1], [0, 0, 1, 1], [], []>} : vector<128x256xbf16>, vector<256x128xbf16>, vector<128x128xf32> -> vector<128x128xf32>
    %7 = arith.addf %3, %6 : vector<128x128xf32>
    %c0_6 = arith.constant 0 : index
    %c0_7 = arith.constant 0 : index
    %8 = vector.load %arg6[%c0_6, %c0_7] : memref<128x128xf32, #tpu.memory_space<vmem>>, vector<128x128xf32>
    tpu.vector_store %arg6[%c0_6, %c0_7], %7 {strides = array<i32>} : memref<128x128xf32, #tpu.memory_space<vmem>>, vector<128x128xf32>,
    %c0_i32_8 = arith.constant 0 : i32
    %9 = arith.cmpi eq, %arg2, %c0_i32_8 : i32
    %10 = arith.extui %9 : i1 to i32
    %c0_i32_9 = arith.constant 0 : i32
    %11 = arith.cmpi ne, %10, %c0_i32_9 : i32
    scf.if %11 {
      %c0_10 = arith.constant 0 : index
      %c0_11 = arith.constant 0 : index
      %12 = vector.load %arg6[%c0_10, %c0_11] : memref<128x128xf32, #tpu.memory_space<vmem>>, vector<128x128xf32>
      %c0_12 = arith.constant 0 : index
      %c0_13 = arith.constant 0 : index
      %13 = vector.load %arg5[%c0_12, %c0_13] : memref<128x128xf32, #tpu.memory_space<vmem>>, vector<128x128xf32>
      tpu.vector_store %arg5[%c0_12, %c0_13], %12 {strides = array<i32>} : memref<128x128xf32, #tpu.memory_space<vmem>>, vector<128x128xf32>,
    } else {
    }
    return
  }
  func.func @transform_0(%arg0: i32, %arg1: i32, %arg2: i32) -> (i32, i32) {
    %c0_i32 = arith.constant 0 : i32
    return %arg0, %arg2 : i32, i32
  }
  func.func @transform_1(%arg0: i32, %arg1: i32, %arg2: i32) -> (i32, i32) {
    %c0_i32 = arith.constant 0 : i32
    return %arg2, %arg1 : i32, i32
  }
  func.func @transform_2(%arg0: i32, %arg1: i32, %arg2: i32) -> (i32, i32) {
    %c0_i32 = arith.constant 0 : i32
    return %arg0, %arg1 : i32, i32
  }
}

module attributes {stable_mosaic.version = 11 : i64} {
  func.func @_affine_act_kernel(%arg0: i32, %arg1: memref<16x128xf32, #tpu.memory_space<vmem>>, %arg2: memref<1x128xf32, #tpu.memory_space<vmem>>, %arg3: memref<1x128xf32, #tpu.memory_space<vmem>>, %arg4: memref<16x128xf32, #tpu.memory_space<vmem>>) attributes {dimension_semantics = [#tpu.dimension_semantics<parallel>], iteration_bounds = array<i64: 1>, scalar_prefetch = 0 : i64, scratch_operands = 0 : i64, tpu.core_type = #tpu.core_type<tc>, window_params = [{transform_indices = @transform_0, window_bounds = array<i64: 16, 128>}, {pipeline_mode = #tpu.pipeline_mode<synchronous>, transform_indices = @transform_1, window_bounds = array<i64: 1, 128>}, {pipeline_mode = #tpu.pipeline_mode<synchronous>, transform_indices = @transform_2, window_bounds = array<i64: 1, 128>}, {transform_indices = @transform_3, window_bounds = array<i64: 16, 128>}]} {
    %c0 = arith.constant 0 : index
    %c0_0 = arith.constant 0 : index
    %0 = vector.load %arg1[%c0, %c0_0] : memref<16x128xf32, #tpu.memory_space<vmem>>, vector<16x128xf32>
    %c0_1 = arith.constant 0 : index
    %c0_2 = arith.constant 0 : index
    %1 = vector.load %arg2[%c0_1, %c0_2] : memref<1x128xf32, #tpu.memory_space<vmem>>, vector<1x128xf32>
    %2 = vector.broadcast %1 : vector<1x128xf32> to vector<16x128xf32>
    %3 = arith.mulf %0, %2 : vector<16x128xf32>
    %c0_3 = arith.constant 0 : index
    %c0_4 = arith.constant 0 : index
    %4 = vector.load %arg3[%c0_3, %c0_4] : memref<1x128xf32, #tpu.memory_space<vmem>>, vector<1x128xf32>
    %5 = vector.broadcast %4 : vector<1x128xf32> to vector<16x128xf32>
    %6 = arith.addf %3, %5 : vector<16x128xf32>
    %cst = arith.constant 0.000000e+00 : f32
    %7 = vector.broadcast %cst : f32 to vector<16x128xf32>
    %8 = arith.cmpf oge, %6, %7 : vector<16x128xf32>
    %cst_5 = arith.constant 2.000000e-01 : f32
    %9 = vector.broadcast %cst_5 : f32 to vector<16x128xf32>
    %10 = arith.mulf %9, %6 : vector<16x128xf32>
    %11 = arith.select %8, %6, %10 : vector<16x128xi1>, vector<16x128xf32>
    %c0_6 = arith.constant 0 : index
    %c0_7 = arith.constant 0 : index
    %12 = vector.load %arg4[%c0_6, %c0_7] : memref<16x128xf32, #tpu.memory_space<vmem>>, vector<16x128xf32>
    tpu.vector_store %arg4[%c0_6, %c0_7], %11 {strides = array<i32>} : memref<16x128xf32, #tpu.memory_space<vmem>>, vector<16x128xf32>,
    return
  }
  func.func @transform_0(%arg0: i32) -> (i32, i32) {
    %c0_i32 = arith.constant 0 : i32
    %c0_i32_0 = arith.constant 0 : i32
    return %arg0, %c0_i32 : i32, i32
  }
  func.func @transform_1(%arg0: i32) -> (i32, i32) {
    %c0_i32 = arith.constant 0 : i32
    %c0_i32_0 = arith.constant 0 : i32
    %c0_i32_1 = arith.constant 0 : i32
    return %c0_i32, %c0_i32_0 : i32, i32
  }
  func.func @transform_2(%arg0: i32) -> (i32, i32) {
    %c0_i32 = arith.constant 0 : i32
    %c0_i32_0 = arith.constant 0 : i32
    %c0_i32_1 = arith.constant 0 : i32
    return %c0_i32, %c0_i32_0 : i32, i32
  }
  func.func @transform_3(%arg0: i32) -> (i32, i32) {
    %c0_i32 = arith.constant 0 : i32
    %c0_i32_0 = arith.constant 0 : i32
    return %arg0, %c0_i32 : i32, i32
  }
}

module attributes {stable_mosaic.version = 11 : i64} {
  func.func @_affine_add_act_kernel(%arg0: i32, %arg1: memref<128x128xf32, #tpu.memory_space<vmem>>, %arg2: memref<1x128xf32, #tpu.memory_space<vmem>>, %arg3: memref<1x128xf32, #tpu.memory_space<vmem>>, %arg4: memref<128x128xf32, #tpu.memory_space<vmem>>, %arg5: memref<128x128xf32, #tpu.memory_space<vmem>>) attributes {dimension_semantics = [#tpu.dimension_semantics<parallel>], iteration_bounds = array<i64: 1>, scalar_prefetch = 0 : i64, scratch_operands = 0 : i64, tpu.core_type = #tpu.core_type<tc>, window_params = [{transform_indices = @transform_0, window_bounds = array<i64: 128, 128>}, {pipeline_mode = #tpu.pipeline_mode<synchronous>, transform_indices = @transform_1, window_bounds = array<i64: 1, 128>}, {pipeline_mode = #tpu.pipeline_mode<synchronous>, transform_indices = @transform_2, window_bounds = array<i64: 1, 128>}, {transform_indices = @transform_3, window_bounds = array<i64: 128, 128>}, {transform_indices = @transform_4, window_bounds = array<i64: 128, 128>}]} {
    %c0 = arith.constant 0 : index
    %c0_0 = arith.constant 0 : index
    %0 = vector.load %arg1[%c0, %c0_0] : memref<128x128xf32, #tpu.memory_space<vmem>>, vector<128x128xf32>
    %c0_1 = arith.constant 0 : index
    %c0_2 = arith.constant 0 : index
    %1 = vector.load %arg2[%c0_1, %c0_2] : memref<1x128xf32, #tpu.memory_space<vmem>>, vector<1x128xf32>
    %2 = vector.broadcast %1 : vector<1x128xf32> to vector<128x128xf32>
    %3 = arith.mulf %0, %2 : vector<128x128xf32>
    %c0_3 = arith.constant 0 : index
    %c0_4 = arith.constant 0 : index
    %4 = vector.load %arg3[%c0_3, %c0_4] : memref<1x128xf32, #tpu.memory_space<vmem>>, vector<1x128xf32>
    %5 = vector.broadcast %4 : vector<1x128xf32> to vector<128x128xf32>
    %6 = arith.addf %3, %5 : vector<128x128xf32>
    %c0_5 = arith.constant 0 : index
    %c0_6 = arith.constant 0 : index
    %7 = vector.load %arg4[%c0_5, %c0_6] : memref<128x128xf32, #tpu.memory_space<vmem>>, vector<128x128xf32>
    %8 = arith.addf %6, %7 : vector<128x128xf32>
    %cst = arith.constant 0.000000e+00 : f32
    %9 = vector.broadcast %cst : f32 to vector<128x128xf32>
    %10 = arith.cmpf oge, %8, %9 : vector<128x128xf32>
    %cst_7 = arith.constant 2.000000e-01 : f32
    %11 = vector.broadcast %cst_7 : f32 to vector<128x128xf32>
    %12 = arith.mulf %11, %8 : vector<128x128xf32>
    %13 = arith.select %10, %8, %12 : vector<128x128xi1>, vector<128x128xf32>
    %c0_8 = arith.constant 0 : index
    %c0_9 = arith.constant 0 : index
    %14 = vector.load %arg5[%c0_8, %c0_9] : memref<128x128xf32, #tpu.memory_space<vmem>>, vector<128x128xf32>
    tpu.vector_store %arg5[%c0_8, %c0_9], %13 {strides = array<i32>} : memref<128x128xf32, #tpu.memory_space<vmem>>, vector<128x128xf32>,
    return
  }
  func.func @transform_0(%arg0: i32) -> (i32, i32) {
    %c0_i32 = arith.constant 0 : i32
    %c0_i32_0 = arith.constant 0 : i32
    return %arg0, %c0_i32 : i32, i32
  }
  func.func @transform_1(%arg0: i32) -> (i32, i32) {
    %c0_i32 = arith.constant 0 : i32
    %c0_i32_0 = arith.constant 0 : i32
    %c0_i32_1 = arith.constant 0 : i32
    return %c0_i32, %c0_i32_0 : i32, i32
  }
  func.func @transform_2(%arg0: i32) -> (i32, i32) {
    %c0_i32 = arith.constant 0 : i32
    %c0_i32_0 = arith.constant 0 : i32
    %c0_i32_1 = arith.constant 0 : i32
    return %c0_i32, %c0_i32_0 : i32, i32
  }
  func.func @transform_3(%arg0: i32) -> (i32, i32) {
    %c0_i32 = arith.constant 0 : i32
    %c0_i32_0 = arith.constant 0 : i32
    return %arg0, %c0_i32 : i32, i32
  }
  func.func @transform_4(%arg0: i32) -> (i32, i32) {
    %c0_i32 = arith.constant 0 : i32
    %c0_i32_0 = arith.constant 0 : i32
    return %arg0, %c0_i32 : i32, i32
  }
}

module attributes {stable_mosaic.version = 11 : i64} {
  func.func @_matmul_kernel(%arg0: i32, %arg1: i32, %arg2: i32, %arg3: memref<32x128xbf16, #tpu.memory_space<vmem>>, %arg4: memref<128x128xbf16, #tpu.memory_space<vmem>>, %arg5: memref<32x128xf32, #tpu.memory_space<vmem>>, %arg6: memref<32x128xf32, #tpu.memory_space<vmem>>) attributes {dimension_semantics = [#tpu.dimension_semantics<parallel>, #tpu.dimension_semantics<parallel>, #tpu.dimension_semantics<arbitrary>], iteration_bounds = array<i64: 1, 1, 1>, scalar_prefetch = 0 : i64, scratch_operands = 1 : i64, tpu.core_type = #tpu.core_type<tc>, window_params = [{transform_indices = @transform_0, window_bounds = array<i64: 32, 128>}, {transform_indices = @transform_1, window_bounds = array<i64: 128, 128>}, {transform_indices = @transform_2, window_bounds = array<i64: 32, 128>}]} {
    %c0_i32 = arith.constant 0 : i32
    %0 = arith.cmpi eq, %arg2, %c0_i32 : i32
    %1 = arith.extui %0 : i1 to i32
    %c0_i32_0 = arith.constant 0 : i32
    %2 = arith.cmpi ne, %1, %c0_i32_0 : i32
    scf.if %2 {
      %cst_10 = arith.constant 0.000000e+00 : f32
      %12 = vector.broadcast %cst_10 : f32 to vector<32x128xf32>
      %c0_11 = arith.constant 0 : index
      %c0_12 = arith.constant 0 : index
      %13 = vector.load %arg6[%c0_11, %c0_12] : memref<32x128xf32, #tpu.memory_space<vmem>>, vector<32x128xf32>
      tpu.vector_store %arg6[%c0_11, %c0_12], %12 {strides = array<i32>} : memref<32x128xf32, #tpu.memory_space<vmem>>, vector<32x128xf32>,
    } else {
    }
    %c0 = arith.constant 0 : index
    %c0_1 = arith.constant 0 : index
    %3 = vector.load %arg6[%c0, %c0_1] : memref<32x128xf32, #tpu.memory_space<vmem>>, vector<32x128xf32>
    %c0_2 = arith.constant 0 : index
    %c0_3 = arith.constant 0 : index
    %4 = vector.load %arg3[%c0_2, %c0_3] : memref<32x128xbf16, #tpu.memory_space<vmem>>, vector<32x128xbf16>
    %c0_4 = arith.constant 0 : index
    %c0_5 = arith.constant 0 : index
    %5 = vector.load %arg4[%c0_4, %c0_5] : memref<128x128xbf16, #tpu.memory_space<vmem>>, vector<128x128xbf16>
    %cst = arith.constant dense<0.000000e+00> : vector<32x128xf32>
    %6 = tpu.matmul %4, %5, %cst {dimension_numbers = #tpu.dot_dimension_numbers<[1], [0], [0], [1], [0, 0, 1, 1], [], []>} : vector<32x128xbf16>, vector<128x128xbf16>, vector<32x128xf32> -> vector<32x128xf32>
    %7 = arith.addf %3, %6 : vector<32x128xf32>
    %c0_6 = arith.constant 0 : index
    %c0_7 = arith.constant 0 : index
    %8 = vector.load %arg6[%c0_6, %c0_7] : memref<32x128xf32, #tpu.memory_space<vmem>>, vector<32x128xf32>
    tpu.vector_store %arg6[%c0_6, %c0_7], %7 {strides = array<i32>} : memref<32x128xf32, #tpu.memory_space<vmem>>, vector<32x128xf32>,
    %c0_i32_8 = arith.constant 0 : i32
    %9 = arith.cmpi eq, %arg2, %c0_i32_8 : i32
    %10 = arith.extui %9 : i1 to i32
    %c0_i32_9 = arith.constant 0 : i32
    %11 = arith.cmpi ne, %10, %c0_i32_9 : i32
    scf.if %11 {
      %c0_10 = arith.constant 0 : index
      %c0_11 = arith.constant 0 : index
      %12 = vector.load %arg6[%c0_10, %c0_11] : memref<32x128xf32, #tpu.memory_space<vmem>>, vector<32x128xf32>
      %c0_12 = arith.constant 0 : index
      %c0_13 = arith.constant 0 : index
      %13 = vector.load %arg5[%c0_12, %c0_13] : memref<32x128xf32, #tpu.memory_space<vmem>>, vector<32x128xf32>
      tpu.vector_store %arg5[%c0_12, %c0_13], %12 {strides = array<i32>} : memref<32x128xf32, #tpu.memory_space<vmem>>, vector<32x128xf32>,
    } else {
    }
    return
  }
  func.func @transform_0(%arg0: i32, %arg1: i32, %arg2: i32) -> (i32, i32) {
    %c0_i32 = arith.constant 0 : i32
    return %arg0, %arg2 : i32, i32
  }
  func.func @transform_1(%arg0: i32, %arg1: i32, %arg2: i32) -> (i32, i32) {
    %c0_i32 = arith.constant 0 : i32
    return %arg2, %arg1 : i32, i32
  }
  func.func @transform_2(%arg0: i32, %arg1: i32, %arg2: i32) -> (i32, i32) {
    %c0_i32 = arith.constant 0 : i32
    return %arg0, %arg1 : i32, i32
  }
}

module attributes {stable_mosaic.version = 11 : i64} {
  func.func @_matmul_kernel(%arg0: i32, %arg1: i32, %arg2: i32, %arg3: memref<32x128xbf16, #tpu.memory_space<vmem>>, %arg4: memref<128x256xbf16, #tpu.memory_space<vmem>>, %arg5: memref<32x256xf32, #tpu.memory_space<vmem>>, %arg6: memref<32x256xf32, #tpu.memory_space<vmem>>) attributes {dimension_semantics = [#tpu.dimension_semantics<parallel>, #tpu.dimension_semantics<parallel>, #tpu.dimension_semantics<arbitrary>], iteration_bounds = array<i64: 1, 1, 1>, scalar_prefetch = 0 : i64, scratch_operands = 1 : i64, tpu.core_type = #tpu.core_type<tc>, window_params = [{transform_indices = @transform_0, window_bounds = array<i64: 32, 128>}, {transform_indices = @transform_1, window_bounds = array<i64: 128, 256>}, {transform_indices = @transform_2, window_bounds = array<i64: 32, 256>}]} {
    %c0_i32 = arith.constant 0 : i32
    %0 = arith.cmpi eq, %arg2, %c0_i32 : i32
    %1 = arith.extui %0 : i1 to i32
    %c0_i32_0 = arith.constant 0 : i32
    %2 = arith.cmpi ne, %1, %c0_i32_0 : i32
    scf.if %2 {
      %cst_10 = arith.constant 0.000000e+00 : f32
      %12 = vector.broadcast %cst_10 : f32 to vector<32x256xf32>
      %c0_11 = arith.constant 0 : index
      %c0_12 = arith.constant 0 : index
      %13 = vector.load %arg6[%c0_11, %c0_12] : memref<32x256xf32, #tpu.memory_space<vmem>>, vector<32x256xf32>
      tpu.vector_store %arg6[%c0_11, %c0_12], %12 {strides = array<i32>} : memref<32x256xf32, #tpu.memory_space<vmem>>, vector<32x256xf32>,
    } else {
    }
    %c0 = arith.constant 0 : index
    %c0_1 = arith.constant 0 : index
    %3 = vector.load %arg6[%c0, %c0_1] : memref<32x256xf32, #tpu.memory_space<vmem>>, vector<32x256xf32>
    %c0_2 = arith.constant 0 : index
    %c0_3 = arith.constant 0 : index
    %4 = vector.load %arg3[%c0_2, %c0_3] : memref<32x128xbf16, #tpu.memory_space<vmem>>, vector<32x128xbf16>
    %c0_4 = arith.constant 0 : index
    %c0_5 = arith.constant 0 : index
    %5 = vector.load %arg4[%c0_4, %c0_5] : memref<128x256xbf16, #tpu.memory_space<vmem>>, vector<128x256xbf16>
    %cst = arith.constant dense<0.000000e+00> : vector<32x256xf32>
    %6 = tpu.matmul %4, %5, %cst {dimension_numbers = #tpu.dot_dimension_numbers<[1], [0], [0], [1], [0, 0, 1, 1], [], []>} : vector<32x128xbf16>, vector<128x256xbf16>, vector<32x256xf32> -> vector<32x256xf32>
    %7 = arith.addf %3, %6 : vector<32x256xf32>
    %c0_6 = arith.constant 0 : index
    %c0_7 = arith.constant 0 : index
    %8 = vector.load %arg6[%c0_6, %c0_7] : memref<32x256xf32, #tpu.memory_space<vmem>>, vector<32x256xf32>
    tpu.vector_store %arg6[%c0_6, %c0_7], %7 {strides = array<i32>} : memref<32x256xf32, #tpu.memory_space<vmem>>, vector<32x256xf32>,
    %c0_i32_8 = arith.constant 0 : i32
    %9 = arith.cmpi eq, %arg2, %c0_i32_8 : i32
    %10 = arith.extui %9 : i1 to i32
    %c0_i32_9 = arith.constant 0 : i32
    %11 = arith.cmpi ne, %10, %c0_i32_9 : i32
    scf.if %11 {
      %c0_10 = arith.constant 0 : index
      %c0_11 = arith.constant 0 : index
      %12 = vector.load %arg6[%c0_10, %c0_11] : memref<32x256xf32, #tpu.memory_space<vmem>>, vector<32x256xf32>
      %c0_12 = arith.constant 0 : index
      %c0_13 = arith.constant 0 : index
      %13 = vector.load %arg5[%c0_12, %c0_13] : memref<32x256xf32, #tpu.memory_space<vmem>>, vector<32x256xf32>
      tpu.vector_store %arg5[%c0_12, %c0_13], %12 {strides = array<i32>} : memref<32x256xf32, #tpu.memory_space<vmem>>, vector<32x256xf32>,
    } else {
    }
    return
  }
  func.func @transform_0(%arg0: i32, %arg1: i32, %arg2: i32) -> (i32, i32) {
    %c0_i32 = arith.constant 0 : i32
    return %arg0, %arg2 : i32, i32
  }
  func.func @transform_1(%arg0: i32, %arg1: i32, %arg2: i32) -> (i32, i32) {
    %c0_i32 = arith.constant 0 : i32
    return %arg2, %arg1 : i32, i32
  }
  func.func @transform_2(%arg0: i32, %arg1: i32, %arg2: i32) -> (i32, i32) {
    %c0_i32 = arith.constant 0 : i32
    return %arg0, %arg1 : i32, i32
  }
}

module attributes {stable_mosaic.version = 11 : i64} {
  func.func @_affine_act_kernel(%arg0: i32, %arg1: memref<32x256xf32, #tpu.memory_space<vmem>>, %arg2: memref<1x256xf32, #tpu.memory_space<vmem>>, %arg3: memref<1x256xf32, #tpu.memory_space<vmem>>, %arg4: memref<32x256xf32, #tpu.memory_space<vmem>>) attributes {dimension_semantics = [#tpu.dimension_semantics<parallel>], iteration_bounds = array<i64: 1>, scalar_prefetch = 0 : i64, scratch_operands = 0 : i64, tpu.core_type = #tpu.core_type<tc>, window_params = [{transform_indices = @transform_0, window_bounds = array<i64: 32, 256>}, {pipeline_mode = #tpu.pipeline_mode<synchronous>, transform_indices = @transform_1, window_bounds = array<i64: 1, 256>}, {pipeline_mode = #tpu.pipeline_mode<synchronous>, transform_indices = @transform_2, window_bounds = array<i64: 1, 256>}, {transform_indices = @transform_3, window_bounds = array<i64: 32, 256>}]} {
    %c0 = arith.constant 0 : index
    %c0_0 = arith.constant 0 : index
    %0 = vector.load %arg1[%c0, %c0_0] : memref<32x256xf32, #tpu.memory_space<vmem>>, vector<32x256xf32>
    %c0_1 = arith.constant 0 : index
    %c0_2 = arith.constant 0 : index
    %1 = vector.load %arg2[%c0_1, %c0_2] : memref<1x256xf32, #tpu.memory_space<vmem>>, vector<1x256xf32>
    %2 = vector.broadcast %1 : vector<1x256xf32> to vector<32x256xf32>
    %3 = arith.mulf %0, %2 : vector<32x256xf32>
    %c0_3 = arith.constant 0 : index
    %c0_4 = arith.constant 0 : index
    %4 = vector.load %arg3[%c0_3, %c0_4] : memref<1x256xf32, #tpu.memory_space<vmem>>, vector<1x256xf32>
    %5 = vector.broadcast %4 : vector<1x256xf32> to vector<32x256xf32>
    %6 = arith.addf %3, %5 : vector<32x256xf32>
    %c0_5 = arith.constant 0 : index
    %c0_6 = arith.constant 0 : index
    %7 = vector.load %arg4[%c0_5, %c0_6] : memref<32x256xf32, #tpu.memory_space<vmem>>, vector<32x256xf32>
    tpu.vector_store %arg4[%c0_5, %c0_6], %6 {strides = array<i32>} : memref<32x256xf32, #tpu.memory_space<vmem>>, vector<32x256xf32>,
    return
  }
  func.func @transform_0(%arg0: i32) -> (i32, i32) {
    %c0_i32 = arith.constant 0 : i32
    %c0_i32_0 = arith.constant 0 : i32
    return %arg0, %c0_i32 : i32, i32
  }
  func.func @transform_1(%arg0: i32) -> (i32, i32) {
    %c0_i32 = arith.constant 0 : i32
    %c0_i32_0 = arith.constant 0 : i32
    %c0_i32_1 = arith.constant 0 : i32
    return %c0_i32, %c0_i32_0 : i32, i32
  }
  func.func @transform_2(%arg0: i32) -> (i32, i32) {
    %c0_i32 = arith.constant 0 : i32
    %c0_i32_0 = arith.constant 0 : i32
    %c0_i32_1 = arith.constant 0 : i32
    return %c0_i32, %c0_i32_0 : i32, i32
  }
  func.func @transform_3(%arg0: i32) -> (i32, i32) {
    %c0_i32 = arith.constant 0 : i32
    %c0_i32_0 = arith.constant 0 : i32
    return %arg0, %c0_i32 : i32, i32
  }
}

module attributes {stable_mosaic.version = 11 : i64} {
  func.func @_matmul_kernel(%arg0: i32, %arg1: i32, %arg2: i32, %arg3: memref<32x384xbf16, #tpu.memory_space<vmem>>, %arg4: memref<384x128xbf16, #tpu.memory_space<vmem>>, %arg5: memref<32x128xf32, #tpu.memory_space<vmem>>, %arg6: memref<32x128xf32, #tpu.memory_space<vmem>>) attributes {dimension_semantics = [#tpu.dimension_semantics<parallel>, #tpu.dimension_semantics<parallel>, #tpu.dimension_semantics<arbitrary>], iteration_bounds = array<i64: 1, 1, 1>, scalar_prefetch = 0 : i64, scratch_operands = 1 : i64, tpu.core_type = #tpu.core_type<tc>, window_params = [{transform_indices = @transform_0, window_bounds = array<i64: 32, 384>}, {transform_indices = @transform_1, window_bounds = array<i64: 384, 128>}, {transform_indices = @transform_2, window_bounds = array<i64: 32, 128>}]} {
    %c0_i32 = arith.constant 0 : i32
    %0 = arith.cmpi eq, %arg2, %c0_i32 : i32
    %1 = arith.extui %0 : i1 to i32
    %c0_i32_0 = arith.constant 0 : i32
    %2 = arith.cmpi ne, %1, %c0_i32_0 : i32
    scf.if %2 {
      %cst_10 = arith.constant 0.000000e+00 : f32
      %12 = vector.broadcast %cst_10 : f32 to vector<32x128xf32>
      %c0_11 = arith.constant 0 : index
      %c0_12 = arith.constant 0 : index
      %13 = vector.load %arg6[%c0_11, %c0_12] : memref<32x128xf32, #tpu.memory_space<vmem>>, vector<32x128xf32>
      tpu.vector_store %arg6[%c0_11, %c0_12], %12 {strides = array<i32>} : memref<32x128xf32, #tpu.memory_space<vmem>>, vector<32x128xf32>,
    } else {
    }
    %c0 = arith.constant 0 : index
    %c0_1 = arith.constant 0 : index
    %3 = vector.load %arg6[%c0, %c0_1] : memref<32x128xf32, #tpu.memory_space<vmem>>, vector<32x128xf32>
    %c0_2 = arith.constant 0 : index
    %c0_3 = arith.constant 0 : index
    %4 = vector.load %arg3[%c0_2, %c0_3] : memref<32x384xbf16, #tpu.memory_space<vmem>>, vector<32x384xbf16>
    %c0_4 = arith.constant 0 : index
    %c0_5 = arith.constant 0 : index
    %5 = vector.load %arg4[%c0_4, %c0_5] : memref<384x128xbf16, #tpu.memory_space<vmem>>, vector<384x128xbf16>
    %cst = arith.constant dense<0.000000e+00> : vector<32x128xf32>
    %6 = tpu.matmul %4, %5, %cst {dimension_numbers = #tpu.dot_dimension_numbers<[1], [0], [0], [1], [0, 0, 1, 1], [], []>} : vector<32x384xbf16>, vector<384x128xbf16>, vector<32x128xf32> -> vector<32x128xf32>
    %7 = arith.addf %3, %6 : vector<32x128xf32>
    %c0_6 = arith.constant 0 : index
    %c0_7 = arith.constant 0 : index
    %8 = vector.load %arg6[%c0_6, %c0_7] : memref<32x128xf32, #tpu.memory_space<vmem>>, vector<32x128xf32>
    tpu.vector_store %arg6[%c0_6, %c0_7], %7 {strides = array<i32>} : memref<32x128xf32, #tpu.memory_space<vmem>>, vector<32x128xf32>,
    %c0_i32_8 = arith.constant 0 : i32
    %9 = arith.cmpi eq, %arg2, %c0_i32_8 : i32
    %10 = arith.extui %9 : i1 to i32
    %c0_i32_9 = arith.constant 0 : i32
    %11 = arith.cmpi ne, %10, %c0_i32_9 : i32
    scf.if %11 {
      %c0_10 = arith.constant 0 : index
      %c0_11 = arith.constant 0 : index
      %12 = vector.load %arg6[%c0_10, %c0_11] : memref<32x128xf32, #tpu.memory_space<vmem>>, vector<32x128xf32>
      %c0_12 = arith.constant 0 : index
      %c0_13 = arith.constant 0 : index
      %13 = vector.load %arg5[%c0_12, %c0_13] : memref<32x128xf32, #tpu.memory_space<vmem>>, vector<32x128xf32>
      tpu.vector_store %arg5[%c0_12, %c0_13], %12 {strides = array<i32>} : memref<32x128xf32, #tpu.memory_space<vmem>>, vector<32x128xf32>,
    } else {
    }
    return
  }
  func.func @transform_0(%arg0: i32, %arg1: i32, %arg2: i32) -> (i32, i32) {
    %c0_i32 = arith.constant 0 : i32
    return %arg0, %arg2 : i32, i32
  }
  func.func @transform_1(%arg0: i32, %arg1: i32, %arg2: i32) -> (i32, i32) {
    %c0_i32 = arith.constant 0 : i32
    return %arg2, %arg1 : i32, i32
  }
  func.func @transform_2(%arg0: i32, %arg1: i32, %arg2: i32) -> (i32, i32) {
    %c0_i32 = arith.constant 0 : i32
    return %arg0, %arg1 : i32, i32
  }
}

module attributes {stable_mosaic.version = 11 : i64} {
  func.func @_affine_act_kernel(%arg0: i32, %arg1: memref<8x128xf32, #tpu.memory_space<vmem>>, %arg2: memref<1x128xf32, #tpu.memory_space<vmem>>, %arg3: memref<1x128xf32, #tpu.memory_space<vmem>>, %arg4: memref<8x128xf32, #tpu.memory_space<vmem>>) attributes {dimension_semantics = [#tpu.dimension_semantics<parallel>], iteration_bounds = array<i64: 1>, scalar_prefetch = 0 : i64, scratch_operands = 0 : i64, tpu.core_type = #tpu.core_type<tc>, window_params = [{transform_indices = @transform_0, window_bounds = array<i64: 8, 128>}, {pipeline_mode = #tpu.pipeline_mode<synchronous>, transform_indices = @transform_1, window_bounds = array<i64: 1, 128>}, {pipeline_mode = #tpu.pipeline_mode<synchronous>, transform_indices = @transform_2, window_bounds = array<i64: 1, 128>}, {transform_indices = @transform_3, window_bounds = array<i64: 8, 128>}]} {
    %c0 = arith.constant 0 : index
    %c0_0 = arith.constant 0 : index
    %0 = vector.load %arg1[%c0, %c0_0] : memref<8x128xf32, #tpu.memory_space<vmem>>, vector<8x128xf32>
    %c0_1 = arith.constant 0 : index
    %c0_2 = arith.constant 0 : index
    %1 = vector.load %arg2[%c0_1, %c0_2] : memref<1x128xf32, #tpu.memory_space<vmem>>, vector<1x128xf32>
    %2 = vector.broadcast %1 : vector<1x128xf32> to vector<8x128xf32>
    %3 = arith.mulf %0, %2 : vector<8x128xf32>
    %c0_3 = arith.constant 0 : index
    %c0_4 = arith.constant 0 : index
    %4 = vector.load %arg3[%c0_3, %c0_4] : memref<1x128xf32, #tpu.memory_space<vmem>>, vector<1x128xf32>
    %5 = vector.broadcast %4 : vector<1x128xf32> to vector<8x128xf32>
    %6 = arith.addf %3, %5 : vector<8x128xf32>
    %cst = arith.constant 0.000000e+00 : f32
    %7 = vector.broadcast %cst : f32 to vector<8x128xf32>
    %8 = arith.cmpf oge, %6, %7 : vector<8x128xf32>
    %cst_5 = arith.constant 2.000000e-01 : f32
    %9 = vector.broadcast %cst_5 : f32 to vector<8x128xf32>
    %10 = arith.mulf %9, %6 : vector<8x128xf32>
    %11 = arith.select %8, %6, %10 : vector<8x128xi1>, vector<8x128xf32>
    %c0_6 = arith.constant 0 : index
    %c0_7 = arith.constant 0 : index
    %12 = vector.load %arg4[%c0_6, %c0_7] : memref<8x128xf32, #tpu.memory_space<vmem>>, vector<8x128xf32>
    tpu.vector_store %arg4[%c0_6, %c0_7], %11 {strides = array<i32>} : memref<8x128xf32, #tpu.memory_space<vmem>>, vector<8x128xf32>,
    return
  }
  func.func @transform_0(%arg0: i32) -> (i32, i32) {
    %c0_i32 = arith.constant 0 : i32
    %c0_i32_0 = arith.constant 0 : i32
    return %arg0, %c0_i32 : i32, i32
  }
  func.func @transform_1(%arg0: i32) -> (i32, i32) {
    %c0_i32 = arith.constant 0 : i32
    %c0_i32_0 = arith.constant 0 : i32
    %c0_i32_1 = arith.constant 0 : i32
    return %c0_i32, %c0_i32_0 : i32, i32
  }
  func.func @transform_2(%arg0: i32) -> (i32, i32) {
    %c0_i32 = arith.constant 0 : i32
    %c0_i32_0 = arith.constant 0 : i32
    %c0_i32_1 = arith.constant 0 : i32
    return %c0_i32, %c0_i32_0 : i32, i32
  }
  func.func @transform_3(%arg0: i32) -> (i32, i32) {
    %c0_i32 = arith.constant 0 : i32
    %c0_i32_0 = arith.constant 0 : i32
    return %arg0, %c0_i32 : i32, i32
  }
}

module attributes {stable_mosaic.version = 11 : i64} {
  func.func @_affine_add_act_kernel(%arg0: i32, %arg1: memref<32x256xf32, #tpu.memory_space<vmem>>, %arg2: memref<1x256xf32, #tpu.memory_space<vmem>>, %arg3: memref<1x256xf32, #tpu.memory_space<vmem>>, %arg4: memref<32x256xf32, #tpu.memory_space<vmem>>, %arg5: memref<32x256xf32, #tpu.memory_space<vmem>>) attributes {dimension_semantics = [#tpu.dimension_semantics<parallel>], iteration_bounds = array<i64: 1>, scalar_prefetch = 0 : i64, scratch_operands = 0 : i64, tpu.core_type = #tpu.core_type<tc>, window_params = [{transform_indices = @transform_0, window_bounds = array<i64: 32, 256>}, {pipeline_mode = #tpu.pipeline_mode<synchronous>, transform_indices = @transform_1, window_bounds = array<i64: 1, 256>}, {pipeline_mode = #tpu.pipeline_mode<synchronous>, transform_indices = @transform_2, window_bounds = array<i64: 1, 256>}, {transform_indices = @transform_3, window_bounds = array<i64: 32, 256>}, {transform_indices = @transform_4, window_bounds = array<i64: 32, 256>}]} {
    %c0 = arith.constant 0 : index
    %c0_0 = arith.constant 0 : index
    %0 = vector.load %arg1[%c0, %c0_0] : memref<32x256xf32, #tpu.memory_space<vmem>>, vector<32x256xf32>
    %c0_1 = arith.constant 0 : index
    %c0_2 = arith.constant 0 : index
    %1 = vector.load %arg2[%c0_1, %c0_2] : memref<1x256xf32, #tpu.memory_space<vmem>>, vector<1x256xf32>
    %2 = vector.broadcast %1 : vector<1x256xf32> to vector<32x256xf32>
    %3 = arith.mulf %0, %2 : vector<32x256xf32>
    %c0_3 = arith.constant 0 : index
    %c0_4 = arith.constant 0 : index
    %4 = vector.load %arg3[%c0_3, %c0_4] : memref<1x256xf32, #tpu.memory_space<vmem>>, vector<1x256xf32>
    %5 = vector.broadcast %4 : vector<1x256xf32> to vector<32x256xf32>
    %6 = arith.addf %3, %5 : vector<32x256xf32>
    %c0_5 = arith.constant 0 : index
    %c0_6 = arith.constant 0 : index
    %7 = vector.load %arg4[%c0_5, %c0_6] : memref<32x256xf32, #tpu.memory_space<vmem>>, vector<32x256xf32>
    %8 = arith.addf %6, %7 : vector<32x256xf32>
    %cst = arith.constant 0.000000e+00 : f32
    %9 = vector.broadcast %cst : f32 to vector<32x256xf32>
    %10 = arith.cmpf oge, %8, %9 : vector<32x256xf32>
    %cst_7 = arith.constant 2.000000e-01 : f32
    %11 = vector.broadcast %cst_7 : f32 to vector<32x256xf32>
    %12 = arith.mulf %11, %8 : vector<32x256xf32>
    %13 = arith.select %10, %8, %12 : vector<32x256xi1>, vector<32x256xf32>
    %c0_8 = arith.constant 0 : index
    %c0_9 = arith.constant 0 : index
    %14 = vector.load %arg5[%c0_8, %c0_9] : memref<32x256xf32, #tpu.memory_space<vmem>>, vector<32x256xf32>
    tpu.vector_store %arg5[%c0_8, %c0_9], %13 {strides = array<i32>} : memref<32x256xf32, #tpu.memory_space<vmem>>, vector<32x256xf32>,
    return
  }
  func.func @transform_0(%arg0: i32) -> (i32, i32) {
    %c0_i32 = arith.constant 0 : i32
    %c0_i32_0 = arith.constant 0 : i32
    return %arg0, %c0_i32 : i32, i32
  }
  func.func @transform_1(%arg0: i32) -> (i32, i32) {
    %c0_i32 = arith.constant 0 : i32
    %c0_i32_0 = arith.constant 0 : i32
    %c0_i32_1 = arith.constant 0 : i32
    return %c0_i32, %c0_i32_0 : i32, i32
  }
  func.func @transform_2(%arg0: i32) -> (i32, i32) {
    %c0_i32 = arith.constant 0 : i32
    %c0_i32_0 = arith.constant 0 : i32
    %c0_i32_1 = arith.constant 0 : i32
    return %c0_i32, %c0_i32_0 : i32, i32
  }
  func.func @transform_3(%arg0: i32) -> (i32, i32) {
    %c0_i32 = arith.constant 0 : i32
    %c0_i32_0 = arith.constant 0 : i32
    return %arg0, %c0_i32 : i32, i32
  }
  func.func @transform_4(%arg0: i32) -> (i32, i32) {
    %c0_i32 = arith.constant 0 : i32
    %c0_i32_0 = arith.constant 0 : i32
    return %arg0, %c0_i32 : i32, i32
  }
}

module attributes {stable_mosaic.version = 11 : i64} {
  func.func @_matmul_kernel(%arg0: i32, %arg1: i32, %arg2: i32, %arg3: memref<8x256xbf16, #tpu.memory_space<vmem>>, %arg4: memref<256x256xbf16, #tpu.memory_space<vmem>>, %arg5: memref<8x256xf32, #tpu.memory_space<vmem>>, %arg6: memref<8x256xf32, #tpu.memory_space<vmem>>) attributes {dimension_semantics = [#tpu.dimension_semantics<parallel>, #tpu.dimension_semantics<parallel>, #tpu.dimension_semantics<arbitrary>], iteration_bounds = array<i64: 1, 2, 1>, scalar_prefetch = 0 : i64, scratch_operands = 1 : i64, tpu.core_type = #tpu.core_type<tc>, window_params = [{transform_indices = @transform_0, window_bounds = array<i64: 8, 256>}, {transform_indices = @transform_1, window_bounds = array<i64: 256, 256>}, {transform_indices = @transform_2, window_bounds = array<i64: 8, 256>}]} {
    %c0_i32 = arith.constant 0 : i32
    %0 = arith.cmpi eq, %arg2, %c0_i32 : i32
    %1 = arith.extui %0 : i1 to i32
    %c0_i32_0 = arith.constant 0 : i32
    %2 = arith.cmpi ne, %1, %c0_i32_0 : i32
    scf.if %2 {
      %cst_10 = arith.constant 0.000000e+00 : f32
      %12 = vector.broadcast %cst_10 : f32 to vector<8x256xf32>
      %c0_11 = arith.constant 0 : index
      %c0_12 = arith.constant 0 : index
      %13 = vector.load %arg6[%c0_11, %c0_12] : memref<8x256xf32, #tpu.memory_space<vmem>>, vector<8x256xf32>
      tpu.vector_store %arg6[%c0_11, %c0_12], %12 {strides = array<i32>} : memref<8x256xf32, #tpu.memory_space<vmem>>, vector<8x256xf32>,
    } else {
    }
    %c0 = arith.constant 0 : index
    %c0_1 = arith.constant 0 : index
    %3 = vector.load %arg6[%c0, %c0_1] : memref<8x256xf32, #tpu.memory_space<vmem>>, vector<8x256xf32>
    %c0_2 = arith.constant 0 : index
    %c0_3 = arith.constant 0 : index
    %4 = vector.load %arg3[%c0_2, %c0_3] : memref<8x256xbf16, #tpu.memory_space<vmem>>, vector<8x256xbf16>
    %c0_4 = arith.constant 0 : index
    %c0_5 = arith.constant 0 : index
    %5 = vector.load %arg4[%c0_4, %c0_5] : memref<256x256xbf16, #tpu.memory_space<vmem>>, vector<256x256xbf16>
    %cst = arith.constant dense<0.000000e+00> : vector<8x256xf32>
    %6 = tpu.matmul %4, %5, %cst {dimension_numbers = #tpu.dot_dimension_numbers<[1], [0], [0], [1], [0, 0, 1, 1], [], []>} : vector<8x256xbf16>, vector<256x256xbf16>, vector<8x256xf32> -> vector<8x256xf32>
    %7 = arith.addf %3, %6 : vector<8x256xf32>
    %c0_6 = arith.constant 0 : index
    %c0_7 = arith.constant 0 : index
    %8 = vector.load %arg6[%c0_6, %c0_7] : memref<8x256xf32, #tpu.memory_space<vmem>>, vector<8x256xf32>
    tpu.vector_store %arg6[%c0_6, %c0_7], %7 {strides = array<i32>} : memref<8x256xf32, #tpu.memory_space<vmem>>, vector<8x256xf32>,
    %c0_i32_8 = arith.constant 0 : i32
    %9 = arith.cmpi eq, %arg2, %c0_i32_8 : i32
    %10 = arith.extui %9 : i1 to i32
    %c0_i32_9 = arith.constant 0 : i32
    %11 = arith.cmpi ne, %10, %c0_i32_9 : i32
    scf.if %11 {
      %c0_10 = arith.constant 0 : index
      %c0_11 = arith.constant 0 : index
      %12 = vector.load %arg6[%c0_10, %c0_11] : memref<8x256xf32, #tpu.memory_space<vmem>>, vector<8x256xf32>
      %c0_12 = arith.constant 0 : index
      %c0_13 = arith.constant 0 : index
      %13 = vector.load %arg5[%c0_12, %c0_13] : memref<8x256xf32, #tpu.memory_space<vmem>>, vector<8x256xf32>
      tpu.vector_store %arg5[%c0_12, %c0_13], %12 {strides = array<i32>} : memref<8x256xf32, #tpu.memory_space<vmem>>, vector<8x256xf32>,
    } else {
    }
    return
  }
  func.func @transform_0(%arg0: i32, %arg1: i32, %arg2: i32) -> (i32, i32) {
    %c0_i32 = arith.constant 0 : i32
    return %arg0, %arg2 : i32, i32
  }
  func.func @transform_1(%arg0: i32, %arg1: i32, %arg2: i32) -> (i32, i32) {
    %c0_i32 = arith.constant 0 : i32
    return %arg2, %arg1 : i32, i32
  }
  func.func @transform_2(%arg0: i32, %arg1: i32, %arg2: i32) -> (i32, i32) {
    %c0_i32 = arith.constant 0 : i32
    return %arg0, %arg1 : i32, i32
  }
}

module attributes {stable_mosaic.version = 11 : i64} {
  func.func @_matmul_kernel(%arg0: i32, %arg1: i32, %arg2: i32, %arg3: memref<8x256xbf16, #tpu.memory_space<vmem>>, %arg4: memref<256x128xbf16, #tpu.memory_space<vmem>>, %arg5: memref<8x128xf32, #tpu.memory_space<vmem>>, %arg6: memref<8x128xf32, #tpu.memory_space<vmem>>) attributes {dimension_semantics = [#tpu.dimension_semantics<parallel>, #tpu.dimension_semantics<parallel>, #tpu.dimension_semantics<arbitrary>], iteration_bounds = array<i64: 1, 1, 1>, scalar_prefetch = 0 : i64, scratch_operands = 1 : i64, tpu.core_type = #tpu.core_type<tc>, window_params = [{transform_indices = @transform_0, window_bounds = array<i64: 8, 256>}, {transform_indices = @transform_1, window_bounds = array<i64: 256, 128>}, {transform_indices = @transform_2, window_bounds = array<i64: 8, 128>}]} {
    %c0_i32 = arith.constant 0 : i32
    %0 = arith.cmpi eq, %arg2, %c0_i32 : i32
    %1 = arith.extui %0 : i1 to i32
    %c0_i32_0 = arith.constant 0 : i32
    %2 = arith.cmpi ne, %1, %c0_i32_0 : i32
    scf.if %2 {
      %cst_10 = arith.constant 0.000000e+00 : f32
      %12 = vector.broadcast %cst_10 : f32 to vector<8x128xf32>
      %c0_11 = arith.constant 0 : index
      %c0_12 = arith.constant 0 : index
      %13 = vector.load %arg6[%c0_11, %c0_12] : memref<8x128xf32, #tpu.memory_space<vmem>>, vector<8x128xf32>
      tpu.vector_store %arg6[%c0_11, %c0_12], %12 {strides = array<i32>} : memref<8x128xf32, #tpu.memory_space<vmem>>, vector<8x128xf32>,
    } else {
    }
    %c0 = arith.constant 0 : index
    %c0_1 = arith.constant 0 : index
    %3 = vector.load %arg6[%c0, %c0_1] : memref<8x128xf32, #tpu.memory_space<vmem>>, vector<8x128xf32>
    %c0_2 = arith.constant 0 : index
    %c0_3 = arith.constant 0 : index
    %4 = vector.load %arg3[%c0_2, %c0_3] : memref<8x256xbf16, #tpu.memory_space<vmem>>, vector<8x256xbf16>
    %c0_4 = arith.constant 0 : index
    %c0_5 = arith.constant 0 : index
    %5 = vector.load %arg4[%c0_4, %c0_5] : memref<256x128xbf16, #tpu.memory_space<vmem>>, vector<256x128xbf16>
    %cst = arith.constant dense<0.000000e+00> : vector<8x128xf32>
    %6 = tpu.matmul %4, %5, %cst {dimension_numbers = #tpu.dot_dimension_numbers<[1], [0], [0], [1], [0, 0, 1, 1], [], []>} : vector<8x256xbf16>, vector<256x128xbf16>, vector<8x128xf32> -> vector<8x128xf32>
    %7 = arith.addf %3, %6 : vector<8x128xf32>
    %c0_6 = arith.constant 0 : index
    %c0_7 = arith.constant 0 : index
    %8 = vector.load %arg6[%c0_6, %c0_7] : memref<8x128xf32, #tpu.memory_space<vmem>>, vector<8x128xf32>
    tpu.vector_store %arg6[%c0_6, %c0_7], %7 {strides = array<i32>} : memref<8x128xf32, #tpu.memory_space<vmem>>, vector<8x128xf32>,
    %c0_i32_8 = arith.constant 0 : i32
    %9 = arith.cmpi eq, %arg2, %c0_i32_8 : i32
    %10 = arith.extui %9 : i1 to i32
    %c0_i32_9 = arith.constant 0 : i32
    %11 = arith.cmpi ne, %10, %c0_i32_9 : i32
    scf.if %11 {
      %c0_10 = arith.constant 0 : index
      %c0_11 = arith.constant 0 : index
      %12 = vector.load %arg6[%c0_10, %c0_11] : memref<8x128xf32, #tpu.memory_space<vmem>>, vector<8x128xf32>
      %c0_12 = arith.constant 0 : index
      %c0_13 = arith.constant 0 : index
      %13 = vector.load %arg5[%c0_12, %c0_13] : memref<8x128xf32, #tpu.memory_space<vmem>>, vector<8x128xf32>
      tpu.vector_store %arg5[%c0_12, %c0_13], %12 {strides = array<i32>} : memref<8x128xf32, #tpu.memory_space<vmem>>, vector<8x128xf32>,
    } else {
    }
    return
  }
  func.func @transform_0(%arg0: i32, %arg1: i32, %arg2: i32) -> (i32, i32) {
    %c0_i32 = arith.constant 0 : i32
    return %arg0, %arg2 : i32, i32
  }
  func.func @transform_1(%arg0: i32, %arg1: i32, %arg2: i32) -> (i32, i32) {
    %c0_i32 = arith.constant 0 : i32
    return %arg2, %arg1 : i32, i32
  }
  func.func @transform_2(%arg0: i32, %arg1: i32, %arg2: i32) -> (i32, i32) {
    %c0_i32 = arith.constant 0 : i32
    return %arg0, %arg1 : i32, i32
  }
}

module attributes {stable_mosaic.version = 11 : i64} {
  func.func @_affine_act_kernel(%arg0: i32, %arg1: memref<8x512xf32, #tpu.memory_space<vmem>>, %arg2: memref<1x512xf32, #tpu.memory_space<vmem>>, %arg3: memref<1x512xf32, #tpu.memory_space<vmem>>, %arg4: memref<8x512xf32, #tpu.memory_space<vmem>>) attributes {dimension_semantics = [#tpu.dimension_semantics<parallel>], iteration_bounds = array<i64: 1>, scalar_prefetch = 0 : i64, scratch_operands = 0 : i64, tpu.core_type = #tpu.core_type<tc>, window_params = [{transform_indices = @transform_0, window_bounds = array<i64: 8, 512>}, {pipeline_mode = #tpu.pipeline_mode<synchronous>, transform_indices = @transform_1, window_bounds = array<i64: 1, 512>}, {pipeline_mode = #tpu.pipeline_mode<synchronous>, transform_indices = @transform_2, window_bounds = array<i64: 1, 512>}, {transform_indices = @transform_3, window_bounds = array<i64: 8, 512>}]} {
    %c0 = arith.constant 0 : index
    %c0_0 = arith.constant 0 : index
    %0 = vector.load %arg1[%c0, %c0_0] : memref<8x512xf32, #tpu.memory_space<vmem>>, vector<8x512xf32>
    %c0_1 = arith.constant 0 : index
    %c0_2 = arith.constant 0 : index
    %1 = vector.load %arg2[%c0_1, %c0_2] : memref<1x512xf32, #tpu.memory_space<vmem>>, vector<1x512xf32>
    %2 = vector.broadcast %1 : vector<1x512xf32> to vector<8x512xf32>
    %3 = arith.mulf %0, %2 : vector<8x512xf32>
    %c0_3 = arith.constant 0 : index
    %c0_4 = arith.constant 0 : index
    %4 = vector.load %arg3[%c0_3, %c0_4] : memref<1x512xf32, #tpu.memory_space<vmem>>, vector<1x512xf32>
    %5 = vector.broadcast %4 : vector<1x512xf32> to vector<8x512xf32>
    %6 = arith.addf %3, %5 : vector<8x512xf32>
    %c0_5 = arith.constant 0 : index
    %c0_6 = arith.constant 0 : index
    %7 = vector.load %arg4[%c0_5, %c0_6] : memref<8x512xf32, #tpu.memory_space<vmem>>, vector<8x512xf32>
    tpu.vector_store %arg4[%c0_5, %c0_6], %6 {strides = array<i32>} : memref<8x512xf32, #tpu.memory_space<vmem>>, vector<8x512xf32>,
    return
  }
  func.func @transform_0(%arg0: i32) -> (i32, i32) {
    %c0_i32 = arith.constant 0 : i32
    %c0_i32_0 = arith.constant 0 : i32
    return %arg0, %c0_i32 : i32, i32
  }
  func.func @transform_1(%arg0: i32) -> (i32, i32) {
    %c0_i32 = arith.constant 0 : i32
    %c0_i32_0 = arith.constant 0 : i32
    %c0_i32_1 = arith.constant 0 : i32
    return %c0_i32, %c0_i32_0 : i32, i32
  }
  func.func @transform_2(%arg0: i32) -> (i32, i32) {
    %c0_i32 = arith.constant 0 : i32
    %c0_i32_0 = arith.constant 0 : i32
    %c0_i32_1 = arith.constant 0 : i32
    return %c0_i32, %c0_i32_0 : i32, i32
  }
  func.func @transform_3(%arg0: i32) -> (i32, i32) {
    %c0_i32 = arith.constant 0 : i32
    %c0_i32_0 = arith.constant 0 : i32
    return %arg0, %c0_i32 : i32, i32
  }
}

module attributes {stable_mosaic.version = 11 : i64} {
  func.func @_matmul_kernel(%arg0: i32, %arg1: i32, %arg2: i32, %arg3: memref<8x640xbf16, #tpu.memory_space<vmem>>, %arg4: memref<640x128xbf16, #tpu.memory_space<vmem>>, %arg5: memref<8x128xf32, #tpu.memory_space<vmem>>, %arg6: memref<8x128xf32, #tpu.memory_space<vmem>>) attributes {dimension_semantics = [#tpu.dimension_semantics<parallel>, #tpu.dimension_semantics<parallel>, #tpu.dimension_semantics<arbitrary>], iteration_bounds = array<i64: 1, 1, 1>, scalar_prefetch = 0 : i64, scratch_operands = 1 : i64, tpu.core_type = #tpu.core_type<tc>, window_params = [{transform_indices = @transform_0, window_bounds = array<i64: 8, 640>}, {transform_indices = @transform_1, window_bounds = array<i64: 640, 128>}, {transform_indices = @transform_2, window_bounds = array<i64: 8, 128>}]} {
    %c0_i32 = arith.constant 0 : i32
    %0 = arith.cmpi eq, %arg2, %c0_i32 : i32
    %1 = arith.extui %0 : i1 to i32
    %c0_i32_0 = arith.constant 0 : i32
    %2 = arith.cmpi ne, %1, %c0_i32_0 : i32
    scf.if %2 {
      %cst_10 = arith.constant 0.000000e+00 : f32
      %12 = vector.broadcast %cst_10 : f32 to vector<8x128xf32>
      %c0_11 = arith.constant 0 : index
      %c0_12 = arith.constant 0 : index
      %13 = vector.load %arg6[%c0_11, %c0_12] : memref<8x128xf32, #tpu.memory_space<vmem>>, vector<8x128xf32>
      tpu.vector_store %arg6[%c0_11, %c0_12], %12 {strides = array<i32>} : memref<8x128xf32, #tpu.memory_space<vmem>>, vector<8x128xf32>,
    } else {
    }
    %c0 = arith.constant 0 : index
    %c0_1 = arith.constant 0 : index
    %3 = vector.load %arg6[%c0, %c0_1] : memref<8x128xf32, #tpu.memory_space<vmem>>, vector<8x128xf32>
    %c0_2 = arith.constant 0 : index
    %c0_3 = arith.constant 0 : index
    %4 = vector.load %arg3[%c0_2, %c0_3] : memref<8x640xbf16, #tpu.memory_space<vmem>>, vector<8x640xbf16>
    %c0_4 = arith.constant 0 : index
    %c0_5 = arith.constant 0 : index
    %5 = vector.load %arg4[%c0_4, %c0_5] : memref<640x128xbf16, #tpu.memory_space<vmem>>, vector<640x128xbf16>
    %cst = arith.constant dense<0.000000e+00> : vector<8x128xf32>
    %6 = tpu.matmul %4, %5, %cst {dimension_numbers = #tpu.dot_dimension_numbers<[1], [0], [0], [1], [0, 0, 1, 1], [], []>} : vector<8x640xbf16>, vector<640x128xbf16>, vector<8x128xf32> -> vector<8x128xf32>
    %7 = arith.addf %3, %6 : vector<8x128xf32>
    %c0_6 = arith.constant 0 : index
    %c0_7 = arith.constant 0 : index
    %8 = vector.load %arg6[%c0_6, %c0_7] : memref<8x128xf32, #tpu.memory_space<vmem>>, vector<8x128xf32>
    tpu.vector_store %arg6[%c0_6, %c0_7], %7 {strides = array<i32>} : memref<8x128xf32, #tpu.memory_space<vmem>>, vector<8x128xf32>,
    %c0_i32_8 = arith.constant 0 : i32
    %9 = arith.cmpi eq, %arg2, %c0_i32_8 : i32
    %10 = arith.extui %9 : i1 to i32
    %c0_i32_9 = arith.constant 0 : i32
    %11 = arith.cmpi ne, %10, %c0_i32_9 : i32
    scf.if %11 {
      %c0_10 = arith.constant 0 : index
      %c0_11 = arith.constant 0 : index
      %12 = vector.load %arg6[%c0_10, %c0_11] : memref<8x128xf32, #tpu.memory_space<vmem>>, vector<8x128xf32>
      %c0_12 = arith.constant 0 : index
      %c0_13 = arith.constant 0 : index
      %13 = vector.load %arg5[%c0_12, %c0_13] : memref<8x128xf32, #tpu.memory_space<vmem>>, vector<8x128xf32>
      tpu.vector_store %arg5[%c0_12, %c0_13], %12 {strides = array<i32>} : memref<8x128xf32, #tpu.memory_space<vmem>>, vector<8x128xf32>,
    } else {
    }
    return
  }
  func.func @transform_0(%arg0: i32, %arg1: i32, %arg2: i32) -> (i32, i32) {
    %c0_i32 = arith.constant 0 : i32
    return %arg0, %arg2 : i32, i32
  }
  func.func @transform_1(%arg0: i32, %arg1: i32, %arg2: i32) -> (i32, i32) {
    %c0_i32 = arith.constant 0 : i32
    return %arg2, %arg1 : i32, i32
  }
  func.func @transform_2(%arg0: i32, %arg1: i32, %arg2: i32) -> (i32, i32) {
    %c0_i32 = arith.constant 0 : i32
    return %arg0, %arg1 : i32, i32
  }
}

module attributes {stable_mosaic.version = 11 : i64} {
  func.func @_matmul_kernel(%arg0: i32, %arg1: i32, %arg2: i32, %arg3: memref<8x128xbf16, #tpu.memory_space<vmem>>, %arg4: memref<128x256xbf16, #tpu.memory_space<vmem>>, %arg5: memref<8x256xf32, #tpu.memory_space<vmem>>, %arg6: memref<8x256xf32, #tpu.memory_space<vmem>>) attributes {dimension_semantics = [#tpu.dimension_semantics<parallel>, #tpu.dimension_semantics<parallel>, #tpu.dimension_semantics<arbitrary>], iteration_bounds = array<i64: 1, 2, 1>, scalar_prefetch = 0 : i64, scratch_operands = 1 : i64, tpu.core_type = #tpu.core_type<tc>, window_params = [{transform_indices = @transform_0, window_bounds = array<i64: 8, 128>}, {transform_indices = @transform_1, window_bounds = array<i64: 128, 256>}, {transform_indices = @transform_2, window_bounds = array<i64: 8, 256>}]} {
    %c0_i32 = arith.constant 0 : i32
    %0 = arith.cmpi eq, %arg2, %c0_i32 : i32
    %1 = arith.extui %0 : i1 to i32
    %c0_i32_0 = arith.constant 0 : i32
    %2 = arith.cmpi ne, %1, %c0_i32_0 : i32
    scf.if %2 {
      %cst_10 = arith.constant 0.000000e+00 : f32
      %12 = vector.broadcast %cst_10 : f32 to vector<8x256xf32>
      %c0_11 = arith.constant 0 : index
      %c0_12 = arith.constant 0 : index
      %13 = vector.load %arg6[%c0_11, %c0_12] : memref<8x256xf32, #tpu.memory_space<vmem>>, vector<8x256xf32>
      tpu.vector_store %arg6[%c0_11, %c0_12], %12 {strides = array<i32>} : memref<8x256xf32, #tpu.memory_space<vmem>>, vector<8x256xf32>,
    } else {
    }
    %c0 = arith.constant 0 : index
    %c0_1 = arith.constant 0 : index
    %3 = vector.load %arg6[%c0, %c0_1] : memref<8x256xf32, #tpu.memory_space<vmem>>, vector<8x256xf32>
    %c0_2 = arith.constant 0 : index
    %c0_3 = arith.constant 0 : index
    %4 = vector.load %arg3[%c0_2, %c0_3] : memref<8x128xbf16, #tpu.memory_space<vmem>>, vector<8x128xbf16>
    %c0_4 = arith.constant 0 : index
    %c0_5 = arith.constant 0 : index
    %5 = vector.load %arg4[%c0_4, %c0_5] : memref<128x256xbf16, #tpu.memory_space<vmem>>, vector<128x256xbf16>
    %cst = arith.constant dense<0.000000e+00> : vector<8x256xf32>
    %6 = tpu.matmul %4, %5, %cst {dimension_numbers = #tpu.dot_dimension_numbers<[1], [0], [0], [1], [0, 0, 1, 1], [], []>} : vector<8x128xbf16>, vector<128x256xbf16>, vector<8x256xf32> -> vector<8x256xf32>
    %7 = arith.addf %3, %6 : vector<8x256xf32>
    %c0_6 = arith.constant 0 : index
    %c0_7 = arith.constant 0 : index
    %8 = vector.load %arg6[%c0_6, %c0_7] : memref<8x256xf32, #tpu.memory_space<vmem>>, vector<8x256xf32>
    tpu.vector_store %arg6[%c0_6, %c0_7], %7 {strides = array<i32>} : memref<8x256xf32, #tpu.memory_space<vmem>>, vector<8x256xf32>,
    %c0_i32_8 = arith.constant 0 : i32
    %9 = arith.cmpi eq, %arg2, %c0_i32_8 : i32
    %10 = arith.extui %9 : i1 to i32
    %c0_i32_9 = arith.constant 0 : i32
    %11 = arith.cmpi ne, %10, %c0_i32_9 : i32
    scf.if %11 {
      %c0_10 = arith.constant 0 : index
      %c0_11 = arith.constant 0 : index
      %12 = vector.load %arg6[%c0_10, %c0_11] : memref<8x256xf32, #tpu.memory_space<vmem>>, vector<8x256xf32>
      %c0_12 = arith.constant 0 : index
      %c0_13 = arith.constant 0 : index
      %13 = vector.load %arg5[%c0_12, %c0_13] : memref<8x256xf32, #tpu.memory_space<vmem>>, vector<8x256xf32>
      tpu.vector_store %arg5[%c0_12, %c0_13], %12 {strides = array<i32>} : memref<8x256xf32, #tpu.memory_space<vmem>>, vector<8x256xf32>,
    } else {
    }
    return
  }
  func.func @transform_0(%arg0: i32, %arg1: i32, %arg2: i32) -> (i32, i32) {
    %c0_i32 = arith.constant 0 : i32
    return %arg0, %arg2 : i32, i32
  }
  func.func @transform_1(%arg0: i32, %arg1: i32, %arg2: i32) -> (i32, i32) {
    %c0_i32 = arith.constant 0 : i32
    return %arg2, %arg1 : i32, i32
  }
  func.func @transform_2(%arg0: i32, %arg1: i32, %arg2: i32) -> (i32, i32) {
    %c0_i32 = arith.constant 0 : i32
    return %arg0, %arg1 : i32, i32
  }
}

module attributes {stable_mosaic.version = 11 : i64} {
  func.func @_affine_add_act_kernel(%arg0: i32, %arg1: memref<8x512xf32, #tpu.memory_space<vmem>>, %arg2: memref<1x512xf32, #tpu.memory_space<vmem>>, %arg3: memref<1x512xf32, #tpu.memory_space<vmem>>, %arg4: memref<8x512xf32, #tpu.memory_space<vmem>>, %arg5: memref<8x512xf32, #tpu.memory_space<vmem>>) attributes {dimension_semantics = [#tpu.dimension_semantics<parallel>], iteration_bounds = array<i64: 1>, scalar_prefetch = 0 : i64, scratch_operands = 0 : i64, tpu.core_type = #tpu.core_type<tc>, window_params = [{transform_indices = @transform_0, window_bounds = array<i64: 8, 512>}, {pipeline_mode = #tpu.pipeline_mode<synchronous>, transform_indices = @transform_1, window_bounds = array<i64: 1, 512>}, {pipeline_mode = #tpu.pipeline_mode<synchronous>, transform_indices = @transform_2, window_bounds = array<i64: 1, 512>}, {transform_indices = @transform_3, window_bounds = array<i64: 8, 512>}, {transform_indices = @transform_4, window_bounds = array<i64: 8, 512>}]} {
    %c0 = arith.constant 0 : index
    %c0_0 = arith.constant 0 : index
    %0 = vector.load %arg1[%c0, %c0_0] : memref<8x512xf32, #tpu.memory_space<vmem>>, vector<8x512xf32>
    %c0_1 = arith.constant 0 : index
    %c0_2 = arith.constant 0 : index
    %1 = vector.load %arg2[%c0_1, %c0_2] : memref<1x512xf32, #tpu.memory_space<vmem>>, vector<1x512xf32>
    %2 = vector.broadcast %1 : vector<1x512xf32> to vector<8x512xf32>
    %3 = arith.mulf %0, %2 : vector<8x512xf32>
    %c0_3 = arith.constant 0 : index
    %c0_4 = arith.constant 0 : index
    %4 = vector.load %arg3[%c0_3, %c0_4] : memref<1x512xf32, #tpu.memory_space<vmem>>, vector<1x512xf32>
    %5 = vector.broadcast %4 : vector<1x512xf32> to vector<8x512xf32>
    %6 = arith.addf %3, %5 : vector<8x512xf32>
    %c0_5 = arith.constant 0 : index
    %c0_6 = arith.constant 0 : index
    %7 = vector.load %arg4[%c0_5, %c0_6] : memref<8x512xf32, #tpu.memory_space<vmem>>, vector<8x512xf32>
    %8 = arith.addf %6, %7 : vector<8x512xf32>
    %cst = arith.constant 0.000000e+00 : f32
    %9 = vector.broadcast %cst : f32 to vector<8x512xf32>
    %10 = arith.cmpf oge, %8, %9 : vector<8x512xf32>
    %cst_7 = arith.constant 2.000000e-01 : f32
    %11 = vector.broadcast %cst_7 : f32 to vector<8x512xf32>
    %12 = arith.mulf %11, %8 : vector<8x512xf32>
    %13 = arith.select %10, %8, %12 : vector<8x512xi1>, vector<8x512xf32>
    %c0_8 = arith.constant 0 : index
    %c0_9 = arith.constant 0 : index
    %14 = vector.load %arg5[%c0_8, %c0_9] : memref<8x512xf32, #tpu.memory_space<vmem>>, vector<8x512xf32>
    tpu.vector_store %arg5[%c0_8, %c0_9], %13 {strides = array<i32>} : memref<8x512xf32, #tpu.memory_space<vmem>>, vector<8x512xf32>,
    return
  }
  func.func @transform_0(%arg0: i32) -> (i32, i32) {
    %c0_i32 = arith.constant 0 : i32
    %c0_i32_0 = arith.constant 0 : i32
    return %arg0, %c0_i32 : i32, i32
  }
  func.func @transform_1(%arg0: i32) -> (i32, i32) {
    %c0_i32 = arith.constant 0 : i32
    %c0_i32_0 = arith.constant 0 : i32
    %c0_i32_1 = arith.constant 0 : i32
    return %c0_i32, %c0_i32_0 : i32, i32
  }
  func.func @transform_2(%arg0: i32) -> (i32, i32) {
    %c0_i32 = arith.constant 0 : i32
    %c0_i32_0 = arith.constant 0 : i32
    %c0_i32_1 = arith.constant 0 : i32
    return %c0_i32, %c0_i32_0 : i32, i32
  }
  func.func @transform_3(%arg0: i32) -> (i32, i32) {
    %c0_i32 = arith.constant 0 : i32
    %c0_i32_0 = arith.constant 0 : i32
    return %arg0, %c0_i32 : i32, i32
  }
  func.func @transform_4(%arg0: i32) -> (i32, i32) {
    %c0_i32 = arith.constant 0 : i32
    %c0_i32_0 = arith.constant 0 : i32
    return %arg0, %c0_i32 : i32, i32
  }
}

module attributes {stable_mosaic.version = 11 : i64} {
  func.func @_matmul_kernel(%arg0: i32, %arg1: i32, %arg2: i32, %arg3: memref<8x2048xbf16, #tpu.memory_space<vmem>>, %arg4: memref<2048x128xbf16, #tpu.memory_space<vmem>>, %arg5: memref<8x128xf32, #tpu.memory_space<vmem>>, %arg6: memref<8x128xf32, #tpu.memory_space<vmem>>) attributes {dimension_semantics = [#tpu.dimension_semantics<parallel>, #tpu.dimension_semantics<parallel>, #tpu.dimension_semantics<arbitrary>], iteration_bounds = array<i64: 1, 1, 13>, scalar_prefetch = 0 : i64, scratch_operands = 1 : i64, tpu.core_type = #tpu.core_type<tc>, window_params = [{transform_indices = @transform_0, window_bounds = array<i64: 8, 2048>}, {transform_indices = @transform_1, window_bounds = array<i64: 2048, 128>}, {transform_indices = @transform_2, window_bounds = array<i64: 8, 128>}]} {
    %c0_i32 = arith.constant 0 : i32
    %0 = arith.cmpi eq, %arg2, %c0_i32 : i32
    %1 = arith.extui %0 : i1 to i32
    %c0_i32_0 = arith.constant 0 : i32
    %2 = arith.cmpi ne, %1, %c0_i32_0 : i32
    scf.if %2 {
      %cst_9 = arith.constant 0.000000e+00 : f32
      %12 = vector.broadcast %cst_9 : f32 to vector<8x128xf32>
      %c0_10 = arith.constant 0 : index
      %c0_11 = arith.constant 0 : index
      %13 = vector.load %arg6[%c0_10, %c0_11] : memref<8x128xf32, #tpu.memory_space<vmem>>, vector<8x128xf32>
      tpu.vector_store %arg6[%c0_10, %c0_11], %12 {strides = array<i32>} : memref<8x128xf32, #tpu.memory_space<vmem>>, vector<8x128xf32>,
    } else {
    }
    %c0 = arith.constant 0 : index
    %c0_1 = arith.constant 0 : index
    %3 = vector.load %arg6[%c0, %c0_1] : memref<8x128xf32, #tpu.memory_space<vmem>>, vector<8x128xf32>
    %c0_2 = arith.constant 0 : index
    %c0_3 = arith.constant 0 : index
    %4 = vector.load %arg3[%c0_2, %c0_3] : memref<8x2048xbf16, #tpu.memory_space<vmem>>, vector<8x2048xbf16>
    %c0_4 = arith.constant 0 : index
    %c0_5 = arith.constant 0 : index
    %5 = vector.load %arg4[%c0_4, %c0_5] : memref<2048x128xbf16, #tpu.memory_space<vmem>>, vector<2048x128xbf16>
    %cst = arith.constant dense<0.000000e+00> : vector<8x128xf32>
    %6 = tpu.matmul %4, %5, %cst {dimension_numbers = #tpu.dot_dimension_numbers<[1], [0], [0], [1], [0, 0, 1, 1], [], []>} : vector<8x2048xbf16>, vector<2048x128xbf16>, vector<8x128xf32> -> vector<8x128xf32>
    %7 = arith.addf %3, %6 : vector<8x128xf32>
    %c0_6 = arith.constant 0 : index
    %c0_7 = arith.constant 0 : index
    %8 = vector.load %arg6[%c0_6, %c0_7] : memref<8x128xf32, #tpu.memory_space<vmem>>, vector<8x128xf32>
    tpu.vector_store %arg6[%c0_6, %c0_7], %7 {strides = array<i32>} : memref<8x128xf32, #tpu.memory_space<vmem>>, vector<8x128xf32>,
    %c12_i32 = arith.constant 12 : i32
    %9 = arith.cmpi eq, %arg2, %c12_i32 : i32
    %10 = arith.extui %9 : i1 to i32
    %c0_i32_8 = arith.constant 0 : i32
    %11 = arith.cmpi ne, %10, %c0_i32_8 : i32
    scf.if %11 {
      %c0_9 = arith.constant 0 : index
      %c0_10 = arith.constant 0 : index
      %12 = vector.load %arg6[%c0_9, %c0_10] : memref<8x128xf32, #tpu.memory_space<vmem>>, vector<8x128xf32>
      %c0_11 = arith.constant 0 : index
      %c0_12 = arith.constant 0 : index
      %13 = vector.load %arg5[%c0_11, %c0_12] : memref<8x128xf32, #tpu.memory_space<vmem>>, vector<8x128xf32>
      tpu.vector_store %arg5[%c0_11, %c0_12], %12 {strides = array<i32>} : memref<8x128xf32, #tpu.memory_space<vmem>>, vector<8x128xf32>,
    } else {
    }
    return
  }
  func.func @transform_0(%arg0: i32, %arg1: i32, %arg2: i32) -> (i32, i32) {
    %c0_i32 = arith.constant 0 : i32
    return %arg0, %arg2 : i32, i32
  }
  func.func @transform_1(%arg0: i32, %arg1: i32, %arg2: i32) -> (i32, i32) {
    %c0_i32 = arith.constant 0 : i32
    return %arg2, %arg1 : i32, i32
  }
  func.func @transform_2(%arg0: i32, %arg1: i32, %arg2: i32) -> (i32, i32) {
    %c0_i32 = arith.constant 0 : i32
    return %arg0, %arg1 : i32, i32
  }
}

</mosaic_0001>

<llo_original>
// kernel: forward.37
$region0: #{forward.37}
  #allocation0 [shape = 'u32[]', space=smem, size = 0x4, offset = 0x4, fixed_abs, tag = 'smem constant byte address 0x4 - core index']
  #allocation1 [shape = 'u32[72,128]{1,0:T(1,128)}', space=vmem, size = 0x9000, scoped, tag = 'internal scratch']
  #allocation2 [shape = 'f32[256,128]{1,0:T(8,128)}', space=vmem, size = 0x20000, scoped, tag = 'scratch operand']
  %s0 = inlined_call_operand.vmem [shape: bf16[2048,128], index: 0, kind: input, shape index: {}]
  %s1 = inlined_call_operand.vmem [shape: bf16[128,128], index: 1, kind: input, shape index: {}]
  %s2 = inlined_call_operand.vmem [shape: f32[2048,128], index: 2, kind: output, shape index: {}]
  %s3 = sld [smem:[#allocation0]]
  $region49: #{forward.37} parent=0
    _
  %s5 = ssub.s32 1, %s3
  %s6 = scalar_select 0, %s5, %s3
  loop: start=0, step=1, limit=10
  $region2: #{forward.37} parent=0 // loop_pre_header
    _
  $region3: #{forward.37} parent=0 // loop_header
    %s8 = sphi 0, %s12
    %p9 = scmp.ge.s32.totalorder %s8, 10
    %s15 = sphi 0, %s34
    %s16 = sphi 0, %s30
    %s17 = sphi 0, %s26
    %s18 = sphi 0, %s15
    %s19 = sphi 0, %s16
    %s20 = sphi 0, %s17
    %s21 = sphi 0, %s18
    %s22 = sphi 0, %s19
    %s23 = sphi 0, %s20
    %s39 = sphi 0, %s41
    %s42 = sphi 0, %s39
    %s43 = sphi 0, %s42
    %s59 = sphi 0, %s43
    %s67 = sphi 0, %s69
    %s70 = sphi 0, %s67
    %s71 = sphi 0, %s70
    %s87 = sphi 0, %s71
    %s95 = sphi 0, %s97
    %s98 = sphi 0, %s95
    %s99 = sphi 0, %s98
    %s115 = sphi 0, %s99
  $region4: #{forward.37} parent=0 // loop_header_branch
    %11 = sbr.rel (%p9) target = $region8
  $region5: #{forward.37} parent=0 // loop_body
    %s13 = ssub.s32 %s8, 1
    %s14 = ssub.s32 %s8, 2
    %s24 = sadd.s32 1, %s17
    %p25 = scmp.ge.s32.totalorder %s24, 1
    %s26 = scalar_select %p25, 0, %s24
    %s27 = sadd.s32 1, %s16
    %s28 = scalar_select %p25, %s27, %s16
    %p29 = scmp.ge.s32.totalorder %s28, 1
    %s30 = scalar_select %p29, 0, %s28
    %s31 = sadd.s32 1, %s15
    %s32 = scalar_select %p29, %s31, %s15
    %p33 = scmp.ge.s32.totalorder %s32, 8
    %s34 = scalar_select %p33, 0, %s32
    %s35 = ssub.s32 %s15, %s34
    %s36 = ssub.s32 %s17, %s26
    %s37 = sor.u32 %s35, %s36
    %p38 = scmp.eq.s32.totalorder %s37, 0
    %s40 = sadd.s32 %s39, 1
    %s41 = scalar_select %p38, %s39, %s40
    %p44 = pneg %p38
    %p45 = scmp.eq.s32.totalorder %s8, 7
    %p46 = por %p44, %p45
    %p47 = scmp.ne.s32.totalorder %s39, %s42
    %p48 = scmp.eq.s32.totalorder %s8, 0
    %p49 = por %p47, %p48
    %p50 = scmp.ne.s32.totalorder %s39, %s42
    %p51 = scmp.eq.s32.totalorder %s13, 7
    %p52 = por %p50, %p51
    %p53 = scmp.ne.s32.totalorder %s42, %s43
    %p54 = scmp.eq.s32.totalorder %s13, 0
    %p55 = por %p53, %p54
    %p56 = scmp.ne.s32.totalorder %s42, %s43
    %p57 = scmp.eq.s32.totalorder %s14, 7
    %p58 = por %p56, %p57
    %p60 = scmp.ne.s32.totalorder %s43, %s59
    %p61 = scmp.eq.s32.totalorder %s14, 0
    %p62 = por %p60, %p61
    %s63 = ssub.s32 %s17, %s26
    %s64 = ssub.s32 %s16, %s30
    %s65 = sor.u32 %s63, %s64
    %p66 = scmp.eq.s32.totalorder %s65, 0
    %s68 = sadd.s32 %s67, 1
    %s69 = scalar_select %p66, %s67, %s68
    %p72 = pneg %p66
    %p73 = scmp.eq.s32.totalorder %s8, 7
    %p74 = por %p72, %p73
    %p75 = scmp.ne.s32.totalorder %s67, %s70
    %p76 = scmp.eq.s32.totalorder %s8, 0
    %p77 = por %p75, %p76
    %p78 = scmp.ne.s32.totalorder %s67, %s70
    %p79 = scmp.eq.s32.totalorder %s13, 7
    %p80 = por %p78, %p79
    %p81 = scmp.ne.s32.totalorder %s70, %s71
    %p82 = scmp.eq.s32.totalorder %s13, 0
    %p83 = por %p81, %p82
    %p84 = scmp.ne.s32.totalorder %s70, %s71
    %p85 = scmp.eq.s32.totalorder %s14, 7
    %p86 = por %p84, %p85
    %p88 = scmp.ne.s32.totalorder %s71, %s87
    %p89 = scmp.eq.s32.totalorder %s14, 0
    %p90 = por %p88, %p89
    %s91 = ssub.s32 %s15, %s34
    %s92 = ssub.s32 %s16, %s30
    %s93 = sor.u32 %s91, %s92
    %p94 = scmp.eq.s32.totalorder %s93, 0
    %s96 = sadd.s32 %s95, 1
    %s97 = scalar_select %p94, %s95, %s96
    %p100 = pneg %p94
    %p101 = scmp.eq.s32.totalorder %s8, 7
    %p102 = por %p100, %p101
    %p103 = scmp.ne.s32.totalorder %s95, %s98
    %p104 = scmp.eq.s32.totalorder %s8, 0
    %p105 = por %p103, %p104
    %p106 = scmp.ne.s32.totalorder %s95, %s98
    %p107 = scmp.eq.s32.totalorder %s13, 7
    %p108 = por %p106, %p107
    %p109 = scmp.ne.s32.totalorder %s98, %s99
    %p110 = scmp.eq.s32.totalorder %s13, 0
    %p111 = por %p109, %p110
    %p112 = scmp.ne.s32.totalorder %s98, %s99
    %p113 = scmp.eq.s32.totalorder %s14, 7
    %p114 = por %p112, %p113
    %p116 = scmp.ne.s32.totalorder %s99, %s115
    %p117 = scmp.eq.s32.totalorder %s14, 0
    %p118 = por %p116, %p117
    %p119 = scmp.le.s32.totalorder 1, %s8
    %p120 = scmp.lt.s32.totalorder %s8, 9
    %p121 = pnand %p119, %p120
    %p122 = pneg %p121
    // Predicated region
    $region9: #{forward.37} parent=5 // pred_check
      _
    $region10: #{forward.37} parent=5 // pred_check_branch
      %124 = sbr.rel (%p121) target = $region12
    $region11: #{forward.37} parent=5 // pred_region
      %s125 = ssub.s32 %s8, 1
      // Predicated region
      $region13: #{forward.37} parent=11 // pred_check
        %p126 = pneg %p83
      $region14: #{forward.37} parent=11 // pred_check_branch
        %128 = sbr.rel (%p126) target = $region16
      $region15: #{forward.37} parent=11 // pred_region
        %s129 = smul.u32 16, %s20
        %p130 = scmp.lt.s32.totalorder %s129, 15
        %s131 = scalar_select %p130, %s129, 15
        %p132 = scmp.lt.s32.totalorder %s19, 0
        %s133 = scalar_select %p132, %s19, 0
        %s134 = sadd.s32 %s133, %s131
        %s135 = smul.addr %s134, 4
        %s136 = scalar_lea.vmem %s1, %s135
        %s137 = smul.u32 16, %s20
      $region16: #{forward.37} parent=11 // pred_fallthru
        _
    $region12: #{forward.37} parent=5 // pred_fallthru
      _
    %p138 = scmp.lt.s32.totalorder %s8, 8
    // Predicated region
    $region17: #{forward.37} parent=5 // pred_check
      %p139 = pneg %p138
    $region18: #{forward.37} parent=5 // pred_check_branch
      %141 = sbr.rel (%p139) target = $region20
    $region19: #{forward.37} parent=5 // pred_region
      // Predicated region
      $region21: #{forward.37} parent=19 // pred_check
        %p142 = pneg %p49
      $region22: #{forward.37} parent=19 // pred_check_branch
        %144 = sbr.rel (%p142) target = $region24
      $region23: #{forward.37} parent=19 // pred_region
        %s145 = smul.u32 32, %s15
        %p146 = scmp.lt.s32.totalorder %s145, 255
        %s147 = scalar_select %p146, %s145, 255
        %p148 = scmp.lt.s32.totalorder %s17, 0
        %s149 = scalar_select %p148, %s17, 0
        %s150 = sadd.s32 %s149, %s147
        %s151 = smul.addr %s150, 4
        %s152 = scalar_lea.vmem %s0, %s151
        %s153 = smul.u32 32, %s15
      $region24: #{forward.37} parent=19 // pred_fallthru
        _
    $region20: #{forward.37} parent=5 // pred_fallthru
      _
    %p154 = scmp.le.s32.totalorder 1, %s8
    %p155 = scmp.lt.s32.totalorder %s8, 9
    %p156 = pnand %p154, %p155
    %p157 = pneg %p156
    // Predicated region
    $region25: #{forward.37} parent=5 // pred_check
      _
    $region26: #{forward.37} parent=5 // pred_check_branch
      %159 = sbr.rel (%p156) target = $region28
    $region27: #{forward.37} parent=5 // pred_region
      %s160 = ssub.s32 %s8, 1
      %s161 = smul.u32 32, %s18
      %p162 = scmp.lt.s32.totalorder %s161, 255
      %s163 = scalar_select %p162, %s161, 255
      %p164 = scmp.lt.s32.totalorder %s20, 0
      %s165 = scalar_select %p164, %s20, 0
      %s166 = sadd.s32 %s165, %s163
      %s167 = smul.addr %s166, 4
      %s168 = scalar_lea.vmem %s0, %s167
      %p169 = pneg %p55
      %p170 = pneg %p52
      %s171 = smul.u32 16, %s20
      %p172 = scmp.lt.s32.totalorder %s171, 15
      %s173 = scalar_select %p172, %s171, 15
      %p174 = scmp.lt.s32.totalorder %s19, 0
      %s175 = scalar_select %p174, %s19, 0
      %s176 = sadd.s32 %s175, %s173
      %s177 = smul.addr %s176, 4
      %s178 = scalar_lea.vmem %s1, %s177
      %p179 = pneg %p83
      %p180 = pneg %p80
      %p181 = pneg %p111
      %p182 = pneg %p108
      %s183 = smul.u32 32, %s18
      %p184 = scmp.lt.s32.totalorder %s183, 255
      %s185 = scalar_select %p184, %s183, 255
      %p186 = scmp.lt.s32.totalorder %s19, 0
      %s187 = scalar_select %p186, %s19, 0
      %s188 = sadd.s32 %s187, %s185
      %s189 = smul.addr %s188, 8
      %s190 = scalar_lea.vmem %s2, %s189
      %s191 = smul.u32 32, %s18
      %p192 = scmp.lt.s32.totalorder %s191, 255
      %s193 = scalar_select %p192, %s191, 255
      %p194 = scmp.lt.s32.totalorder %s20, 0
      %s195 = scalar_select %p194, %s20, 0
      %s196 = sadd.s32 %s195, %s193
      %s197 = smul.addr %s196, 4
      %s198 = scalar_lea.vmem %s0, %s197
      %s199 = smul.u32 32, %s18
      %s200 = smul.u32 16, %s20
      %p201 = scmp.lt.s32.totalorder %s200, 15
      %s202 = scalar_select %p201, %s200, 15
      %p203 = scmp.lt.s32.totalorder %s19, 0
      %s204 = scalar_select %p203, %s19, 0
      %s205 = sadd.s32 %s204, %s202
      %s206 = smul.addr %s205, 4
      %s207 = scalar_lea.vmem %s1, %s206
      %s208 = smul.u32 16, %s20
      %s209 = smul.u32 32, %s18
      %p210 = scmp.lt.s32.totalorder %s209, 255
      %s211 = scalar_select %p210, %s209, 255
      %p212 = scmp.lt.s32.totalorder %s19, 0
      %s213 = scalar_select %p212, %s19, 0
      %s214 = sadd.s32 %s213, %s211
      %s215 = smul.addr %s214, 8
      %s216 = scalar_lea.vmem %s2, %s215
      %s217 = smul.u32 32, %s18
      %p218 = scmp.eq.s32.totalorder %s20, 0
      // Predicated region
      $region29: #{forward.37} parent=27 // pred_check
        %p219 = pneg %p218
      $region30: #{forward.37} parent=27 // pred_check_branch
        %221 = sbr.rel (%p219) target = $region32
      $region31: #{forward.37} parent=27 // pred_region
        %222 = vst [vmem:[#allocation2] sm:$0xff] 0.0
        %223 = vst [vmem:[#allocation2 + $0x8] sm:$0xff] 0.0
        %224 = vst [vmem:[#allocation2 + $0x10] sm:$0xff] 0.0
        %225 = vst [vmem:[#allocation2 + $0x18] sm:$0xff] 0.0
        %226 = vst [vmem:[#allocation2 + $0x20] sm:$0xff] 0.0
        %227 = vst [vmem:[#allocation2 + $0x28] sm:$0xff] 0.0
        %228 = vst [vmem:[#allocation2 + $0x30] sm:$0xff] 0.0
        %229 = vst [vmem:[#allocation2 + $0x38] sm:$0xff] 0.0
        %230 = vst [vmem:[#allocation2 + $0x40] sm:$0xff] 0.0
        %231 = vst [vmem:[#allocation2 + $0x48] sm:$0xff] 0.0
        %232 = vst [vmem:[#allocation2 + $0x50] sm:$0xff] 0.0
        %233 = vst [vmem:[#allocation2 + $0x58] sm:$0xff] 0.0
        %234 = vst [vmem:[#allocation2 + $0x60] sm:$0xff] 0.0
        %235 = vst [vmem:[#allocation2 + $0x68] sm:$0xff] 0.0
        %236 = vst [vmem:[#allocation2 + $0x70] sm:$0xff] 0.0
        %237 = vst [vmem:[#allocation2 + $0x78] sm:$0xff] 0.0
        %238 = vst [vmem:[#allocation2 + $0x80] sm:$0xff] 0.0
        %239 = vst [vmem:[#allocation2 + $0x88] sm:$0xff] 0.0
        %240 = vst [vmem:[#allocation2 + $0x90] sm:$0xff] 0.0
        %241 = vst [vmem:[#allocation2 + $0x98] sm:$0xff] 0.0
        %242 = vst [vmem:[#allocation2 + $0xa0] sm:$0xff] 0.0
        %243 = vst [vmem:[#allocation2 + $0xa8] sm:$0xff] 0.0
        %244 = vst [vmem:[#allocation2 + $0xb0] sm:$0xff] 0.0
        %245 = vst [vmem:[#allocation2 + $0xb8] sm:$0xff] 0.0
        %246 = vst [vmem:[#allocation2 + $0xc0] sm:$0xff] 0.0
        %247 = vst [vmem:[#allocation2 + $0xc8] sm:$0xff] 0.0
        %248 = vst [vmem:[#allocation2 + $0xd0] sm:$0xff] 0.0
        %249 = vst [vmem:[#allocation2 + $0xd8] sm:$0xff] 0.0
        %250 = vst [vmem:[#allocation2 + $0xe0] sm:$0xff] 0.0
        %251 = vst [vmem:[#allocation2 + $0xe8] sm:$0xff] 0.0
        %252 = vst [vmem:[#allocation2 + $0xf0] sm:$0xff] 0.0
        %253 = vst [vmem:[#allocation2 + $0xf8] sm:$0xff] 0.0
      $region32: #{forward.37} parent=27 // pred_fallthru
        _
      %v254 = vld [vmem:[#allocation2] sm:$0xff]
      %v255 = vld [vmem:[#allocation2 + $0x8] sm:$0xff]
      %v256 = vld [vmem:[#allocation2 + $0x10] sm:$0xff]
      %v257 = vld [vmem:[#allocation2 + $0x18] sm:$0xff]
      %v258 = vld [vmem:[#allocation2 + $0x20] sm:$0xff]
      %v259 = vld [vmem:[#allocation2 + $0x28] sm:$0xff]
      %v260 = vld [vmem:[#allocation2 + $0x30] sm:$0xff]
      %v261 = vld [vmem:[#allocation2 + $0x38] sm:$0xff]
      %v262 = vld [vmem:[#allocation2 + $0x40] sm:$0xff]
      %v263 = vld [vmem:[#allocation2 + $0x48] sm:$0xff]
      %v264 = vld [vmem:[#allocation2 + $0x50] sm:$0xff]
      %v265 = vld [vmem:[#allocation2 + $0x58] sm:$0xff]
      %v266 = vld [vmem:[#allocation2 + $0x60] sm:$0xff]
      %v267 = vld [vmem:[#allocation2 + $0x68] sm:$0xff]
      %v268 = vld [vmem:[#allocation2 + $0x70] sm:$0xff]
      %v269 = vld [vmem:[#allocation2 + $0x78] sm:$0xff]
      %v270 = vld [vmem:[#allocation2 + $0x80] sm:$0xff]
      %v271 = vld [vmem:[#allocation2 + $0x88] sm:$0xff]
      %v272 = vld [vmem:[#allocation2 + $0x90] sm:$0xff]
      %v273 = vld [vmem:[#allocation2 + $0x98] sm:$0xff]
      %v274 = vld [vmem:[#allocation2 + $0xa0] sm:$0xff]
      %v275 = vld [vmem:[#allocation2 + $0xa8] sm:$0xff]
      %v276 = vld [vmem:[#allocation2 + $0xb0] sm:$0xff]
      %v277 = vld [vmem:[#allocation2 + $0xb8] sm:$0xff]
      %v278 = vld [vmem:[#allocation2 + $0xc0] sm:$0xff]
      %v279 = vld [vmem:[#allocation2 + $0xc8] sm:$0xff]
      %v280 = vld [vmem:[#allocation2 + $0xd0] sm:$0xff]
      %v281 = vld [vmem:[#allocation2 + $0xd8] sm:$0xff]
      %v282 = vld [vmem:[#allocation2 + $0xe0] sm:$0xff]
      %v283 = vld [vmem:[#allocation2 + $0xe8] sm:$0xff]
      %v284 = vld [vmem:[#allocation2 + $0xf0] sm:$0xff]
      %v285 = vld [vmem:[#allocation2 + $0xf8] sm:$0xff]
      %v286 = vld [vmem:[%s198] sm:$0xf]
      %v287 = vld [vmem:[%s198 + $0x4] sm:$0xf]
      %v288 = vld [vmem:[%s198 + $0x8] sm:$0xf]
      %v289 = vld [vmem:[%s198 + $0xc] sm:$0xf]
      %v290 = vld [vmem:[%s198 + $0x10] sm:$0xf]
      %v291 = vld [vmem:[%s198 + $0x14] sm:$0xf]
      %v292 = vld [vmem:[%s198 + $0x18] sm:$0xf]
      %v293 = vld [vmem:[%s198 + $0x1c] sm:$0xf]
      %v294 = vld [vmem:[%s198 + $0x20] sm:$0xf]
      %v295 = vld [vmem:[%s198 + $0x24] sm:$0xf]
      %v296 = vld [vmem:[%s198 + $0x28] sm:$0xf]
      %v297 = vld [vmem:[%s198 + $0x2c] sm:$0xf]
      %v298 = vld [vmem:[%s198 + $0x30] sm:$0xf]
      %v299 = vld [vmem:[%s198 + $0x34] sm:$0xf]
      %v300 = vld [vmem:[%s198 + $0x38] sm:$0xf]
      %v301 = vld [vmem:[%s198 + $0x3c] sm:$0xf]
      %v302 = vld [vmem:[%s198 + $0x40] sm:$0xf]
      %v303 = vld [vmem:[%s198 + $0x44] sm:$0xf]
      %v304 = vld [vmem:[%s198 + $0x48] sm:$0xf]
      %v305 = vld [vmem:[%s198 + $0x4c] sm:$0xf]
      %v306 = vld [vmem:[%s198 + $0x50] sm:$0xf]
      %v307 = vld [vmem:[%s198 + $0x54] sm:$0xf]
      %v308 = vld [vmem:[%s198 + $0x58] sm:$0xf]
      %v309 = vld [vmem:[%s198 + $0x5c] sm:$0xf]
      %v310 = vld [vmem:[%s198 + $0x60] sm:$0xf]
      %v311 = vld [vmem:[%s198 + $0x64] sm:$0xf]
      %v312 = vld [vmem:[%s198 + $0x68] sm:$0xf]
      %v313 = vld [vmem:[%s198 + $0x6c] sm:$0xf]
      %v314 = vld [vmem:[%s198 + $0x70] sm:$0xf]
      %v315 = vld [vmem:[%s198 + $0x74] sm:$0xf]
      %v316 = vld [vmem:[%s198 + $0x78] sm:$0xf]
      %v317 = vld [vmem:[%s198 + $0x7c] sm:$0xf]
      %v318 = vld [vmem:[%s207] sm:$0xf]
      %v319 = vld [vmem:[%s207 + $0x4] sm:$0xf]
      %v320 = vld [vmem:[%s207 + $0x8] sm:$0xf]
      %v321 = vld [vmem:[%s207 + $0xc] sm:$0xf]
      %v322 = vld [vmem:[%s207 + $0x10] sm:$0xf]
      %v323 = vld [vmem:[%s207 + $0x14] sm:$0xf]
      %v324 = vld [vmem:[%s207 + $0x18] sm:$0xf]
      %v325 = vld [vmem:[%s207 + $0x1c] sm:$0xf]
      %v326 = vld [vmem:[%s207 + $0x20] sm:$0xf]
      %v327 = vld [vmem:[%s207 + $0x24] sm:$0xf]
      %v328 = vld [vmem:[%s207 + $0x28] sm:$0xf]
      %v329 = vld [vmem:[%s207 + $0x2c] sm:$0xf]
      %v330 = vld [vmem:[%s207 + $0x30] sm:$0xf]
      %v331 = vld [vmem:[%s207 + $0x34] sm:$0xf]
      %v332 = vld [vmem:[%s207 + $0x38] sm:$0xf]
      %v333 = vld [vmem:[%s207 + $0x3c] sm:$0xf]
      %v366 = vunpack.c.l.b16 %v286
      %v367 = vunpack.c.l.b16 %v287
      %v368 = vunpack.c.l.b16 %v288
      %v369 = vunpack.c.l.b16 %v289
      %v370 = vunpack.c.l.b16 %v290
      %v371 = vunpack.c.l.b16 %v291
      %v372 = vunpack.c.l.b16 %v292
      %v373 = vunpack.c.l.b16 %v293
      %v374 = vunpack.c.l.b16 %v294
      %v375 = vunpack.c.l.b16 %v295
      %v376 = vunpack.c.l.b16 %v296
      %v377 = vunpack.c.l.b16 %v297
      %v378 = vunpack.c.l.b16 %v298
      %v379 = vunpack.c.l.b16 %v299
      %v380 = vunpack.c.l.b16 %v300
      %v381 = vunpack.c.l.b16 %v301
      %v382 = vunpack.c.l.b16 %v302
      %v383 = vunpack.c.l.b16 %v303
      %v384 = vunpack.c.l.b16 %v304
      %v385 = vunpack.c.l.b16 %v305
      %v386 = vunpack.c.l.b16 %v306
      %v387 = vunpack.c.l.b16 %v307
      %v388 = vunpack.c.l.b16 %v308
      %v389 = vunpack.c.l.b16 %v309
      %v390 = vunpack.c.l.b16 %v310
      %v391 = vunpack.c.l.b16 %v311
      %v392 = vunpack.c.l.b16 %v312
      %v393 = vunpack.c.l.b16 %v313
      %v394 = vunpack.c.l.b16 %v314
      %v395 = vunpack.c.l.b16 %v315
      %v396 = vunpack.c.l.b16 %v316
      %v397 = vunpack.c.l.b16 %v317
      %v398 = vpack.c.b16 %v367, %v366
      %v399 = vpack.c.b16 %v369, %v368
      %v400 = vpack.c.b16 %v371, %v370
      %v401 = vpack.c.b16 %v373, %v372
      %v402 = vpack.c.b16 %v375, %v374
      %v403 = vpack.c.b16 %v377, %v376
      %v404 = vpack.c.b16 %v379, %v378
      %v405 = vpack.c.b16 %v381, %v380
      %v406 = vpack.c.b16 %v383, %v382
      %v407 = vpack.c.b16 %v385, %v384
      %v408 = vpack.c.b16 %v387, %v386
      %v409 = vpack.c.b16 %v389, %v388
      %v410 = vpack.c.b16 %v391, %v390
      %v411 = vpack.c.b16 %v393, %v392
      %v412 = vpack.c.b16 %v395, %v394
      %v413 = vpack.c.b16 %v397, %v396
      %v446 = vunpack.c.l.b16 %v318
      %v447 = vunpack.c.l.b16 %v319
      %v448 = vunpack.c.l.b16 %v320
      %v449 = vunpack.c.l.b16 %v321
      %v450 = vunpack.c.l.b16 %v322
      %v451 = vunpack.c.l.b16 %v323
      %v452 = vunpack.c.l.b16 %v324
      %v453 = vunpack.c.l.b16 %v325
      %v454 = vunpack.c.l.b16 %v326
      %v455 = vunpack.c.l.b16 %v327
      %v456 = vunpack.c.l.b16 %v328
      %v457 = vunpack.c.l.b16 %v329
      %v458 = vunpack.c.l.b16 %v330
      %v459 = vunpack.c.l.b16 %v331
      %v460 = vunpack.c.l.b16 %v332
      %v461 = vunpack.c.l.b16 %v333
      %v462 = vpack.c.b16 %v447, %v446
      %v463 = vpack.c.b16 %v449, %v448
      %v464 = vpack.c.b16 %v451, %v450
      %v465 = vpack.c.b16 %v453, %v452
      %v466 = vpack.c.b16 %v455, %v454
      %v467 = vpack.c.b16 %v457, %v456
      %v468 = vpack.c.b16 %v459, %v458
      %v469 = vpack.c.b16 %v461, %v460
      %478 = vmatpush.bf16.msra.mxu0 %v469
      %479 = vmatpush.bf16.msra.mxu0 %v468
      %480 = vmatpush.bf16.msra.mxu0 %v467
      %481 = vmatpush.bf16.msra.mxu0 %v466
      %482 = vmatpush.bf16.msra.mxu0 %v465
      %483 = vmatpush.bf16.msra.mxu0 %v464
      %484 = vmatpush.bf16.msra.mxu0 %v463
      %485 = vmatpush.bf16.msra.mxu0 %v462
      %486 = vmatmul.bf16.gmra.mxu0 %v398
      %v487 = vpop.f32.mrf.mxu0
      %v488 = vadd.f32 0.0, %v487
      %v489 = vpop.f32.mrf.mxu0
      %v490 = vadd.f32 0.0, %v489
      %491 = vmatmul.bf16.gmra.mxu0 %v399
      %v492 = vpop.f32.mrf.mxu0
      %v493 = vadd.f32 0.0, %v492
      %v494 = vpop.f32.mrf.mxu0
      %v495 = vadd.f32 0.0, %v494
      %496 = vmatmul.bf16.gmra.mxu0 %v400
      %v497 = vpop.f32.mrf.mxu0
      %v498 = vadd.f32 0.0, %v497
      %v499 = vpop.f32.mrf.mxu0
      %v500 = vadd.f32 0.0, %v499
      %501 = vmatmul.bf16.gmra.mxu0 %v401
      %v502 = vpop.f32.mrf.mxu0
      %v503 = vadd.f32 0.0, %v502
      %v504 = vpop.f32.mrf.mxu0
      %v505 = vadd.f32 0.0, %v504
      %506 = vmatmul.bf16.gmra.mxu0 %v402
      %v507 = vpop.f32.mrf.mxu0
      %v508 = vadd.f32 0.0, %v507
      %v509 = vpop.f32.mrf.mxu0
      %v510 = vadd.f32 0.0, %v509
      %511 = vmatmul.bf16.gmra.mxu0 %v403
      %v512 = vpop.f32.mrf.mxu0
      %v513 = vadd.f32 0.0, %v512
      %v514 = vpop.f32.mrf.mxu0
      %v515 = vadd.f32 0.0, %v514
      %516 = vmatmul.bf16.gmra.mxu0 %v404
      %v517 = vpop.f32.mrf.mxu0
      %v518 = vadd.f32 0.0, %v517
      %v519 = vpop.f32.mrf.mxu0
      %v520 = vadd.f32 0.0, %v519
      %521 = vmatmul.bf16.gmra.mxu0 %v405
      %v522 = vpop.f32.mrf.mxu0
      %v523 = vadd.f32 0.0, %v522
      %v524 = vpop.f32.mrf.mxu0
      %v525 = vadd.f32 0.0, %v524
      %526 = vmatmul.bf16.gmra.mxu0 %v406
      %v527 = vpop.f32.mrf.mxu0
      %v528 = vadd.f32 0.0, %v527
      %v529 = vpop.f32.mrf.mxu0
      %v530 = vadd.f32 0.0, %v529
      %531 = vmatmul.bf16.gmra.mxu0 %v407
      %v532 = vpop.f32.mrf.mxu0
      %v533 = vadd.f32 0.0, %v532
      %v534 = vpop.f32.mrf.mxu0
      %v535 = vadd.f32 0.0, %v534
      %536 = vmatmul.bf16.gmra.mxu0 %v408
      %v537 = vpop.f32.mrf.mxu0
      %v538 = vadd.f32 0.0, %v537
      %v539 = vpop.f32.mrf.mxu0
      %v540 = vadd.f32 0.0, %v539
      %541 = vmatmul.bf16.gmra.mxu0 %v409
      %v542 = vpop.f32.mrf.mxu0
      %v543 = vadd.f32 0.0, %v542
      %v544 = vpop.f32.mrf.mxu0
      %v545 = vadd.f32 0.0, %v544
      %546 = vmatmul.bf16.gmra.mxu0 %v410
      %v547 = vpop.f32.mrf.mxu0
      %v548 = vadd.f32 0.0, %v547
      %v549 = vpop.f32.mrf.mxu0
      %v550 = vadd.f32 0.0, %v549
      %551 = vmatmul.bf16.gmra.mxu0 %v411
      %v552 = vpop.f32.mrf.mxu0
      %v553 = vadd.f32 0.0, %v552
      %v554 = vpop.f32.mrf.mxu0
      %v555 = vadd.f32 0.0, %v554
      %556 = vmatmul.bf16.gmra.mxu0 %v412
      %v557 = vpop.f32.mrf.mxu0
      %v558 = vadd.f32 0.0, %v557
      %v559 = vpop.f32.mrf.mxu0
      %v560 = vadd.f32 0.0, %v559
      %561 = vmatmul.bf16.gmra.mxu0 %v413
      %v562 = vpop.f32.mrf.mxu0
      %v563 = vadd.f32 0.0, %v562
      %v564 = vpop.f32.mrf.mxu0
      %v565 = vadd.f32 0.0, %v564
      %566 = vdwg.mxu0
      %v567 = vadd.f32 %v254, %v488
      %v568 = vadd.f32 %v255, %v490
      %v569 = vadd.f32 %v256, %v493
      %v570 = vadd.f32 %v257, %v495
      %v571 = vadd.f32 %v258, %v498
      %v572 = vadd.f32 %v259, %v500
      %v573 = vadd.f32 %v260, %v503
      %v574 = vadd.f32 %v261, %v505
      %v575 = vadd.f32 %v262, %v508
      %v576 = vadd.f32 %v263, %v510
      %v577 = vadd.f32 %v264, %v513
      %v578 = vadd.f32 %v265, %v515
      %v579 = vadd.f32 %v266, %v518
      %v580 = vadd.f32 %v267, %v520
      %v581 = vadd.f32 %v268, %v523
      %v582 = vadd.f32 %v269, %v525
      %v583 = vadd.f32 %v270, %v528
      %v584 = vadd.f32 %v271, %v530
      %v585 = vadd.f32 %v272, %v533
      %v586 = vadd.f32 %v273, %v535
      %v587 = vadd.f32 %v274, %v538
      %v588 = vadd.f32 %v275, %v540
      %v589 = vadd.f32 %v276, %v543
      %v590 = vadd.f32 %v277, %v545
      %v591 = vadd.f32 %v278, %v548
      %v592 = vadd.f32 %v279, %v550
      %v593 = vadd.f32 %v280, %v553
      %v594 = vadd.f32 %v281, %v555
      %v595 = vadd.f32 %v282, %v558
      %v596 = vadd.f32 %v283, %v560
      %v597 = vadd.f32 %v284, %v563
      %v598 = vadd.f32 %v285, %v565
      %599 = vst [vmem:[#allocation2] sm:$0xff] %v567
      %600 = vst [vmem:[#allocation2 + $0x8] sm:$0xff] %v568
      %601 = vst [vmem:[#allocation2 + $0x10] sm:$0xff] %v569
      %602 = vst [vmem:[#allocation2 + $0x18] sm:$0xff] %v570
      %603 = vst [vmem:[#allocation2 + $0x20] sm:$0xff] %v571
      %604 = vst [vmem:[#allocation2 + $0x28] sm:$0xff] %v572
      %605 = vst [vmem:[#allocation2 + $0x30] sm:$0xff] %v573
      %606 = vst [vmem:[#allocation2 + $0x38] sm:$0xff] %v574
      %607 = vst [vmem:[#allocation2 + $0x40] sm:$0xff] %v575
      %608 = vst [vmem:[#allocation2 + $0x48] sm:$0xff] %v576
      %609 = vst [vmem:[#allocation2 + $0x50] sm:$0xff] %v577
      %610 = vst [vmem:[#allocation2 + $0x58] sm:$0xff] %v578
      %611 = vst [vmem:[#allocation2 + $0x60] sm:$0xff] %v579
      %612 = vst [vmem:[#allocation2 + $0x68] sm:$0xff] %v580
      %613 = vst [vmem:[#allocation2 + $0x70] sm:$0xff] %v581
      %614 = vst [vmem:[#allocation2 + $0x78] sm:$0xff] %v582
      %615 = vst [vmem:[#allocation2 + $0x80] sm:$0xff] %v583
      %616 = vst [vmem:[#allocation2 + $0x88] sm:$0xff] %v584
      %617 = vst [vmem:[#allocation2 + $0x90] sm:$0xff] %v585
      %618 = vst [vmem:[#allocation2 + $0x98] sm:$0xff] %v586
      %619 = vst [vmem:[#allocation2 + $0xa0] sm:$0xff] %v587
      %620 = vst [vmem:[#allocation2 + $0xa8] sm:$0xff] %v588
      %621 = vst [vmem:[#allocation2 + $0xb0] sm:$0xff] %v589
      %622 = vst [vmem:[#allocation2 + $0xb8] sm:$0xff] %v590
      %623 = vst [vmem:[#allocation2 + $0xc0] sm:$0xff] %v591
      %624 = vst [vmem:[#allocation2 + $0xc8] sm:$0xff] %v592
      %625 = vst [vmem:[#allocation2 + $0xd0] sm:$0xff] %v593
      %626 = vst [vmem:[#allocation2 + $0xd8] sm:$0xff] %v594
      %627 = vst [vmem:[#allocation2 + $0xe0] sm:$0xff] %v595
      %628 = vst [vmem:[#allocation2 + $0xe8] sm:$0xff] %v596
      %629 = vst [vmem:[#allocation2 + $0xf0] sm:$0xff] %v597
      %630 = vst [vmem:[#allocation2 + $0xf8] sm:$0xff] %v598
      // Predicated region
      $region33: #{forward.37} parent=27 // pred_check
        %p631 = pneg %p218
      $region34: #{forward.37} parent=27 // pred_check_branch
        %633 = sbr.rel (%p631) target = $region36
      $region35: #{forward.37} parent=27 // pred_region
        %v634 = vld [vmem:[#allocation2] sm:$0xff]
        %v635 = vld [vmem:[#allocation2 + $0x8] sm:$0xff]
        %v636 = vld [vmem:[#allocation2 + $0x10] sm:$0xff]
        %v637 = vld [vmem:[#allocation2 + $0x18] sm:$0xff]
        %v638 = vld [vmem:[#allocation2 + $0x20] sm:$0xff]
        %v639 = vld [vmem:[#allocation2 + $0x28] sm:$0xff]
        %v640 = vld [vmem:[#allocation2 + $0x30] sm:$0xff]
        %v641 = vld [vmem:[#allocation2 + $0x38] sm:$0xff]
        %v642 = vld [vmem:[#allocation2 + $0x40] sm:$0xff]
        %v643 = vld [vmem:[#allocation2 + $0x48] sm:$0xff]
        %v644 = vld [vmem:[#allocation2 + $0x50] sm:$0xff]
        %v645 = vld [vmem:[#allocation2 + $0x58] sm:$0xff]
        %v646 = vld [vmem:[#allocation2 + $0x60] sm:$0xff]
        %v647 = vld [vmem:[#allocation2 + $0x68] sm:$0xff]
        %v648 = vld [vmem:[#allocation2 + $0x70] sm:$0xff]
        %v649 = vld [vmem:[#allocation2 + $0x78] sm:$0xff]
        %v650 = vld [vmem:[#allocation2 + $0x80] sm:$0xff]
        %v651 = vld [vmem:[#allocation2 + $0x88] sm:$0xff]
        %v652 = vld [vmem:[#allocation2 + $0x90] sm:$0xff]
        %v653 = vld [vmem:[#allocation2 + $0x98] sm:$0xff]
        %v654 = vld [vmem:[#allocation2 + $0xa0] sm:$0xff]
        %v655 = vld [vmem:[#allocation2 + $0xa8] sm:$0xff]
        %v656 = vld [vmem:[#allocation2 + $0xb0] sm:$0xff]
        %v657 = vld [vmem:[#allocation2 + $0xb8] sm:$0xff]
        %v658 = vld [vmem:[#allocation2 + $0xc0] sm:$0xff]
        %v659 = vld [vmem:[#allocation2 + $0xc8] sm:$0xff]
        %v660 = vld [vmem:[#allocation2 + $0xd0] sm:$0xff]
        %v661 = vld [vmem:[#allocation2 + $0xd8] sm:$0xff]
        %v662 = vld [vmem:[#allocation2 + $0xe0] sm:$0xff]
        %v663 = vld [vmem:[#allocation2 + $0xe8] sm:$0xff]
        %v664 = vld [vmem:[#allocation2 + $0xf0] sm:$0xff]
        %v665 = vld [vmem:[#allocation2 + $0xf8] sm:$0xff]
        %666 = vst [vmem:[%s216] sm:$0xff] %v634
        %667 = vst [vmem:[%s216 + $0x8] sm:$0xff] %v635
        %668 = vst [vmem:[%s216 + $0x10] sm:$0xff] %v636
        %669 = vst [vmem:[%s216 + $0x18] sm:$0xff] %v637
        %670 = vst [vmem:[%s216 + $0x20] sm:$0xff] %v638
        %671 = vst [vmem:[%s216 + $0x28] sm:$0xff] %v639
        %672 = vst [vmem:[%s216 + $0x30] sm:$0xff] %v640
        %673 = vst [vmem:[%s216 + $0x38] sm:$0xff] %v641
        %674 = vst [vmem:[%s216 + $0x40] sm:$0xff] %v642
        %675 = vst [vmem:[%s216 + $0x48] sm:$0xff] %v643
        %676 = vst [vmem:[%s216 + $0x50] sm:$0xff] %v644
        %677 = vst [vmem:[%s216 + $0x58] sm:$0xff] %v645
        %678 = vst [vmem:[%s216 + $0x60] sm:$0xff] %v646
        %679 = vst [vmem:[%s216 + $0x68] sm:$0xff] %v647
        %680 = vst [vmem:[%s216 + $0x70] sm:$0xff] %v648
        %681 = vst [vmem:[%s216 + $0x78] sm:$0xff] %v649
        %682 = vst [vmem:[%s216 + $0x80] sm:$0xff] %v650
        %683 = vst [vmem:[%s216 + $0x88] sm:$0xff] %v651
        %684 = vst [vmem:[%s216 + $0x90] sm:$0xff] %v652
        %685 = vst [vmem:[%s216 + $0x98] sm:$0xff] %v653
        %686 = vst [vmem:[%s216 + $0xa0] sm:$0xff] %v654
        %687 = vst [vmem:[%s216 + $0xa8] sm:$0xff] %v655
        %688 = vst [vmem:[%s216 + $0xb0] sm:$0xff] %v656
        %689 = vst [vmem:[%s216 + $0xb8] sm:$0xff] %v657
        %690 = vst [vmem:[%s216 + $0xc0] sm:$0xff] %v658
        %691 = vst [vmem:[%s216 + $0xc8] sm:$0xff] %v659
        %692 = vst [vmem:[%s216 + $0xd0] sm:$0xff] %v660
        %693 = vst [vmem:[%s216 + $0xd8] sm:$0xff] %v661
        %694 = vst [vmem:[%s216 + $0xe0] sm:$0xff] %v662
        %695 = vst [vmem:[%s216 + $0xe8] sm:$0xff] %v663
        %696 = vst [vmem:[%s216 + $0xf0] sm:$0xff] %v664
        %697 = vst [vmem:[%s216 + $0xf8] sm:$0xff] %v665
      $region36: #{forward.37} parent=27 // pred_fallthru
        _
      %s698 = smul.u32 32, %s18
      %p699 = scmp.lt.s32.totalorder %s698, 255
      %s700 = scalar_select %p699, %s698, 255
      %p701 = scmp.lt.s32.totalorder %s19, 0
      %s702 = scalar_select %p701, %s19, 0
      %s703 = sadd.s32 %s702, %s700
      %s704 = smul.addr %s703, 8
      %s705 = scalar_lea.vmem %s2, %s704
      // Predicated region
      $region37: #{forward.37} parent=27 // pred_check
        %p706 = pneg %p108
      $region38: #{forward.37} parent=27 // pred_check_branch
        %708 = sbr.rel (%p706) target = $region40
      $region39: #{forward.37} parent=27 // pred_region
        %s709 = smul.u32 32, %s18
      $region40: #{forward.37} parent=27 // pred_fallthru
        _
    $region28: #{forward.37} parent=5 // pred_fallthru
      _
    %p710 = scmp.le.s32.totalorder 2, %s8
    // Predicated region
    $region41: #{forward.37} parent=5 // pred_check
      %p711 = pneg %p710
    $region42: #{forward.37} parent=5 // pred_check_branch
      %713 = sbr.rel (%p711) target = $region44
    $region43: #{forward.37} parent=5 // pred_region
      %s714 = ssub.s32 %s8, 2
      // Predicated region
      $region45: #{forward.37} parent=43 // pred_check
        %p715 = pneg %p114
      $region46: #{forward.37} parent=43 // pred_check_branch
        %717 = sbr.rel (%p715) target = $region48
      $region47: #{forward.37} parent=43 // pred_region
        %s718 = smul.u32 32, %s21
        %p719 = scmp.lt.s32.totalorder %s718, 255
        %s720 = scalar_select %p719, %s718, 255
        %p721 = scmp.lt.s32.totalorder %s22, 0
        %s722 = scalar_select %p721, %s22, 0
        %s723 = sadd.s32 %s722, %s720
        %s724 = smul.addr %s723, 8
        %s725 = scalar_lea.vmem %s2, %s724
      $region48: #{forward.37} parent=43 // pred_fallthru
        _
    $region44: #{forward.37} parent=5 // pred_fallthru
      _
  $region6: #{forward.37} parent=0 // loop_footer
    %s12 = sadd.s32 1, %s8
  $region7: #{forward.37} parent=0 // loop_footer_branch
    %7 = sbr.rel target = $region3
  $region8: #{forward.37} parent=0 // loop_exit
    _

// kernel: forward.39
$region0: #{forward.39}
  #allocation0 [shape = 'u32[]', space=smem, size = 0x4, offset = 0x4, fixed_abs, tag = 'smem constant byte address 0x4 - core index']
  #allocation1 [shape = 'u32[72,128]{1,0:T(1,128)}', space=vmem, size = 0x9000, scoped, tag = 'internal scratch']
  #allocation2 [shape = 'f32[256,128]{1,0:T(8,128)}', space=vmem, size = 0x20000, scoped, tag = 'scratch operand']
  %s0 = inlined_call_operand.vmem [shape: bf16[2048,256], index: 0, kind: input, shape index: {}]
  %s1 = inlined_call_operand.vmem [shape: bf16[256,128], index: 1, kind: input, shape index: {}]
  %s2 = inlined_call_operand.vmem [shape: f32[2048,128], index: 2, kind: output, shape index: {}]
  %s3 = sld [smem:[#allocation0]]
  $region49: #{forward.39} parent=0
    _
  %s5 = ssub.s32 1, %s3
  %s6 = scalar_select 0, %s5, %s3
  loop: start=0, step=1, limit=10
  $region2: #{forward.39} parent=0 // loop_pre_header
    _
  $region3: #{forward.39} parent=0 // loop_header
    %s8 = sphi 0, %s12
    %p9 = scmp.ge.s32.totalorder %s8, 10
    %s15 = sphi 0, %s34
    %s16 = sphi 0, %s30
    %s17 = sphi 0, %s26
    %s18 = sphi 0, %s15
    %s19 = sphi 0, %s16
    %s20 = sphi 0, %s17
    %s21 = sphi 0, %s18
    %s22 = sphi 0, %s19
    %s23 = sphi 0, %s20
    %s39 = sphi 0, %s41
    %s42 = sphi 0, %s39
    %s43 = sphi 0, %s42
    %s59 = sphi 0, %s43
    %s67 = sphi 0, %s69
    %s70 = sphi 0, %s67
    %s71 = sphi 0, %s70
    %s87 = sphi 0, %s71
    %s95 = sphi 0, %s97
    %s98 = sphi 0, %s95
    %s99 = sphi 0, %s98
    %s115 = sphi 0, %s99
  $region4: #{forward.39} parent=0 // loop_header_branch
    %11 = sbr.rel (%p9) target = $region8
  $region5: #{forward.39} parent=0 // loop_body
    %s13 = ssub.s32 %s8, 1
    %s14 = ssub.s32 %s8, 2
    %s24 = sadd.s32 1, %s17
    %p25 = scmp.ge.s32.totalorder %s24, 1
    %s26 = scalar_select %p25, 0, %s24
    %s27 = sadd.s32 1, %s16
    %s28 = scalar_select %p25, %s27, %s16
    %p29 = scmp.ge.s32.totalorder %s28, 1
    %s30 = scalar_select %p29, 0, %s28
    %s31 = sadd.s32 1, %s15
    %s32 = scalar_select %p29, %s31, %s15
    %p33 = scmp.ge.s32.totalorder %s32, 8
    %s34 = scalar_select %p33, 0, %s32
    %s35 = ssub.s32 %s15, %s34
    %s36 = ssub.s32 %s17, %s26
    %s37 = sor.u32 %s35, %s36
    %p38 = scmp.eq.s32.totalorder %s37, 0
    %s40 = sadd.s32 %s39, 1
    %s41 = scalar_select %p38, %s39, %s40
    %p44 = pneg %p38
    %p45 = scmp.eq.s32.totalorder %s8, 7
    %p46 = por %p44, %p45
    %p47 = scmp.ne.s32.totalorder %s39, %s42
    %p48 = scmp.eq.s32.totalorder %s8, 0
    %p49 = por %p47, %p48
    %p50 = scmp.ne.s32.totalorder %s39, %s42
    %p51 = scmp.eq.s32.totalorder %s13, 7
    %p52 = por %p50, %p51
    %p53 = scmp.ne.s32.totalorder %s42, %s43
    %p54 = scmp.eq.s32.totalorder %s13, 0
    %p55 = por %p53, %p54
    %p56 = scmp.ne.s32.totalorder %s42, %s43
    %p57 = scmp.eq.s32.totalorder %s14, 7
    %p58 = por %p56, %p57
    %p60 = scmp.ne.s32.totalorder %s43, %s59
    %p61 = scmp.eq.s32.totalorder %s14, 0
    %p62 = por %p60, %p61
    %s63 = ssub.s32 %s17, %s26
    %s64 = ssub.s32 %s16, %s30
    %s65 = sor.u32 %s63, %s64
    %p66 = scmp.eq.s32.totalorder %s65, 0
    %s68 = sadd.s32 %s67, 1
    %s69 = scalar_select %p66, %s67, %s68
    %p72 = pneg %p66
    %p73 = scmp.eq.s32.totalorder %s8, 7
    %p74 = por %p72, %p73
    %p75 = scmp.ne.s32.totalorder %s67, %s70
    %p76 = scmp.eq.s32.totalorder %s8, 0
    %p77 = por %p75, %p76
    %p78 = scmp.ne.s32.totalorder %s67, %s70
    %p79 = scmp.eq.s32.totalorder %s13, 7
    %p80 = por %p78, %p79
    %p81 = scmp.ne.s32.totalorder %s70, %s71
    %p82 = scmp.eq.s32.totalorder %s13, 0
    %p83 = por %p81, %p82
    %p84 = scmp.ne.s32.totalorder %s70, %s71
    %p85 = scmp.eq.s32.totalorder %s14, 7
    %p86 = por %p84, %p85
    %p88 = scmp.ne.s32.totalorder %s71, %s87
    %p89 = scmp.eq.s32.totalorder %s14, 0
    %p90 = por %p88, %p89
    %s91 = ssub.s32 %s15, %s34
    %s92 = ssub.s32 %s16, %s30
    %s93 = sor.u32 %s91, %s92
    %p94 = scmp.eq.s32.totalorder %s93, 0
    %s96 = sadd.s32 %s95, 1
    %s97 = scalar_select %p94, %s95, %s96
    %p100 = pneg %p94
    %p101 = scmp.eq.s32.totalorder %s8, 7
    %p102 = por %p100, %p101
    %p103 = scmp.ne.s32.totalorder %s95, %s98
    %p104 = scmp.eq.s32.totalorder %s8, 0
    %p105 = por %p103, %p104
    %p106 = scmp.ne.s32.totalorder %s95, %s98
    %p107 = scmp.eq.s32.totalorder %s13, 7
    %p108 = por %p106, %p107
    %p109 = scmp.ne.s32.totalorder %s98, %s99
    %p110 = scmp.eq.s32.totalorder %s13, 0
    %p111 = por %p109, %p110
    %p112 = scmp.ne.s32.totalorder %s98, %s99
    %p113 = scmp.eq.s32.totalorder %s14, 7
    %p114 = por %p112, %p113
    %p116 = scmp.ne.s32.totalorder %s99, %s115
    %p117 = scmp.eq.s32.totalorder %s14, 0
    %p118 = por %p116, %p117
    %p119 = scmp.le.s32.totalorder 1, %s8
    %p120 = scmp.lt.s32.totalorder %s8, 9
    %p121 = pnand %p119, %p120
    %p122 = pneg %p121
    // Predicated region
    $region9: #{forward.39} parent=5 // pred_check
      _
    $region10: #{forward.39} parent=5 // pred_check_branch
      %124 = sbr.rel (%p121) target = $region12
    $region11: #{forward.39} parent=5 // pred_region
      %s125 = ssub.s32 %s8, 1
      // Predicated region
      $region13: #{forward.39} parent=11 // pred_check
        %p126 = pneg %p83
      $region14: #{forward.39} parent=11 // pred_check_branch
        %128 = sbr.rel (%p126) target = $region16
      $region15: #{forward.39} parent=11 // pred_region
        %s129 = smul.u32 32, %s20
        %p130 = scmp.lt.s32.totalorder %s129, 31
        %s131 = scalar_select %p130, %s129, 31
        %p132 = scmp.lt.s32.totalorder %s19, 0
        %s133 = scalar_select %p132, %s19, 0
        %s134 = sadd.s32 %s133, %s131
        %s135 = smul.addr %s134, 4
        %s136 = scalar_lea.vmem %s1, %s135
        %s137 = smul.u32 32, %s20
      $region16: #{forward.39} parent=11 // pred_fallthru
        _
    $region12: #{forward.39} parent=5 // pred_fallthru
      _
    %p138 = scmp.lt.s32.totalorder %s8, 8
    // Predicated region
    $region17: #{forward.39} parent=5 // pred_check
      %p139 = pneg %p138
    $region18: #{forward.39} parent=5 // pred_check_branch
      %141 = sbr.rel (%p139) target = $region20
    $region19: #{forward.39} parent=5 // pred_region
      // Predicated region
      $region21: #{forward.39} parent=19 // pred_check
        %p142 = pneg %p49
      $region22: #{forward.39} parent=19 // pred_check_branch
        %144 = sbr.rel (%p142) target = $region24
      $region23: #{forward.39} parent=19 // pred_region
        %s145 = smul.u32 32, %s15
        %s146 = smul.u32 2, %s17
        %p147 = scmp.lt.s32.totalorder %s145, 255
        %s148 = scalar_select %p147, %s145, 255
        %p149 = scmp.lt.s32.totalorder %s146, 1
        %s150 = scalar_select %p149, %s146, 1
        %s151 = smul.addr %s148, 2
        %s152 = sadd.s32 %s150, %s151
        %s153 = smul.addr %s152, 4
        %s154 = scalar_lea.vmem %s0, %s153
        %s155 = smul.u32 32, %s15
        %s156 = smul.u32 2, %s17
      $region24: #{forward.39} parent=19 // pred_fallthru
        _
    $region20: #{forward.39} parent=5 // pred_fallthru
      _
    %p157 = scmp.le.s32.totalorder 1, %s8
    %p158 = scmp.lt.s32.totalorder %s8, 9
    %p159 = pnand %p157, %p158
    %p160 = pneg %p159
    // Predicated region
    $region25: #{forward.39} parent=5 // pred_check
      _
    $region26: #{forward.39} parent=5 // pred_check_branch
      %162 = sbr.rel (%p159) target = $region28
    $region27: #{forward.39} parent=5 // pred_region
      %s163 = ssub.s32 %s8, 1
      %s164 = smul.u32 32, %s18
      %s165 = smul.u32 2, %s20
      %p166 = scmp.lt.s32.totalorder %s164, 255
      %s167 = scalar_select %p166, %s164, 255
      %p168 = scmp.lt.s32.totalorder %s165, 1
      %s169 = scalar_select %p168, %s165, 1
      %s170 = smul.addr %s167, 2
      %s171 = sadd.s32 %s169, %s170
      %s172 = smul.addr %s171, 4
      %s173 = scalar_lea.vmem %s0, %s172
      %p174 = pneg %p55
      %p175 = pneg %p52
      %s176 = smul.u32 32, %s20
      %p177 = scmp.lt.s32.totalorder %s176, 31
      %s178 = scalar_select %p177, %s176, 31
      %p179 = scmp.lt.s32.totalorder %s19, 0
      %s180 = scalar_select %p179, %s19, 0
      %s181 = sadd.s32 %s180, %s178
      %s182 = smul.addr %s181, 4
      %s183 = scalar_lea.vmem %s1, %s182
      %p184 = pneg %p83
      %p185 = pneg %p80
      %p186 = pneg %p111
      %p187 = pneg %p108
      %s188 = smul.u32 32, %s18
      %p189 = scmp.lt.s32.totalorder %s188, 255
      %s190 = scalar_select %p189, %s188, 255
      %p191 = scmp.lt.s32.totalorder %s19, 0
      %s192 = scalar_select %p191, %s19, 0
      %s193 = sadd.s32 %s192, %s190
      %s194 = smul.addr %s193, 8
      %s195 = scalar_lea.vmem %s2, %s194
      %s196 = smul.u32 32, %s18
      %s197 = smul.u32 2, %s20
      %p198 = scmp.lt.s32.totalorder %s196, 255
      %s199 = scalar_select %p198, %s196, 255
      %p200 = scmp.lt.s32.totalorder %s197, 1
      %s201 = scalar_select %p200, %s197, 1
      %s202 = smul.addr %s199, 2
      %s203 = sadd.s32 %s201, %s202
      %s204 = smul.addr %s203, 4
      %s205 = scalar_lea.vmem %s0, %s204
      %s206 = smul.u32 32, %s18
      %s207 = smul.u32 2, %s20
      %s208 = smul.u32 32, %s20
      %p209 = scmp.lt.s32.totalorder %s208, 31
      %s210 = scalar_select %p209, %s208, 31
      %p211 = scmp.lt.s32.totalorder %s19, 0
      %s212 = scalar_select %p211, %s19, 0
      %s213 = sadd.s32 %s212, %s210
      %s214 = smul.addr %s213, 4
      %s215 = scalar_lea.vmem %s1, %s214
      %s216 = smul.u32 32, %s20
      %s217 = smul.u32 32, %s18
      %p218 = scmp.lt.s32.totalorder %s217, 255
      %s219 = scalar_select %p218, %s217, 255
      %p220 = scmp.lt.s32.totalorder %s19, 0
      %s221 = scalar_select %p220, %s19, 0
      %s222 = sadd.s32 %s221, %s219
      %s223 = smul.addr %s222, 8
      %s224 = scalar_lea.vmem %s2, %s223
      %s225 = smul.u32 32, %s18
      %p226 = scmp.eq.s32.totalorder %s20, 0
      // Predicated region
      $region29: #{forward.39} parent=27 // pred_check
        %p227 = pneg %p226
      $region30: #{forward.39} parent=27 // pred_check_branch
        %229 = sbr.rel (%p227) target = $region32
      $region31: #{forward.39} parent=27 // pred_region
        %230 = vst [vmem:[#allocation2] sm:$0xff] 0.0
        %231 = vst [vmem:[#allocation2 + $0x8] sm:$0xff] 0.0
        %232 = vst [vmem:[#allocation2 + $0x10] sm:$0xff] 0.0
        %233 = vst [vmem:[#allocation2 + $0x18] sm:$0xff] 0.0
        %234 = vst [vmem:[#allocation2 + $0x20] sm:$0xff] 0.0
        %235 = vst [vmem:[#allocation2 + $0x28] sm:$0xff] 0.0
        %236 = vst [vmem:[#allocation2 + $0x30] sm:$0xff] 0.0
        %237 = vst [vmem:[#allocation2 + $0x38] sm:$0xff] 0.0
        %238 = vst [vmem:[#allocation2 + $0x40] sm:$0xff] 0.0
        %239 = vst [vmem:[#allocation2 + $0x48] sm:$0xff] 0.0
        %240 = vst [vmem:[#allocation2 + $0x50] sm:$0xff] 0.0
        %241 = vst [vmem:[#allocation2 + $0x58] sm:$0xff] 0.0
        %242 = vst [vmem:[#allocation2 + $0x60] sm:$0xff] 0.0
        %243 = vst [vmem:[#allocation2 + $0x68] sm:$0xff] 0.0
        %244 = vst [vmem:[#allocation2 + $0x70] sm:$0xff] 0.0
        %245 = vst [vmem:[#allocation2 + $0x78] sm:$0xff] 0.0
        %246 = vst [vmem:[#allocation2 + $0x80] sm:$0xff] 0.0
        %247 = vst [vmem:[#allocation2 + $0x88] sm:$0xff] 0.0
        %248 = vst [vmem:[#allocation2 + $0x90] sm:$0xff] 0.0
        %249 = vst [vmem:[#allocation2 + $0x98] sm:$0xff] 0.0
        %250 = vst [vmem:[#allocation2 + $0xa0] sm:$0xff] 0.0
        %251 = vst [vmem:[#allocation2 + $0xa8] sm:$0xff] 0.0
        %252 = vst [vmem:[#allocation2 + $0xb0] sm:$0xff] 0.0
        %253 = vst [vmem:[#allocation2 + $0xb8] sm:$0xff] 0.0
        %254 = vst [vmem:[#allocation2 + $0xc0] sm:$0xff] 0.0
        %255 = vst [vmem:[#allocation2 + $0xc8] sm:$0xff] 0.0
        %256 = vst [vmem:[#allocation2 + $0xd0] sm:$0xff] 0.0
        %257 = vst [vmem:[#allocation2 + $0xd8] sm:$0xff] 0.0
        %258 = vst [vmem:[#allocation2 + $0xe0] sm:$0xff] 0.0
        %259 = vst [vmem:[#allocation2 + $0xe8] sm:$0xff] 0.0
        %260 = vst [vmem:[#allocation2 + $0xf0] sm:$0xff] 0.0
        %261 = vst [vmem:[#allocation2 + $0xf8] sm:$0xff] 0.0
      $region32: #{forward.39} parent=27 // pred_fallthru
        _
      %v262 = vld [vmem:[#allocation2] sm:$0xff]
      %v263 = vld [vmem:[#allocation2 + $0x8] sm:$0xff]
      %v264 = vld [vmem:[#allocation2 + $0x10] sm:$0xff]
      %v265 = vld [vmem:[#allocation2 + $0x18] sm:$0xff]
      %v266 = vld [vmem:[#allocation2 + $0x20] sm:$0xff]
      %v267 = vld [vmem:[#allocation2 + $0x28] sm:$0xff]
      %v268 = vld [vmem:[#allocation2 + $0x30] sm:$0xff]
      %v269 = vld [vmem:[#allocation2 + $0x38] sm:$0xff]
      %v270 = vld [vmem:[#allocation2 + $0x40] sm:$0xff]
      %v271 = vld [vmem:[#allocation2 + $0x48] sm:$0xff]
      %v272 = vld [vmem:[#allocation2 + $0x50] sm:$0xff]
      %v273 = vld [vmem:[#allocation2 + $0x58] sm:$0xff]
      %v274 = vld [vmem:[#allocation2 + $0x60] sm:$0xff]
      %v275 = vld [vmem:[#allocation2 + $0x68] sm:$0xff]
      %v276 = vld [vmem:[#allocation2 + $0x70] sm:$0xff]
      %v277 = vld [vmem:[#allocation2 + $0x78] sm:$0xff]
      %v278 = vld [vmem:[#allocation2 + $0x80] sm:$0xff]
      %v279 = vld [vmem:[#allocation2 + $0x88] sm:$0xff]
      %v280 = vld [vmem:[#allocation2 + $0x90] sm:$0xff]
      %v281 = vld [vmem:[#allocation2 + $0x98] sm:$0xff]
      %v282 = vld [vmem:[#allocation2 + $0xa0] sm:$0xff]
      %v283 = vld [vmem:[#allocation2 + $0xa8] sm:$0xff]
      %v284 = vld [vmem:[#allocation2 + $0xb0] sm:$0xff]
      %v285 = vld [vmem:[#allocation2 + $0xb8] sm:$0xff]
      %v286 = vld [vmem:[#allocation2 + $0xc0] sm:$0xff]
      %v287 = vld [vmem:[#allocation2 + $0xc8] sm:$0xff]
      %v288 = vld [vmem:[#allocation2 + $0xd0] sm:$0xff]
      %v289 = vld [vmem:[#allocation2 + $0xd8] sm:$0xff]
      %v290 = vld [vmem:[#allocation2 + $0xe0] sm:$0xff]
      %v291 = vld [vmem:[#allocation2 + $0xe8] sm:$0xff]
      %v292 = vld [vmem:[#allocation2 + $0xf0] sm:$0xff]
      %v293 = vld [vmem:[#allocation2 + $0xf8] sm:$0xff]
      %v294 = vld [vmem:[%s205] sm:$0xff]
      %v295 = vld [vmem:[%s205 + $0x8] sm:$0xff]
      %v296 = vld [vmem:[%s205 + $0x10] sm:$0xff]
      %v297 = vld [vmem:[%s205 + $0x18] sm:$0xff]
      %v298 = vld [vmem:[%s205 + $0x20] sm:$0xff]
      %v299 = vld [vmem:[%s205 + $0x28] sm:$0xff]
      %v300 = vld [vmem:[%s205 + $0x30] sm:$0xff]
      %v301 = vld [vmem:[%s205 + $0x38] sm:$0xff]
      %v302 = vld [vmem:[%s205 + $0x40] sm:$0xff]
      %v303 = vld [vmem:[%s205 + $0x48] sm:$0xff]
      %v304 = vld [vmem:[%s205 + $0x50] sm:$0xff]
      %v305 = vld [vmem:[%s205 + $0x58] sm:$0xff]
      %v306 = vld [vmem:[%s205 + $0x60] sm:$0xff]
      %v307 = vld [vmem:[%s205 + $0x68] sm:$0xff]
      %v308 = vld [vmem:[%s205 + $0x70] sm:$0xff]
      %v309 = vld [vmem:[%s205 + $0x78] sm:$0xff]
      %v310 = vld [vmem:[%s205 + $0x80] sm:$0xff]
      %v311 = vld [vmem:[%s205 + $0x88] sm:$0xff]
      %v312 = vld [vmem:[%s205 + $0x90] sm:$0xff]
      %v313 = vld [vmem:[%s205 + $0x98] sm:$0xff]
      %v314 = vld [vmem:[%s205 + $0xa0] sm:$0xff]
      %v315 = vld [vmem:[%s205 + $0xa8] sm:$0xff]
      %v316 = vld [vmem:[%s205 + $0xb0] sm:$0xff]
      %v317 = vld [vmem:[%s205 + $0xb8] sm:$0xff]
      %v318 = vld [vmem:[%s205 + $0xc0] sm:$0xff]
      %v319 = vld [vmem:[%s205 + $0xc8] sm:$0xff]
      %v320 = vld [vmem:[%s205 + $0xd0] sm:$0xff]
      %v321 = vld [vmem:[%s205 + $0xd8] sm:$0xff]
      %v322 = vld [vmem:[%s205 + $0xe0] sm:$0xff]
      %v323 = vld [vmem:[%s205 + $0xe8] sm:$0xff]
      %v324 = vld [vmem:[%s205 + $0xf0] sm:$0xff]
      %v325 = vld [vmem:[%s205 + $0xf8] sm:$0xff]
      %v326 = vld [vmem:[%s215] sm:$0xf]
      %v327 = vld [vmem:[%s215 + $0x4] sm:$0xf]
      %v328 = vld [vmem:[%s215 + $0x8] sm:$0xf]
      %v329 = vld [vmem:[%s215 + $0xc] sm:$0xf]
      %v330 = vld [vmem:[%s215 + $0x10] sm:$0xf]
      %v331 = vld [vmem:[%s215 + $0x14] sm:$0xf]
      %v332 = vld [vmem:[%s215 + $0x18] sm:$0xf]
      %v333 = vld [vmem:[%s215 + $0x1c] sm:$0xf]
      %v334 = vld [vmem:[%s215 + $0x20] sm:$0xf]
      %v335 = vld [vmem:[%s215 + $0x24] sm:$0xf]
      %v336 = vld [vmem:[%s215 + $0x28] sm:$0xf]
      %v337 = vld [vmem:[%s215 + $0x2c] sm:$0xf]
      %v338 = vld [vmem:[%s215 + $0x30] sm:$0xf]
      %v339 = vld [vmem:[%s215 + $0x34] sm:$0xf]
      %v340 = vld [vmem:[%s215 + $0x38] sm:$0xf]
      %v341 = vld [vmem:[%s215 + $0x3c] sm:$0xf]
      %v342 = vld [vmem:[%s215 + $0x40] sm:$0xf]
      %v343 = vld [vmem:[%s215 + $0x44] sm:$0xf]
      %v344 = vld [vmem:[%s215 + $0x48] sm:$0xf]
      %v345 = vld [vmem:[%s215 + $0x4c] sm:$0xf]
      %v346 = vld [vmem:[%s215 + $0x50] sm:$0xf]
      %v347 = vld [vmem:[%s215 + $0x54] sm:$0xf]
      %v348 = vld [vmem:[%s215 + $0x58] sm:$0xf]
      %v349 = vld [vmem:[%s215 + $0x5c] sm:$0xf]
      %v350 = vld [vmem:[%s215 + $0x60] sm:$0xf]
      %v351 = vld [vmem:[%s215 + $0x64] sm:$0xf]
      %v352 = vld [vmem:[%s215 + $0x68] sm:$0xf]
      %v353 = vld [vmem:[%s215 + $0x6c] sm:$0xf]
      %v354 = vld [vmem:[%s215 + $0x70] sm:$0xf]
      %v355 = vld [vmem:[%s215 + $0x74] sm:$0xf]
      %v356 = vld [vmem:[%s215 + $0x78] sm:$0xf]
      %v357 = vld [vmem:[%s215 + $0x7c] sm:$0xf]
      %v390 = vunpack.c.l.b16 %v294
      %v391 = vunpack.c.h.b16 %v294
      %v392 = vunpack.c.l.b16 %v295
      %v393 = vunpack.c.h.b16 %v295
      %v394 = vunpack.c.l.b16 %v296
      %v395 = vunpack.c.h.b16 %v296
      %v396 = vunpack.c.l.b16 %v297
      %v397 = vunpack.c.h.b16 %v297
      %v398 = vunpack.c.l.b16 %v298
      %v399 = vunpack.c.h.b16 %v298
      %v400 = vunpack.c.l.b16 %v299
      %v401 = vunpack.c.h.b16 %v299
      %v402 = vunpack.c.l.b16 %v300
      %v403 = vunpack.c.h.b16 %v300
      %v404 = vunpack.c.l.b16 %v301
      %v405 = vunpack.c.h.b16 %v301
      %v406 = vunpack.c.l.b16 %v302
      %v407 = vunpack.c.h.b16 %v302
      %v408 = vunpack.c.l.b16 %v303
      %v409 = vunpack.c.h.b16 %v303
      %v410 = vunpack.c.l.b16 %v304
      %v411 = vunpack.c.h.b16 %v304
      %v412 = vunpack.c.l.b16 %v305
      %v413 = vunpack.c.h.b16 %v305
      %v414 = vunpack.c.l.b16 %v306
      %v415 = vunpack.c.h.b16 %v306
      %v416 = vunpack.c.l.b16 %v307
      %v417 = vunpack.c.h.b16 %v307
      %v418 = vunpack.c.l.b16 %v308
      %v419 = vunpack.c.h.b16 %v308
      %v420 = vunpack.c.l.b16 %v309
      %v421 = vunpack.c.h.b16 %v309
      %v422 = vunpack.c.l.b16 %v310
      %v423 = vunpack.c.h.b16 %v310
      %v424 = vunpack.c.l.b16 %v311
      %v425 = vunpack.c.h.b16 %v311
      %v426 = vunpack.c.l.b16 %v312
      %v427 = vunpack.c.h.b16 %v312
      %v428 = vunpack.c.l.b16 %v313
      %v429 = vunpack.c.h.b16 %v313
      %v430 = vunpack.c.l.b16 %v314
      %v431 = vunpack.c.h.b16 %v314
      %v432 = vunpack.c.l.b16 %v315
      %v433 = vunpack.c.h.b16 %v315
      %v434 = vunpack.c.l.b16 %v316
      %v435 = vunpack.c.h.b16 %v316
      %v436 = vunpack.c.l.b16 %v317
      %v437 = vunpack.c.h.b16 %v317
      %v438 = vunpack.c.l.b16 %v318
      %v439 = vunpack.c.h.b16 %v318
      %v440 = vunpack.c.l.b16 %v319
      %v441 = vunpack.c.h.b16 %v319
      %v442 = vunpack.c.l.b16 %v320
      %v443 = vunpack.c.h.b16 %v320
      %v444 = vunpack.c.l.b16 %v321
      %v445 = vunpack.c.h.b16 %v321
      %v446 = vunpack.c.l.b16 %v322
      %v447 = vunpack.c.h.b16 %v322
      %v448 = vunpack.c.l.b16 %v323
      %v449 = vunpack.c.h.b16 %v323
      %v450 = vunpack.c.l.b16 %v324
      %v451 = vunpack.c.h.b16 %v324
      %v452 = vunpack.c.l.b16 %v325
      %v453 = vunpack.c.h.b16 %v325
      %v454 = vpack.c.b16 %v392, %v390
      %v455 = vpack.c.b16 %v393, %v391
      %v456 = vpack.c.b16 %v396, %v394
      %v457 = vpack.c.b16 %v397, %v395
      %v458 = vpack.c.b16 %v400, %v398
      %v459 = vpack.c.b16 %v401, %v399
      %v460 = vpack.c.b16 %v404, %v402
      %v461 = vpack.c.b16 %v405, %v403
      %v462 = vpack.c.b16 %v408, %v406
      %v463 = vpack.c.b16 %v409, %v407
      %v464 = vpack.c.b16 %v412, %v410
      %v465 = vpack.c.b16 %v413, %v411
      %v466 = vpack.c.b16 %v416, %v414
      %v467 = vpack.c.b16 %v417, %v415
      %v468 = vpack.c.b16 %v420, %v418
      %v469 = vpack.c.b16 %v421, %v419
      %v470 = vpack.c.b16 %v424, %v422
      %v471 = vpack.c.b16 %v425, %v423
      %v472 = vpack.c.b16 %v428, %v426
      %v473 = vpack.c.b16 %v429, %v427
      %v474 = vpack.c.b16 %v432, %v430
      %v475 = vpack.c.b16 %v433, %v431
      %v476 = vpack.c.b16 %v436, %v434
      %v477 = vpack.c.b16 %v437, %v435
      %v478 = vpack.c.b16 %v440, %v438
      %v479 = vpack.c.b16 %v441, %v439
      %v480 = vpack.c.b16 %v444, %v442
      %v481 = vpack.c.b16 %v445, %v443
      %v482 = vpack.c.b16 %v448, %v446
      %v483 = vpack.c.b16 %v449, %v447
      %v484 = vpack.c.b16 %v452, %v450
      %v485 = vpack.c.b16 %v453, %v451
      %v550 = vunpack.c.l.b16 %v326
      %v551 = vunpack.c.l.b16 %v327
      %v552 = vunpack.c.l.b16 %v328
      %v553 = vunpack.c.l.b16 %v329
      %v554 = vunpack.c.l.b16 %v330
      %v555 = vunpack.c.l.b16 %v331
      %v556 = vunpack.c.l.b16 %v332
      %v557 = vunpack.c.l.b16 %v333
      %v558 = vunpack.c.l.b16 %v334
      %v559 = vunpack.c.l.b16 %v335
      %v560 = vunpack.c.l.b16 %v336
      %v561 = vunpack.c.l.b16 %v337
      %v562 = vunpack.c.l.b16 %v338
      %v563 = vunpack.c.l.b16 %v339
      %v564 = vunpack.c.l.b16 %v340
      %v565 = vunpack.c.l.b16 %v341
      %v566 = vunpack.c.l.b16 %v342
      %v567 = vunpack.c.l.b16 %v343
      %v568 = vunpack.c.l.b16 %v344
      %v569 = vunpack.c.l.b16 %v345
      %v570 = vunpack.c.l.b16 %v346
      %v571 = vunpack.c.l.b16 %v347
      %v572 = vunpack.c.l.b16 %v348
      %v573 = vunpack.c.l.b16 %v349
      %v574 = vunpack.c.l.b16 %v350
      %v575 = vunpack.c.l.b16 %v351
      %v576 = vunpack.c.l.b16 %v352
      %v577 = vunpack.c.l.b16 %v353
      %v578 = vunpack.c.l.b16 %v354
      %v579 = vunpack.c.l.b16 %v355
      %v580 = vunpack.c.l.b16 %v356
      %v581 = vunpack.c.l.b16 %v357
      %v582 = vpack.c.b16 %v551, %v550
      %v583 = vpack.c.b16 %v553, %v552
      %v584 = vpack.c.b16 %v555, %v554
      %v585 = vpack.c.b16 %v557, %v556
      %v586 = vpack.c.b16 %v559, %v558
      %v587 = vpack.c.b16 %v561, %v560
      %v588 = vpack.c.b16 %v563, %v562
      %v589 = vpack.c.b16 %v565, %v564
      %v590 = vpack.c.b16 %v567, %v566
      %v591 = vpack.c.b16 %v569, %v568
      %v592 = vpack.c.b16 %v571, %v570
      %v593 = vpack.c.b16 %v573, %v572
      %v594 = vpack.c.b16 %v575, %v574
      %v595 = vpack.c.b16 %v577, %v576
      %v596 = vpack.c.b16 %v579, %v578
      %v597 = vpack.c.b16 %v581, %v580
      %614 = vmatpush.bf16.msra.mxu0 %v589
      %615 = vmatpush.bf16.msra.mxu0 %v588
      %616 = vmatpush.bf16.msra.mxu0 %v587
      %617 = vmatpush.bf16.msra.mxu0 %v586
      %618 = vmatpush.bf16.msra.mxu0 %v585
      %619 = vmatpush.bf16.msra.mxu0 %v584
      %620 = vmatpush.bf16.msra.mxu0 %v583
      %621 = vmatpush.bf16.msra.mxu0 %v582
      %622 = vmatmul.bf16.gmra.mxu0 %v454
      %v623 = vpop.f32.mrf.mxu0
      %v624 = vadd.f32 0.0, %v623
      %v625 = vpop.f32.mrf.mxu0
      %v626 = vadd.f32 0.0, %v625
      %627 = vmatmul.bf16.gmra.mxu0 %v456
      %v628 = vpop.f32.mrf.mxu0
      %v629 = vadd.f32 0.0, %v628
      %v630 = vpop.f32.mrf.mxu0
      %v631 = vadd.f32 0.0, %v630
      %632 = vmatmul.bf16.gmra.mxu0 %v458
      %v633 = vpop.f32.mrf.mxu0
      %v634 = vadd.f32 0.0, %v633
      %v635 = vpop.f32.mrf.mxu0
      %v636 = vadd.f32 0.0, %v635
      %637 = vmatmul.bf16.gmra.mxu0 %v460
      %v638 = vpop.f32.mrf.mxu0
      %v639 = vadd.f32 0.0, %v638
      %v640 = vpop.f32.mrf.mxu0
      %v641 = vadd.f32 0.0, %v640
      %642 = vmatmul.bf16.gmra.mxu0 %v462
      %v643 = vpop.f32.mrf.mxu0
      %v644 = vadd.f32 0.0, %v643
      %v645 = vpop.f32.mrf.mxu0
      %v646 = vadd.f32 0.0, %v645
      %647 = vmatmul.bf16.gmra.mxu0 %v464
      %v648 = vpop.f32.mrf.mxu0
      %v649 = vadd.f32 0.0, %v648
      %v650 = vpop.f32.mrf.mxu0
      %v651 = vadd.f32 0.0, %v650
      %652 = vmatmul.bf16.gmra.mxu0 %v466
      %v653 = vpop.f32.mrf.mxu0
      %v654 = vadd.f32 0.0, %v653
      %v655 = vpop.f32.mrf.mxu0
      %v656 = vadd.f32 0.0, %v655
      %657 = vmatmul.bf16.gmra.mxu0 %v468
      %v658 = vpop.f32.mrf.mxu0
      %v659 = vadd.f32 0.0, %v658
      %v660 = vpop.f32.mrf.mxu0
      %v661 = vadd.f32 0.0, %v660
      %662 = vmatmul.bf16.gmra.mxu0 %v470
      %v663 = vpop.f32.mrf.mxu0
      %v664 = vadd.f32 0.0, %v663
      %v665 = vpop.f32.mrf.mxu0
      %v666 = vadd.f32 0.0, %v665
      %667 = vmatmul.bf16.gmra.mxu0 %v472
      %v668 = vpop.f32.mrf.mxu0
      %v669 = vadd.f32 0.0, %v668
      %v670 = vpop.f32.mrf.mxu0
      %v671 = vadd.f32 0.0, %v670
      %672 = vmatmul.bf16.gmra.mxu0 %v474
      %v673 = vpop.f32.mrf.mxu0
      %v674 = vadd.f32 0.0, %v673
      %v675 = vpop.f32.mrf.mxu0
      %v676 = vadd.f32 0.0, %v675
      %677 = vmatmul.bf16.gmra.mxu0 %v476
      %v678 = vpop.f32.mrf.mxu0
      %v679 = vadd.f32 0.0, %v678
      %v680 = vpop.f32.mrf.mxu0
      %v681 = vadd.f32 0.0, %v680
      %682 = vmatmul.bf16.gmra.mxu0 %v478
      %v683 = vpop.f32.mrf.mxu0
      %v684 = vadd.f32 0.0, %v683
      %v685 = vpop.f32.mrf.mxu0
      %v686 = vadd.f32 0.0, %v685
      %687 = vmatmul.bf16.gmra.mxu0 %v480
      %v688 = vpop.f32.mrf.mxu0
      %v689 = vadd.f32 0.0, %v688
      %v690 = vpop.f32.mrf.mxu0
      %v691 = vadd.f32 0.0, %v690
      %692 = vmatmul.bf16.gmra.mxu0 %v482
      %v693 = vpop.f32.mrf.mxu0
      %v694 = vadd.f32 0.0, %v693
      %v695 = vpop.f32.mrf.mxu0
      %v696 = vadd.f32 0.0, %v695
      %697 = vmatmul.bf16.gmra.mxu0 %v484
      %v698 = vpop.f32.mrf.mxu0
      %v699 = vadd.f32 0.0, %v698
      %v700 = vpop.f32.mrf.mxu0
      %v701 = vadd.f32 0.0, %v700
      %702 = vdwg.mxu0
      %703 = vmatpush.bf16.msra.mxu0 %v597
      %704 = vmatpush.bf16.msra.mxu0 %v596
      %705 = vmatpush.bf16.msra.mxu0 %v595
      %706 = vmatpush.bf16.msra.mxu0 %v594
      %707 = vmatpush.bf16.msra.mxu0 %v593
      %708 = vmatpush.bf16.msra.mxu0 %v592
      %709 = vmatpush.bf16.msra.mxu0 %v591
      %710 = vmatpush.bf16.msra.mxu0 %v590
      %711 = vmatmul.bf16.gmra.mxu0 %v455
      %v712 = vpop.f32.mrf.mxu0
      %v713 = vadd.f32 %v624, %v712
      %v714 = vpop.f32.mrf.mxu0
      %v715 = vadd.f32 %v626, %v714
      %716 = vmatmul.bf16.gmra.mxu0 %v457
      %v717 = vpop.f32.mrf.mxu0
      %v718 = vadd.f32 %v629, %v717
      %v719 = vpop.f32.mrf.mxu0
      %v720 = vadd.f32 %v631, %v719
      %721 = vmatmul.bf16.gmra.mxu0 %v459
      %v722 = vpop.f32.mrf.mxu0
      %v723 = vadd.f32 %v634, %v722
      %v724 = vpop.f32.mrf.mxu0
      %v725 = vadd.f32 %v636, %v724
      %726 = vmatmul.bf16.gmra.mxu0 %v461
      %v727 = vpop.f32.mrf.mxu0
      %v728 = vadd.f32 %v639, %v727
      %v729 = vpop.f32.mrf.mxu0
      %v730 = vadd.f32 %v641, %v729
      %731 = vmatmul.bf16.gmra.mxu0 %v463
      %v732 = vpop.f32.mrf.mxu0
      %v733 = vadd.f32 %v644, %v732
      %v734 = vpop.f32.mrf.mxu0
      %v735 = vadd.f32 %v646, %v734
      %736 = vmatmul.bf16.gmra.mxu0 %v465
      %v737 = vpop.f32.mrf.mxu0
      %v738 = vadd.f32 %v649, %v737
      %v739 = vpop.f32.mrf.mxu0
      %v740 = vadd.f32 %v651, %v739
      %741 = vmatmul.bf16.gmra.mxu0 %v467
      %v742 = vpop.f32.mrf.mxu0
      %v743 = vadd.f32 %v654, %v742
      %v744 = vpop.f32.mrf.mxu0
      %v745 = vadd.f32 %v656, %v744
      %746 = vmatmul.bf16.gmra.mxu0 %v469
      %v747 = vpop.f32.mrf.mxu0
      %v748 = vadd.f32 %v659, %v747
      %v749 = vpop.f32.mrf.mxu0
      %v750 = vadd.f32 %v661, %v749
      %751 = vmatmul.bf16.gmra.mxu0 %v471
      %v752 = vpop.f32.mrf.mxu0
      %v753 = vadd.f32 %v664, %v752
      %v754 = vpop.f32.mrf.mxu0
      %v755 = vadd.f32 %v666, %v754
      %756 = vmatmul.bf16.gmra.mxu0 %v473
      %v757 = vpop.f32.mrf.mxu0
      %v758 = vadd.f32 %v669, %v757
      %v759 = vpop.f32.mrf.mxu0
      %v760 = vadd.f32 %v671, %v759
      %761 = vmatmul.bf16.gmra.mxu0 %v475
      %v762 = vpop.f32.mrf.mxu0
      %v763 = vadd.f32 %v674, %v762
      %v764 = vpop.f32.mrf.mxu0
      %v765 = vadd.f32 %v676, %v764
      %766 = vmatmul.bf16.gmra.mxu0 %v477
      %v767 = vpop.f32.mrf.mxu0
      %v768 = vadd.f32 %v679, %v767
      %v769 = vpop.f32.mrf.mxu0
      %v770 = vadd.f32 %v681, %v769
      %771 = vmatmul.bf16.gmra.mxu0 %v479
      %v772 = vpop.f32.mrf.mxu0
      %v773 = vadd.f32 %v684, %v772
      %v774 = vpop.f32.mrf.mxu0
      %v775 = vadd.f32 %v686, %v774
      %776 = vmatmul.bf16.gmra.mxu0 %v481
      %v777 = vpop.f32.mrf.mxu0
      %v778 = vadd.f32 %v689, %v777
      %v779 = vpop.f32.mrf.mxu0
      %v780 = vadd.f32 %v691, %v779
      %781 = vmatmul.bf16.gmra.mxu0 %v483
      %v782 = vpop.f32.mrf.mxu0
      %v783 = vadd.f32 %v694, %v782
      %v784 = vpop.f32.mrf.mxu0
      %v785 = vadd.f32 %v696, %v784
      %786 = vmatmul.bf16.gmra.mxu0 %v485
      %v787 = vpop.f32.mrf.mxu0
      %v788 = vadd.f32 %v699, %v787
      %v789 = vpop.f32.mrf.mxu0
      %v790 = vadd.f32 %v701, %v789
      %791 = vdwg.mxu0
      %v792 = vadd.f32 %v262, %v713
      %v793 = vadd.f32 %v263, %v715
      %v794 = vadd.f32 %v264, %v718
      %v795 = vadd.f32 %v265, %v720
      %v796 = vadd.f32 %v266, %v723
      %v797 = vadd.f32 %v267, %v725
      %v798 = vadd.f32 %v268, %v728
      %v799 = vadd.f32 %v269, %v730
      %v800 = vadd.f32 %v270, %v733
      %v801 = vadd.f32 %v271, %v735
      %v802 = vadd.f32 %v272, %v738
      %v803 = vadd.f32 %v273, %v740
      %v804 = vadd.f32 %v274, %v743
      %v805 = vadd.f32 %v275, %v745
      %v806 = vadd.f32 %v276, %v748
      %v807 = vadd.f32 %v277, %v750
      %v808 = vadd.f32 %v278, %v753
      %v809 = vadd.f32 %v279, %v755
      %v810 = vadd.f32 %v280, %v758
      %v811 = vadd.f32 %v281, %v760
      %v812 = vadd.f32 %v282, %v763
      %v813 = vadd.f32 %v283, %v765
      %v814 = vadd.f32 %v284, %v768
      %v815 = vadd.f32 %v285, %v770
      %v816 = vadd.f32 %v286, %v773
      %v817 = vadd.f32 %v287, %v775
      %v818 = vadd.f32 %v288, %v778
      %v819 = vadd.f32 %v289, %v780
      %v820 = vadd.f32 %v290, %v783
      %v821 = vadd.f32 %v291, %v785
      %v822 = vadd.f32 %v292, %v788
      %v823 = vadd.f32 %v293, %v790
      %824 = vst [vmem:[#allocation2] sm:$0xff] %v792
      %825 = vst [vmem:[#allocation2 + $0x8] sm:$0xff] %v793
      %826 = vst [vmem:[#allocation2 + $0x10] sm:$0xff] %v794
      %827 = vst [vmem:[#allocation2 + $0x18] sm:$0xff] %v795
      %828 = vst [vmem:[#allocation2 + $0x20] sm:$0xff] %v796
      %829 = vst [vmem:[#allocation2 + $0x28] sm:$0xff] %v797
      %830 = vst [vmem:[#allocation2 + $0x30] sm:$0xff] %v798
      %831 = vst [vmem:[#allocation2 + $0x38] sm:$0xff] %v799
      %832 = vst [vmem:[#allocation2 + $0x40] sm:$0xff] %v800
      %833 = vst [vmem:[#allocation2 + $0x48] sm:$0xff] %v801
      %834 = vst [vmem:[#allocation2 + $0x50] sm:$0xff] %v802
      %835 = vst [vmem:[#allocation2 + $0x58] sm:$0xff] %v803
      %836 = vst [vmem:[#allocation2 + $0x60] sm:$0xff] %v804
      %837 = vst [vmem:[#allocation2 + $0x68] sm:$0xff] %v805
      %838 = vst [vmem:[#allocation2 + $0x70] sm:$0xff] %v806
      %839 = vst [vmem:[#allocation2 + $0x78] sm:$0xff] %v807
      %840 = vst [vmem:[#allocation2 + $0x80] sm:$0xff] %v808
      %841 = vst [vmem:[#allocation2 + $0x88] sm:$0xff] %v809
      %842 = vst [vmem:[#allocation2 + $0x90] sm:$0xff] %v810
      %843 = vst [vmem:[#allocation2 + $0x98] sm:$0xff] %v811
      %844 = vst [vmem:[#allocation2 + $0xa0] sm:$0xff] %v812
      %845 = vst [vmem:[#allocation2 + $0xa8] sm:$0xff] %v813
      %846 = vst [vmem:[#allocation2 + $0xb0] sm:$0xff] %v814
      %847 = vst [vmem:[#allocation2 + $0xb8] sm:$0xff] %v815
      %848 = vst [vmem:[#allocation2 + $0xc0] sm:$0xff] %v816
      %849 = vst [vmem:[#allocation2 + $0xc8] sm:$0xff] %v817
      %850 = vst [vmem:[#allocation2 + $0xd0] sm:$0xff] %v818
      %851 = vst [vmem:[#allocation2 + $0xd8] sm:$0xff] %v819
      %852 = vst [vmem:[#allocation2 + $0xe0] sm:$0xff] %v820
      %853 = vst [vmem:[#allocation2 + $0xe8] sm:$0xff] %v821
      %854 = vst [vmem:[#allocation2 + $0xf0] sm:$0xff] %v822
      %855 = vst [vmem:[#allocation2 + $0xf8] sm:$0xff] %v823
      // Predicated region
      $region33: #{forward.39} parent=27 // pred_check
        %p856 = pneg %p226
      $region34: #{forward.39} parent=27 // pred_check_branch
        %858 = sbr.rel (%p856) target = $region36
      $region35: #{forward.39} parent=27 // pred_region
        %v859 = vld [vmem:[#allocation2] sm:$0xff]
        %v860 = vld [vmem:[#allocation2 + $0x8] sm:$0xff]
        %v861 = vld [vmem:[#allocation2 + $0x10] sm:$0xff]
        %v862 = vld [vmem:[#allocation2 + $0x18] sm:$0xff]
        %v863 = vld [vmem:[#allocation2 + $0x20] sm:$0xff]
        %v864 = vld [vmem:[#allocation2 + $0x28] sm:$0xff]
        %v865 = vld [vmem:[#allocation2 + $0x30] sm:$0xff]
        %v866 = vld [vmem:[#allocation2 + $0x38] sm:$0xff]
        %v867 = vld [vmem:[#allocation2 + $0x40] sm:$0xff]
        %v868 = vld [vmem:[#allocation2 + $0x48] sm:$0xff]
        %v869 = vld [vmem:[#allocation2 + $0x50] sm:$0xff]
        %v870 = vld [vmem:[#allocation2 + $0x58] sm:$0xff]
        %v871 = vld [vmem:[#allocation2 + $0x60] sm:$0xff]
        %v872 = vld [vmem:[#allocation2 + $0x68] sm:$0xff]
        %v873 = vld [vmem:[#allocation2 + $0x70] sm:$0xff]
        %v874 = vld [vmem:[#allocation2 + $0x78] sm:$0xff]
        %v875 = vld [vmem:[#allocation2 + $0x80] sm:$0xff]
        %v876 = vld [vmem:[#allocation2 + $0x88] sm:$0xff]
        %v877 = vld [vmem:[#allocation2 + $0x90] sm:$0xff]
        %v878 = vld [vmem:[#allocation2 + $0x98] sm:$0xff]
        %v879 = vld [vmem:[#allocation2 + $0xa0] sm:$0xff]
        %v880 = vld [vmem:[#allocation2 + $0xa8] sm:$0xff]
        %v881 = vld [vmem:[#allocation2 + $0xb0] sm:$0xff]
        %v882 = vld [vmem:[#allocation2 + $0xb8] sm:$0xff]
        %v883 = vld [vmem:[#allocation2 + $0xc0] sm:$0xff]
        %v884 = vld [vmem:[#allocation2 + $0xc8] sm:$0xff]
        %v885 = vld [vmem:[#allocation2 + $0xd0] sm:$0xff]
        %v886 = vld [vmem:[#allocation2 + $0xd8] sm:$0xff]
        %v887 = vld [vmem:[#allocation2 + $0xe0] sm:$0xff]
        %v888 = vld [vmem:[#allocation2 + $0xe8] sm:$0xff]
        %v889 = vld [vmem:[#allocation2 + $0xf0] sm:$0xff]
        %v890 = vld [vmem:[#allocation2 + $0xf8] sm:$0xff]
        %891 = vst [vmem:[%s224] sm:$0xff] %v859
        %892 = vst [vmem:[%s224 + $0x8] sm:$0xff] %v860
        %893 = vst [vmem:[%s224 + $0x10] sm:$0xff] %v861
        %894 = vst [vmem:[%s224 + $0x18] sm:$0xff] %v862
        %895 = vst [vmem:[%s224 + $0x20] sm:$0xff] %v863
        %896 = vst [vmem:[%s224 + $0x28] sm:$0xff] %v864
        %897 = vst [vmem:[%s224 + $0x30] sm:$0xff] %v865
        %898 = vst [vmem:[%s224 + $0x38] sm:$0xff] %v866
        %899 = vst [vmem:[%s224 + $0x40] sm:$0xff] %v867
        %900 = vst [vmem:[%s224 + $0x48] sm:$0xff] %v868
        %901 = vst [vmem:[%s224 + $0x50] sm:$0xff] %v869
        %902 = vst [vmem:[%s224 + $0x58] sm:$0xff] %v870
        %903 = vst [vmem:[%s224 + $0x60] sm:$0xff] %v871
        %904 = vst [vmem:[%s224 + $0x68] sm:$0xff] %v872
        %905 = vst [vmem:[%s224 + $0x70] sm:$0xff] %v873
        %906 = vst [vmem:[%s224 + $0x78] sm:$0xff] %v874
        %907 = vst [vmem:[%s224 + $0x80] sm:$0xff] %v875
        %908 = vst [vmem:[%s224 + $0x88] sm:$0xff] %v876
        %909 = vst [vmem:[%s224 + $0x90] sm:$0xff] %v877
        %910 = vst [vmem:[%s224 + $0x98] sm:$0xff] %v878
        %911 = vst [vmem:[%s224 + $0xa0] sm:$0xff] %v879
        %912 = vst [vmem:[%s224 + $0xa8] sm:$0xff] %v880
        %913 = vst [vmem:[%s224 + $0xb0] sm:$0xff] %v881
        %914 = vst [vmem:[%s224 + $0xb8] sm:$0xff] %v882
        %915 = vst [vmem:[%s224 + $0xc0] sm:$0xff] %v883
        %916 = vst [vmem:[%s224 + $0xc8] sm:$0xff] %v884
        %917 = vst [vmem:[%s224 + $0xd0] sm:$0xff] %v885
        %918 = vst [vmem:[%s224 + $0xd8] sm:$0xff] %v886
        %919 = vst [vmem:[%s224 + $0xe0] sm:$0xff] %v887
        %920 = vst [vmem:[%s224 + $0xe8] sm:$0xff] %v888
        %921 = vst [vmem:[%s224 + $0xf0] sm:$0xff] %v889
        %922 = vst [vmem:[%s224 + $0xf8] sm:$0xff] %v890
      $region36: #{forward.39} parent=27 // pred_fallthru
        _
      %s923 = smul.u32 32, %s18
      %p924 = scmp.lt.s32.totalorder %s923, 255
      %s925 = scalar_select %p924, %s923, 255
      %p926 = scmp.lt.s32.totalorder %s19, 0
      %s927 = scalar_select %p926, %s19, 0
      %s928 = sadd.s32 %s927, %s925
      %s929 = smul.addr %s928, 8
      %s930 = scalar_lea.vmem %s2, %s929
      // Predicated region
      $region37: #{forward.39} parent=27 // pred_check
        %p931 = pneg %p108
      $region38: #{forward.39} parent=27 // pred_check_branch
        %933 = sbr.rel (%p931) target = $region40
      $region39: #{forward.39} parent=27 // pred_region
        %s934 = smul.u32 32, %s18
      $region40: #{forward.39} parent=27 // pred_fallthru
        _
    $region28: #{forward.39} parent=5 // pred_fallthru
      _
    %p935 = scmp.le.s32.totalorder 2, %s8
    // Predicated region
    $region41: #{forward.39} parent=5 // pred_check
      %p936 = pneg %p935
    $region42: #{forward.39} parent=5 // pred_check_branch
      %938 = sbr.rel (%p936) target = $region44
    $region43: #{forward.39} parent=5 // pred_region
      %s939 = ssub.s32 %s8, 2
      // Predicated region
      $region45: #{forward.39} parent=43 // pred_check
        %p940 = pneg %p114
      $region46: #{forward.39} parent=43 // pred_check_branch
        %942 = sbr.rel (%p940) target = $region48
      $region47: #{forward.39} parent=43 // pred_region
        %s943 = smul.u32 32, %s21
        %p944 = scmp.lt.s32.totalorder %s943, 255
        %s945 = scalar_select %p944, %s943, 255
        %p946 = scmp.lt.s32.totalorder %s22, 0
        %s947 = scalar_select %p946, %s22, 0
        %s948 = sadd.s32 %s947, %s945
        %s949 = smul.addr %s948, 8
        %s950 = scalar_lea.vmem %s2, %s949
      $region48: #{forward.39} parent=43 // pred_fallthru
        _
    $region44: #{forward.39} parent=5 // pred_fallthru
      _
  $region6: #{forward.39} parent=0 // loop_footer
    %s12 = sadd.s32 1, %s8
  $region7: #{forward.39} parent=0 // loop_footer_branch
    %7 = sbr.rel target = $region3
  $region8: #{forward.39} parent=0 // loop_exit
    _

// kernel: tile.122
$region0: #{tile.122}
  #allocation0 [shape = 's32[1]{0}', space=sflag, size = 0x4, scoped, tag = 'scoped memory for tile.122']
  %s0 = inlined_call_operand.vmem [shape: f32[16], index: 0, kind: input, shape index: {}]
  %s1 = inlined_call_operand.vmem [shape: f32[8,16], index: 1, kind: output, shape index: {}]
  // Predicated region
  $region2: #{tile.122} parent=0 // pred_check
    _
  $region3: #{tile.122} parent=0 // pred_check_branch
    %3 = sbr.rel (0) target = $region5
  $region4: #{tile.122} parent=0 // pred_region
    _
  $region5: #{tile.122} parent=0 // pred_fallthru
    _
  %v4 = vld [vmem:[%s0] ss:$0 sm:$0xff]
  %5 = vst [vmem:[%s1] sm:$0xff] %v4

// kernel: tile.123
$region0: #{tile.123}
  %s0 = inlined_call_operand.vmem [shape: f32[8,16], index: 0, kind: input, shape index: {}]
  %s1 = inlined_call_operand.vmem [shape: f32[1,128], index: 1, kind: output, shape index: {}]
  $region1: #{tile.123} parent=0
    #allocation0 [shape = 'u8[4096]{0}', space=vmem, size = 0x1000, scoped, tag = 'scoped mem for output reshape']
    %v2 = vld [vmem:[%s0] sm:$0x1]
    %vm3 = vcmask 130048
    %4 = vst.msk [vmem:[#allocation0] sm:$0x1] %vm3, %v2
    %s5 = scalar_lea.vmem %s0, 7
    %v6 = vld [vmem:[%s5] sm:$0x1]
    %7 = vrot.lane.b32.xlu0 %v6, 112
    %v8 = vpop.permute.xlu0 %7
    %vm9 = vcmask 1048448
    %10 = vst.msk [vmem:[#allocation0] sm:$0x1] %vm9, %v8
    %s11 = scalar_lea.vmem %s0, 6
    %v12 = vld [vmem:[%s11] sm:$0x1]
    %13 = vrot.lane.b32.xlu0 %v12, 96
    %v14 = vpop.permute.xlu0 %13
    %vm15 = vcmask 917248
    %16 = vst.msk [vmem:[#allocation0] sm:$0x1] %vm15, %v14
    %s17 = scalar_lea.vmem %s0, 5
    %v18 = vld [vmem:[%s17] sm:$0x1]
    %19 = vrot.lane.b32.xlu0 %v18, 80
    %v20 = vpop.permute.xlu0 %19
    %vm21 = vcmask 786048
    %22 = vst.msk [vmem:[#allocation0] sm:$0x1] %vm21, %v20
    %s23 = scalar_lea.vmem %s0, 4
    %v24 = vld [vmem:[%s23] sm:$0x1]
    %25 = vrot.lane.b32.xlu0 %v24, 64
    %v26 = vpop.permute.xlu0 %25
    %vm27 = vcmask 654848
    %28 = vst.msk [vmem:[#allocation0] sm:$0x1] %vm27, %v26
    %s29 = scalar_lea.vmem %s0, 3
    %v30 = vld [vmem:[%s29] sm:$0x1]
    %31 = vrot.lane.b32.xlu0 %v30, 48
    %v32 = vpop.permute.xlu0 %31
    %vm33 = vcmask 523648
    %34 = vst.msk [vmem:[#allocation0] sm:$0x1] %vm33, %v32
    %s35 = scalar_lea.vmem %s0, 2
    %v36 = vld [vmem:[%s35] sm:$0x1]
    %37 = vrot.lane.b32.xlu0 %v36, 32
    %v38 = vpop.permute.xlu0 %37
    %vm39 = vcmask 392448
    %40 = vst.msk [vmem:[#allocation0] sm:$0x1] %vm39, %v38
    %s41 = scalar_lea.vmem %s0, 1
    %v42 = vld [vmem:[%s41] sm:$0x1]
    %43 = vrot.lane.b32.xlu0 %v42, 16
    %v44 = vpop.permute.xlu0 %43
    %vm45 = vcmask 261248
    %46 = vst.msk [vmem:[#allocation0] sm:$0x1] %vm45, %v44
    %s48 = ssub.s32 2, 1
    %v49 = vld [vmem:[#allocation0] sm:%s48]
    %s51 = ssub.s32 2, 1
    %52 = vst [vmem:[%s1] sm:%s51] %v49

// kernel: forward.40
$region0: #{forward.40}
  #allocation0 [shape = 'u32[]', space=smem, size = 0x4, offset = 0x4, fixed_abs, tag = 'smem constant byte address 0x4 - core index']
  #allocation1 [shape = 'u32[72,128]{1,0:T(1,128)}', space=vmem, size = 0x9000, scoped, tag = 'internal scratch']
  %s0 = inlined_call_operand.vmem [shape: f32[256,128], index: 0, kind: input, shape index: {}]
  %s1 = inlined_call_operand.vmem [shape: f32[1,128], index: 1, kind: input, shape index: {}]
  %s2 = inlined_call_operand.vmem [shape: f32[1,128], index: 2, kind: input, shape index: {}]
  %s3 = inlined_call_operand.vmem [shape: f32[256,128], index: 3, kind: output, shape index: {}]
  %s4 = sld [smem:[#allocation0]]
  $region22: #{forward.40} parent=0
    _
  %s6 = ssub.s32 1, %s4
  %s7 = scalar_select 0, %s6, %s4
  // Predicated region
  $region2: #{forward.40} parent=0 // pred_check
    _
  $region3: #{forward.40} parent=0 // pred_check_branch
    %9 = sbr.rel (0) target = $region5
  $region4: #{forward.40} parent=0 // pred_region
    _
  $region5: #{forward.40} parent=0 // pred_fallthru
    _
  // Predicated region
  $region6: #{forward.40} parent=0 // pred_check
    _
  $region7: #{forward.40} parent=0 // pred_check_branch
    %11 = sbr.rel (0) target = $region9
  $region8: #{forward.40} parent=0 // pred_region
    _
  $region9: #{forward.40} parent=0 // pred_fallthru
    _
  // Predicated region
  $region10: #{forward.40} parent=0 // pred_check
    _
  $region11: #{forward.40} parent=0 // pred_check_branch
    %13 = sbr.rel (0) target = $region13
  $region12: #{forward.40} parent=0 // pred_region
    _
  $region13: #{forward.40} parent=0 // pred_fallthru
    _
  %v14 = vld [vmem:[%s0] sm:$0xff]
  %v15 = vld [vmem:[%s0 + $0x8] sm:$0xff]
  %v16 = vld [vmem:[%s0 + $0x10] sm:$0xff]
  %v17 = vld [vmem:[%s0 + $0x18] sm:$0xff]
  %v18 = vld [vmem:[%s0 + $0x20] sm:$0xff]
  %v19 = vld [vmem:[%s0 + $0x28] sm:$0xff]
  %v20 = vld [vmem:[%s0 + $0x30] sm:$0xff]
  %v21 = vld [vmem:[%s0 + $0x38] sm:$0xff]
  %v22 = vld [vmem:[%s0 + $0x40] sm:$0xff]
  %v23 = vld [vmem:[%s0 + $0x48] sm:$0xff]
  %v24 = vld [vmem:[%s0 + $0x50] sm:$0xff]
  %v25 = vld [vmem:[%s0 + $0x58] sm:$0xff]
  %v26 = vld [vmem:[%s0 + $0x60] sm:$0xff]
  %v27 = vld [vmem:[%s0 + $0x68] sm:$0xff]
  %v28 = vld [vmem:[%s0 + $0x70] sm:$0xff]
  %v29 = vld [vmem:[%s0 + $0x78] sm:$0xff]
  %v30 = vld [vmem:[%s0 + $0x80] sm:$0xff]
  %v31 = vld [vmem:[%s0 + $0x88] sm:$0xff]
  %v32 = vld [vmem:[%s0 + $0x90] sm:$0xff]
  %v33 = vld [vmem:[%s0 + $0x98] sm:$0xff]
  %v34 = vld [vmem:[%s0 + $0xa0] sm:$0xff]
  %v35 = vld [vmem:[%s0 + $0xa8] sm:$0xff]
  %v36 = vld [vmem:[%s0 + $0xb0] sm:$0xff]
  %v37 = vld [vmem:[%s0 + $0xb8] sm:$0xff]
  %v38 = vld [vmem:[%s0 + $0xc0] sm:$0xff]
  %v39 = vld [vmem:[%s0 + $0xc8] sm:$0xff]
  %v40 = vld [vmem:[%s0 + $0xd0] sm:$0xff]
  %v41 = vld [vmem:[%s0 + $0xd8] sm:$0xff]
  %v42 = vld [vmem:[%s0 + $0xe0] sm:$0xff]
  %v43 = vld [vmem:[%s0 + $0xe8] sm:$0xff]
  %v44 = vld [vmem:[%s0 + $0xf0] sm:$0xff]
  %v45 = vld [vmem:[%s0 + $0xf8] sm:$0xff]
  %v46 = vld [vmem:[%s1] sm:$0x1]
  %v48 = vperm.slane %v46, 0
  %v50 = vmul.f32 %v14, %v48
  %v51 = vmul.f32 %v15, %v48
  %v52 = vmul.f32 %v16, %v48
  %v53 = vmul.f32 %v17, %v48
  %v54 = vmul.f32 %v18, %v48
  %v55 = vmul.f32 %v19, %v48
  %v56 = vmul.f32 %v20, %v48
  %v57 = vmul.f32 %v21, %v48
  %v58 = vmul.f32 %v22, %v48
  %v59 = vmul.f32 %v23, %v48
  %v60 = vmul.f32 %v24, %v48
  %v61 = vmul.f32 %v25, %v48
  %v62 = vmul.f32 %v26, %v48
  %v63 = vmul.f32 %v27, %v48
  %v64 = vmul.f32 %v28, %v48
  %v65 = vmul.f32 %v29, %v48
  %v66 = vmul.f32 %v30, %v48
  %v67 = vmul.f32 %v31, %v48
  %v68 = vmul.f32 %v32, %v48
  %v69 = vmul.f32 %v33, %v48
  %v70 = vmul.f32 %v34, %v48
  %v71 = vmul.f32 %v35, %v48
  %v72 = vmul.f32 %v36, %v48
  %v73 = vmul.f32 %v37, %v48
  %v74 = vmul.f32 %v38, %v48
  %v75 = vmul.f32 %v39, %v48
  %v76 = vmul.f32 %v40, %v48
  %v77 = vmul.f32 %v41, %v48
  %v78 = vmul.f32 %v42, %v48
  %v79 = vmul.f32 %v43, %v48
  %v80 = vmul.f32 %v44, %v48
  %v81 = vmul.f32 %v45, %v48
  %v82 = vld [vmem:[%s2] sm:$0x1]
  %v84 = vperm.slane %v82, 0
  %v86 = vadd.f32 %v50, %v84
  %v87 = vadd.f32 %v51, %v84
  %v88 = vadd.f32 %v52, %v84
  %v89 = vadd.f32 %v53, %v84
  %v90 = vadd.f32 %v54, %v84
  %v91 = vadd.f32 %v55, %v84
  %v92 = vadd.f32 %v56, %v84
  %v93 = vadd.f32 %v57, %v84
  %v94 = vadd.f32 %v58, %v84
  %v95 = vadd.f32 %v59, %v84
  %v96 = vadd.f32 %v60, %v84
  %v97 = vadd.f32 %v61, %v84
  %v98 = vadd.f32 %v62, %v84
  %v99 = vadd.f32 %v63, %v84
  %v100 = vadd.f32 %v64, %v84
  %v101 = vadd.f32 %v65, %v84
  %v102 = vadd.f32 %v66, %v84
  %v103 = vadd.f32 %v67, %v84
  %v104 = vadd.f32 %v68, %v84
  %v105 = vadd.f32 %v69, %v84
  %v106 = vadd.f32 %v70, %v84
  %v107 = vadd.f32 %v71, %v84
  %v108 = vadd.f32 %v72, %v84
  %v109 = vadd.f32 %v73, %v84
  %v110 = vadd.f32 %v74, %v84
  %v111 = vadd.f32 %v75, %v84
  %v112 = vadd.f32 %v76, %v84
  %v113 = vadd.f32 %v77, %v84
  %v114 = vadd.f32 %v78, %v84
  %v115 = vadd.f32 %v79, %v84
  %v116 = vadd.f32 %v80, %v84
  %v117 = vadd.f32 %v81, %v84
  %vm118 = vcmp.ge.f32.partialorder %v86, 0.0
  %vm119 = vcmp.ge.f32.partialorder %v87, 0.0
  %vm120 = vcmp.ge.f32.partialorder %v88, 0.0
  %vm121 = vcmp.ge.f32.partialorder %v89, 0.0
  %vm122 = vcmp.ge.f32.partialorder %v90, 0.0
  %vm123 = vcmp.ge.f32.partialorder %v91, 0.0
  %vm124 = vcmp.ge.f32.partialorder %v92, 0.0
  %vm125 = vcmp.ge.f32.partialorder %v93, 0.0
  %vm126 = vcmp.ge.f32.partialorder %v94, 0.0
  %vm127 = vcmp.ge.f32.partialorder %v95, 0.0
  %vm128 = vcmp.ge.f32.partialorder %v96, 0.0
  %vm129 = vcmp.ge.f32.partialorder %v97, 0.0
  %vm130 = vcmp.ge.f32.partialorder %v98, 0.0
  %vm131 = vcmp.ge.f32.partialorder %v99, 0.0
  %vm132 = vcmp.ge.f32.partialorder %v100, 0.0
  %vm133 = vcmp.ge.f32.partialorder %v101, 0.0
  %vm134 = vcmp.ge.f32.partialorder %v102, 0.0
  %vm135 = vcmp.ge.f32.partialorder %v103, 0.0
  %vm136 = vcmp.ge.f32.partialorder %v104, 0.0
  %vm137 = vcmp.ge.f32.partialorder %v105, 0.0
  %vm138 = vcmp.ge.f32.partialorder %v106, 0.0
  %vm139 = vcmp.ge.f32.partialorder %v107, 0.0
  %vm140 = vcmp.ge.f32.partialorder %v108, 0.0
  %vm141 = vcmp.ge.f32.partialorder %v109, 0.0
  %vm142 = vcmp.ge.f32.partialorder %v110, 0.0
  %vm143 = vcmp.ge.f32.partialorder %v111, 0.0
  %vm144 = vcmp.ge.f32.partialorder %v112, 0.0
  %vm145 = vcmp.ge.f32.partialorder %v113, 0.0
  %vm146 = vcmp.ge.f32.partialorder %v114, 0.0
  %vm147 = vcmp.ge.f32.partialorder %v115, 0.0
  %vm148 = vcmp.ge.f32.partialorder %v116, 0.0
  %vm149 = vcmp.ge.f32.partialorder %v117, 0.0
  %v150 = vmul.f32 %v86, 0.2
  %v151 = vmul.f32 %v87, 0.2
  %v152 = vmul.f32 %v88, 0.2
  %v153 = vmul.f32 %v89, 0.2
  %v154 = vmul.f32 %v90, 0.2
  %v155 = vmul.f32 %v91, 0.2
  %v156 = vmul.f32 %v92, 0.2
  %v157 = vmul.f32 %v93, 0.2
  %v158 = vmul.f32 %v94, 0.2
  %v159 = vmul.f32 %v95, 0.2
  %v160 = vmul.f32 %v96, 0.2
  %v161 = vmul.f32 %v97, 0.2
  %v162 = vmul.f32 %v98, 0.2
  %v163 = vmul.f32 %v99, 0.2
  %v164 = vmul.f32 %v100, 0.2
  %v165 = vmul.f32 %v101, 0.2
  %v166 = vmul.f32 %v102, 0.2
  %v167 = vmul.f32 %v103, 0.2
  %v168 = vmul.f32 %v104, 0.2
  %v169 = vmul.f32 %v105, 0.2
  %v170 = vmul.f32 %v106, 0.2
  %v171 = vmul.f32 %v107, 0.2
  %v172 = vmul.f32 %v108, 0.2
  %v173 = vmul.f32 %v109, 0.2
  %v174 = vmul.f32 %v110, 0.2
  %v175 = vmul.f32 %v111, 0.2
  %v176 = vmul.f32 %v112, 0.2
  %v177 = vmul.f32 %v113, 0.2
  %v178 = vmul.f32 %v114, 0.2
  %v179 = vmul.f32 %v115, 0.2
  %v180 = vmul.f32 %v116, 0.2
  %v181 = vmul.f32 %v117, 0.2
  %v182 = vsel %vm118, %v86, %v150
  %v183 = vsel %vm119, %v87, %v151
  %v184 = vsel %vm120, %v88, %v152
  %v185 = vsel %vm121, %v89, %v153
  %v186 = vsel %vm122, %v90, %v154
  %v187 = vsel %vm123, %v91, %v155
  %v188 = vsel %vm124, %v92, %v156
  %v189 = vsel %vm125, %v93, %v157
  %v190 = vsel %vm126, %v94, %v158
  %v191 = vsel %vm127, %v95, %v159
  %v192 = vsel %vm128, %v96, %v160
  %v193 = vsel %vm129, %v97, %v161
  %v194 = vsel %vm130, %v98, %v162
  %v195 = vsel %vm131, %v99, %v163
  %v196 = vsel %vm132, %v100, %v164
  %v197 = vsel %vm133, %v101, %v165
  %v198 = vsel %vm134, %v102, %v166
  %v199 = vsel %vm135, %v103, %v167
  %v200 = vsel %vm136, %v104, %v168
  %v201 = vsel %vm137, %v105, %v169
  %v202 = vsel %vm138, %v106, %v170
  %v203 = vsel %vm139, %v107, %v171
  %v204 = vsel %vm140, %v108, %v172
  %v205 = vsel %vm141, %v109, %v173
  %v206 = vsel %vm142, %v110, %v174
  %v207 = vsel %vm143, %v111, %v175
  %v208 = vsel %vm144, %v112, %v176
  %v209 = vsel %vm145, %v113, %v177
  %v210 = vsel %vm146, %v114, %v178
  %v211 = vsel %vm147, %v115, %v179
  %v212 = vsel %vm148, %v116, %v180
  %v213 = vsel %vm149, %v117, %v181
  %214 = vst [vmem:[%s3] sm:$0xff] %v182
  %215 = vst [vmem:[%s3 + $0x8] sm:$0xff] %v183
  %216 = vst [vmem:[%s3 + $0x10] sm:$0xff] %v184
  %217 = vst [vmem:[%s3 + $0x18] sm:$0xff] %v185
  %218 = vst [vmem:[%s3 + $0x20] sm:$0xff] %v186
  %219 = vst [vmem:[%s3 + $0x28] sm:$0xff] %v187
  %220 = vst [vmem:[%s3 + $0x30] sm:$0xff] %v188
  %221 = vst [vmem:[%s3 + $0x38] sm:$0xff] %v189
  %222 = vst [vmem:[%s3 + $0x40] sm:$0xff] %v190
  %223 = vst [vmem:[%s3 + $0x48] sm:$0xff] %v191
  %224 = vst [vmem:[%s3 + $0x50] sm:$0xff] %v192
  %225 = vst [vmem:[%s3 + $0x58] sm:$0xff] %v193
  %226 = vst [vmem:[%s3 + $0x60] sm:$0xff] %v194
  %227 = vst [vmem:[%s3 + $0x68] sm:$0xff] %v195
  %228 = vst [vmem:[%s3 + $0x70] sm:$0xff] %v196
  %229 = vst [vmem:[%s3 + $0x78] sm:$0xff] %v197
  %230 = vst [vmem:[%s3 + $0x80] sm:$0xff] %v198
  %231 = vst [vmem:[%s3 + $0x88] sm:$0xff] %v199
  %232 = vst [vmem:[%s3 + $0x90] sm:$0xff] %v200
  %233 = vst [vmem:[%s3 + $0x98] sm:$0xff] %v201
  %234 = vst [vmem:[%s3 + $0xa0] sm:$0xff] %v202
  %235 = vst [vmem:[%s3 + $0xa8] sm:$0xff] %v203
  %236 = vst [vmem:[%s3 + $0xb0] sm:$0xff] %v204
  %237 = vst [vmem:[%s3 + $0xb8] sm:$0xff] %v205
  %238 = vst [vmem:[%s3 + $0xc0] sm:$0xff] %v206
  %239 = vst [vmem:[%s3 + $0xc8] sm:$0xff] %v207
  %240 = vst [vmem:[%s3 + $0xd0] sm:$0xff] %v208
  %241 = vst [vmem:[%s3 + $0xd8] sm:$0xff] %v209
  %242 = vst [vmem:[%s3 + $0xe0] sm:$0xff] %v210
  %243 = vst [vmem:[%s3 + $0xe8] sm:$0xff] %v211
  %244 = vst [vmem:[%s3 + $0xf0] sm:$0xff] %v212
  %245 = vst [vmem:[%s3 + $0xf8] sm:$0xff] %v213
  // Predicated region
  $region14: #{forward.40} parent=0 // pred_check
    _
  $region15: #{forward.40} parent=0 // pred_check_branch
    %247 = sbr.rel (0) target = $region17
  $region16: #{forward.40} parent=0 // pred_region
    _
  $region17: #{forward.40} parent=0 // pred_fallthru
    _
  // Predicated region
  $region18: #{forward.40} parent=0 // pred_check
    _
  $region19: #{forward.40} parent=0 // pred_check_branch
    %249 = sbr.rel (0) target = $region21
  $region20: #{forward.40} parent=0 // pred_region
    _
  $region21: #{forward.40} parent=0 // pred_fallthru
    _

// kernel: tile.152
$region0: #{tile.152}
  #allocation0 [shape = 's32[1]{0}', space=sflag, size = 0x4, scoped, tag = 'scoped memory for tile.152']
  %s0 = inlined_call_operand.vmem [shape: f32[64], index: 0, kind: input, shape index: {}]
  %s1 = inlined_call_operand.vmem [shape: f32[2,64], index: 1, kind: output, shape index: {}]
  // Predicated region
  $region2: #{tile.152} parent=0 // pred_check
    _
  $region3: #{tile.152} parent=0 // pred_check_branch
    %3 = sbr.rel (0) target = $region5
  $region4: #{tile.152} parent=0 // pred_region
    _
  $region5: #{tile.152} parent=0 // pred_fallthru
    _
  %v4 = vld [vmem:[%s0] ss:$0 sm:$0xff]
  %5 = vst [vmem:[%s1] sm:$0x3] %v4

// kernel: tile.153
$region0: #{tile.153}
  %s0 = inlined_call_operand.vmem [shape: f32[2,64], index: 0, kind: input, shape index: {}]
  %s1 = inlined_call_operand.vmem [shape: f32[1,128], index: 1, kind: output, shape index: {}]
  $region1: #{tile.153} parent=0
    #allocation0 [shape = 'u8[4096]{0}', space=vmem, size = 0x1000, scoped, tag = 'scoped mem for output reshape']
    #allocation1 [shape = 'u8[4096]{0}', space=vmem, size = 0x1000, scoped, tag = 'scoped mem for input reshape']
    %s3 = ssub.s32 4, 1
    %v4 = vld [vmem:[%s0] sm:%s3]
    %5 = vst [vmem:[#allocation1] sm:%s3] %v4
    %v6 = vld [vmem:[#allocation1] sm:$0x1]
    %vm7 = vcmask 523264
    %8 = vst.msk [vmem:[#allocation0] sm:$0x1] %vm7, %v6
    %s9 = scalar_lea.vmem [#allocation1], 1
    %v10 = vld [vmem:[%s9] sm:$0x1]
    %11 = vrot.lane.b32.xlu0 %v10, 64
    %v12 = vpop.permute.xlu0 %11
    %vm13 = vcmask 1048064
    %14 = vst.msk [vmem:[#allocation0] sm:$0x1] %vm13, %v12
    %s16 = ssub.s32 2, 1
    %v17 = vld [vmem:[#allocation0] sm:%s16]
    %s19 = ssub.s32 2, 1
    %20 = vst [vmem:[%s1] sm:%s19] %v17

// kernel: forward.46
$region0: #{forward.46}
  #allocation0 [shape = 'u32[]', space=smem, size = 0x4, offset = 0x4, fixed_abs, tag = 'smem constant byte address 0x4 - core index']
  #allocation1 [shape = 'u32[72,128]{1,0:T(1,128)}', space=vmem, size = 0x9000, scoped, tag = 'internal scratch']
  #allocation2 [shape = 'f32[256,128]{1,0:T(8,128)}', space=vmem, size = 0x20000, scoped, tag = 'scratch operand']
  %s0 = inlined_call_operand.vmem [shape: bf16[512,128], index: 0, kind: input, shape index: {}]
  %s1 = inlined_call_operand.vmem [shape: bf16[128,128], index: 1, kind: input, shape index: {}]
  %s2 = inlined_call_operand.vmem [shape: f32[512,128], index: 2, kind: output, shape index: {}]
  %s3 = sld [smem:[#allocation0]]
  $region49: #{forward.46} parent=0
    _
  %s5 = ssub.s32 1, %s3
  %s6 = scalar_select 0, %s5, %s3
  loop: start=0, step=1, limit=4
  $region2: #{forward.46} parent=0 // loop_pre_header
    _
  $region3: #{forward.46} parent=0 // loop_header
    %s8 = sphi 0, %s12
    %p9 = scmp.ge.s32.totalorder %s8, 4
    %s15 = sphi 0, %s34
    %s16 = sphi 0, %s30
    %s17 = sphi 0, %s26
    %s18 = sphi 0, %s15
    %s19 = sphi 0, %s16
    %s20 = sphi 0, %s17
    %s21 = sphi 0, %s18
    %s22 = sphi 0, %s19
    %s23 = sphi 0, %s20
    %s39 = sphi 0, %s41
    %s42 = sphi 0, %s39
    %s43 = sphi 0, %s42
    %s59 = sphi 0, %s43
    %s67 = sphi 0, %s69
    %s70 = sphi 0, %s67
    %s71 = sphi 0, %s70
    %s87 = sphi 0, %s71
    %s95 = sphi 0, %s97
    %s98 = sphi 0, %s95
    %s99 = sphi 0, %s98
    %s115 = sphi 0, %s99
  $region4: #{forward.46} parent=0 // loop_header_branch
    %11 = sbr.rel (%p9) target = $region8
  $region5: #{forward.46} parent=0 // loop_body
    %s13 = ssub.s32 %s8, 1
    %s14 = ssub.s32 %s8, 2
    %s24 = sadd.s32 1, %s17
    %p25 = scmp.ge.s32.totalorder %s24, 1
    %s26 = scalar_select %p25, 0, %s24
    %s27 = sadd.s32 1, %s16
    %s28 = scalar_select %p25, %s27, %s16
    %p29 = scmp.ge.s32.totalorder %s28, 1
    %s30 = scalar_select %p29, 0, %s28
    %s31 = sadd.s32 1, %s15
    %s32 = scalar_select %p29, %s31, %s15
    %p33 = scmp.ge.s32.totalorder %s32, 2
    %s34 = scalar_select %p33, 0, %s32
    %s35 = ssub.s32 %s15, %s34
    %s36 = ssub.s32 %s17, %s26
    %s37 = sor.u32 %s35, %s36
    %p38 = scmp.eq.s32.totalorder %s37, 0
    %s40 = sadd.s32 %s39, 1
    %s41 = scalar_select %p38, %s39, %s40
    %p44 = pneg %p38
    %p45 = scmp.eq.s32.totalorder %s8, 1
    %p46 = por %p44, %p45
    %p47 = scmp.ne.s32.totalorder %s39, %s42
    %p48 = scmp.eq.s32.totalorder %s8, 0
    %p49 = por %p47, %p48
    %p50 = scmp.ne.s32.totalorder %s39, %s42
    %p51 = scmp.eq.s32.totalorder %s13, 1
    %p52 = por %p50, %p51
    %p53 = scmp.ne.s32.totalorder %s42, %s43
    %p54 = scmp.eq.s32.totalorder %s13, 0
    %p55 = por %p53, %p54
    %p56 = scmp.ne.s32.totalorder %s42, %s43
    %p57 = scmp.eq.s32.totalorder %s14, 1
    %p58 = por %p56, %p57
    %p60 = scmp.ne.s32.totalorder %s43, %s59
    %p61 = scmp.eq.s32.totalorder %s14, 0
    %p62 = por %p60, %p61
    %s63 = ssub.s32 %s17, %s26
    %s64 = ssub.s32 %s16, %s30
    %s65 = sor.u32 %s63, %s64
    %p66 = scmp.eq.s32.totalorder %s65, 0
    %s68 = sadd.s32 %s67, 1
    %s69 = scalar_select %p66, %s67, %s68
    %p72 = pneg %p66
    %p73 = scmp.eq.s32.totalorder %s8, 1
    %p74 = por %p72, %p73
    %p75 = scmp.ne.s32.totalorder %s67, %s70
    %p76 = scmp.eq.s32.totalorder %s8, 0
    %p77 = por %p75, %p76
    %p78 = scmp.ne.s32.totalorder %s67, %s70
    %p79 = scmp.eq.s32.totalorder %s13, 1
    %p80 = por %p78, %p79
    %p81 = scmp.ne.s32.totalorder %s70, %s71
    %p82 = scmp.eq.s32.totalorder %s13, 0
    %p83 = por %p81, %p82
    %p84 = scmp.ne.s32.totalorder %s70, %s71
    %p85 = scmp.eq.s32.totalorder %s14, 1
    %p86 = por %p84, %p85
    %p88 = scmp.ne.s32.totalorder %s71, %s87
    %p89 = scmp.eq.s32.totalorder %s14, 0
    %p90 = por %p88, %p89
    %s91 = ssub.s32 %s15, %s34
    %s92 = ssub.s32 %s16, %s30
    %s93 = sor.u32 %s91, %s92
    %p94 = scmp.eq.s32.totalorder %s93, 0
    %s96 = sadd.s32 %s95, 1
    %s97 = scalar_select %p94, %s95, %s96
    %p100 = pneg %p94
    %p101 = scmp.eq.s32.totalorder %s8, 1
    %p102 = por %p100, %p101
    %p103 = scmp.ne.s32.totalorder %s95, %s98
    %p104 = scmp.eq.s32.totalorder %s8, 0
    %p105 = por %p103, %p104
    %p106 = scmp.ne.s32.totalorder %s95, %s98
    %p107 = scmp.eq.s32.totalorder %s13, 1
    %p108 = por %p106, %p107
    %p109 = scmp.ne.s32.totalorder %s98, %s99
    %p110 = scmp.eq.s32.totalorder %s13, 0
    %p111 = por %p109, %p110
    %p112 = scmp.ne.s32.totalorder %s98, %s99
    %p113 = scmp.eq.s32.totalorder %s14, 1
    %p114 = por %p112, %p113
    %p116 = scmp.ne.s32.totalorder %s99, %s115
    %p117 = scmp.eq.s32.totalorder %s14, 0
    %p118 = por %p116, %p117
    %p119 = scmp.le.s32.totalorder 1, %s8
    %p120 = scmp.lt.s32.totalorder %s8, 3
    %p121 = pnand %p119, %p120
    %p122 = pneg %p121
    // Predicated region
    $region9: #{forward.46} parent=5 // pred_check
      _
    $region10: #{forward.46} parent=5 // pred_check_branch
      %124 = sbr.rel (%p121) target = $region12
    $region11: #{forward.46} parent=5 // pred_region
      %s125 = ssub.s32 %s8, 1
      // Predicated region
      $region13: #{forward.46} parent=11 // pred_check
        %p126 = pneg %p83
      $region14: #{forward.46} parent=11 // pred_check_branch
        %128 = sbr.rel (%p126) target = $region16
      $region15: #{forward.46} parent=11 // pred_region
        %s129 = smul.u32 16, %s20
        %p130 = scmp.lt.s32.totalorder %s129, 15
        %s131 = scalar_select %p130, %s129, 15
        %p132 = scmp.lt.s32.totalorder %s19, 0
        %s133 = scalar_select %p132, %s19, 0
        %s134 = sadd.s32 %s133, %s131
        %s135 = smul.addr %s134, 4
        %s136 = scalar_lea.vmem %s1, %s135
        %s137 = smul.u32 16, %s20
      $region16: #{forward.46} parent=11 // pred_fallthru
        _
    $region12: #{forward.46} parent=5 // pred_fallthru
      _
    %p138 = scmp.lt.s32.totalorder %s8, 2
    // Predicated region
    $region17: #{forward.46} parent=5 // pred_check
      %p139 = pneg %p138
    $region18: #{forward.46} parent=5 // pred_check_branch
      %141 = sbr.rel (%p139) target = $region20
    $region19: #{forward.46} parent=5 // pred_region
      // Predicated region
      $region21: #{forward.46} parent=19 // pred_check
        %p142 = pneg %p49
      $region22: #{forward.46} parent=19 // pred_check_branch
        %144 = sbr.rel (%p142) target = $region24
      $region23: #{forward.46} parent=19 // pred_region
        %s145 = smul.u32 32, %s15
        %p146 = scmp.lt.s32.totalorder %s145, 63
        %s147 = scalar_select %p146, %s145, 63
        %p148 = scmp.lt.s32.totalorder %s17, 0
        %s149 = scalar_select %p148, %s17, 0
        %s150 = sadd.s32 %s149, %s147
        %s151 = smul.addr %s150, 4
        %s152 = scalar_lea.vmem %s0, %s151
        %s153 = smul.u32 32, %s15
      $region24: #{forward.46} parent=19 // pred_fallthru
        _
    $region20: #{forward.46} parent=5 // pred_fallthru
      _
    %p154 = scmp.le.s32.totalorder 1, %s8
    %p155 = scmp.lt.s32.totalorder %s8, 3
    %p156 = pnand %p154, %p155
    %p157 = pneg %p156
    // Predicated region
    $region25: #{forward.46} parent=5 // pred_check
      _
    $region26: #{forward.46} parent=5 // pred_check_branch
      %159 = sbr.rel (%p156) target = $region28
    $region27: #{forward.46} parent=5 // pred_region
      %s160 = ssub.s32 %s8, 1
      %s161 = smul.u32 32, %s18
      %p162 = scmp.lt.s32.totalorder %s161, 63
      %s163 = scalar_select %p162, %s161, 63
      %p164 = scmp.lt.s32.totalorder %s20, 0
      %s165 = scalar_select %p164, %s20, 0
      %s166 = sadd.s32 %s165, %s163
      %s167 = smul.addr %s166, 4
      %s168 = scalar_lea.vmem %s0, %s167
      %p169 = pneg %p55
      %p170 = pneg %p52
      %s171 = smul.u32 16, %s20
      %p172 = scmp.lt.s32.totalorder %s171, 15
      %s173 = scalar_select %p172, %s171, 15
      %p174 = scmp.lt.s32.totalorder %s19, 0
      %s175 = scalar_select %p174, %s19, 0
      %s176 = sadd.s32 %s175, %s173
      %s177 = smul.addr %s176, 4
      %s178 = scalar_lea.vmem %s1, %s177
      %p179 = pneg %p83
      %p180 = pneg %p80
      %p181 = pneg %p111
      %p182 = pneg %p108
      %s183 = smul.u32 32, %s18
      %p184 = scmp.lt.s32.totalorder %s183, 63
      %s185 = scalar_select %p184, %s183, 63
      %p186 = scmp.lt.s32.totalorder %s19, 0
      %s187 = scalar_select %p186, %s19, 0
      %s188 = sadd.s32 %s187, %s185
      %s189 = smul.addr %s188, 8
      %s190 = scalar_lea.vmem %s2, %s189
      %s191 = smul.u32 32, %s18
      %p192 = scmp.lt.s32.totalorder %s191, 63
      %s193 = scalar_select %p192, %s191, 63
      %p194 = scmp.lt.s32.totalorder %s20, 0
      %s195 = scalar_select %p194, %s20, 0
      %s196 = sadd.s32 %s195, %s193
      %s197 = smul.addr %s196, 4
      %s198 = scalar_lea.vmem %s0, %s197
      %s199 = smul.u32 32, %s18
      %s200 = smul.u32 16, %s20
      %p201 = scmp.lt.s32.totalorder %s200, 15
      %s202 = scalar_select %p201, %s200, 15
      %p203 = scmp.lt.s32.totalorder %s19, 0
      %s204 = scalar_select %p203, %s19, 0
      %s205 = sadd.s32 %s204, %s202
      %s206 = smul.addr %s205, 4
      %s207 = scalar_lea.vmem %s1, %s206
      %s208 = smul.u32 16, %s20
      %s209 = smul.u32 32, %s18
      %p210 = scmp.lt.s32.totalorder %s209, 63
      %s211 = scalar_select %p210, %s209, 63
      %p212 = scmp.lt.s32.totalorder %s19, 0
      %s213 = scalar_select %p212, %s19, 0
      %s214 = sadd.s32 %s213, %s211
      %s215 = smul.addr %s214, 8
      %s216 = scalar_lea.vmem %s2, %s215
      %s217 = smul.u32 32, %s18
      %p218 = scmp.eq.s32.totalorder %s20, 0
      // Predicated region
      $region29: #{forward.46} parent=27 // pred_check
        %p219 = pneg %p218
      $region30: #{forward.46} parent=27 // pred_check_branch
        %221 = sbr.rel (%p219) target = $region32
      $region31: #{forward.46} parent=27 // pred_region
        %222 = vst [vmem:[#allocation2] sm:$0xff] 0.0
        %223 = vst [vmem:[#allocation2 + $0x8] sm:$0xff] 0.0
        %224 = vst [vmem:[#allocation2 + $0x10] sm:$0xff] 0.0
        %225 = vst [vmem:[#allocation2 + $0x18] sm:$0xff] 0.0
        %226 = vst [vmem:[#allocation2 + $0x20] sm:$0xff] 0.0
        %227 = vst [vmem:[#allocation2 + $0x28] sm:$0xff] 0.0
        %228 = vst [vmem:[#allocation2 + $0x30] sm:$0xff] 0.0
        %229 = vst [vmem:[#allocation2 + $0x38] sm:$0xff] 0.0
        %230 = vst [vmem:[#allocation2 + $0x40] sm:$0xff] 0.0
        %231 = vst [vmem:[#allocation2 + $0x48] sm:$0xff] 0.0
        %232 = vst [vmem:[#allocation2 + $0x50] sm:$0xff] 0.0
        %233 = vst [vmem:[#allocation2 + $0x58] sm:$0xff] 0.0
        %234 = vst [vmem:[#allocation2 + $0x60] sm:$0xff] 0.0
        %235 = vst [vmem:[#allocation2 + $0x68] sm:$0xff] 0.0
        %236 = vst [vmem:[#allocation2 + $0x70] sm:$0xff] 0.0
        %237 = vst [vmem:[#allocation2 + $0x78] sm:$0xff] 0.0
        %238 = vst [vmem:[#allocation2 + $0x80] sm:$0xff] 0.0
        %239 = vst [vmem:[#allocation2 + $0x88] sm:$0xff] 0.0
        %240 = vst [vmem:[#allocation2 + $0x90] sm:$0xff] 0.0
        %241 = vst [vmem:[#allocation2 + $0x98] sm:$0xff] 0.0
        %242 = vst [vmem:[#allocation2 + $0xa0] sm:$0xff] 0.0
        %243 = vst [vmem:[#allocation2 + $0xa8] sm:$0xff] 0.0
        %244 = vst [vmem:[#allocation2 + $0xb0] sm:$0xff] 0.0
        %245 = vst [vmem:[#allocation2 + $0xb8] sm:$0xff] 0.0
        %246 = vst [vmem:[#allocation2 + $0xc0] sm:$0xff] 0.0
        %247 = vst [vmem:[#allocation2 + $0xc8] sm:$0xff] 0.0
        %248 = vst [vmem:[#allocation2 + $0xd0] sm:$0xff] 0.0
        %249 = vst [vmem:[#allocation2 + $0xd8] sm:$0xff] 0.0
        %250 = vst [vmem:[#allocation2 + $0xe0] sm:$0xff] 0.0
        %251 = vst [vmem:[#allocation2 + $0xe8] sm:$0xff] 0.0
        %252 = vst [vmem:[#allocation2 + $0xf0] sm:$0xff] 0.0
        %253 = vst [vmem:[#allocation2 + $0xf8] sm:$0xff] 0.0
      $region32: #{forward.46} parent=27 // pred_fallthru
        _
      %v254 = vld [vmem:[#allocation2] sm:$0xff]
      %v255 = vld [vmem:[#allocation2 + $0x8] sm:$0xff]
      %v256 = vld [vmem:[#allocation2 + $0x10] sm:$0xff]
      %v257 = vld [vmem:[#allocation2 + $0x18] sm:$0xff]
      %v258 = vld [vmem:[#allocation2 + $0x20] sm:$0xff]
      %v259 = vld [vmem:[#allocation2 + $0x28] sm:$0xff]
      %v260 = vld [vmem:[#allocation2 + $0x30] sm:$0xff]
      %v261 = vld [vmem:[#allocation2 + $0x38] sm:$0xff]
      %v262 = vld [vmem:[#allocation2 + $0x40] sm:$0xff]
      %v263 = vld [vmem:[#allocation2 + $0x48] sm:$0xff]
      %v264 = vld [vmem:[#allocation2 + $0x50] sm:$0xff]
      %v265 = vld [vmem:[#allocation2 + $0x58] sm:$0xff]
      %v266 = vld [vmem:[#allocation2 + $0x60] sm:$0xff]
      %v267 = vld [vmem:[#allocation2 + $0x68] sm:$0xff]
      %v268 = vld [vmem:[#allocation2 + $0x70] sm:$0xff]
      %v269 = vld [vmem:[#allocation2 + $0x78] sm:$0xff]
      %v270 = vld [vmem:[#allocation2 + $0x80] sm:$0xff]
      %v271 = vld [vmem:[#allocation2 + $0x88] sm:$0xff]
      %v272 = vld [vmem:[#allocation2 + $0x90] sm:$0xff]
      %v273 = vld [vmem:[#allocation2 + $0x98] sm:$0xff]
      %v274 = vld [vmem:[#allocation2 + $0xa0] sm:$0xff]
      %v275 = vld [vmem:[#allocation2 + $0xa8] sm:$0xff]
      %v276 = vld [vmem:[#allocation2 + $0xb0] sm:$0xff]
      %v277 = vld [vmem:[#allocation2 + $0xb8] sm:$0xff]
      %v278 = vld [vmem:[#allocation2 + $0xc0] sm:$0xff]
      %v279 = vld [vmem:[#allocation2 + $0xc8] sm:$0xff]
      %v280 = vld [vmem:[#allocation2 + $0xd0] sm:$0xff]
      %v281 = vld [vmem:[#allocation2 + $0xd8] sm:$0xff]
      %v282 = vld [vmem:[#allocation2 + $0xe0] sm:$0xff]
      %v283 = vld [vmem:[#allocation2 + $0xe8] sm:$0xff]
      %v284 = vld [vmem:[#allocation2 + $0xf0] sm:$0xff]
      %v285 = vld [vmem:[#allocation2 + $0xf8] sm:$0xff]
      %v286 = vld [vmem:[%s198] sm:$0xf]
      %v287 = vld [vmem:[%s198 + $0x4] sm:$0xf]
      %v288 = vld [vmem:[%s198 + $0x8] sm:$0xf]
      %v289 = vld [vmem:[%s198 + $0xc] sm:$0xf]
      %v290 = vld [vmem:[%s198 + $0x10] sm:$0xf]
      %v291 = vld [vmem:[%s198 + $0x14] sm:$0xf]
      %v292 = vld [vmem:[%s198 + $0x18] sm:$0xf]
      %v293 = vld [vmem:[%s198 + $0x1c] sm:$0xf]
      %v294 = vld [vmem:[%s198 + $0x20] sm:$0xf]
      %v295 = vld [vmem:[%s198 + $0x24] sm:$0xf]
      %v296 = vld [vmem:[%s198 + $0x28] sm:$0xf]
      %v297 = vld [vmem:[%s198 + $0x2c] sm:$0xf]
      %v298 = vld [vmem:[%s198 + $0x30] sm:$0xf]
      %v299 = vld [vmem:[%s198 + $0x34] sm:$0xf]
      %v300 = vld [vmem:[%s198 + $0x38] sm:$0xf]
      %v301 = vld [vmem:[%s198 + $0x3c] sm:$0xf]
      %v302 = vld [vmem:[%s198 + $0x40] sm:$0xf]
      %v303 = vld [vmem:[%s198 + $0x44] sm:$0xf]
      %v304 = vld [vmem:[%s198 + $0x48] sm:$0xf]
      %v305 = vld [vmem:[%s198 + $0x4c] sm:$0xf]
      %v306 = vld [vmem:[%s198 + $0x50] sm:$0xf]
      %v307 = vld [vmem:[%s198 + $0x54] sm:$0xf]
      %v308 = vld [vmem:[%s198 + $0x58] sm:$0xf]
      %v309 = vld [vmem:[%s198 + $0x5c] sm:$0xf]
      %v310 = vld [vmem:[%s198 + $0x60] sm:$0xf]
      %v311 = vld [vmem:[%s198 + $0x64] sm:$0xf]
      %v312 = vld [vmem:[%s198 + $0x68] sm:$0xf]
      %v313 = vld [vmem:[%s198 + $0x6c] sm:$0xf]
      %v314 = vld [vmem:[%s198 + $0x70] sm:$0xf]
      %v315 = vld [vmem:[%s198 + $0x74] sm:$0xf]
      %v316 = vld [vmem:[%s198 + $0x78] sm:$0xf]
      %v317 = vld [vmem:[%s198 + $0x7c] sm:$0xf]
      %v318 = vld [vmem:[%s207] sm:$0xf]
      %v319 = vld [vmem:[%s207 + $0x4] sm:$0xf]
      %v320 = vld [vmem:[%s207 + $0x8] sm:$0xf]
      %v321 = vld [vmem:[%s207 + $0xc] sm:$0xf]
      %v322 = vld [vmem:[%s207 + $0x10] sm:$0xf]
      %v323 = vld [vmem:[%s207 + $0x14] sm:$0xf]
      %v324 = vld [vmem:[%s207 + $0x18] sm:$0xf]
      %v325 = vld [vmem:[%s207 + $0x1c] sm:$0xf]
      %v326 = vld [vmem:[%s207 + $0x20] sm:$0xf]
      %v327 = vld [vmem:[%s207 + $0x24] sm:$0xf]
      %v328 = vld [vmem:[%s207 + $0x28] sm:$0xf]
      %v329 = vld [vmem:[%s207 + $0x2c] sm:$0xf]
      %v330 = vld [vmem:[%s207 + $0x30] sm:$0xf]
      %v331 = vld [vmem:[%s207 + $0x34] sm:$0xf]
      %v332 = vld [vmem:[%s207 + $0x38] sm:$0xf]
      %v333 = vld [vmem:[%s207 + $0x3c] sm:$0xf]
      %v366 = vunpack.c.l.b16 %v286
      %v367 = vunpack.c.l.b16 %v287
      %v368 = vunpack.c.l.b16 %v288
      %v369 = vunpack.c.l.b16 %v289
      %v370 = vunpack.c.l.b16 %v290
      %v371 = vunpack.c.l.b16 %v291
      %v372 = vunpack.c.l.b16 %v292
      %v373 = vunpack.c.l.b16 %v293
      %v374 = vunpack.c.l.b16 %v294
      %v375 = vunpack.c.l.b16 %v295
      %v376 = vunpack.c.l.b16 %v296
      %v377 = vunpack.c.l.b16 %v297
      %v378 = vunpack.c.l.b16 %v298
      %v379 = vunpack.c.l.b16 %v299
      %v380 = vunpack.c.l.b16 %v300
      %v381 = vunpack.c.l.b16 %v301
      %v382 = vunpack.c.l.b16 %v302
      %v383 = vunpack.c.l.b16 %v303
      %v384 = vunpack.c.l.b16 %v304
      %v385 = vunpack.c.l.b16 %v305
      %v386 = vunpack.c.l.b16 %v306
      %v387 = vunpack.c.l.b16 %v307
      %v388 = vunpack.c.l.b16 %v308
      %v389 = vunpack.c.l.b16 %v309
      %v390 = vunpack.c.l.b16 %v310
      %v391 = vunpack.c.l.b16 %v311
      %v392 = vunpack.c.l.b16 %v312
      %v393 = vunpack.c.l.b16 %v313
      %v394 = vunpack.c.l.b16 %v314
      %v395 = vunpack.c.l.b16 %v315
      %v396 = vunpack.c.l.b16 %v316
      %v397 = vunpack.c.l.b16 %v317
      %v398 = vpack.c.b16 %v367, %v366
      %v399 = vpack.c.b16 %v369, %v368
      %v400 = vpack.c.b16 %v371, %v370
      %v401 = vpack.c.b16 %v373, %v372
      %v402 = vpack.c.b16 %v375, %v374
      %v403 = vpack.c.b16 %v377, %v376
      %v404 = vpack.c.b16 %v379, %v378
      %v405 = vpack.c.b16 %v381, %v380
      %v406 = vpack.c.b16 %v383, %v382
      %v407 = vpack.c.b16 %v385, %v384
      %v408 = vpack.c.b16 %v387, %v386
      %v409 = vpack.c.b16 %v389, %v388
      %v410 = vpack.c.b16 %v391, %v390
      %v411 = vpack.c.b16 %v393, %v392
      %v412 = vpack.c.b16 %v395, %v394
      %v413 = vpack.c.b16 %v397, %v396
      %v446 = vunpack.c.l.b16 %v318
      %v447 = vunpack.c.l.b16 %v319
      %v448 = vunpack.c.l.b16 %v320
      %v449 = vunpack.c.l.b16 %v321
      %v450 = vunpack.c.l.b16 %v322
      %v451 = vunpack.c.l.b16 %v323
      %v452 = vunpack.c.l.b16 %v324
      %v453 = vunpack.c.l.b16 %v325
      %v454 = vunpack.c.l.b16 %v326
      %v455 = vunpack.c.l.b16 %v327
      %v456 = vunpack.c.l.b16 %v328
      %v457 = vunpack.c.l.b16 %v329
      %v458 = vunpack.c.l.b16 %v330
      %v459 = vunpack.c.l.b16 %v331
      %v460 = vunpack.c.l.b16 %v332
      %v461 = vunpack.c.l.b16 %v333
      %v462 = vpack.c.b16 %v447, %v446
      %v463 = vpack.c.b16 %v449, %v448
      %v464 = vpack.c.b16 %v451, %v450
      %v465 = vpack.c.b16 %v453, %v452
      %v466 = vpack.c.b16 %v455, %v454
      %v467 = vpack.c.b16 %v457, %v456
      %v468 = vpack.c.b16 %v459, %v458
      %v469 = vpack.c.b16 %v461, %v460
      %478 = vmatpush.bf16.msra.mxu0 %v469
      %479 = vmatpush.bf16.msra.mxu0 %v468
      %480 = vmatpush.bf16.msra.mxu0 %v467
      %481 = vmatpush.bf16.msra.mxu0 %v466
      %482 = vmatpush.bf16.msra.mxu0 %v465
      %483 = vmatpush.bf16.msra.mxu0 %v464
      %484 = vmatpush.bf16.msra.mxu0 %v463
      %485 = vmatpush.bf16.msra.mxu0 %v462
      %486 = vmatmul.bf16.gmra.mxu0 %v398
      %v487 = vpop.f32.mrf.mxu0
      %v488 = vadd.f32 0.0, %v487
      %v489 = vpop.f32.mrf.mxu0
      %v490 = vadd.f32 0.0, %v489
      %491 = vmatmul.bf16.gmra.mxu0 %v399
      %v492 = vpop.f32.mrf.mxu0
      %v493 = vadd.f32 0.0, %v492
      %v494 = vpop.f32.mrf.mxu0
      %v495 = vadd.f32 0.0, %v494
      %496 = vmatmul.bf16.gmra.mxu0 %v400
      %v497 = vpop.f32.mrf.mxu0
      %v498 = vadd.f32 0.0, %v497
      %v499 = vpop.f32.mrf.mxu0
      %v500 = vadd.f32 0.0, %v499
      %501 = vmatmul.bf16.gmra.mxu0 %v401
      %v502 = vpop.f32.mrf.mxu0
      %v503 = vadd.f32 0.0, %v502
      %v504 = vpop.f32.mrf.mxu0
      %v505 = vadd.f32 0.0, %v504
      %506 = vmatmul.bf16.gmra.mxu0 %v402
      %v507 = vpop.f32.mrf.mxu0
      %v508 = vadd.f32 0.0, %v507
      %v509 = vpop.f32.mrf.mxu0
      %v510 = vadd.f32 0.0, %v509
      %511 = vmatmul.bf16.gmra.mxu0 %v403
      %v512 = vpop.f32.mrf.mxu0
      %v513 = vadd.f32 0.0, %v512
      %v514 = vpop.f32.mrf.mxu0
      %v515 = vadd.f32 0.0, %v514
      %516 = vmatmul.bf16.gmra.mxu0 %v404
      %v517 = vpop.f32.mrf.mxu0
      %v518 = vadd.f32 0.0, %v517
      %v519 = vpop.f32.mrf.mxu0
      %v520 = vadd.f32 0.0, %v519
      %521 = vmatmul.bf16.gmra.mxu0 %v405
      %v522 = vpop.f32.mrf.mxu0
      %v523 = vadd.f32 0.0, %v522
      %v524 = vpop.f32.mrf.mxu0
      %v525 = vadd.f32 0.0, %v524
      %526 = vmatmul.bf16.gmra.mxu0 %v406
      %v527 = vpop.f32.mrf.mxu0
      %v528 = vadd.f32 0.0, %v527
      %v529 = vpop.f32.mrf.mxu0
      %v530 = vadd.f32 0.0, %v529
      %531 = vmatmul.bf16.gmra.mxu0 %v407
      %v532 = vpop.f32.mrf.mxu0
      %v533 = vadd.f32 0.0, %v532
      %v534 = vpop.f32.mrf.mxu0
      %v535 = vadd.f32 0.0, %v534
      %536 = vmatmul.bf16.gmra.mxu0 %v408
      %v537 = vpop.f32.mrf.mxu0
      %v538 = vadd.f32 0.0, %v537
      %v539 = vpop.f32.mrf.mxu0
      %v540 = vadd.f32 0.0, %v539
      %541 = vmatmul.bf16.gmra.mxu0 %v409
      %v542 = vpop.f32.mrf.mxu0
      %v543 = vadd.f32 0.0, %v542
      %v544 = vpop.f32.mrf.mxu0
      %v545 = vadd.f32 0.0, %v544
      %546 = vmatmul.bf16.gmra.mxu0 %v410
      %v547 = vpop.f32.mrf.mxu0
      %v548 = vadd.f32 0.0, %v547
      %v549 = vpop.f32.mrf.mxu0
      %v550 = vadd.f32 0.0, %v549
      %551 = vmatmul.bf16.gmra.mxu0 %v411
      %v552 = vpop.f32.mrf.mxu0
      %v553 = vadd.f32 0.0, %v552
      %v554 = vpop.f32.mrf.mxu0
      %v555 = vadd.f32 0.0, %v554
      %556 = vmatmul.bf16.gmra.mxu0 %v412
      %v557 = vpop.f32.mrf.mxu0
      %v558 = vadd.f32 0.0, %v557
      %v559 = vpop.f32.mrf.mxu0
      %v560 = vadd.f32 0.0, %v559
      %561 = vmatmul.bf16.gmra.mxu0 %v413
      %v562 = vpop.f32.mrf.mxu0
      %v563 = vadd.f32 0.0, %v562
      %v564 = vpop.f32.mrf.mxu0
      %v565 = vadd.f32 0.0, %v564
      %566 = vdwg.mxu0
      %v567 = vadd.f32 %v254, %v488
      %v568 = vadd.f32 %v255, %v490
      %v569 = vadd.f32 %v256, %v493
      %v570 = vadd.f32 %v257, %v495
      %v571 = vadd.f32 %v258, %v498
      %v572 = vadd.f32 %v259, %v500
      %v573 = vadd.f32 %v260, %v503
      %v574 = vadd.f32 %v261, %v505
      %v575 = vadd.f32 %v262, %v508
      %v576 = vadd.f32 %v263, %v510
      %v577 = vadd.f32 %v264, %v513
      %v578 = vadd.f32 %v265, %v515
      %v579 = vadd.f32 %v266, %v518
      %v580 = vadd.f32 %v267, %v520
      %v581 = vadd.f32 %v268, %v523
      %v582 = vadd.f32 %v269, %v525
      %v583 = vadd.f32 %v270, %v528
      %v584 = vadd.f32 %v271, %v530
      %v585 = vadd.f32 %v272, %v533
      %v586 = vadd.f32 %v273, %v535
      %v587 = vadd.f32 %v274, %v538
      %v588 = vadd.f32 %v275, %v540
      %v589 = vadd.f32 %v276, %v543
      %v590 = vadd.f32 %v277, %v545
      %v591 = vadd.f32 %v278, %v548
      %v592 = vadd.f32 %v279, %v550
      %v593 = vadd.f32 %v280, %v553
      %v594 = vadd.f32 %v281, %v555
      %v595 = vadd.f32 %v282, %v558
      %v596 = vadd.f32 %v283, %v560
      %v597 = vadd.f32 %v284, %v563
      %v598 = vadd.f32 %v285, %v565
      %599 = vst [vmem:[#allocation2] sm:$0xff] %v567
      %600 = vst [vmem:[#allocation2 + $0x8] sm:$0xff] %v568
      %601 = vst [vmem:[#allocation2 + $0x10] sm:$0xff] %v569
      %602 = vst [vmem:[#allocation2 + $0x18] sm:$0xff] %v570
      %603 = vst [vmem:[#allocation2 + $0x20] sm:$0xff] %v571
      %604 = vst [vmem:[#allocation2 + $0x28] sm:$0xff] %v572
      %605 = vst [vmem:[#allocation2 + $0x30] sm:$0xff] %v573
      %606 = vst [vmem:[#allocation2 + $0x38] sm:$0xff] %v574
      %607 = vst [vmem:[#allocation2 + $0x40] sm:$0xff] %v575
      %608 = vst [vmem:[#allocation2 + $0x48] sm:$0xff] %v576
      %609 = vst [vmem:[#allocation2 + $0x50] sm:$0xff] %v577
      %610 = vst [vmem:[#allocation2 + $0x58] sm:$0xff] %v578
      %611 = vst [vmem:[#allocation2 + $0x60] sm:$0xff] %v579
      %612 = vst [vmem:[#allocation2 + $0x68] sm:$0xff] %v580
      %613 = vst [vmem:[#allocation2 + $0x70] sm:$0xff] %v581
      %614 = vst [vmem:[#allocation2 + $0x78] sm:$0xff] %v582
      %615 = vst [vmem:[#allocation2 + $0x80] sm:$0xff] %v583
      %616 = vst [vmem:[#allocation2 + $0x88] sm:$0xff] %v584
      %617 = vst [vmem:[#allocation2 + $0x90] sm:$0xff] %v585
      %618 = vst [vmem:[#allocation2 + $0x98] sm:$0xff] %v586
      %619 = vst [vmem:[#allocation2 + $0xa0] sm:$0xff] %v587
      %620 = vst [vmem:[#allocation2 + $0xa8] sm:$0xff] %v588
      %621 = vst [vmem:[#allocation2 + $0xb0] sm:$0xff] %v589
      %622 = vst [vmem:[#allocation2 + $0xb8] sm:$0xff] %v590
      %623 = vst [vmem:[#allocation2 + $0xc0] sm:$0xff] %v591
      %624 = vst [vmem:[#allocation2 + $0xc8] sm:$0xff] %v592
      %625 = vst [vmem:[#allocation2 + $0xd0] sm:$0xff] %v593
      %626 = vst [vmem:[#allocation2 + $0xd8] sm:$0xff] %v594
      %627 = vst [vmem:[#allocation2 + $0xe0] sm:$0xff] %v595
      %628 = vst [vmem:[#allocation2 + $0xe8] sm:$0xff] %v596
      %629 = vst [vmem:[#allocation2 + $0xf0] sm:$0xff] %v597
      %630 = vst [vmem:[#allocation2 + $0xf8] sm:$0xff] %v598
      // Predicated region
      $region33: #{forward.46} parent=27 // pred_check
        %p631 = pneg %p218
      $region34: #{forward.46} parent=27 // pred_check_branch
        %633 = sbr.rel (%p631) target = $region36
      $region35: #{forward.46} parent=27 // pred_region
        %v634 = vld [vmem:[#allocation2] sm:$0xff]
        %v635 = vld [vmem:[#allocation2 + $0x8] sm:$0xff]
        %v636 = vld [vmem:[#allocation2 + $0x10] sm:$0xff]
        %v637 = vld [vmem:[#allocation2 + $0x18] sm:$0xff]
        %v638 = vld [vmem:[#allocation2 + $0x20] sm:$0xff]
        %v639 = vld [vmem:[#allocation2 + $0x28] sm:$0xff]
        %v640 = vld [vmem:[#allocation2 + $0x30] sm:$0xff]
        %v641 = vld [vmem:[#allocation2 + $0x38] sm:$0xff]
        %v642 = vld [vmem:[#allocation2 + $0x40] sm:$0xff]
        %v643 = vld [vmem:[#allocation2 + $0x48] sm:$0xff]
        %v644 = vld [vmem:[#allocation2 + $0x50] sm:$0xff]
        %v645 = vld [vmem:[#allocation2 + $0x58] sm:$0xff]
        %v646 = vld [vmem:[#allocation2 + $0x60] sm:$0xff]
        %v647 = vld [vmem:[#allocation2 + $0x68] sm:$0xff]
        %v648 = vld [vmem:[#allocation2 + $0x70] sm:$0xff]
        %v649 = vld [vmem:[#allocation2 + $0x78] sm:$0xff]
        %v650 = vld [vmem:[#allocation2 + $0x80] sm:$0xff]
        %v651 = vld [vmem:[#allocation2 + $0x88] sm:$0xff]
        %v652 = vld [vmem:[#allocation2 + $0x90] sm:$0xff]
        %v653 = vld [vmem:[#allocation2 + $0x98] sm:$0xff]
        %v654 = vld [vmem:[#allocation2 + $0xa0] sm:$0xff]
        %v655 = vld [vmem:[#allocation2 + $0xa8] sm:$0xff]
        %v656 = vld [vmem:[#allocation2 + $0xb0] sm:$0xff]
        %v657 = vld [vmem:[#allocation2 + $0xb8] sm:$0xff]
        %v658 = vld [vmem:[#allocation2 + $0xc0] sm:$0xff]
        %v659 = vld [vmem:[#allocation2 + $0xc8] sm:$0xff]
        %v660 = vld [vmem:[#allocation2 + $0xd0] sm:$0xff]
        %v661 = vld [vmem:[#allocation2 + $0xd8] sm:$0xff]
        %v662 = vld [vmem:[#allocation2 + $0xe0] sm:$0xff]
        %v663 = vld [vmem:[#allocation2 + $0xe8] sm:$0xff]
        %v664 = vld [vmem:[#allocation2 + $0xf0] sm:$0xff]
        %v665 = vld [vmem:[#allocation2 + $0xf8] sm:$0xff]
        %666 = vst [vmem:[%s216] sm:$0xff] %v634
        %667 = vst [vmem:[%s216 + $0x8] sm:$0xff] %v635
        %668 = vst [vmem:[%s216 + $0x10] sm:$0xff] %v636
        %669 = vst [vmem:[%s216 + $0x18] sm:$0xff] %v637
        %670 = vst [vmem:[%s216 + $0x20] sm:$0xff] %v638
        %671 = vst [vmem:[%s216 + $0x28] sm:$0xff] %v639
        %672 = vst [vmem:[%s216 + $0x30] sm:$0xff] %v640
        %673 = vst [vmem:[%s216 + $0x38] sm:$0xff] %v641
        %674 = vst [vmem:[%s216 + $0x40] sm:$0xff] %v642
        %675 = vst [vmem:[%s216 + $0x48] sm:$0xff] %v643
        %676 = vst [vmem:[%s216 + $0x50] sm:$0xff] %v644
        %677 = vst [vmem:[%s216 + $0x58] sm:$0xff] %v645
        %678 = vst [vmem:[%s216 + $0x60] sm:$0xff] %v646
        %679 = vst [vmem:[%s216 + $0x68] sm:$0xff] %v647
        %680 = vst [vmem:[%s216 + $0x70] sm:$0xff] %v648
        %681 = vst [vmem:[%s216 + $0x78] sm:$0xff] %v649
        %682 = vst [vmem:[%s216 + $0x80] sm:$0xff] %v650
        %683 = vst [vmem:[%s216 + $0x88] sm:$0xff] %v651
        %684 = vst [vmem:[%s216 + $0x90] sm:$0xff] %v652
        %685 = vst [vmem:[%s216 + $0x98] sm:$0xff] %v653
        %686 = vst [vmem:[%s216 + $0xa0] sm:$0xff] %v654
        %687 = vst [vmem:[%s216 + $0xa8] sm:$0xff] %v655
        %688 = vst [vmem:[%s216 + $0xb0] sm:$0xff] %v656
        %689 = vst [vmem:[%s216 + $0xb8] sm:$0xff] %v657
        %690 = vst [vmem:[%s216 + $0xc0] sm:$0xff] %v658
        %691 = vst [vmem:[%s216 + $0xc8] sm:$0xff] %v659
        %692 = vst [vmem:[%s216 + $0xd0] sm:$0xff] %v660
        %693 = vst [vmem:[%s216 + $0xd8] sm:$0xff] %v661
        %694 = vst [vmem:[%s216 + $0xe0] sm:$0xff] %v662
        %695 = vst [vmem:[%s216 + $0xe8] sm:$0xff] %v663
        %696 = vst [vmem:[%s216 + $0xf0] sm:$0xff] %v664
        %697 = vst [vmem:[%s216 + $0xf8] sm:$0xff] %v665
      $region36: #{forward.46} parent=27 // pred_fallthru
        _
      %s698 = smul.u32 32, %s18
      %p699 = scmp.lt.s32.totalorder %s698, 63
      %s700 = scalar_select %p699, %s698, 63
      %p701 = scmp.lt.s32.totalorder %s19, 0
      %s702 = scalar_select %p701, %s19, 0
      %s703 = sadd.s32 %s702, %s700
      %s704 = smul.addr %s703, 8
      %s705 = scalar_lea.vmem %s2, %s704
      // Predicated region
      $region37: #{forward.46} parent=27 // pred_check
        %p706 = pneg %p108
      $region38: #{forward.46} parent=27 // pred_check_branch
        %708 = sbr.rel (%p706) target = $region40
      $region39: #{forward.46} parent=27 // pred_region
        %s709 = smul.u32 32, %s18
      $region40: #{forward.46} parent=27 // pred_fallthru
        _
    $region28: #{forward.46} parent=5 // pred_fallthru
      _
    %p710 = scmp.le.s32.totalorder 2, %s8
    // Predicated region
    $region41: #{forward.46} parent=5 // pred_check
      %p711 = pneg %p710
    $region42: #{forward.46} parent=5 // pred_check_branch
      %713 = sbr.rel (%p711) target = $region44
    $region43: #{forward.46} parent=5 // pred_region
      %s714 = ssub.s32 %s8, 2
      // Predicated region
      $region45: #{forward.46} parent=43 // pred_check
        %p715 = pneg %p114
      $region46: #{forward.46} parent=43 // pred_check_branch
        %717 = sbr.rel (%p715) target = $region48
      $region47: #{forward.46} parent=43 // pred_region
        %s718 = smul.u32 32, %s21
        %p719 = scmp.lt.s32.totalorder %s718, 63
        %s720 = scalar_select %p719, %s718, 63
        %p721 = scmp.lt.s32.totalorder %s22, 0
        %s722 = scalar_select %p721, %s22, 0
        %s723 = sadd.s32 %s722, %s720
        %s724 = smul.addr %s723, 8
        %s725 = scalar_lea.vmem %s2, %s724
      $region48: #{forward.46} parent=43 // pred_fallthru
        _
    $region44: #{forward.46} parent=5 // pred_fallthru
      _
  $region6: #{forward.46} parent=0 // loop_footer
    %s12 = sadd.s32 1, %s8
  $region7: #{forward.46} parent=0 // loop_footer_branch
    %7 = sbr.rel target = $region3
  $region8: #{forward.46} parent=0 // loop_exit
    _

// kernel: forward.42
$region0: #{forward.42}
  #allocation0 [shape = 'u32[]', space=smem, size = 0x4, offset = 0x4, fixed_abs, tag = 'smem constant byte address 0x4 - core index']
  #allocation1 [shape = 'u32[72,128]{1,0:T(1,128)}', space=vmem, size = 0x9000, scoped, tag = 'internal scratch']
  %s0 = inlined_call_operand.vmem [shape: f32[64,128], index: 0, kind: input, shape index: {}]
  %s1 = inlined_call_operand.vmem [shape: f32[1,128], index: 1, kind: input, shape index: {}]
  %s2 = inlined_call_operand.vmem [shape: f32[1,128], index: 2, kind: input, shape index: {}]
  %s3 = inlined_call_operand.vmem [shape: f32[64,128], index: 3, kind: output, shape index: {}]
  %s4 = sld [smem:[#allocation0]]
  $region22: #{forward.42} parent=0
    _
  %s6 = ssub.s32 1, %s4
  %s7 = scalar_select 0, %s6, %s4
  // Predicated region
  $region2: #{forward.42} parent=0 // pred_check
    _
  $region3: #{forward.42} parent=0 // pred_check_branch
    %9 = sbr.rel (0) target = $region5
  $region4: #{forward.42} parent=0 // pred_region
    _
  $region5: #{forward.42} parent=0 // pred_fallthru
    _
  // Predicated region
  $region6: #{forward.42} parent=0 // pred_check
    _
  $region7: #{forward.42} parent=0 // pred_check_branch
    %11 = sbr.rel (0) target = $region9
  $region8: #{forward.42} parent=0 // pred_region
    _
  $region9: #{forward.42} parent=0 // pred_fallthru
    _
  // Predicated region
  $region10: #{forward.42} parent=0 // pred_check
    _
  $region11: #{forward.42} parent=0 // pred_check_branch
    %13 = sbr.rel (0) target = $region13
  $region12: #{forward.42} parent=0 // pred_region
    _
  $region13: #{forward.42} parent=0 // pred_fallthru
    _
  %v14 = vld [vmem:[%s0] sm:$0xff]
  %v15 = vld [vmem:[%s0 + $0x8] sm:$0xff]
  %v16 = vld [vmem:[%s0 + $0x10] sm:$0xff]
  %v17 = vld [vmem:[%s0 + $0x18] sm:$0xff]
  %v18 = vld [vmem:[%s0 + $0x20] sm:$0xff]
  %v19 = vld [vmem:[%s0 + $0x28] sm:$0xff]
  %v20 = vld [vmem:[%s0 + $0x30] sm:$0xff]
  %v21 = vld [vmem:[%s0 + $0x38] sm:$0xff]
  %v22 = vld [vmem:[%s1] sm:$0x1]
  %v24 = vperm.slane %v22, 0
  %v26 = vmul.f32 %v14, %v24
  %v27 = vmul.f32 %v15, %v24
  %v28 = vmul.f32 %v16, %v24
  %v29 = vmul.f32 %v17, %v24
  %v30 = vmul.f32 %v18, %v24
  %v31 = vmul.f32 %v19, %v24
  %v32 = vmul.f32 %v20, %v24
  %v33 = vmul.f32 %v21, %v24
  %v34 = vld [vmem:[%s2] sm:$0x1]
  %v36 = vperm.slane %v34, 0
  %v38 = vadd.f32 %v26, %v36
  %v39 = vadd.f32 %v27, %v36
  %v40 = vadd.f32 %v28, %v36
  %v41 = vadd.f32 %v29, %v36
  %v42 = vadd.f32 %v30, %v36
  %v43 = vadd.f32 %v31, %v36
  %v44 = vadd.f32 %v32, %v36
  %v45 = vadd.f32 %v33, %v36
  %vm46 = vcmp.ge.f32.partialorder %v38, 0.0
  %vm47 = vcmp.ge.f32.partialorder %v39, 0.0
  %vm48 = vcmp.ge.f32.partialorder %v40, 0.0
  %vm49 = vcmp.ge.f32.partialorder %v41, 0.0
  %vm50 = vcmp.ge.f32.partialorder %v42, 0.0
  %vm51 = vcmp.ge.f32.partialorder %v43, 0.0
  %vm52 = vcmp.ge.f32.partialorder %v44, 0.0
  %vm53 = vcmp.ge.f32.partialorder %v45, 0.0
  %v54 = vmul.f32 %v38, 0.2
  %v55 = vmul.f32 %v39, 0.2
  %v56 = vmul.f32 %v40, 0.2
  %v57 = vmul.f32 %v41, 0.2
  %v58 = vmul.f32 %v42, 0.2
  %v59 = vmul.f32 %v43, 0.2
  %v60 = vmul.f32 %v44, 0.2
  %v61 = vmul.f32 %v45, 0.2
  %v62 = vsel %vm46, %v38, %v54
  %v63 = vsel %vm47, %v39, %v55
  %v64 = vsel %vm48, %v40, %v56
  %v65 = vsel %vm49, %v41, %v57
  %v66 = vsel %vm50, %v42, %v58
  %v67 = vsel %vm51, %v43, %v59
  %v68 = vsel %vm52, %v44, %v60
  %v69 = vsel %vm53, %v45, %v61
  %70 = vst [vmem:[%s3] sm:$0xff] %v62
  %71 = vst [vmem:[%s3 + $0x8] sm:$0xff] %v63
  %72 = vst [vmem:[%s3 + $0x10] sm:$0xff] %v64
  %73 = vst [vmem:[%s3 + $0x18] sm:$0xff] %v65
  %74 = vst [vmem:[%s3 + $0x20] sm:$0xff] %v66
  %75 = vst [vmem:[%s3 + $0x28] sm:$0xff] %v67
  %76 = vst [vmem:[%s3 + $0x30] sm:$0xff] %v68
  %77 = vst [vmem:[%s3 + $0x38] sm:$0xff] %v69
  // Predicated region
  $region14: #{forward.42} parent=0 // pred_check
    _
  $region15: #{forward.42} parent=0 // pred_check_branch
    %79 = sbr.rel (0) target = $region17
  $region16: #{forward.42} parent=0 // pred_region
    _
  $region17: #{forward.42} parent=0 // pred_fallthru
    _
  // Predicated region
  $region18: #{forward.42} parent=0 // pred_check
    _
  $region19: #{forward.42} parent=0 // pred_check_branch
    %81 = sbr.rel (0) target = $region21
  $region20: #{forward.42} parent=0 // pred_region
    _
  $region21: #{forward.42} parent=0 // pred_fallthru
    _

// kernel: forward.47
$region0: #{forward.47}
  #allocation0 [shape = 'u32[]', space=smem, size = 0x4, offset = 0x4, fixed_abs, tag = 'smem constant byte address 0x4 - core index']
  #allocation1 [shape = 'u32[72,128]{1,0:T(1,128)}', space=vmem, size = 0x9000, scoped, tag = 'internal scratch']
  %s0 = inlined_call_operand.vmem [shape: f32[256,128], index: 0, kind: input, shape index: {}]
  %s1 = inlined_call_operand.vmem [shape: f32[1,128], index: 1, kind: input, shape index: {}]
  %s2 = inlined_call_operand.vmem [shape: f32[1,128], index: 2, kind: input, shape index: {}]
  %s3 = inlined_call_operand.vmem [shape: f32[256,128], index: 3, kind: output, shape index: {}]
  %s4 = sld [smem:[#allocation0]]
  $region22: #{forward.47} parent=0
    _
  %s6 = ssub.s32 1, %s4
  %s7 = scalar_select 0, %s6, %s4
  // Predicated region
  $region2: #{forward.47} parent=0 // pred_check
    _
  $region3: #{forward.47} parent=0 // pred_check_branch
    %9 = sbr.rel (0) target = $region5
  $region4: #{forward.47} parent=0 // pred_region
    _
  $region5: #{forward.47} parent=0 // pred_fallthru
    _
  // Predicated region
  $region6: #{forward.47} parent=0 // pred_check
    _
  $region7: #{forward.47} parent=0 // pred_check_branch
    %11 = sbr.rel (0) target = $region9
  $region8: #{forward.47} parent=0 // pred_region
    _
  $region9: #{forward.47} parent=0 // pred_fallthru
    _
  // Predicated region
  $region10: #{forward.47} parent=0 // pred_check
    _
  $region11: #{forward.47} parent=0 // pred_check_branch
    %13 = sbr.rel (0) target = $region13
  $region12: #{forward.47} parent=0 // pred_region
    _
  $region13: #{forward.47} parent=0 // pred_fallthru
    _
  %v14 = vld [vmem:[%s0] sm:$0xff]
  %v15 = vld [vmem:[%s0 + $0x8] sm:$0xff]
  %v16 = vld [vmem:[%s0 + $0x10] sm:$0xff]
  %v17 = vld [vmem:[%s0 + $0x18] sm:$0xff]
  %v18 = vld [vmem:[%s0 + $0x20] sm:$0xff]
  %v19 = vld [vmem:[%s0 + $0x28] sm:$0xff]
  %v20 = vld [vmem:[%s0 + $0x30] sm:$0xff]
  %v21 = vld [vmem:[%s0 + $0x38] sm:$0xff]
  %v22 = vld [vmem:[%s0 + $0x40] sm:$0xff]
  %v23 = vld [vmem:[%s0 + $0x48] sm:$0xff]
  %v24 = vld [vmem:[%s0 + $0x50] sm:$0xff]
  %v25 = vld [vmem:[%s0 + $0x58] sm:$0xff]
  %v26 = vld [vmem:[%s0 + $0x60] sm:$0xff]
  %v27 = vld [vmem:[%s0 + $0x68] sm:$0xff]
  %v28 = vld [vmem:[%s0 + $0x70] sm:$0xff]
  %v29 = vld [vmem:[%s0 + $0x78] sm:$0xff]
  %v30 = vld [vmem:[%s0 + $0x80] sm:$0xff]
  %v31 = vld [vmem:[%s0 + $0x88] sm:$0xff]
  %v32 = vld [vmem:[%s0 + $0x90] sm:$0xff]
  %v33 = vld [vmem:[%s0 + $0x98] sm:$0xff]
  %v34 = vld [vmem:[%s0 + $0xa0] sm:$0xff]
  %v35 = vld [vmem:[%s0 + $0xa8] sm:$0xff]
  %v36 = vld [vmem:[%s0 + $0xb0] sm:$0xff]
  %v37 = vld [vmem:[%s0 + $0xb8] sm:$0xff]
  %v38 = vld [vmem:[%s0 + $0xc0] sm:$0xff]
  %v39 = vld [vmem:[%s0 + $0xc8] sm:$0xff]
  %v40 = vld [vmem:[%s0 + $0xd0] sm:$0xff]
  %v41 = vld [vmem:[%s0 + $0xd8] sm:$0xff]
  %v42 = vld [vmem:[%s0 + $0xe0] sm:$0xff]
  %v43 = vld [vmem:[%s0 + $0xe8] sm:$0xff]
  %v44 = vld [vmem:[%s0 + $0xf0] sm:$0xff]
  %v45 = vld [vmem:[%s0 + $0xf8] sm:$0xff]
  %v46 = vld [vmem:[%s1] sm:$0x1]
  %v48 = vperm.slane %v46, 0
  %v50 = vmul.f32 %v14, %v48
  %v51 = vmul.f32 %v15, %v48
  %v52 = vmul.f32 %v16, %v48
  %v53 = vmul.f32 %v17, %v48
  %v54 = vmul.f32 %v18, %v48
  %v55 = vmul.f32 %v19, %v48
  %v56 = vmul.f32 %v20, %v48
  %v57 = vmul.f32 %v21, %v48
  %v58 = vmul.f32 %v22, %v48
  %v59 = vmul.f32 %v23, %v48
  %v60 = vmul.f32 %v24, %v48
  %v61 = vmul.f32 %v25, %v48
  %v62 = vmul.f32 %v26, %v48
  %v63 = vmul.f32 %v27, %v48
  %v64 = vmul.f32 %v28, %v48
  %v65 = vmul.f32 %v29, %v48
  %v66 = vmul.f32 %v30, %v48
  %v67 = vmul.f32 %v31, %v48
  %v68 = vmul.f32 %v32, %v48
  %v69 = vmul.f32 %v33, %v48
  %v70 = vmul.f32 %v34, %v48
  %v71 = vmul.f32 %v35, %v48
  %v72 = vmul.f32 %v36, %v48
  %v73 = vmul.f32 %v37, %v48
  %v74 = vmul.f32 %v38, %v48
  %v75 = vmul.f32 %v39, %v48
  %v76 = vmul.f32 %v40, %v48
  %v77 = vmul.f32 %v41, %v48
  %v78 = vmul.f32 %v42, %v48
  %v79 = vmul.f32 %v43, %v48
  %v80 = vmul.f32 %v44, %v48
  %v81 = vmul.f32 %v45, %v48
  %v82 = vld [vmem:[%s2] sm:$0x1]
  %v84 = vperm.slane %v82, 0
  %v86 = vadd.f32 %v50, %v84
  %v87 = vadd.f32 %v51, %v84
  %v88 = vadd.f32 %v52, %v84
  %v89 = vadd.f32 %v53, %v84
  %v90 = vadd.f32 %v54, %v84
  %v91 = vadd.f32 %v55, %v84
  %v92 = vadd.f32 %v56, %v84
  %v93 = vadd.f32 %v57, %v84
  %v94 = vadd.f32 %v58, %v84
  %v95 = vadd.f32 %v59, %v84
  %v96 = vadd.f32 %v60, %v84
  %v97 = vadd.f32 %v61, %v84
  %v98 = vadd.f32 %v62, %v84
  %v99 = vadd.f32 %v63, %v84
  %v100 = vadd.f32 %v64, %v84
  %v101 = vadd.f32 %v65, %v84
  %v102 = vadd.f32 %v66, %v84
  %v103 = vadd.f32 %v67, %v84
  %v104 = vadd.f32 %v68, %v84
  %v105 = vadd.f32 %v69, %v84
  %v106 = vadd.f32 %v70, %v84
  %v107 = vadd.f32 %v71, %v84
  %v108 = vadd.f32 %v72, %v84
  %v109 = vadd.f32 %v73, %v84
  %v110 = vadd.f32 %v74, %v84
  %v111 = vadd.f32 %v75, %v84
  %v112 = vadd.f32 %v76, %v84
  %v113 = vadd.f32 %v77, %v84
  %v114 = vadd.f32 %v78, %v84
  %v115 = vadd.f32 %v79, %v84
  %v116 = vadd.f32 %v80, %v84
  %v117 = vadd.f32 %v81, %v84
  %118 = vst [vmem:[%s3] sm:$0xff] %v86
  %119 = vst [vmem:[%s3 + $0x8] sm:$0xff] %v87
  %120 = vst [vmem:[%s3 + $0x10] sm:$0xff] %v88
  %121 = vst [vmem:[%s3 + $0x18] sm:$0xff] %v89
  %122 = vst [vmem:[%s3 + $0x20] sm:$0xff] %v90
  %123 = vst [vmem:[%s3 + $0x28] sm:$0xff] %v91
  %124 = vst [vmem:[%s3 + $0x30] sm:$0xff] %v92
  %125 = vst [vmem:[%s3 + $0x38] sm:$0xff] %v93
  %126 = vst [vmem:[%s3 + $0x40] sm:$0xff] %v94
  %127 = vst [vmem:[%s3 + $0x48] sm:$0xff] %v95
  %128 = vst [vmem:[%s3 + $0x50] sm:$0xff] %v96
  %129 = vst [vmem:[%s3 + $0x58] sm:$0xff] %v97
  %130 = vst [vmem:[%s3 + $0x60] sm:$0xff] %v98
  %131 = vst [vmem:[%s3 + $0x68] sm:$0xff] %v99
  %132 = vst [vmem:[%s3 + $0x70] sm:$0xff] %v100
  %133 = vst [vmem:[%s3 + $0x78] sm:$0xff] %v101
  %134 = vst [vmem:[%s3 + $0x80] sm:$0xff] %v102
  %135 = vst [vmem:[%s3 + $0x88] sm:$0xff] %v103
  %136 = vst [vmem:[%s3 + $0x90] sm:$0xff] %v104
  %137 = vst [vmem:[%s3 + $0x98] sm:$0xff] %v105
  %138 = vst [vmem:[%s3 + $0xa0] sm:$0xff] %v106
  %139 = vst [vmem:[%s3 + $0xa8] sm:$0xff] %v107
  %140 = vst [vmem:[%s3 + $0xb0] sm:$0xff] %v108
  %141 = vst [vmem:[%s3 + $0xb8] sm:$0xff] %v109
  %142 = vst [vmem:[%s3 + $0xc0] sm:$0xff] %v110
  %143 = vst [vmem:[%s3 + $0xc8] sm:$0xff] %v111
  %144 = vst [vmem:[%s3 + $0xd0] sm:$0xff] %v112
  %145 = vst [vmem:[%s3 + $0xd8] sm:$0xff] %v113
  %146 = vst [vmem:[%s3 + $0xe0] sm:$0xff] %v114
  %147 = vst [vmem:[%s3 + $0xe8] sm:$0xff] %v115
  %148 = vst [vmem:[%s3 + $0xf0] sm:$0xff] %v116
  %149 = vst [vmem:[%s3 + $0xf8] sm:$0xff] %v117
  // Predicated region
  $region14: #{forward.47} parent=0 // pred_check
    _
  $region15: #{forward.47} parent=0 // pred_check_branch
    %151 = sbr.rel (0) target = $region17
  $region16: #{forward.47} parent=0 // pred_region
    _
  $region17: #{forward.47} parent=0 // pred_fallthru
    _
  // Predicated region
  $region18: #{forward.47} parent=0 // pred_check
    _
  $region19: #{forward.47} parent=0 // pred_check_branch
    %153 = sbr.rel (0) target = $region21
  $region20: #{forward.47} parent=0 // pred_region
    _
  $region21: #{forward.47} parent=0 // pred_fallthru
    _

// kernel: tile.142
$region0: #{tile.142}
  #allocation0 [shape = 's32[1]{0}', space=sflag, size = 0x4, scoped, tag = 'scoped memory for tile.142']
  %s0 = inlined_call_operand.vmem [shape: f32[8], index: 0, kind: input, shape index: {}]
  %s1 = inlined_call_operand.vmem [shape: f32[16,8], index: 1, kind: output, shape index: {}]
  // Predicated region
  $region2: #{tile.142} parent=0 // pred_check
    _
  $region3: #{tile.142} parent=0 // pred_check_branch
    %3 = sbr.rel (0) target = $region5
  $region4: #{tile.142} parent=0 // pred_region
    _
  $region5: #{tile.142} parent=0 // pred_fallthru
    _
  %v4 = vld [vmem:[%s0] ss:$0 sm:$0xff]
  %5 = vst [vmem:[%s1] sm:$0xff] %v4
  %s6 = scalar_lea.vmem %s1, 8
  %7 = vst [vmem:[%s6] sm:$0xff] %v4

// kernel: tile.143
$region0: #{tile.143}
  %s0 = inlined_call_operand.vmem [shape: f32[16,8], index: 0, kind: input, shape index: {}]
  %s1 = inlined_call_operand.vmem [shape: f32[1,128], index: 1, kind: output, shape index: {}]
  $region1: #{tile.143} parent=0
    #allocation0 [shape = 'u8[4096]{0}', space=vmem, size = 0x1000, scoped, tag = 'scoped mem for output reshape']
    %v2 = vld [vmem:[%s0] sm:$0x1]
    %vm3 = vcmask 64512
    %4 = vst.msk [vmem:[#allocation0] sm:$0x1] %vm3, %v2
    %s5 = scalar_lea.vmem %s0, 15
    %v6 = vld [vmem:[%s5] sm:$0x1]
    %7 = vrot.lane.b32.xlu0 %v6, 120
    %v8 = vpop.permute.xlu0 %7
    %vm9 = vcmask 1048512
    %10 = vst.msk [vmem:[#allocation0] sm:$0x1] %vm9, %v8
    %s11 = scalar_lea.vmem %s0, 14
    %v12 = vld [vmem:[%s11] sm:$0x1]
    %13 = vrot.lane.b32.xlu0 %v12, 112
    %v14 = vpop.permute.xlu0 %13
    %vm15 = vcmask 982912
    %16 = vst.msk [vmem:[#allocation0] sm:$0x1] %vm15, %v14
    %s17 = scalar_lea.vmem %s0, 13
    %v18 = vld [vmem:[%s17] sm:$0x1]
    %19 = vrot.lane.b32.xlu0 %v18, 104
    %v20 = vpop.permute.xlu0 %19
    %vm21 = vcmask 917312
    %22 = vst.msk [vmem:[#allocation0] sm:$0x1] %vm21, %v20
    %s23 = scalar_lea.vmem %s0, 12
    %v24 = vld [vmem:[%s23] sm:$0x1]
    %25 = vrot.lane.b32.xlu0 %v24, 96
    %v26 = vpop.permute.xlu0 %25
    %vm27 = vcmask 851712
    %28 = vst.msk [vmem:[#allocation0] sm:$0x1] %vm27, %v26
    %s29 = scalar_lea.vmem %s0, 11
    %v30 = vld [vmem:[%s29] sm:$0x1]
    %31 = vrot.lane.b32.xlu0 %v30, 88
    %v32 = vpop.permute.xlu0 %31
    %vm33 = vcmask 786112
    %34 = vst.msk [vmem:[#allocation0] sm:$0x1] %vm33, %v32
    %s35 = scalar_lea.vmem %s0, 10
    %v36 = vld [vmem:[%s35] sm:$0x1]
    %37 = vrot.lane.b32.xlu0 %v36, 80
    %v38 = vpop.permute.xlu0 %37
    %vm39 = vcmask 720512
    %40 = vst.msk [vmem:[#allocation0] sm:$0x1] %vm39, %v38
    %s41 = scalar_lea.vmem %s0, 9
    %v42 = vld [vmem:[%s41] sm:$0x1]
    %43 = vrot.lane.b32.xlu0 %v42, 72
    %v44 = vpop.permute.xlu0 %43
    %vm45 = vcmask 654912
    %46 = vst.msk [vmem:[#allocation0] sm:$0x1] %vm45, %v44
    %s47 = scalar_lea.vmem %s0, 8
    %v48 = vld [vmem:[%s47] sm:$0x1]
    %49 = vrot.lane.b32.xlu0 %v48, 64
    %v50 = vpop.permute.xlu0 %49
    %vm51 = vcmask 589312
    %52 = vst.msk [vmem:[#allocation0] sm:$0x1] %vm51, %v50
    %s53 = scalar_lea.vmem %s0, 7
    %v54 = vld [vmem:[%s53] sm:$0x1]
    %55 = vrot.lane.b32.xlu0 %v54, 56
    %v56 = vpop.permute.xlu0 %55
    %vm57 = vcmask 523712
    %58 = vst.msk [vmem:[#allocation0] sm:$0x1] %vm57, %v56
    %s59 = scalar_lea.vmem %s0, 6
    %v60 = vld [vmem:[%s59] sm:$0x1]
    %61 = vrot.lane.b32.xlu0 %v60, 48
    %v62 = vpop.permute.xlu0 %61
    %vm63 = vcmask 458112
    %64 = vst.msk [vmem:[#allocation0] sm:$0x1] %vm63, %v62
    %s65 = scalar_lea.vmem %s0, 5
    %v66 = vld [vmem:[%s65] sm:$0x1]
    %67 = vrot.lane.b32.xlu0 %v66, 40
    %v68 = vpop.permute.xlu0 %67
    %vm69 = vcmask 392512
    %70 = vst.msk [vmem:[#allocation0] sm:$0x1] %vm69, %v68
    %s71 = scalar_lea.vmem %s0, 4
    %v72 = vld [vmem:[%s71] sm:$0x1]
    %73 = vrot.lane.b32.xlu0 %v72, 32
    %v74 = vpop.permute.xlu0 %73
    %vm75 = vcmask 326912
    %76 = vst.msk [vmem:[#allocation0] sm:$0x1] %vm75, %v74
    %s77 = scalar_lea.vmem %s0, 3
    %v78 = vld [vmem:[%s77] sm:$0x1]
    %79 = vrot.lane.b32.xlu0 %v78, 24
    %v80 = vpop.permute.xlu0 %79
    %vm81 = vcmask 261312
    %82 = vst.msk [vmem:[#allocation0] sm:$0x1] %vm81, %v80
    %s83 = scalar_lea.vmem %s0, 2
    %v84 = vld [vmem:[%s83] sm:$0x1]
    %85 = vrot.lane.b32.xlu0 %v84, 16
    %v86 = vpop.permute.xlu0 %85
    %vm87 = vcmask 195712
    %88 = vst.msk [vmem:[#allocation0] sm:$0x1] %vm87, %v86
    %s89 = scalar_lea.vmem %s0, 1
    %v90 = vld [vmem:[%s89] sm:$0x1]
    %91 = vrot.lane.b32.xlu0 %v90, 8
    %v92 = vpop.permute.xlu0 %91
    %vm93 = vcmask 130112
    %94 = vst.msk [vmem:[#allocation0] sm:$0x1] %vm93, %v92
    %s96 = ssub.s32 2, 1
    %v97 = vld [vmem:[#allocation0] sm:%s96]
    %s99 = ssub.s32 2, 1
    %100 = vst [vmem:[%s1] sm:%s99] %v97

// kernel: forward.44
$region0: #{forward.44}
  #allocation0 [shape = 'u32[]', space=smem, size = 0x4, offset = 0x4, fixed_abs, tag = 'smem constant byte address 0x4 - core index']
  #allocation1 [shape = 'u32[72,128]{1,0:T(1,128)}', space=vmem, size = 0x9000, scoped, tag = 'internal scratch']
  %s0 = inlined_call_operand.vmem [shape: f32[32,128], index: 0, kind: input, shape index: {}]
  %s1 = inlined_call_operand.vmem [shape: f32[1,128], index: 1, kind: input, shape index: {}]
  %s2 = inlined_call_operand.vmem [shape: f32[1,128], index: 2, kind: input, shape index: {}]
  %s3 = inlined_call_operand.vmem [shape: f32[32,128], index: 3, kind: output, shape index: {}]
  %s4 = sld [smem:[#allocation0]]
  $region22: #{forward.44} parent=0
    _
  %s6 = ssub.s32 1, %s4
  %s7 = scalar_select 0, %s6, %s4
  // Predicated region
  $region2: #{forward.44} parent=0 // pred_check
    _
  $region3: #{forward.44} parent=0 // pred_check_branch
    %9 = sbr.rel (0) target = $region5
  $region4: #{forward.44} parent=0 // pred_region
    _
  $region5: #{forward.44} parent=0 // pred_fallthru
    _
  // Predicated region
  $region6: #{forward.44} parent=0 // pred_check
    _
  $region7: #{forward.44} parent=0 // pred_check_branch
    %11 = sbr.rel (0) target = $region9
  $region8: #{forward.44} parent=0 // pred_region
    _
  $region9: #{forward.44} parent=0 // pred_fallthru
    _
  // Predicated region
  $region10: #{forward.44} parent=0 // pred_check
    _
  $region11: #{forward.44} parent=0 // pred_check_branch
    %13 = sbr.rel (0) target = $region13
  $region12: #{forward.44} parent=0 // pred_region
    _
  $region13: #{forward.44} parent=0 // pred_fallthru
    _
  %v14 = vld [vmem:[%s0] sm:$0xff]
  %v15 = vld [vmem:[%s0 + $0x8] sm:$0xff]
  %v16 = vld [vmem:[%s0 + $0x10] sm:$0xff]
  %v17 = vld [vmem:[%s0 + $0x18] sm:$0xff]
  %v18 = vld [vmem:[%s1] sm:$0x1]
  %v20 = vperm.slane %v18, 0
  %v22 = vmul.f32 %v14, %v20
  %v23 = vmul.f32 %v15, %v20
  %v24 = vmul.f32 %v16, %v20
  %v25 = vmul.f32 %v17, %v20
  %v26 = vld [vmem:[%s2] sm:$0x1]
  %v28 = vperm.slane %v26, 0
  %v30 = vadd.f32 %v22, %v28
  %v31 = vadd.f32 %v23, %v28
  %v32 = vadd.f32 %v24, %v28
  %v33 = vadd.f32 %v25, %v28
  %vm34 = vcmp.ge.f32.partialorder %v30, 0.0
  %vm35 = vcmp.ge.f32.partialorder %v31, 0.0
  %vm36 = vcmp.ge.f32.partialorder %v32, 0.0
  %vm37 = vcmp.ge.f32.partialorder %v33, 0.0
  %v38 = vmul.f32 %v30, 0.2
  %v39 = vmul.f32 %v31, 0.2
  %v40 = vmul.f32 %v32, 0.2
  %v41 = vmul.f32 %v33, 0.2
  %v42 = vsel %vm34, %v30, %v38
  %v43 = vsel %vm35, %v31, %v39
  %v44 = vsel %vm36, %v32, %v40
  %v45 = vsel %vm37, %v33, %v41
  %46 = vst [vmem:[%s3] sm:$0xff] %v42
  %47 = vst [vmem:[%s3 + $0x8] sm:$0xff] %v43
  %48 = vst [vmem:[%s3 + $0x10] sm:$0xff] %v44
  %49 = vst [vmem:[%s3 + $0x18] sm:$0xff] %v45
  // Predicated region
  $region14: #{forward.44} parent=0 // pred_check
    _
  $region15: #{forward.44} parent=0 // pred_check_branch
    %51 = sbr.rel (0) target = $region17
  $region16: #{forward.44} parent=0 // pred_region
    _
  $region17: #{forward.44} parent=0 // pred_fallthru
    _
  // Predicated region
  $region18: #{forward.44} parent=0 // pred_check
    _
  $region19: #{forward.44} parent=0 // pred_check_branch
    %53 = sbr.rel (0) target = $region21
  $region20: #{forward.44} parent=0 // pred_region
    _
  $region21: #{forward.44} parent=0 // pred_fallthru
    _

// kernel: forward.48
$region0: #{forward.48}
  #allocation0 [shape = 'u32[]', space=smem, size = 0x4, offset = 0x4, fixed_abs, tag = 'smem constant byte address 0x4 - core index']
  #allocation1 [shape = 'u32[72,128]{1,0:T(1,128)}', space=vmem, size = 0x9000, scoped, tag = 'internal scratch']
  %s0 = inlined_call_operand.vmem [shape: f32[256,128], index: 0, kind: input, shape index: {}]
  %s1 = inlined_call_operand.vmem [shape: f32[1,128], index: 1, kind: input, shape index: {}]
  %s2 = inlined_call_operand.vmem [shape: f32[1,128], index: 2, kind: input, shape index: {}]
  %s3 = inlined_call_operand.vmem [shape: f32[256,128], index: 3, kind: input, shape index: {}]
  %s4 = inlined_call_operand.vmem [shape: f32[256,128], index: 4, kind: output, shape index: {}]
  %s5 = sld [smem:[#allocation0]]
  $region26: #{forward.48} parent=0
    _
  %s7 = ssub.s32 1, %s5
  %s8 = scalar_select 0, %s7, %s5
  // Predicated region
  $region2: #{forward.48} parent=0 // pred_check
    _
  $region3: #{forward.48} parent=0 // pred_check_branch
    %10 = sbr.rel (0) target = $region5
  $region4: #{forward.48} parent=0 // pred_region
    _
  $region5: #{forward.48} parent=0 // pred_fallthru
    _
  // Predicated region
  $region6: #{forward.48} parent=0 // pred_check
    _
  $region7: #{forward.48} parent=0 // pred_check_branch
    %12 = sbr.rel (0) target = $region9
  $region8: #{forward.48} parent=0 // pred_region
    _
  $region9: #{forward.48} parent=0 // pred_fallthru
    _
  // Predicated region
  $region10: #{forward.48} parent=0 // pred_check
    _
  $region11: #{forward.48} parent=0 // pred_check_branch
    %14 = sbr.rel (0) target = $region13
  $region12: #{forward.48} parent=0 // pred_region
    _
  $region13: #{forward.48} parent=0 // pred_fallthru
    _
  // Predicated region
  $region14: #{forward.48} parent=0 // pred_check
    _
  $region15: #{forward.48} parent=0 // pred_check_branch
    %16 = sbr.rel (0) target = $region17
  $region16: #{forward.48} parent=0 // pred_region
    _
  $region17: #{forward.48} parent=0 // pred_fallthru
    _
  %v17 = vld [vmem:[%s0] sm:$0xff]
  %v18 = vld [vmem:[%s0 + $0x8] sm:$0xff]
  %v19 = vld [vmem:[%s0 + $0x10] sm:$0xff]
  %v20 = vld [vmem:[%s0 + $0x18] sm:$0xff]
  %v21 = vld [vmem:[%s0 + $0x20] sm:$0xff]
  %v22 = vld [vmem:[%s0 + $0x28] sm:$0xff]
  %v23 = vld [vmem:[%s0 + $0x30] sm:$0xff]
  %v24 = vld [vmem:[%s0 + $0x38] sm:$0xff]
  %v25 = vld [vmem:[%s0 + $0x40] sm:$0xff]
  %v26 = vld [vmem:[%s0 + $0x48] sm:$0xff]
  %v27 = vld [vmem:[%s0 + $0x50] sm:$0xff]
  %v28 = vld [vmem:[%s0 + $0x58] sm:$0xff]
  %v29 = vld [vmem:[%s0 + $0x60] sm:$0xff]
  %v30 = vld [vmem:[%s0 + $0x68] sm:$0xff]
  %v31 = vld [vmem:[%s0 + $0x70] sm:$0xff]
  %v32 = vld [vmem:[%s0 + $0x78] sm:$0xff]
  %v33 = vld [vmem:[%s0 + $0x80] sm:$0xff]
  %v34 = vld [vmem:[%s0 + $0x88] sm:$0xff]
  %v35 = vld [vmem:[%s0 + $0x90] sm:$0xff]
  %v36 = vld [vmem:[%s0 + $0x98] sm:$0xff]
  %v37 = vld [vmem:[%s0 + $0xa0] sm:$0xff]
  %v38 = vld [vmem:[%s0 + $0xa8] sm:$0xff]
  %v39 = vld [vmem:[%s0 + $0xb0] sm:$0xff]
  %v40 = vld [vmem:[%s0 + $0xb8] sm:$0xff]
  %v41 = vld [vmem:[%s0 + $0xc0] sm:$0xff]
  %v42 = vld [vmem:[%s0 + $0xc8] sm:$0xff]
  %v43 = vld [vmem:[%s0 + $0xd0] sm:$0xff]
  %v44 = vld [vmem:[%s0 + $0xd8] sm:$0xff]
  %v45 = vld [vmem:[%s0 + $0xe0] sm:$0xff]
  %v46 = vld [vmem:[%s0 + $0xe8] sm:$0xff]
  %v47 = vld [vmem:[%s0 + $0xf0] sm:$0xff]
  %v48 = vld [vmem:[%s0 + $0xf8] sm:$0xff]
  %v49 = vld [vmem:[%s1] sm:$0x1]
  %v51 = vperm.slane %v49, 0
  %v53 = vmul.f32 %v17, %v51
  %v54 = vmul.f32 %v18, %v51
  %v55 = vmul.f32 %v19, %v51
  %v56 = vmul.f32 %v20, %v51
  %v57 = vmul.f32 %v21, %v51
  %v58 = vmul.f32 %v22, %v51
  %v59 = vmul.f32 %v23, %v51
  %v60 = vmul.f32 %v24, %v51
  %v61 = vmul.f32 %v25, %v51
  %v62 = vmul.f32 %v26, %v51
  %v63 = vmul.f32 %v27, %v51
  %v64 = vmul.f32 %v28, %v51
  %v65 = vmul.f32 %v29, %v51
  %v66 = vmul.f32 %v30, %v51
  %v67 = vmul.f32 %v31, %v51
  %v68 = vmul.f32 %v32, %v51
  %v69 = vmul.f32 %v33, %v51
  %v70 = vmul.f32 %v34, %v51
  %v71 = vmul.f32 %v35, %v51
  %v72 = vmul.f32 %v36, %v51
  %v73 = vmul.f32 %v37, %v51
  %v74 = vmul.f32 %v38, %v51
  %v75 = vmul.f32 %v39, %v51
  %v76 = vmul.f32 %v40, %v51
  %v77 = vmul.f32 %v41, %v51
  %v78 = vmul.f32 %v42, %v51
  %v79 = vmul.f32 %v43, %v51
  %v80 = vmul.f32 %v44, %v51
  %v81 = vmul.f32 %v45, %v51
  %v82 = vmul.f32 %v46, %v51
  %v83 = vmul.f32 %v47, %v51
  %v84 = vmul.f32 %v48, %v51
  %v85 = vld [vmem:[%s2] sm:$0x1]
  %v87 = vperm.slane %v85, 0
  %v89 = vadd.f32 %v53, %v87
  %v90 = vadd.f32 %v54, %v87
  %v91 = vadd.f32 %v55, %v87
  %v92 = vadd.f32 %v56, %v87
  %v93 = vadd.f32 %v57, %v87
  %v94 = vadd.f32 %v58, %v87
  %v95 = vadd.f32 %v59, %v87
  %v96 = vadd.f32 %v60, %v87
  %v97 = vadd.f32 %v61, %v87
  %v98 = vadd.f32 %v62, %v87
  %v99 = vadd.f32 %v63, %v87
  %v100 = vadd.f32 %v64, %v87
  %v101 = vadd.f32 %v65, %v87
  %v102 = vadd.f32 %v66, %v87
  %v103 = vadd.f32 %v67, %v87
  %v104 = vadd.f32 %v68, %v87
  %v105 = vadd.f32 %v69, %v87
  %v106 = vadd.f32 %v70, %v87
  %v107 = vadd.f32 %v71, %v87
  %v108 = vadd.f32 %v72, %v87
  %v109 = vadd.f32 %v73, %v87
  %v110 = vadd.f32 %v74, %v87
  %v111 = vadd.f32 %v75, %v87
  %v112 = vadd.f32 %v76, %v87
  %v113 = vadd.f32 %v77, %v87
  %v114 = vadd.f32 %v78, %v87
  %v115 = vadd.f32 %v79, %v87
  %v116 = vadd.f32 %v80, %v87
  %v117 = vadd.f32 %v81, %v87
  %v118 = vadd.f32 %v82, %v87
  %v119 = vadd.f32 %v83, %v87
  %v120 = vadd.f32 %v84, %v87
  %v121 = vld [vmem:[%s3] sm:$0xff]
  %v122 = vld [vmem:[%s3 + $0x8] sm:$0xff]
  %v123 = vld [vmem:[%s3 + $0x10] sm:$0xff]
  %v124 = vld [vmem:[%s3 + $0x18] sm:$0xff]
  %v125 = vld [vmem:[%s3 + $0x20] sm:$0xff]
  %v126 = vld [vmem:[%s3 + $0x28] sm:$0xff]
  %v127 = vld [vmem:[%s3 + $0x30] sm:$0xff]
  %v128 = vld [vmem:[%s3 + $0x38] sm:$0xff]
  %v129 = vld [vmem:[%s3 + $0x40] sm:$0xff]
  %v130 = vld [vmem:[%s3 + $0x48] sm:$0xff]
  %v131 = vld [vmem:[%s3 + $0x50] sm:$0xff]
  %v132 = vld [vmem:[%s3 + $0x58] sm:$0xff]
  %v133 = vld [vmem:[%s3 + $0x60] sm:$0xff]
  %v134 = vld [vmem:[%s3 + $0x68] sm:$0xff]
  %v135 = vld [vmem:[%s3 + $0x70] sm:$0xff]
  %v136 = vld [vmem:[%s3 + $0x78] sm:$0xff]
  %v137 = vld [vmem:[%s3 + $0x80] sm:$0xff]
  %v138 = vld [vmem:[%s3 + $0x88] sm:$0xff]
  %v139 = vld [vmem:[%s3 + $0x90] sm:$0xff]
  %v140 = vld [vmem:[%s3 + $0x98] sm:$0xff]
  %v141 = vld [vmem:[%s3 + $0xa0] sm:$0xff]
  %v142 = vld [vmem:[%s3 + $0xa8] sm:$0xff]
  %v143 = vld [vmem:[%s3 + $0xb0] sm:$0xff]
  %v144 = vld [vmem:[%s3 + $0xb8] sm:$0xff]
  %v145 = vld [vmem:[%s3 + $0xc0] sm:$0xff]
  %v146 = vld [vmem:[%s3 + $0xc8] sm:$0xff]
  %v147 = vld [vmem:[%s3 + $0xd0] sm:$0xff]
  %v148 = vld [vmem:[%s3 + $0xd8] sm:$0xff]
  %v149 = vld [vmem:[%s3 + $0xe0] sm:$0xff]
  %v150 = vld [vmem:[%s3 + $0xe8] sm:$0xff]
  %v151 = vld [vmem:[%s3 + $0xf0] sm:$0xff]
  %v152 = vld [vmem:[%s3 + $0xf8] sm:$0xff]
  %v153 = vadd.f32 %v89, %v121
  %v154 = vadd.f32 %v90, %v122
  %v155 = vadd.f32 %v91, %v123
  %v156 = vadd.f32 %v92, %v124
  %v157 = vadd.f32 %v93, %v125
  %v158 = vadd.f32 %v94, %v126
  %v159 = vadd.f32 %v95, %v127
  %v160 = vadd.f32 %v96, %v128
  %v161 = vadd.f32 %v97, %v129
  %v162 = vadd.f32 %v98, %v130
  %v163 = vadd.f32 %v99, %v131
  %v164 = vadd.f32 %v100, %v132
  %v165 = vadd.f32 %v101, %v133
  %v166 = vadd.f32 %v102, %v134
  %v167 = vadd.f32 %v103, %v135
  %v168 = vadd.f32 %v104, %v136
  %v169 = vadd.f32 %v105, %v137
  %v170 = vadd.f32 %v106, %v138
  %v171 = vadd.f32 %v107, %v139
  %v172 = vadd.f32 %v108, %v140
  %v173 = vadd.f32 %v109, %v141
  %v174 = vadd.f32 %v110, %v142
  %v175 = vadd.f32 %v111, %v143
  %v176 = vadd.f32 %v112, %v144
  %v177 = vadd.f32 %v113, %v145
  %v178 = vadd.f32 %v114, %v146
  %v179 = vadd.f32 %v115, %v147
  %v180 = vadd.f32 %v116, %v148
  %v181 = vadd.f32 %v117, %v149
  %v182 = vadd.f32 %v118, %v150
  %v183 = vadd.f32 %v119, %v151
  %v184 = vadd.f32 %v120, %v152
  %vm185 = vcmp.ge.f32.partialorder %v153, 0.0
  %vm186 = vcmp.ge.f32.partialorder %v154, 0.0
  %vm187 = vcmp.ge.f32.partialorder %v155, 0.0
  %vm188 = vcmp.ge.f32.partialorder %v156, 0.0
  %vm189 = vcmp.ge.f32.partialorder %v157, 0.0
  %vm190 = vcmp.ge.f32.partialorder %v158, 0.0
  %vm191 = vcmp.ge.f32.partialorder %v159, 0.0
  %vm192 = vcmp.ge.f32.partialorder %v160, 0.0
  %vm193 = vcmp.ge.f32.partialorder %v161, 0.0
  %vm194 = vcmp.ge.f32.partialorder %v162, 0.0
  %vm195 = vcmp.ge.f32.partialorder %v163, 0.0
  %vm196 = vcmp.ge.f32.partialorder %v164, 0.0
  %vm197 = vcmp.ge.f32.partialorder %v165, 0.0
  %vm198 = vcmp.ge.f32.partialorder %v166, 0.0
  %vm199 = vcmp.ge.f32.partialorder %v167, 0.0
  %vm200 = vcmp.ge.f32.partialorder %v168, 0.0
  %vm201 = vcmp.ge.f32.partialorder %v169, 0.0
  %vm202 = vcmp.ge.f32.partialorder %v170, 0.0
  %vm203 = vcmp.ge.f32.partialorder %v171, 0.0
  %vm204 = vcmp.ge.f32.partialorder %v172, 0.0
  %vm205 = vcmp.ge.f32.partialorder %v173, 0.0
  %vm206 = vcmp.ge.f32.partialorder %v174, 0.0
  %vm207 = vcmp.ge.f32.partialorder %v175, 0.0
  %vm208 = vcmp.ge.f32.partialorder %v176, 0.0
  %vm209 = vcmp.ge.f32.partialorder %v177, 0.0
  %vm210 = vcmp.ge.f32.partialorder %v178, 0.0
  %vm211 = vcmp.ge.f32.partialorder %v179, 0.0
  %vm212 = vcmp.ge.f32.partialorder %v180, 0.0
  %vm213 = vcmp.ge.f32.partialorder %v181, 0.0
  %vm214 = vcmp.ge.f32.partialorder %v182, 0.0
  %vm215 = vcmp.ge.f32.partialorder %v183, 0.0
  %vm216 = vcmp.ge.f32.partialorder %v184, 0.0
  %v217 = vmul.f32 %v153, 0.2
  %v218 = vmul.f32 %v154, 0.2
  %v219 = vmul.f32 %v155, 0.2
  %v220 = vmul.f32 %v156, 0.2
  %v221 = vmul.f32 %v157, 0.2
  %v222 = vmul.f32 %v158, 0.2
  %v223 = vmul.f32 %v159, 0.2
  %v224 = vmul.f32 %v160, 0.2
  %v225 = vmul.f32 %v161, 0.2
  %v226 = vmul.f32 %v162, 0.2
  %v227 = vmul.f32 %v163, 0.2
  %v228 = vmul.f32 %v164, 0.2
  %v229 = vmul.f32 %v165, 0.2
  %v230 = vmul.f32 %v166, 0.2
  %v231 = vmul.f32 %v167, 0.2
  %v232 = vmul.f32 %v168, 0.2
  %v233 = vmul.f32 %v169, 0.2
  %v234 = vmul.f32 %v170, 0.2
  %v235 = vmul.f32 %v171, 0.2
  %v236 = vmul.f32 %v172, 0.2
  %v237 = vmul.f32 %v173, 0.2
  %v238 = vmul.f32 %v174, 0.2
  %v239 = vmul.f32 %v175, 0.2
  %v240 = vmul.f32 %v176, 0.2
  %v241 = vmul.f32 %v177, 0.2
  %v242 = vmul.f32 %v178, 0.2
  %v243 = vmul.f32 %v179, 0.2
  %v244 = vmul.f32 %v180, 0.2
  %v245 = vmul.f32 %v181, 0.2
  %v246 = vmul.f32 %v182, 0.2
  %v247 = vmul.f32 %v183, 0.2
  %v248 = vmul.f32 %v184, 0.2
  %v249 = vsel %vm185, %v153, %v217
  %v250 = vsel %vm186, %v154, %v218
  %v251 = vsel %vm187, %v155, %v219
  %v252 = vsel %vm188, %v156, %v220
  %v253 = vsel %vm189, %v157, %v221
  %v254 = vsel %vm190, %v158, %v222
  %v255 = vsel %vm191, %v159, %v223
  %v256 = vsel %vm192, %v160, %v224
  %v257 = vsel %vm193, %v161, %v225
  %v258 = vsel %vm194, %v162, %v226
  %v259 = vsel %vm195, %v163, %v227
  %v260 = vsel %vm196, %v164, %v228
  %v261 = vsel %vm197, %v165, %v229
  %v262 = vsel %vm198, %v166, %v230
  %v263 = vsel %vm199, %v167, %v231
  %v264 = vsel %vm200, %v168, %v232
  %v265 = vsel %vm201, %v169, %v233
  %v266 = vsel %vm202, %v170, %v234
  %v267 = vsel %vm203, %v171, %v235
  %v268 = vsel %vm204, %v172, %v236
  %v269 = vsel %vm205, %v173, %v237
  %v270 = vsel %vm206, %v174, %v238
  %v271 = vsel %vm207, %v175, %v239
  %v272 = vsel %vm208, %v176, %v240
  %v273 = vsel %vm209, %v177, %v241
  %v274 = vsel %vm210, %v178, %v242
  %v275 = vsel %vm211, %v179, %v243
  %v276 = vsel %vm212, %v180, %v244
  %v277 = vsel %vm213, %v181, %v245
  %v278 = vsel %vm214, %v182, %v246
  %v279 = vsel %vm215, %v183, %v247
  %v280 = vsel %vm216, %v184, %v248
  %281 = vst [vmem:[%s4] sm:$0xff] %v249
  %282 = vst [vmem:[%s4 + $0x8] sm:$0xff] %v250
  %283 = vst [vmem:[%s4 + $0x10] sm:$0xff] %v251
  %284 = vst [vmem:[%s4 + $0x18] sm:$0xff] %v252
  %285 = vst [vmem:[%s4 + $0x20] sm:$0xff] %v253
  %286 = vst [vmem:[%s4 + $0x28] sm:$0xff] %v254
  %287 = vst [vmem:[%s4 + $0x30] sm:$0xff] %v255
  %288 = vst [vmem:[%s4 + $0x38] sm:$0xff] %v256
  %289 = vst [vmem:[%s4 + $0x40] sm:$0xff] %v257
  %290 = vst [vmem:[%s4 + $0x48] sm:$0xff] %v258
  %291 = vst [vmem:[%s4 + $0x50] sm:$0xff] %v259
  %292 = vst [vmem:[%s4 + $0x58] sm:$0xff] %v260
  %293 = vst [vmem:[%s4 + $0x60] sm:$0xff] %v261
  %294 = vst [vmem:[%s4 + $0x68] sm:$0xff] %v262
  %295 = vst [vmem:[%s4 + $0x70] sm:$0xff] %v263
  %296 = vst [vmem:[%s4 + $0x78] sm:$0xff] %v264
  %297 = vst [vmem:[%s4 + $0x80] sm:$0xff] %v265
  %298 = vst [vmem:[%s4 + $0x88] sm:$0xff] %v266
  %299 = vst [vmem:[%s4 + $0x90] sm:$0xff] %v267
  %300 = vst [vmem:[%s4 + $0x98] sm:$0xff] %v268
  %301 = vst [vmem:[%s4 + $0xa0] sm:$0xff] %v269
  %302 = vst [vmem:[%s4 + $0xa8] sm:$0xff] %v270
  %303 = vst [vmem:[%s4 + $0xb0] sm:$0xff] %v271
  %304 = vst [vmem:[%s4 + $0xb8] sm:$0xff] %v272
  %305 = vst [vmem:[%s4 + $0xc0] sm:$0xff] %v273
  %306 = vst [vmem:[%s4 + $0xc8] sm:$0xff] %v274
  %307 = vst [vmem:[%s4 + $0xd0] sm:$0xff] %v275
  %308 = vst [vmem:[%s4 + $0xd8] sm:$0xff] %v276
  %309 = vst [vmem:[%s4 + $0xe0] sm:$0xff] %v277
  %310 = vst [vmem:[%s4 + $0xe8] sm:$0xff] %v278
  %311 = vst [vmem:[%s4 + $0xf0] sm:$0xff] %v279
  %312 = vst [vmem:[%s4 + $0xf8] sm:$0xff] %v280
  // Predicated region
  $region18: #{forward.48} parent=0 // pred_check
    _
  $region19: #{forward.48} parent=0 // pred_check_branch
    %314 = sbr.rel (0) target = $region21
  $region20: #{forward.48} parent=0 // pred_region
    _
  $region21: #{forward.48} parent=0 // pred_fallthru
    _
  // Predicated region
  $region22: #{forward.48} parent=0 // pred_check
    _
  $region23: #{forward.48} parent=0 // pred_check_branch
    %316 = sbr.rel (0) target = $region25
  $region24: #{forward.48} parent=0 // pred_region
    _
  $region25: #{forward.48} parent=0 // pred_fallthru
    _

// kernel: tile.172
$region0: #{tile.172}
  #allocation0 [shape = 's32[1]{0}', space=sflag, size = 0x4, scoped, tag = 'scoped memory for tile.172']
  %s0 = inlined_call_operand.vmem [shape: f32[32], index: 0, kind: input, shape index: {}]
  %s1 = inlined_call_operand.vmem [shape: f32[4,32], index: 1, kind: output, shape index: {}]
  // Predicated region
  $region2: #{tile.172} parent=0 // pred_check
    _
  $region3: #{tile.172} parent=0 // pred_check_branch
    %3 = sbr.rel (0) target = $region5
  $region4: #{tile.172} parent=0 // pred_region
    _
  $region5: #{tile.172} parent=0 // pred_fallthru
    _
  %v4 = vld [vmem:[%s0] ss:$0 sm:$0xff]
  %5 = vst [vmem:[%s1] sm:$0xf] %v4

// kernel: tile.173
$region0: #{tile.173}
  %s0 = inlined_call_operand.vmem [shape: f32[4,32], index: 0, kind: input, shape index: {}]
  %s1 = inlined_call_operand.vmem [shape: f32[1,128], index: 1, kind: output, shape index: {}]
  $region1: #{tile.173} parent=0
    #allocation0 [shape = 'u8[4096]{0}', space=vmem, size = 0x1000, scoped, tag = 'scoped mem for output reshape']
    #allocation1 [shape = 'u8[4096]{0}', space=vmem, size = 0x1000, scoped, tag = 'scoped mem for input reshape']
    %s3 = ssub.s32 16, 1
    %v4 = vld [vmem:[%s0] sm:%s3]
    %5 = vst [vmem:[#allocation1] sm:%s3] %v4
    %v6 = vld [vmem:[#allocation1] sm:$0x1]
    %vm7 = vcmask 261120
    %8 = vst.msk [vmem:[#allocation0] sm:$0x1] %vm7, %v6
    %s9 = scalar_lea.vmem [#allocation1], 3
    %v10 = vld [vmem:[%s9] sm:$0x1]
    %11 = vrot.lane.b32.xlu0 %v10, 96
    %v12 = vpop.permute.xlu0 %11
    %vm13 = vcmask 1048320
    %14 = vst.msk [vmem:[#allocation0] sm:$0x1] %vm13, %v12
    %s15 = scalar_lea.vmem [#allocation1], 2
    %v16 = vld [vmem:[%s15] sm:$0x1]
    %17 = vrot.lane.b32.xlu0 %v16, 64
    %v18 = vpop.permute.xlu0 %17
    %vm19 = vcmask 785920
    %20 = vst.msk [vmem:[#allocation0] sm:$0x1] %vm19, %v18
    %s21 = scalar_lea.vmem [#allocation1], 1
    %v22 = vld [vmem:[%s21] sm:$0x1]
    %23 = vrot.lane.b32.xlu0 %v22, 32
    %v24 = vpop.permute.xlu0 %23
    %vm25 = vcmask 523520
    %26 = vst.msk [vmem:[#allocation0] sm:$0x1] %vm25, %v24
    %s28 = ssub.s32 2, 1
    %v29 = vld [vmem:[#allocation0] sm:%s28]
    %s31 = ssub.s32 2, 1
    %32 = vst [vmem:[%s1] sm:%s31] %v29

// kernel: forward.54
$region0: #{forward.54}
  #allocation0 [shape = 'u32[]', space=smem, size = 0x4, offset = 0x4, fixed_abs, tag = 'smem constant byte address 0x4 - core index']
  #allocation1 [shape = 'u32[72,128]{1,0:T(1,128)}', space=vmem, size = 0x9000, scoped, tag = 'internal scratch']
  #allocation2 [shape = 'f32[128,128]{1,0:T(8,128)}', space=vmem, size = 0x10000, scoped, tag = 'scratch operand']
  %s0 = inlined_call_operand.vmem [shape: bf16[128,128], index: 0, kind: input, shape index: {}]
  %s1 = inlined_call_operand.vmem [shape: bf16[128,128], index: 1, kind: input, shape index: {}]
  %s2 = inlined_call_operand.vmem [shape: f32[128,128], index: 2, kind: output, shape index: {}]
  %s3 = sld [smem:[#allocation0]]
  $region26: #{forward.54} parent=0
    _
  %s5 = ssub.s32 1, %s3
  %s6 = scalar_select 0, %s5, %s3
  // Predicated region
  $region2: #{forward.54} parent=0 // pred_check
    _
  $region3: #{forward.54} parent=0 // pred_check_branch
    %8 = sbr.rel (0) target = $region5
  $region4: #{forward.54} parent=0 // pred_region
    _
  $region5: #{forward.54} parent=0 // pred_fallthru
    _
  // Predicated region
  $region6: #{forward.54} parent=0 // pred_check
    _
  $region7: #{forward.54} parent=0 // pred_check_branch
    %10 = sbr.rel (0) target = $region9
  $region8: #{forward.54} parent=0 // pred_region
    _
  $region9: #{forward.54} parent=0 // pred_fallthru
    _
  %p11 = scmp.eq.s32.totalorder 0, 0
  // Predicated region
  $region10: #{forward.54} parent=0 // pred_check
    %p12 = pneg %p11
  $region11: #{forward.54} parent=0 // pred_check_branch
    %14 = sbr.rel (%p12) target = $region13
  $region12: #{forward.54} parent=0 // pred_region
    %15 = vst [vmem:[#allocation2] sm:$0xff] 0.0
    %16 = vst [vmem:[#allocation2 + $0x8] sm:$0xff] 0.0
    %17 = vst [vmem:[#allocation2 + $0x10] sm:$0xff] 0.0
    %18 = vst [vmem:[#allocation2 + $0x18] sm:$0xff] 0.0
    %19 = vst [vmem:[#allocation2 + $0x20] sm:$0xff] 0.0
    %20 = vst [vmem:[#allocation2 + $0x28] sm:$0xff] 0.0
    %21 = vst [vmem:[#allocation2 + $0x30] sm:$0xff] 0.0
    %22 = vst [vmem:[#allocation2 + $0x38] sm:$0xff] 0.0
    %23 = vst [vmem:[#allocation2 + $0x40] sm:$0xff] 0.0
    %24 = vst [vmem:[#allocation2 + $0x48] sm:$0xff] 0.0
    %25 = vst [vmem:[#allocation2 + $0x50] sm:$0xff] 0.0
    %26 = vst [vmem:[#allocation2 + $0x58] sm:$0xff] 0.0
    %27 = vst [vmem:[#allocation2 + $0x60] sm:$0xff] 0.0
    %28 = vst [vmem:[#allocation2 + $0x68] sm:$0xff] 0.0
    %29 = vst [vmem:[#allocation2 + $0x70] sm:$0xff] 0.0
    %30 = vst [vmem:[#allocation2 + $0x78] sm:$0xff] 0.0
  $region13: #{forward.54} parent=0 // pred_fallthru
    _
  %v31 = vld [vmem:[#allocation2] sm:$0xff]
  %v32 = vld [vmem:[#allocation2 + $0x8] sm:$0xff]
  %v33 = vld [vmem:[#allocation2 + $0x10] sm:$0xff]
  %v34 = vld [vmem:[#allocation2 + $0x18] sm:$0xff]
  %v35 = vld [vmem:[#allocation2 + $0x20] sm:$0xff]
  %v36 = vld [vmem:[#allocation2 + $0x28] sm:$0xff]
  %v37 = vld [vmem:[#allocation2 + $0x30] sm:$0xff]
  %v38 = vld [vmem:[#allocation2 + $0x38] sm:$0xff]
  %v39 = vld [vmem:[#allocation2 + $0x40] sm:$0xff]
  %v40 = vld [vmem:[#allocation2 + $0x48] sm:$0xff]
  %v41 = vld [vmem:[#allocation2 + $0x50] sm:$0xff]
  %v42 = vld [vmem:[#allocation2 + $0x58] sm:$0xff]
  %v43 = vld [vmem:[#allocation2 + $0x60] sm:$0xff]
  %v44 = vld [vmem:[#allocation2 + $0x68] sm:$0xff]
  %v45 = vld [vmem:[#allocation2 + $0x70] sm:$0xff]
  %v46 = vld [vmem:[#allocation2 + $0x78] sm:$0xff]
  %v47 = vld [vmem:[%s0] sm:$0xf]
  %v48 = vld [vmem:[%s0 + $0x4] sm:$0xf]
  %v49 = vld [vmem:[%s0 + $0x8] sm:$0xf]
  %v50 = vld [vmem:[%s0 + $0xc] sm:$0xf]
  %v51 = vld [vmem:[%s0 + $0x10] sm:$0xf]
  %v52 = vld [vmem:[%s0 + $0x14] sm:$0xf]
  %v53 = vld [vmem:[%s0 + $0x18] sm:$0xf]
  %v54 = vld [vmem:[%s0 + $0x1c] sm:$0xf]
  %v55 = vld [vmem:[%s0 + $0x20] sm:$0xf]
  %v56 = vld [vmem:[%s0 + $0x24] sm:$0xf]
  %v57 = vld [vmem:[%s0 + $0x28] sm:$0xf]
  %v58 = vld [vmem:[%s0 + $0x2c] sm:$0xf]
  %v59 = vld [vmem:[%s0 + $0x30] sm:$0xf]
  %v60 = vld [vmem:[%s0 + $0x34] sm:$0xf]
  %v61 = vld [vmem:[%s0 + $0x38] sm:$0xf]
  %v62 = vld [vmem:[%s0 + $0x3c] sm:$0xf]
  %v63 = vld [vmem:[%s1] sm:$0xf]
  %v64 = vld [vmem:[%s1 + $0x4] sm:$0xf]
  %v65 = vld [vmem:[%s1 + $0x8] sm:$0xf]
  %v66 = vld [vmem:[%s1 + $0xc] sm:$0xf]
  %v67 = vld [vmem:[%s1 + $0x10] sm:$0xf]
  %v68 = vld [vmem:[%s1 + $0x14] sm:$0xf]
  %v69 = vld [vmem:[%s1 + $0x18] sm:$0xf]
  %v70 = vld [vmem:[%s1 + $0x1c] sm:$0xf]
  %v71 = vld [vmem:[%s1 + $0x20] sm:$0xf]
  %v72 = vld [vmem:[%s1 + $0x24] sm:$0xf]
  %v73 = vld [vmem:[%s1 + $0x28] sm:$0xf]
  %v74 = vld [vmem:[%s1 + $0x2c] sm:$0xf]
  %v75 = vld [vmem:[%s1 + $0x30] sm:$0xf]
  %v76 = vld [vmem:[%s1 + $0x34] sm:$0xf]
  %v77 = vld [vmem:[%s1 + $0x38] sm:$0xf]
  %v78 = vld [vmem:[%s1 + $0x3c] sm:$0xf]
  %v95 = vunpack.c.l.b16 %v47
  %v96 = vunpack.c.l.b16 %v48
  %v97 = vunpack.c.l.b16 %v49
  %v98 = vunpack.c.l.b16 %v50
  %v99 = vunpack.c.l.b16 %v51
  %v100 = vunpack.c.l.b16 %v52
  %v101 = vunpack.c.l.b16 %v53
  %v102 = vunpack.c.l.b16 %v54
  %v103 = vunpack.c.l.b16 %v55
  %v104 = vunpack.c.l.b16 %v56
  %v105 = vunpack.c.l.b16 %v57
  %v106 = vunpack.c.l.b16 %v58
  %v107 = vunpack.c.l.b16 %v59
  %v108 = vunpack.c.l.b16 %v60
  %v109 = vunpack.c.l.b16 %v61
  %v110 = vunpack.c.l.b16 %v62
  %v111 = vpack.c.b16 %v96, %v95
  %v112 = vpack.c.b16 %v98, %v97
  %v113 = vpack.c.b16 %v100, %v99
  %v114 = vpack.c.b16 %v102, %v101
  %v115 = vpack.c.b16 %v104, %v103
  %v116 = vpack.c.b16 %v106, %v105
  %v117 = vpack.c.b16 %v108, %v107
  %v118 = vpack.c.b16 %v110, %v109
  %v143 = vunpack.c.l.b16 %v63
  %v144 = vunpack.c.l.b16 %v64
  %v145 = vunpack.c.l.b16 %v65
  %v146 = vunpack.c.l.b16 %v66
  %v147 = vunpack.c.l.b16 %v67
  %v148 = vunpack.c.l.b16 %v68
  %v149 = vunpack.c.l.b16 %v69
  %v150 = vunpack.c.l.b16 %v70
  %v151 = vunpack.c.l.b16 %v71
  %v152 = vunpack.c.l.b16 %v72
  %v153 = vunpack.c.l.b16 %v73
  %v154 = vunpack.c.l.b16 %v74
  %v155 = vunpack.c.l.b16 %v75
  %v156 = vunpack.c.l.b16 %v76
  %v157 = vunpack.c.l.b16 %v77
  %v158 = vunpack.c.l.b16 %v78
  %v159 = vpack.c.b16 %v144, %v143
  %v160 = vpack.c.b16 %v146, %v145
  %v161 = vpack.c.b16 %v148, %v147
  %v162 = vpack.c.b16 %v150, %v149
  %v163 = vpack.c.b16 %v152, %v151
  %v164 = vpack.c.b16 %v154, %v153
  %v165 = vpack.c.b16 %v156, %v155
  %v166 = vpack.c.b16 %v158, %v157
  %175 = vmatpush.bf16.msra.mxu0 %v166
  %176 = vmatpush.bf16.msra.mxu0 %v165
  %177 = vmatpush.bf16.msra.mxu0 %v164
  %178 = vmatpush.bf16.msra.mxu0 %v163
  %179 = vmatpush.bf16.msra.mxu0 %v162
  %180 = vmatpush.bf16.msra.mxu0 %v161
  %181 = vmatpush.bf16.msra.mxu0 %v160
  %182 = vmatpush.bf16.msra.mxu0 %v159
  %183 = vmatmul.bf16.gmra.mxu0 %v111
  %v184 = vpop.f32.mrf.mxu0
  %v185 = vadd.f32 0.0, %v184
  %v186 = vpop.f32.mrf.mxu0
  %v187 = vadd.f32 0.0, %v186
  %188 = vmatmul.bf16.gmra.mxu0 %v112
  %v189 = vpop.f32.mrf.mxu0
  %v190 = vadd.f32 0.0, %v189
  %v191 = vpop.f32.mrf.mxu0
  %v192 = vadd.f32 0.0, %v191
  %193 = vmatmul.bf16.gmra.mxu0 %v113
  %v194 = vpop.f32.mrf.mxu0
  %v195 = vadd.f32 0.0, %v194
  %v196 = vpop.f32.mrf.mxu0
  %v197 = vadd.f32 0.0, %v196
  %198 = vmatmul.bf16.gmra.mxu0 %v114
  %v199 = vpop.f32.mrf.mxu0
  %v200 = vadd.f32 0.0, %v199
  %v201 = vpop.f32.mrf.mxu0
  %v202 = vadd.f32 0.0, %v201
  %203 = vmatmul.bf16.gmra.mxu0 %v115
  %v204 = vpop.f32.mrf.mxu0
  %v205 = vadd.f32 0.0, %v204
  %v206 = vpop.f32.mrf.mxu0
  %v207 = vadd.f32 0.0, %v206
  %208 = vmatmul.bf16.gmra.mxu0 %v116
  %v209 = vpop.f32.mrf.mxu0
  %v210 = vadd.f32 0.0, %v209
  %v211 = vpop.f32.mrf.mxu0
  %v212 = vadd.f32 0.0, %v211
  %213 = vmatmul.bf16.gmra.mxu0 %v117
  %v214 = vpop.f32.mrf.mxu0
  %v215 = vadd.f32 0.0, %v214
  %v216 = vpop.f32.mrf.mxu0
  %v217 = vadd.f32 0.0, %v216
  %218 = vmatmul.bf16.gmra.mxu0 %v118
  %v219 = vpop.f32.mrf.mxu0
  %v220 = vadd.f32 0.0, %v219
  %v221 = vpop.f32.mrf.mxu0
  %v222 = vadd.f32 0.0, %v221
  %223 = vdwg.mxu0
  %v224 = vadd.f32 %v31, %v185
  %v225 = vadd.f32 %v32, %v187
  %v226 = vadd.f32 %v33, %v190
  %v227 = vadd.f32 %v34, %v192
  %v228 = vadd.f32 %v35, %v195
  %v229 = vadd.f32 %v36, %v197
  %v230 = vadd.f32 %v37, %v200
  %v231 = vadd.f32 %v38, %v202
  %v232 = vadd.f32 %v39, %v205
  %v233 = vadd.f32 %v40, %v207
  %v234 = vadd.f32 %v41, %v210
  %v235 = vadd.f32 %v42, %v212
  %v236 = vadd.f32 %v43, %v215
  %v237 = vadd.f32 %v44, %v217
  %v238 = vadd.f32 %v45, %v220
  %v239 = vadd.f32 %v46, %v222
  %240 = vst [vmem:[#allocation2] sm:$0xff] %v224
  %241 = vst [vmem:[#allocation2 + $0x8] sm:$0xff] %v225
  %242 = vst [vmem:[#allocation2 + $0x10] sm:$0xff] %v226
  %243 = vst [vmem:[#allocation2 + $0x18] sm:$0xff] %v227
  %244 = vst [vmem:[#allocation2 + $0x20] sm:$0xff] %v228
  %245 = vst [vmem:[#allocation2 + $0x28] sm:$0xff] %v229
  %246 = vst [vmem:[#allocation2 + $0x30] sm:$0xff] %v230
  %247 = vst [vmem:[#allocation2 + $0x38] sm:$0xff] %v231
  %248 = vst [vmem:[#allocation2 + $0x40] sm:$0xff] %v232
  %249 = vst [vmem:[#allocation2 + $0x48] sm:$0xff] %v233
  %250 = vst [vmem:[#allocation2 + $0x50] sm:$0xff] %v234
  %251 = vst [vmem:[#allocation2 + $0x58] sm:$0xff] %v235
  %252 = vst [vmem:[#allocation2 + $0x60] sm:$0xff] %v236
  %253 = vst [vmem:[#allocation2 + $0x68] sm:$0xff] %v237
  %254 = vst [vmem:[#allocation2 + $0x70] sm:$0xff] %v238
  %255 = vst [vmem:[#allocation2 + $0x78] sm:$0xff] %v239
  // Predicated region
  $region14: #{forward.54} parent=0 // pred_check
    %p256 = pneg %p11
  $region15: #{forward.54} parent=0 // pred_check_branch
    %258 = sbr.rel (%p256) target = $region17
  $region16: #{forward.54} parent=0 // pred_region
    %v259 = vld [vmem:[#allocation2] sm:$0xff]
    %v260 = vld [vmem:[#allocation2 + $0x8] sm:$0xff]
    %v261 = vld [vmem:[#allocation2 + $0x10] sm:$0xff]
    %v262 = vld [vmem:[#allocation2 + $0x18] sm:$0xff]
    %v263 = vld [vmem:[#allocation2 + $0x20] sm:$0xff]
    %v264 = vld [vmem:[#allocation2 + $0x28] sm:$0xff]
    %v265 = vld [vmem:[#allocation2 + $0x30] sm:$0xff]
    %v266 = vld [vmem:[#allocation2 + $0x38] sm:$0xff]
    %v267 = vld [vmem:[#allocation2 + $0x40] sm:$0xff]
    %v268 = vld [vmem:[#allocation2 + $0x48] sm:$0xff]
    %v269 = vld [vmem:[#allocation2 + $0x50] sm:$0xff]
    %v270 = vld [vmem:[#allocation2 + $0x58] sm:$0xff]
    %v271 = vld [vmem:[#allocation2 + $0x60] sm:$0xff]
    %v272 = vld [vmem:[#allocation2 + $0x68] sm:$0xff]
    %v273 = vld [vmem:[#allocation2 + $0x70] sm:$0xff]
    %v274 = vld [vmem:[#allocation2 + $0x78] sm:$0xff]
    %275 = vst [vmem:[%s2] sm:$0xff] %v259
    %276 = vst [vmem:[%s2 + $0x8] sm:$0xff] %v260
    %277 = vst [vmem:[%s2 + $0x10] sm:$0xff] %v261
    %278 = vst [vmem:[%s2 + $0x18] sm:$0xff] %v262
    %279 = vst [vmem:[%s2 + $0x20] sm:$0xff] %v263
    %280 = vst [vmem:[%s2 + $0x28] sm:$0xff] %v264
    %281 = vst [vmem:[%s2 + $0x30] sm:$0xff] %v265
    %282 = vst [vmem:[%s2 + $0x38] sm:$0xff] %v266
    %283 = vst [vmem:[%s2 + $0x40] sm:$0xff] %v267
    %284 = vst [vmem:[%s2 + $0x48] sm:$0xff] %v268
    %285 = vst [vmem:[%s2 + $0x50] sm:$0xff] %v269
    %286 = vst [vmem:[%s2 + $0x58] sm:$0xff] %v270
    %287 = vst [vmem:[%s2 + $0x60] sm:$0xff] %v271
    %288 = vst [vmem:[%s2 + $0x68] sm:$0xff] %v272
    %289 = vst [vmem:[%s2 + $0x70] sm:$0xff] %v273
    %290 = vst [vmem:[%s2 + $0x78] sm:$0xff] %v274
  $region17: #{forward.54} parent=0 // pred_fallthru
    _
  // Predicated region
  $region18: #{forward.54} parent=0 // pred_check
    _
  $region19: #{forward.54} parent=0 // pred_check_branch
    %292 = sbr.rel (0) target = $region21
  $region20: #{forward.54} parent=0 // pred_region
    _
  $region21: #{forward.54} parent=0 // pred_fallthru
    _
  // Predicated region
  $region22: #{forward.54} parent=0 // pred_check
    _
  $region23: #{forward.54} parent=0 // pred_check_branch
    %294 = sbr.rel (0) target = $region25
  $region24: #{forward.54} parent=0 // pred_region
    _
  $region25: #{forward.54} parent=0 // pred_fallthru
    _

// kernel: forward.55
$region0: #{forward.55}
  #allocation0 [shape = 'u32[]', space=smem, size = 0x4, offset = 0x4, fixed_abs, tag = 'smem constant byte address 0x4 - core index']
  #allocation1 [shape = 'u32[72,128]{1,0:T(1,128)}', space=vmem, size = 0x9000, scoped, tag = 'internal scratch']
  %s0 = inlined_call_operand.vmem [shape: f32[128,128], index: 0, kind: input, shape index: {}]
  %s1 = inlined_call_operand.vmem [shape: f32[1,128], index: 1, kind: input, shape index: {}]
  %s2 = inlined_call_operand.vmem [shape: f32[1,128], index: 2, kind: input, shape index: {}]
  %s3 = inlined_call_operand.vmem [shape: f32[128,128], index: 3, kind: output, shape index: {}]
  %s4 = sld [smem:[#allocation0]]
  $region22: #{forward.55} parent=0
    _
  %s6 = ssub.s32 1, %s4
  %s7 = scalar_select 0, %s6, %s4
  // Predicated region
  $region2: #{forward.55} parent=0 // pred_check
    _
  $region3: #{forward.55} parent=0 // pred_check_branch
    %9 = sbr.rel (0) target = $region5
  $region4: #{forward.55} parent=0 // pred_region
    _
  $region5: #{forward.55} parent=0 // pred_fallthru
    _
  // Predicated region
  $region6: #{forward.55} parent=0 // pred_check
    _
  $region7: #{forward.55} parent=0 // pred_check_branch
    %11 = sbr.rel (0) target = $region9
  $region8: #{forward.55} parent=0 // pred_region
    _
  $region9: #{forward.55} parent=0 // pred_fallthru
    _
  // Predicated region
  $region10: #{forward.55} parent=0 // pred_check
    _
  $region11: #{forward.55} parent=0 // pred_check_branch
    %13 = sbr.rel (0) target = $region13
  $region12: #{forward.55} parent=0 // pred_region
    _
  $region13: #{forward.55} parent=0 // pred_fallthru
    _
  %v14 = vld [vmem:[%s0] sm:$0xff]
  %v15 = vld [vmem:[%s0 + $0x8] sm:$0xff]
  %v16 = vld [vmem:[%s0 + $0x10] sm:$0xff]
  %v17 = vld [vmem:[%s0 + $0x18] sm:$0xff]
  %v18 = vld [vmem:[%s0 + $0x20] sm:$0xff]
  %v19 = vld [vmem:[%s0 + $0x28] sm:$0xff]
  %v20 = vld [vmem:[%s0 + $0x30] sm:$0xff]
  %v21 = vld [vmem:[%s0 + $0x38] sm:$0xff]
  %v22 = vld [vmem:[%s0 + $0x40] sm:$0xff]
  %v23 = vld [vmem:[%s0 + $0x48] sm:$0xff]
  %v24 = vld [vmem:[%s0 + $0x50] sm:$0xff]
  %v25 = vld [vmem:[%s0 + $0x58] sm:$0xff]
  %v26 = vld [vmem:[%s0 + $0x60] sm:$0xff]
  %v27 = vld [vmem:[%s0 + $0x68] sm:$0xff]
  %v28 = vld [vmem:[%s0 + $0x70] sm:$0xff]
  %v29 = vld [vmem:[%s0 + $0x78] sm:$0xff]
  %v30 = vld [vmem:[%s1] sm:$0x1]
  %v32 = vperm.slane %v30, 0
  %v34 = vmul.f32 %v14, %v32
  %v35 = vmul.f32 %v15, %v32
  %v36 = vmul.f32 %v16, %v32
  %v37 = vmul.f32 %v17, %v32
  %v38 = vmul.f32 %v18, %v32
  %v39 = vmul.f32 %v19, %v32
  %v40 = vmul.f32 %v20, %v32
  %v41 = vmul.f32 %v21, %v32
  %v42 = vmul.f32 %v22, %v32
  %v43 = vmul.f32 %v23, %v32
  %v44 = vmul.f32 %v24, %v32
  %v45 = vmul.f32 %v25, %v32
  %v46 = vmul.f32 %v26, %v32
  %v47 = vmul.f32 %v27, %v32
  %v48 = vmul.f32 %v28, %v32
  %v49 = vmul.f32 %v29, %v32
  %v50 = vld [vmem:[%s2] sm:$0x1]
  %v52 = vperm.slane %v50, 0
  %v54 = vadd.f32 %v34, %v52
  %v55 = vadd.f32 %v35, %v52
  %v56 = vadd.f32 %v36, %v52
  %v57 = vadd.f32 %v37, %v52
  %v58 = vadd.f32 %v38, %v52
  %v59 = vadd.f32 %v39, %v52
  %v60 = vadd.f32 %v40, %v52
  %v61 = vadd.f32 %v41, %v52
  %v62 = vadd.f32 %v42, %v52
  %v63 = vadd.f32 %v43, %v52
  %v64 = vadd.f32 %v44, %v52
  %v65 = vadd.f32 %v45, %v52
  %v66 = vadd.f32 %v46, %v52
  %v67 = vadd.f32 %v47, %v52
  %v68 = vadd.f32 %v48, %v52
  %v69 = vadd.f32 %v49, %v52
  %70 = vst [vmem:[%s3] sm:$0xff] %v54
  %71 = vst [vmem:[%s3 + $0x8] sm:$0xff] %v55
  %72 = vst [vmem:[%s3 + $0x10] sm:$0xff] %v56
  %73 = vst [vmem:[%s3 + $0x18] sm:$0xff] %v57
  %74 = vst [vmem:[%s3 + $0x20] sm:$0xff] %v58
  %75 = vst [vmem:[%s3 + $0x28] sm:$0xff] %v59
  %76 = vst [vmem:[%s3 + $0x30] sm:$0xff] %v60
  %77 = vst [vmem:[%s3 + $0x38] sm:$0xff] %v61
  %78 = vst [vmem:[%s3 + $0x40] sm:$0xff] %v62
  %79 = vst [vmem:[%s3 + $0x48] sm:$0xff] %v63
  %80 = vst [vmem:[%s3 + $0x50] sm:$0xff] %v64
  %81 = vst [vmem:[%s3 + $0x58] sm:$0xff] %v65
  %82 = vst [vmem:[%s3 + $0x60] sm:$0xff] %v66
  %83 = vst [vmem:[%s3 + $0x68] sm:$0xff] %v67
  %84 = vst [vmem:[%s3 + $0x70] sm:$0xff] %v68
  %85 = vst [vmem:[%s3 + $0x78] sm:$0xff] %v69
  // Predicated region
  $region14: #{forward.55} parent=0 // pred_check
    _
  $region15: #{forward.55} parent=0 // pred_check_branch
    %87 = sbr.rel (0) target = $region17
  $region16: #{forward.55} parent=0 // pred_region
    _
  $region17: #{forward.55} parent=0 // pred_fallthru
    _
  // Predicated region
  $region18: #{forward.55} parent=0 // pred_check
    _
  $region19: #{forward.55} parent=0 // pred_check_branch
    %89 = sbr.rel (0) target = $region21
  $region20: #{forward.55} parent=0 // pred_region
    _
  $region21: #{forward.55} parent=0 // pred_fallthru
    _

// kernel: forward.51
$region0: #{forward.51}
  #allocation0 [shape = 'u32[]', space=smem, size = 0x4, offset = 0x4, fixed_abs, tag = 'smem constant byte address 0x4 - core index']
  #allocation1 [shape = 'u32[72,128]{1,0:T(1,128)}', space=vmem, size = 0x9000, scoped, tag = 'internal scratch']
  #allocation2 [shape = 'f32[128,128]{1,0:T(8,128)}', space=vmem, size = 0x10000, scoped, tag = 'scratch operand']
  %s0 = inlined_call_operand.vmem [shape: bf16[128,256], index: 0, kind: input, shape index: {}]
  %s1 = inlined_call_operand.vmem [shape: bf16[256,128], index: 1, kind: input, shape index: {}]
  %s2 = inlined_call_operand.vmem [shape: f32[128,128], index: 2, kind: output, shape index: {}]
  %s3 = sld [smem:[#allocation0]]
  $region26: #{forward.51} parent=0
    _
  %s5 = ssub.s32 1, %s3
  %s6 = scalar_select 0, %s5, %s3
  // Predicated region
  $region2: #{forward.51} parent=0 // pred_check
    _
  $region3: #{forward.51} parent=0 // pred_check_branch
    %8 = sbr.rel (0) target = $region5
  $region4: #{forward.51} parent=0 // pred_region
    _
  $region5: #{forward.51} parent=0 // pred_fallthru
    _
  // Predicated region
  $region6: #{forward.51} parent=0 // pred_check
    _
  $region7: #{forward.51} parent=0 // pred_check_branch
    %10 = sbr.rel (0) target = $region9
  $region8: #{forward.51} parent=0 // pred_region
    _
  $region9: #{forward.51} parent=0 // pred_fallthru
    _
  %p11 = scmp.eq.s32.totalorder 0, 0
  // Predicated region
  $region10: #{forward.51} parent=0 // pred_check
    %p12 = pneg %p11
  $region11: #{forward.51} parent=0 // pred_check_branch
    %14 = sbr.rel (%p12) target = $region13
  $region12: #{forward.51} parent=0 // pred_region
    %15 = vst [vmem:[#allocation2] sm:$0xff] 0.0
    %16 = vst [vmem:[#allocation2 + $0x8] sm:$0xff] 0.0
    %17 = vst [vmem:[#allocation2 + $0x10] sm:$0xff] 0.0
    %18 = vst [vmem:[#allocation2 + $0x18] sm:$0xff] 0.0
    %19 = vst [vmem:[#allocation2 + $0x20] sm:$0xff] 0.0
    %20 = vst [vmem:[#allocation2 + $0x28] sm:$0xff] 0.0
    %21 = vst [vmem:[#allocation2 + $0x30] sm:$0xff] 0.0
    %22 = vst [vmem:[#allocation2 + $0x38] sm:$0xff] 0.0
    %23 = vst [vmem:[#allocation2 + $0x40] sm:$0xff] 0.0
    %24 = vst [vmem:[#allocation2 + $0x48] sm:$0xff] 0.0
    %25 = vst [vmem:[#allocation2 + $0x50] sm:$0xff] 0.0
    %26 = vst [vmem:[#allocation2 + $0x58] sm:$0xff] 0.0
    %27 = vst [vmem:[#allocation2 + $0x60] sm:$0xff] 0.0
    %28 = vst [vmem:[#allocation2 + $0x68] sm:$0xff] 0.0
    %29 = vst [vmem:[#allocation2 + $0x70] sm:$0xff] 0.0
    %30 = vst [vmem:[#allocation2 + $0x78] sm:$0xff] 0.0
  $region13: #{forward.51} parent=0 // pred_fallthru
    _
  %v31 = vld [vmem:[#allocation2] sm:$0xff]
  %v32 = vld [vmem:[#allocation2 + $0x8] sm:$0xff]
  %v33 = vld [vmem:[#allocation2 + $0x10] sm:$0xff]
  %v34 = vld [vmem:[#allocation2 + $0x18] sm:$0xff]
  %v35 = vld [vmem:[#allocation2 + $0x20] sm:$0xff]
  %v36 = vld [vmem:[#allocation2 + $0x28] sm:$0xff]
  %v37 = vld [vmem:[#allocation2 + $0x30] sm:$0xff]
  %v38 = vld [vmem:[#allocation2 + $0x38] sm:$0xff]
  %v39 = vld [vmem:[#allocation2 + $0x40] sm:$0xff]
  %v40 = vld [vmem:[#allocation2 + $0x48] sm:$0xff]
  %v41 = vld [vmem:[#allocation2 + $0x50] sm:$0xff]
  %v42 = vld [vmem:[#allocation2 + $0x58] sm:$0xff]
  %v43 = vld [vmem:[#allocation2 + $0x60] sm:$0xff]
  %v44 = vld [vmem:[#allocation2 + $0x68] sm:$0xff]
  %v45 = vld [vmem:[#allocation2 + $0x70] sm:$0xff]
  %v46 = vld [vmem:[#allocation2 + $0x78] sm:$0xff]
  %v47 = vld [vmem:[%s0] sm:$0xff]
  %v48 = vld [vmem:[%s0 + $0x8] sm:$0xff]
  %v49 = vld [vmem:[%s0 + $0x10] sm:$0xff]
  %v50 = vld [vmem:[%s0 + $0x18] sm:$0xff]
  %v51 = vld [vmem:[%s0 + $0x20] sm:$0xff]
  %v52 = vld [vmem:[%s0 + $0x28] sm:$0xff]
  %v53 = vld [vmem:[%s0 + $0x30] sm:$0xff]
  %v54 = vld [vmem:[%s0 + $0x38] sm:$0xff]
  %v55 = vld [vmem:[%s0 + $0x40] sm:$0xff]
  %v56 = vld [vmem:[%s0 + $0x48] sm:$0xff]
  %v57 = vld [vmem:[%s0 + $0x50] sm:$0xff]
  %v58 = vld [vmem:[%s0 + $0x58] sm:$0xff]
  %v59 = vld [vmem:[%s0 + $0x60] sm:$0xff]
  %v60 = vld [vmem:[%s0 + $0x68] sm:$0xff]
  %v61 = vld [vmem:[%s0 + $0x70] sm:$0xff]
  %v62 = vld [vmem:[%s0 + $0x78] sm:$0xff]
  %v63 = vld [vmem:[%s1] sm:$0xf]
  %v64 = vld [vmem:[%s1 + $0x4] sm:$0xf]
  %v65 = vld [vmem:[%s1 + $0x8] sm:$0xf]
  %v66 = vld [vmem:[%s1 + $0xc] sm:$0xf]
  %v67 = vld [vmem:[%s1 + $0x10] sm:$0xf]
  %v68 = vld [vmem:[%s1 + $0x14] sm:$0xf]
  %v69 = vld [vmem:[%s1 + $0x18] sm:$0xf]
  %v70 = vld [vmem:[%s1 + $0x1c] sm:$0xf]
  %v71 = vld [vmem:[%s1 + $0x20] sm:$0xf]
  %v72 = vld [vmem:[%s1 + $0x24] sm:$0xf]
  %v73 = vld [vmem:[%s1 + $0x28] sm:$0xf]
  %v74 = vld [vmem:[%s1 + $0x2c] sm:$0xf]
  %v75 = vld [vmem:[%s1 + $0x30] sm:$0xf]
  %v76 = vld [vmem:[%s1 + $0x34] sm:$0xf]
  %v77 = vld [vmem:[%s1 + $0x38] sm:$0xf]
  %v78 = vld [vmem:[%s1 + $0x3c] sm:$0xf]
  %v79 = vld [vmem:[%s1 + $0x40] sm:$0xf]
  %v80 = vld [vmem:[%s1 + $0x44] sm:$0xf]
  %v81 = vld [vmem:[%s1 + $0x48] sm:$0xf]
  %v82 = vld [vmem:[%s1 + $0x4c] sm:$0xf]
  %v83 = vld [vmem:[%s1 + $0x50] sm:$0xf]
  %v84 = vld [vmem:[%s1 + $0x54] sm:$0xf]
  %v85 = vld [vmem:[%s1 + $0x58] sm:$0xf]
  %v86 = vld [vmem:[%s1 + $0x5c] sm:$0xf]
  %v87 = vld [vmem:[%s1 + $0x60] sm:$0xf]
  %v88 = vld [vmem:[%s1 + $0x64] sm:$0xf]
  %v89 = vld [vmem:[%s1 + $0x68] sm:$0xf]
  %v90 = vld [vmem:[%s1 + $0x6c] sm:$0xf]
  %v91 = vld [vmem:[%s1 + $0x70] sm:$0xf]
  %v92 = vld [vmem:[%s1 + $0x74] sm:$0xf]
  %v93 = vld [vmem:[%s1 + $0x78] sm:$0xf]
  %v94 = vld [vmem:[%s1 + $0x7c] sm:$0xf]
  %v111 = vunpack.c.l.b16 %v47
  %v112 = vunpack.c.h.b16 %v47
  %v113 = vunpack.c.l.b16 %v48
  %v114 = vunpack.c.h.b16 %v48
  %v115 = vunpack.c.l.b16 %v49
  %v116 = vunpack.c.h.b16 %v49
  %v117 = vunpack.c.l.b16 %v50
  %v118 = vunpack.c.h.b16 %v50
  %v119 = vunpack.c.l.b16 %v51
  %v120 = vunpack.c.h.b16 %v51
  %v121 = vunpack.c.l.b16 %v52
  %v122 = vunpack.c.h.b16 %v52
  %v123 = vunpack.c.l.b16 %v53
  %v124 = vunpack.c.h.b16 %v53
  %v125 = vunpack.c.l.b16 %v54
  %v126 = vunpack.c.h.b16 %v54
  %v127 = vunpack.c.l.b16 %v55
  %v128 = vunpack.c.h.b16 %v55
  %v129 = vunpack.c.l.b16 %v56
  %v130 = vunpack.c.h.b16 %v56
  %v131 = vunpack.c.l.b16 %v57
  %v132 = vunpack.c.h.b16 %v57
  %v133 = vunpack.c.l.b16 %v58
  %v134 = vunpack.c.h.b16 %v58
  %v135 = vunpack.c.l.b16 %v59
  %v136 = vunpack.c.h.b16 %v59
  %v137 = vunpack.c.l.b16 %v60
  %v138 = vunpack.c.h.b16 %v60
  %v139 = vunpack.c.l.b16 %v61
  %v140 = vunpack.c.h.b16 %v61
  %v141 = vunpack.c.l.b16 %v62
  %v142 = vunpack.c.h.b16 %v62
  %v143 = vpack.c.b16 %v113, %v111
  %v144 = vpack.c.b16 %v114, %v112
  %v145 = vpack.c.b16 %v117, %v115
  %v146 = vpack.c.b16 %v118, %v116
  %v147 = vpack.c.b16 %v121, %v119
  %v148 = vpack.c.b16 %v122, %v120
  %v149 = vpack.c.b16 %v125, %v123
  %v150 = vpack.c.b16 %v126, %v124
  %v151 = vpack.c.b16 %v129, %v127
  %v152 = vpack.c.b16 %v130, %v128
  %v153 = vpack.c.b16 %v133, %v131
  %v154 = vpack.c.b16 %v134, %v132
  %v155 = vpack.c.b16 %v137, %v135
  %v156 = vpack.c.b16 %v138, %v136
  %v157 = vpack.c.b16 %v141, %v139
  %v158 = vpack.c.b16 %v142, %v140
  %v207 = vunpack.c.l.b16 %v63
  %v208 = vunpack.c.l.b16 %v64
  %v209 = vunpack.c.l.b16 %v65
  %v210 = vunpack.c.l.b16 %v66
  %v211 = vunpack.c.l.b16 %v67
  %v212 = vunpack.c.l.b16 %v68
  %v213 = vunpack.c.l.b16 %v69
  %v214 = vunpack.c.l.b16 %v70
  %v215 = vunpack.c.l.b16 %v71
  %v216 = vunpack.c.l.b16 %v72
  %v217 = vunpack.c.l.b16 %v73
  %v218 = vunpack.c.l.b16 %v74
  %v219 = vunpack.c.l.b16 %v75
  %v220 = vunpack.c.l.b16 %v76
  %v221 = vunpack.c.l.b16 %v77
  %v222 = vunpack.c.l.b16 %v78
  %v223 = vunpack.c.l.b16 %v79
  %v224 = vunpack.c.l.b16 %v80
  %v225 = vunpack.c.l.b16 %v81
  %v226 = vunpack.c.l.b16 %v82
  %v227 = vunpack.c.l.b16 %v83
  %v228 = vunpack.c.l.b16 %v84
  %v229 = vunpack.c.l.b16 %v85
  %v230 = vunpack.c.l.b16 %v86
  %v231 = vunpack.c.l.b16 %v87
  %v232 = vunpack.c.l.b16 %v88
  %v233 = vunpack.c.l.b16 %v89
  %v234 = vunpack.c.l.b16 %v90
  %v235 = vunpack.c.l.b16 %v91
  %v236 = vunpack.c.l.b16 %v92
  %v237 = vunpack.c.l.b16 %v93
  %v238 = vunpack.c.l.b16 %v94
  %v239 = vpack.c.b16 %v208, %v207
  %v240 = vpack.c.b16 %v210, %v209
  %v241 = vpack.c.b16 %v212, %v211
  %v242 = vpack.c.b16 %v214, %v213
  %v243 = vpack.c.b16 %v216, %v215
  %v244 = vpack.c.b16 %v218, %v217
  %v245 = vpack.c.b16 %v220, %v219
  %v246 = vpack.c.b16 %v222, %v221
  %v247 = vpack.c.b16 %v224, %v223
  %v248 = vpack.c.b16 %v226, %v225
  %v249 = vpack.c.b16 %v228, %v227
  %v250 = vpack.c.b16 %v230, %v229
  %v251 = vpack.c.b16 %v232, %v231
  %v252 = vpack.c.b16 %v234, %v233
  %v253 = vpack.c.b16 %v236, %v235
  %v254 = vpack.c.b16 %v238, %v237
  %271 = vmatpush.bf16.msra.mxu0 %v246
  %272 = vmatpush.bf16.msra.mxu0 %v245
  %273 = vmatpush.bf16.msra.mxu0 %v244
  %274 = vmatpush.bf16.msra.mxu0 %v243
  %275 = vmatpush.bf16.msra.mxu0 %v242
  %276 = vmatpush.bf16.msra.mxu0 %v241
  %277 = vmatpush.bf16.msra.mxu0 %v240
  %278 = vmatpush.bf16.msra.mxu0 %v239
  %279 = vmatmul.bf16.gmra.mxu0 %v143
  %v280 = vpop.f32.mrf.mxu0
  %v281 = vadd.f32 0.0, %v280
  %v282 = vpop.f32.mrf.mxu0
  %v283 = vadd.f32 0.0, %v282
  %284 = vmatmul.bf16.gmra.mxu0 %v145
  %v285 = vpop.f32.mrf.mxu0
  %v286 = vadd.f32 0.0, %v285
  %v287 = vpop.f32.mrf.mxu0
  %v288 = vadd.f32 0.0, %v287
  %289 = vmatmul.bf16.gmra.mxu0 %v147
  %v290 = vpop.f32.mrf.mxu0
  %v291 = vadd.f32 0.0, %v290
  %v292 = vpop.f32.mrf.mxu0
  %v293 = vadd.f32 0.0, %v292
  %294 = vmatmul.bf16.gmra.mxu0 %v149
  %v295 = vpop.f32.mrf.mxu0
  %v296 = vadd.f32 0.0, %v295
  %v297 = vpop.f32.mrf.mxu0
  %v298 = vadd.f32 0.0, %v297
  %299 = vmatmul.bf16.gmra.mxu0 %v151
  %v300 = vpop.f32.mrf.mxu0
  %v301 = vadd.f32 0.0, %v300
  %v302 = vpop.f32.mrf.mxu0
  %v303 = vadd.f32 0.0, %v302
  %304 = vmatmul.bf16.gmra.mxu0 %v153
  %v305 = vpop.f32.mrf.mxu0
  %v306 = vadd.f32 0.0, %v305
  %v307 = vpop.f32.mrf.mxu0
  %v308 = vadd.f32 0.0, %v307
  %309 = vmatmul.bf16.gmra.mxu0 %v155
  %v310 = vpop.f32.mrf.mxu0
  %v311 = vadd.f32 0.0, %v310
  %v312 = vpop.f32.mrf.mxu0
  %v313 = vadd.f32 0.0, %v312
  %314 = vmatmul.bf16.gmra.mxu0 %v157
  %v315 = vpop.f32.mrf.mxu0
  %v316 = vadd.f32 0.0, %v315
  %v317 = vpop.f32.mrf.mxu0
  %v318 = vadd.f32 0.0, %v317
  %319 = vdwg.mxu0
  %320 = vmatpush.bf16.msra.mxu0 %v254
  %321 = vmatpush.bf16.msra.mxu0 %v253
  %322 = vmatpush.bf16.msra.mxu0 %v252
  %323 = vmatpush.bf16.msra.mxu0 %v251
  %324 = vmatpush.bf16.msra.mxu0 %v250
  %325 = vmatpush.bf16.msra.mxu0 %v249
  %326 = vmatpush.bf16.msra.mxu0 %v248
  %327 = vmatpush.bf16.msra.mxu0 %v247
  %328 = vmatmul.bf16.gmra.mxu0 %v144
  %v329 = vpop.f32.mrf.mxu0
  %v330 = vadd.f32 %v281, %v329
  %v331 = vpop.f32.mrf.mxu0
  %v332 = vadd.f32 %v283, %v331
  %333 = vmatmul.bf16.gmra.mxu0 %v146
  %v334 = vpop.f32.mrf.mxu0
  %v335 = vadd.f32 %v286, %v334
  %v336 = vpop.f32.mrf.mxu0
  %v337 = vadd.f32 %v288, %v336
  %338 = vmatmul.bf16.gmra.mxu0 %v148
  %v339 = vpop.f32.mrf.mxu0
  %v340 = vadd.f32 %v291, %v339
  %v341 = vpop.f32.mrf.mxu0
  %v342 = vadd.f32 %v293, %v341
  %343 = vmatmul.bf16.gmra.mxu0 %v150
  %v344 = vpop.f32.mrf.mxu0
  %v345 = vadd.f32 %v296, %v344
  %v346 = vpop.f32.mrf.mxu0
  %v347 = vadd.f32 %v298, %v346
  %348 = vmatmul.bf16.gmra.mxu0 %v152
  %v349 = vpop.f32.mrf.mxu0
  %v350 = vadd.f32 %v301, %v349
  %v351 = vpop.f32.mrf.mxu0
  %v352 = vadd.f32 %v303, %v351
  %353 = vmatmul.bf16.gmra.mxu0 %v154
  %v354 = vpop.f32.mrf.mxu0
  %v355 = vadd.f32 %v306, %v354
  %v356 = vpop.f32.mrf.mxu0
  %v357 = vadd.f32 %v308, %v356
  %358 = vmatmul.bf16.gmra.mxu0 %v156
  %v359 = vpop.f32.mrf.mxu0
  %v360 = vadd.f32 %v311, %v359
  %v361 = vpop.f32.mrf.mxu0
  %v362 = vadd.f32 %v313, %v361
  %363 = vmatmul.bf16.gmra.mxu0 %v158
  %v364 = vpop.f32.mrf.mxu0
  %v365 = vadd.f32 %v316, %v364
  %v366 = vpop.f32.mrf.mxu0
  %v367 = vadd.f32 %v318, %v366
  %368 = vdwg.mxu0
  %v369 = vadd.f32 %v31, %v330
  %v370 = vadd.f32 %v32, %v332
  %v371 = vadd.f32 %v33, %v335
  %v372 = vadd.f32 %v34, %v337
  %v373 = vadd.f32 %v35, %v340
  %v374 = vadd.f32 %v36, %v342
  %v375 = vadd.f32 %v37, %v345
  %v376 = vadd.f32 %v38, %v347
  %v377 = vadd.f32 %v39, %v350
  %v378 = vadd.f32 %v40, %v352
  %v379 = vadd.f32 %v41, %v355
  %v380 = vadd.f32 %v42, %v357
  %v381 = vadd.f32 %v43, %v360
  %v382 = vadd.f32 %v44, %v362
  %v383 = vadd.f32 %v45, %v365
  %v384 = vadd.f32 %v46, %v367
  %385 = vst [vmem:[#allocation2] sm:$0xff] %v369
  %386 = vst [vmem:[#allocation2 + $0x8] sm:$0xff] %v370
  %387 = vst [vmem:[#allocation2 + $0x10] sm:$0xff] %v371
  %388 = vst [vmem:[#allocation2 + $0x18] sm:$0xff] %v372
  %389 = vst [vmem:[#allocation2 + $0x20] sm:$0xff] %v373
  %390 = vst [vmem:[#allocation2 + $0x28] sm:$0xff] %v374
  %391 = vst [vmem:[#allocation2 + $0x30] sm:$0xff] %v375
  %392 = vst [vmem:[#allocation2 + $0x38] sm:$0xff] %v376
  %393 = vst [vmem:[#allocation2 + $0x40] sm:$0xff] %v377
  %394 = vst [vmem:[#allocation2 + $0x48] sm:$0xff] %v378
  %395 = vst [vmem:[#allocation2 + $0x50] sm:$0xff] %v379
  %396 = vst [vmem:[#allocation2 + $0x58] sm:$0xff] %v380
  %397 = vst [vmem:[#allocation2 + $0x60] sm:$0xff] %v381
  %398 = vst [vmem:[#allocation2 + $0x68] sm:$0xff] %v382
  %399 = vst [vmem:[#allocation2 + $0x70] sm:$0xff] %v383
  %400 = vst [vmem:[#allocation2 + $0x78] sm:$0xff] %v384
  // Predicated region
  $region14: #{forward.51} parent=0 // pred_check
    %p401 = pneg %p11
  $region15: #{forward.51} parent=0 // pred_check_branch
    %403 = sbr.rel (%p401) target = $region17
  $region16: #{forward.51} parent=0 // pred_region
    %v404 = vld [vmem:[#allocation2] sm:$0xff]
    %v405 = vld [vmem:[#allocation2 + $0x8] sm:$0xff]
    %v406 = vld [vmem:[#allocation2 + $0x10] sm:$0xff]
    %v407 = vld [vmem:[#allocation2 + $0x18] sm:$0xff]
    %v408 = vld [vmem:[#allocation2 + $0x20] sm:$0xff]
    %v409 = vld [vmem:[#allocation2 + $0x28] sm:$0xff]
    %v410 = vld [vmem:[#allocation2 + $0x30] sm:$0xff]
    %v411 = vld [vmem:[#allocation2 + $0x38] sm:$0xff]
    %v412 = vld [vmem:[#allocation2 + $0x40] sm:$0xff]
    %v413 = vld [vmem:[#allocation2 + $0x48] sm:$0xff]
    %v414 = vld [vmem:[#allocation2 + $0x50] sm:$0xff]
    %v415 = vld [vmem:[#allocation2 + $0x58] sm:$0xff]
    %v416 = vld [vmem:[#allocation2 + $0x60] sm:$0xff]
    %v417 = vld [vmem:[#allocation2 + $0x68] sm:$0xff]
    %v418 = vld [vmem:[#allocation2 + $0x70] sm:$0xff]
    %v419 = vld [vmem:[#allocation2 + $0x78] sm:$0xff]
    %420 = vst [vmem:[%s2] sm:$0xff] %v404
    %421 = vst [vmem:[%s2 + $0x8] sm:$0xff] %v405
    %422 = vst [vmem:[%s2 + $0x10] sm:$0xff] %v406
    %423 = vst [vmem:[%s2 + $0x18] sm:$0xff] %v407
    %424 = vst [vmem:[%s2 + $0x20] sm:$0xff] %v408
    %425 = vst [vmem:[%s2 + $0x28] sm:$0xff] %v409
    %426 = vst [vmem:[%s2 + $0x30] sm:$0xff] %v410
    %427 = vst [vmem:[%s2 + $0x38] sm:$0xff] %v411
    %428 = vst [vmem:[%s2 + $0x40] sm:$0xff] %v412
    %429 = vst [vmem:[%s2 + $0x48] sm:$0xff] %v413
    %430 = vst [vmem:[%s2 + $0x50] sm:$0xff] %v414
    %431 = vst [vmem:[%s2 + $0x58] sm:$0xff] %v415
    %432 = vst [vmem:[%s2 + $0x60] sm:$0xff] %v416
    %433 = vst [vmem:[%s2 + $0x68] sm:$0xff] %v417
    %434 = vst [vmem:[%s2 + $0x70] sm:$0xff] %v418
    %435 = vst [vmem:[%s2 + $0x78] sm:$0xff] %v419
  $region17: #{forward.51} parent=0 // pred_fallthru
    _
  // Predicated region
  $region18: #{forward.51} parent=0 // pred_check
    _
  $region19: #{forward.51} parent=0 // pred_check_branch
    %437 = sbr.rel (0) target = $region21
  $region20: #{forward.51} parent=0 // pred_region
    _
  $region21: #{forward.51} parent=0 // pred_fallthru
    _
  // Predicated region
  $region22: #{forward.51} parent=0 // pred_check
    _
  $region23: #{forward.51} parent=0 // pred_check_branch
    %439 = sbr.rel (0) target = $region25
  $region24: #{forward.51} parent=0 // pred_region
    _
  $region25: #{forward.51} parent=0 // pred_fallthru
    _

// kernel: forward.52
$region0: #{forward.52}
  #allocation0 [shape = 'u32[]', space=smem, size = 0x4, offset = 0x4, fixed_abs, tag = 'smem constant byte address 0x4 - core index']
  #allocation1 [shape = 'u32[72,128]{1,0:T(1,128)}', space=vmem, size = 0x9000, scoped, tag = 'internal scratch']
  %s0 = inlined_call_operand.vmem [shape: f32[16,128], index: 0, kind: input, shape index: {}]
  %s1 = inlined_call_operand.vmem [shape: f32[1,128], index: 1, kind: input, shape index: {}]
  %s2 = inlined_call_operand.vmem [shape: f32[1,128], index: 2, kind: input, shape index: {}]
  %s3 = inlined_call_operand.vmem [shape: f32[16,128], index: 3, kind: output, shape index: {}]
  %s4 = sld [smem:[#allocation0]]
  $region22: #{forward.52} parent=0
    _
  %s6 = ssub.s32 1, %s4
  %s7 = scalar_select 0, %s6, %s4
  // Predicated region
  $region2: #{forward.52} parent=0 // pred_check
    _
  $region3: #{forward.52} parent=0 // pred_check_branch
    %9 = sbr.rel (0) target = $region5
  $region4: #{forward.52} parent=0 // pred_region
    _
  $region5: #{forward.52} parent=0 // pred_fallthru
    _
  // Predicated region
  $region6: #{forward.52} parent=0 // pred_check
    _
  $region7: #{forward.52} parent=0 // pred_check_branch
    %11 = sbr.rel (0) target = $region9
  $region8: #{forward.52} parent=0 // pred_region
    _
  $region9: #{forward.52} parent=0 // pred_fallthru
    _
  // Predicated region
  $region10: #{forward.52} parent=0 // pred_check
    _
  $region11: #{forward.52} parent=0 // pred_check_branch
    %13 = sbr.rel (0) target = $region13
  $region12: #{forward.52} parent=0 // pred_region
    _
  $region13: #{forward.52} parent=0 // pred_fallthru
    _
  %v14 = vld [vmem:[%s0] sm:$0xff]
  %v15 = vld [vmem:[%s0 + $0x8] sm:$0xff]
  %v16 = vld [vmem:[%s1] sm:$0x1]
  %v18 = vperm.slane %v16, 0
  %v20 = vmul.f32 %v14, %v18
  %v21 = vmul.f32 %v15, %v18
  %v22 = vld [vmem:[%s2] sm:$0x1]
  %v24 = vperm.slane %v22, 0
  %v26 = vadd.f32 %v20, %v24
  %v27 = vadd.f32 %v21, %v24
  %vm28 = vcmp.ge.f32.partialorder %v26, 0.0
  %vm29 = vcmp.ge.f32.partialorder %v27, 0.0
  %v30 = vmul.f32 %v26, 0.2
  %v31 = vmul.f32 %v27, 0.2
  %v32 = vsel %vm28, %v26, %v30
  %v33 = vsel %vm29, %v27, %v31
  %34 = vst [vmem:[%s3] sm:$0xff] %v32
  %35 = vst [vmem:[%s3 + $0x8] sm:$0xff] %v33
  // Predicated region
  $region14: #{forward.52} parent=0 // pred_check
    _
  $region15: #{forward.52} parent=0 // pred_check_branch
    %37 = sbr.rel (0) target = $region17
  $region16: #{forward.52} parent=0 // pred_region
    _
  $region17: #{forward.52} parent=0 // pred_fallthru
    _
  // Predicated region
  $region18: #{forward.52} parent=0 // pred_check
    _
  $region19: #{forward.52} parent=0 // pred_check_branch
    %39 = sbr.rel (0) target = $region21
  $region20: #{forward.52} parent=0 // pred_region
    _
  $region21: #{forward.52} parent=0 // pred_fallthru
    _

// kernel: forward.56
$region0: #{forward.56}
  #allocation0 [shape = 'u32[]', space=smem, size = 0x4, offset = 0x4, fixed_abs, tag = 'smem constant byte address 0x4 - core index']
  #allocation1 [shape = 'u32[72,128]{1,0:T(1,128)}', space=vmem, size = 0x9000, scoped, tag = 'internal scratch']
  %s0 = inlined_call_operand.vmem [shape: f32[128,128], index: 0, kind: input, shape index: {}]
  %s1 = inlined_call_operand.vmem [shape: f32[1,128], index: 1, kind: input, shape index: {}]
  %s2 = inlined_call_operand.vmem [shape: f32[1,128], index: 2, kind: input, shape index: {}]
  %s3 = inlined_call_operand.vmem [shape: f32[128,128], index: 3, kind: input, shape index: {}]
  %s4 = inlined_call_operand.vmem [shape: f32[128,128], index: 4, kind: output, shape index: {}]
  %s5 = sld [smem:[#allocation0]]
  $region26: #{forward.56} parent=0
    _
  %s7 = ssub.s32 1, %s5
  %s8 = scalar_select 0, %s7, %s5
  // Predicated region
  $region2: #{forward.56} parent=0 // pred_check
    _
  $region3: #{forward.56} parent=0 // pred_check_branch
    %10 = sbr.rel (0) target = $region5
  $region4: #{forward.56} parent=0 // pred_region
    _
  $region5: #{forward.56} parent=0 // pred_fallthru
    _
  // Predicated region
  $region6: #{forward.56} parent=0 // pred_check
    _
  $region7: #{forward.56} parent=0 // pred_check_branch
    %12 = sbr.rel (0) target = $region9
  $region8: #{forward.56} parent=0 // pred_region
    _
  $region9: #{forward.56} parent=0 // pred_fallthru
    _
  // Predicated region
  $region10: #{forward.56} parent=0 // pred_check
    _
  $region11: #{forward.56} parent=0 // pred_check_branch
    %14 = sbr.rel (0) target = $region13
  $region12: #{forward.56} parent=0 // pred_region
    _
  $region13: #{forward.56} parent=0 // pred_fallthru
    _
  // Predicated region
  $region14: #{forward.56} parent=0 // pred_check
    _
  $region15: #{forward.56} parent=0 // pred_check_branch
    %16 = sbr.rel (0) target = $region17
  $region16: #{forward.56} parent=0 // pred_region
    _
  $region17: #{forward.56} parent=0 // pred_fallthru
    _
  %v17 = vld [vmem:[%s0] sm:$0xff]
  %v18 = vld [vmem:[%s0 + $0x8] sm:$0xff]
  %v19 = vld [vmem:[%s0 + $0x10] sm:$0xff]
  %v20 = vld [vmem:[%s0 + $0x18] sm:$0xff]
  %v21 = vld [vmem:[%s0 + $0x20] sm:$0xff]
  %v22 = vld [vmem:[%s0 + $0x28] sm:$0xff]
  %v23 = vld [vmem:[%s0 + $0x30] sm:$0xff]
  %v24 = vld [vmem:[%s0 + $0x38] sm:$0xff]
  %v25 = vld [vmem:[%s0 + $0x40] sm:$0xff]
  %v26 = vld [vmem:[%s0 + $0x48] sm:$0xff]
  %v27 = vld [vmem:[%s0 + $0x50] sm:$0xff]
  %v28 = vld [vmem:[%s0 + $0x58] sm:$0xff]
  %v29 = vld [vmem:[%s0 + $0x60] sm:$0xff]
  %v30 = vld [vmem:[%s0 + $0x68] sm:$0xff]
  %v31 = vld [vmem:[%s0 + $0x70] sm:$0xff]
  %v32 = vld [vmem:[%s0 + $0x78] sm:$0xff]
  %v33 = vld [vmem:[%s1] sm:$0x1]
  %v35 = vperm.slane %v33, 0
  %v37 = vmul.f32 %v17, %v35
  %v38 = vmul.f32 %v18, %v35
  %v39 = vmul.f32 %v19, %v35
  %v40 = vmul.f32 %v20, %v35
  %v41 = vmul.f32 %v21, %v35
  %v42 = vmul.f32 %v22, %v35
  %v43 = vmul.f32 %v23, %v35
  %v44 = vmul.f32 %v24, %v35
  %v45 = vmul.f32 %v25, %v35
  %v46 = vmul.f32 %v26, %v35
  %v47 = vmul.f32 %v27, %v35
  %v48 = vmul.f32 %v28, %v35
  %v49 = vmul.f32 %v29, %v35
  %v50 = vmul.f32 %v30, %v35
  %v51 = vmul.f32 %v31, %v35
  %v52 = vmul.f32 %v32, %v35
  %v53 = vld [vmem:[%s2] sm:$0x1]
  %v55 = vperm.slane %v53, 0
  %v57 = vadd.f32 %v37, %v55
  %v58 = vadd.f32 %v38, %v55
  %v59 = vadd.f32 %v39, %v55
  %v60 = vadd.f32 %v40, %v55
  %v61 = vadd.f32 %v41, %v55
  %v62 = vadd.f32 %v42, %v55
  %v63 = vadd.f32 %v43, %v55
  %v64 = vadd.f32 %v44, %v55
  %v65 = vadd.f32 %v45, %v55
  %v66 = vadd.f32 %v46, %v55
  %v67 = vadd.f32 %v47, %v55
  %v68 = vadd.f32 %v48, %v55
  %v69 = vadd.f32 %v49, %v55
  %v70 = vadd.f32 %v50, %v55
  %v71 = vadd.f32 %v51, %v55
  %v72 = vadd.f32 %v52, %v55
  %v73 = vld [vmem:[%s3] sm:$0xff]
  %v74 = vld [vmem:[%s3 + $0x8] sm:$0xff]
  %v75 = vld [vmem:[%s3 + $0x10] sm:$0xff]
  %v76 = vld [vmem:[%s3 + $0x18] sm:$0xff]
  %v77 = vld [vmem:[%s3 + $0x20] sm:$0xff]
  %v78 = vld [vmem:[%s3 + $0x28] sm:$0xff]
  %v79 = vld [vmem:[%s3 + $0x30] sm:$0xff]
  %v80 = vld [vmem:[%s3 + $0x38] sm:$0xff]
  %v81 = vld [vmem:[%s3 + $0x40] sm:$0xff]
  %v82 = vld [vmem:[%s3 + $0x48] sm:$0xff]
  %v83 = vld [vmem:[%s3 + $0x50] sm:$0xff]
  %v84 = vld [vmem:[%s3 + $0x58] sm:$0xff]
  %v85 = vld [vmem:[%s3 + $0x60] sm:$0xff]
  %v86 = vld [vmem:[%s3 + $0x68] sm:$0xff]
  %v87 = vld [vmem:[%s3 + $0x70] sm:$0xff]
  %v88 = vld [vmem:[%s3 + $0x78] sm:$0xff]
  %v89 = vadd.f32 %v57, %v73
  %v90 = vadd.f32 %v58, %v74
  %v91 = vadd.f32 %v59, %v75
  %v92 = vadd.f32 %v60, %v76
  %v93 = vadd.f32 %v61, %v77
  %v94 = vadd.f32 %v62, %v78
  %v95 = vadd.f32 %v63, %v79
  %v96 = vadd.f32 %v64, %v80
  %v97 = vadd.f32 %v65, %v81
  %v98 = vadd.f32 %v66, %v82
  %v99 = vadd.f32 %v67, %v83
  %v100 = vadd.f32 %v68, %v84
  %v101 = vadd.f32 %v69, %v85
  %v102 = vadd.f32 %v70, %v86
  %v103 = vadd.f32 %v71, %v87
  %v104 = vadd.f32 %v72, %v88
  %vm105 = vcmp.ge.f32.partialorder %v89, 0.0
  %vm106 = vcmp.ge.f32.partialorder %v90, 0.0
  %vm107 = vcmp.ge.f32.partialorder %v91, 0.0
  %vm108 = vcmp.ge.f32.partialorder %v92, 0.0
  %vm109 = vcmp.ge.f32.partialorder %v93, 0.0
  %vm110 = vcmp.ge.f32.partialorder %v94, 0.0
  %vm111 = vcmp.ge.f32.partialorder %v95, 0.0
  %vm112 = vcmp.ge.f32.partialorder %v96, 0.0
  %vm113 = vcmp.ge.f32.partialorder %v97, 0.0
  %vm114 = vcmp.ge.f32.partialorder %v98, 0.0
  %vm115 = vcmp.ge.f32.partialorder %v99, 0.0
  %vm116 = vcmp.ge.f32.partialorder %v100, 0.0
  %vm117 = vcmp.ge.f32.partialorder %v101, 0.0
  %vm118 = vcmp.ge.f32.partialorder %v102, 0.0
  %vm119 = vcmp.ge.f32.partialorder %v103, 0.0
  %vm120 = vcmp.ge.f32.partialorder %v104, 0.0
  %v121 = vmul.f32 %v89, 0.2
  %v122 = vmul.f32 %v90, 0.2
  %v123 = vmul.f32 %v91, 0.2
  %v124 = vmul.f32 %v92, 0.2
  %v125 = vmul.f32 %v93, 0.2
  %v126 = vmul.f32 %v94, 0.2
  %v127 = vmul.f32 %v95, 0.2
  %v128 = vmul.f32 %v96, 0.2
  %v129 = vmul.f32 %v97, 0.2
  %v130 = vmul.f32 %v98, 0.2
  %v131 = vmul.f32 %v99, 0.2
  %v132 = vmul.f32 %v100, 0.2
  %v133 = vmul.f32 %v101, 0.2
  %v134 = vmul.f32 %v102, 0.2
  %v135 = vmul.f32 %v103, 0.2
  %v136 = vmul.f32 %v104, 0.2
  %v137 = vsel %vm105, %v89, %v121
  %v138 = vsel %vm106, %v90, %v122
  %v139 = vsel %vm107, %v91, %v123
  %v140 = vsel %vm108, %v92, %v124
  %v141 = vsel %vm109, %v93, %v125
  %v142 = vsel %vm110, %v94, %v126
  %v143 = vsel %vm111, %v95, %v127
  %v144 = vsel %vm112, %v96, %v128
  %v145 = vsel %vm113, %v97, %v129
  %v146 = vsel %vm114, %v98, %v130
  %v147 = vsel %vm115, %v99, %v131
  %v148 = vsel %vm116, %v100, %v132
  %v149 = vsel %vm117, %v101, %v133
  %v150 = vsel %vm118, %v102, %v134
  %v151 = vsel %vm119, %v103, %v135
  %v152 = vsel %vm120, %v104, %v136
  %153 = vst [vmem:[%s4] sm:$0xff] %v137
  %154 = vst [vmem:[%s4 + $0x8] sm:$0xff] %v138
  %155 = vst [vmem:[%s4 + $0x10] sm:$0xff] %v139
  %156 = vst [vmem:[%s4 + $0x18] sm:$0xff] %v140
  %157 = vst [vmem:[%s4 + $0x20] sm:$0xff] %v141
  %158 = vst [vmem:[%s4 + $0x28] sm:$0xff] %v142
  %159 = vst [vmem:[%s4 + $0x30] sm:$0xff] %v143
  %160 = vst [vmem:[%s4 + $0x38] sm:$0xff] %v144
  %161 = vst [vmem:[%s4 + $0x40] sm:$0xff] %v145
  %162 = vst [vmem:[%s4 + $0x48] sm:$0xff] %v146
  %163 = vst [vmem:[%s4 + $0x50] sm:$0xff] %v147
  %164 = vst [vmem:[%s4 + $0x58] sm:$0xff] %v148
  %165 = vst [vmem:[%s4 + $0x60] sm:$0xff] %v149
  %166 = vst [vmem:[%s4 + $0x68] sm:$0xff] %v150
  %167 = vst [vmem:[%s4 + $0x70] sm:$0xff] %v151
  %168 = vst [vmem:[%s4 + $0x78] sm:$0xff] %v152
  // Predicated region
  $region18: #{forward.56} parent=0 // pred_check
    _
  $region19: #{forward.56} parent=0 // pred_check_branch
    %170 = sbr.rel (0) target = $region21
  $region20: #{forward.56} parent=0 // pred_region
    _
  $region21: #{forward.56} parent=0 // pred_fallthru
    _
  // Predicated region
  $region22: #{forward.56} parent=0 // pred_check
    _
  $region23: #{forward.56} parent=0 // pred_check_branch
    %172 = sbr.rel (0) target = $region25
  $region24: #{forward.56} parent=0 // pred_region
    _
  $region25: #{forward.56} parent=0 // pred_fallthru
    _

// kernel: forward.57
$region0: #{forward.57}
  #allocation0 [shape = 'u32[]', space=smem, size = 0x4, offset = 0x4, fixed_abs, tag = 'smem constant byte address 0x4 - core index']
  #allocation1 [shape = 'u32[72,128]{1,0:T(1,128)}', space=vmem, size = 0x9000, scoped, tag = 'internal scratch']
  #allocation2 [shape = 'f32[32,128]{1,0:T(8,128)}', space=vmem, size = 0x4000, scoped, tag = 'scratch operand']
  %s0 = inlined_call_operand.vmem [shape: bf16[32,128], index: 0, kind: input, shape index: {}]
  %s1 = inlined_call_operand.vmem [shape: bf16[128,128], index: 1, kind: input, shape index: {}]
  %s2 = inlined_call_operand.vmem [shape: f32[32,128], index: 2, kind: output, shape index: {}]
  %s3 = sld [smem:[#allocation0]]
  $region26: #{forward.57} parent=0
    _
  %s5 = ssub.s32 1, %s3
  %s6 = scalar_select 0, %s5, %s3
  // Predicated region
  $region2: #{forward.57} parent=0 // pred_check
    _
  $region3: #{forward.57} parent=0 // pred_check_branch
    %8 = sbr.rel (0) target = $region5
  $region4: #{forward.57} parent=0 // pred_region
    _
  $region5: #{forward.57} parent=0 // pred_fallthru
    _
  // Predicated region
  $region6: #{forward.57} parent=0 // pred_check
    _
  $region7: #{forward.57} parent=0 // pred_check_branch
    %10 = sbr.rel (0) target = $region9
  $region8: #{forward.57} parent=0 // pred_region
    _
  $region9: #{forward.57} parent=0 // pred_fallthru
    _
  %p11 = scmp.eq.s32.totalorder 0, 0
  // Predicated region
  $region10: #{forward.57} parent=0 // pred_check
    %p12 = pneg %p11
  $region11: #{forward.57} parent=0 // pred_check_branch
    %14 = sbr.rel (%p12) target = $region13
  $region12: #{forward.57} parent=0 // pred_region
    %15 = vst [vmem:[#allocation2] sm:$0xff] 0.0
    %16 = vst [vmem:[#allocation2 + $0x8] sm:$0xff] 0.0
    %17 = vst [vmem:[#allocation2 + $0x10] sm:$0xff] 0.0
    %18 = vst [vmem:[#allocation2 + $0x18] sm:$0xff] 0.0
  $region13: #{forward.57} parent=0 // pred_fallthru
    _
  %v19 = vld [vmem:[#allocation2] sm:$0xff]
  %v20 = vld [vmem:[#allocation2 + $0x8] sm:$0xff]
  %v21 = vld [vmem:[#allocation2 + $0x10] sm:$0xff]
  %v22 = vld [vmem:[#allocation2 + $0x18] sm:$0xff]
  %v23 = vld [vmem:[%s0] sm:$0xf]
  %v24 = vld [vmem:[%s0 + $0x4] sm:$0xf]
  %v25 = vld [vmem:[%s0 + $0x8] sm:$0xf]
  %v26 = vld [vmem:[%s0 + $0xc] sm:$0xf]
  %v27 = vld [vmem:[%s1] sm:$0xf]
  %v28 = vld [vmem:[%s1 + $0x4] sm:$0xf]
  %v29 = vld [vmem:[%s1 + $0x8] sm:$0xf]
  %v30 = vld [vmem:[%s1 + $0xc] sm:$0xf]
  %v31 = vld [vmem:[%s1 + $0x10] sm:$0xf]
  %v32 = vld [vmem:[%s1 + $0x14] sm:$0xf]
  %v33 = vld [vmem:[%s1 + $0x18] sm:$0xf]
  %v34 = vld [vmem:[%s1 + $0x1c] sm:$0xf]
  %v35 = vld [vmem:[%s1 + $0x20] sm:$0xf]
  %v36 = vld [vmem:[%s1 + $0x24] sm:$0xf]
  %v37 = vld [vmem:[%s1 + $0x28] sm:$0xf]
  %v38 = vld [vmem:[%s1 + $0x2c] sm:$0xf]
  %v39 = vld [vmem:[%s1 + $0x30] sm:$0xf]
  %v40 = vld [vmem:[%s1 + $0x34] sm:$0xf]
  %v41 = vld [vmem:[%s1 + $0x38] sm:$0xf]
  %v42 = vld [vmem:[%s1 + $0x3c] sm:$0xf]
  %v47 = vunpack.c.l.b16 %v23
  %v48 = vunpack.c.l.b16 %v24
  %v49 = vunpack.c.l.b16 %v25
  %v50 = vunpack.c.l.b16 %v26
  %v51 = vpack.c.b16 %v48, %v47
  %v52 = vpack.c.b16 %v50, %v49
  %v71 = vunpack.c.l.b16 %v27
  %v72 = vunpack.c.l.b16 %v28
  %v73 = vunpack.c.l.b16 %v29
  %v74 = vunpack.c.l.b16 %v30
  %v75 = vunpack.c.l.b16 %v31
  %v76 = vunpack.c.l.b16 %v32
  %v77 = vunpack.c.l.b16 %v33
  %v78 = vunpack.c.l.b16 %v34
  %v79 = vunpack.c.l.b16 %v35
  %v80 = vunpack.c.l.b16 %v36
  %v81 = vunpack.c.l.b16 %v37
  %v82 = vunpack.c.l.b16 %v38
  %v83 = vunpack.c.l.b16 %v39
  %v84 = vunpack.c.l.b16 %v40
  %v85 = vunpack.c.l.b16 %v41
  %v86 = vunpack.c.l.b16 %v42
  %v87 = vpack.c.b16 %v72, %v71
  %v88 = vpack.c.b16 %v74, %v73
  %v89 = vpack.c.b16 %v76, %v75
  %v90 = vpack.c.b16 %v78, %v77
  %v91 = vpack.c.b16 %v80, %v79
  %v92 = vpack.c.b16 %v82, %v81
  %v93 = vpack.c.b16 %v84, %v83
  %v94 = vpack.c.b16 %v86, %v85
  %103 = vmatpush.bf16.msra.mxu0 %v94
  %104 = vmatpush.bf16.msra.mxu0 %v93
  %105 = vmatpush.bf16.msra.mxu0 %v92
  %106 = vmatpush.bf16.msra.mxu0 %v91
  %107 = vmatpush.bf16.msra.mxu0 %v90
  %108 = vmatpush.bf16.msra.mxu0 %v89
  %109 = vmatpush.bf16.msra.mxu0 %v88
  %110 = vmatpush.bf16.msra.mxu0 %v87
  %111 = vmatmul.bf16.gmra.mxu0 %v51
  %v112 = vpop.f32.mrf.mxu0
  %v113 = vadd.f32 0.0, %v112
  %v114 = vpop.f32.mrf.mxu0
  %v115 = vadd.f32 0.0, %v114
  %116 = vmatmul.bf16.gmra.mxu0 %v52
  %v117 = vpop.f32.mrf.mxu0
  %v118 = vadd.f32 0.0, %v117
  %v119 = vpop.f32.mrf.mxu0
  %v120 = vadd.f32 0.0, %v119
  %121 = vdwg.mxu0
  %v122 = vadd.f32 %v19, %v113
  %v123 = vadd.f32 %v20, %v115
  %v124 = vadd.f32 %v21, %v118
  %v125 = vadd.f32 %v22, %v120
  %126 = vst [vmem:[#allocation2] sm:$0xff] %v122
  %127 = vst [vmem:[#allocation2 + $0x8] sm:$0xff] %v123
  %128 = vst [vmem:[#allocation2 + $0x10] sm:$0xff] %v124
  %129 = vst [vmem:[#allocation2 + $0x18] sm:$0xff] %v125
  // Predicated region
  $region14: #{forward.57} parent=0 // pred_check
    %p130 = pneg %p11
  $region15: #{forward.57} parent=0 // pred_check_branch
    %132 = sbr.rel (%p130) target = $region17
  $region16: #{forward.57} parent=0 // pred_region
    %v133 = vld [vmem:[#allocation2] sm:$0xff]
    %v134 = vld [vmem:[#allocation2 + $0x8] sm:$0xff]
    %v135 = vld [vmem:[#allocation2 + $0x10] sm:$0xff]
    %v136 = vld [vmem:[#allocation2 + $0x18] sm:$0xff]
    %137 = vst [vmem:[%s2] sm:$0xff] %v133
    %138 = vst [vmem:[%s2 + $0x8] sm:$0xff] %v134
    %139 = vst [vmem:[%s2 + $0x10] sm:$0xff] %v135
    %140 = vst [vmem:[%s2 + $0x18] sm:$0xff] %v136
  $region17: #{forward.57} parent=0 // pred_fallthru
    _
  // Predicated region
  $region18: #{forward.57} parent=0 // pred_check
    _
  $region19: #{forward.57} parent=0 // pred_check_branch
    %142 = sbr.rel (0) target = $region21
  $region20: #{forward.57} parent=0 // pred_region
    _
  $region21: #{forward.57} parent=0 // pred_fallthru
    _
  // Predicated region
  $region22: #{forward.57} parent=0 // pred_check
    _
  $region23: #{forward.57} parent=0 // pred_check_branch
    %144 = sbr.rel (0) target = $region25
  $region24: #{forward.57} parent=0 // pred_region
    _
  $region25: #{forward.57} parent=0 // pred_fallthru
    _

// kernel: forward.62
$region0: #{forward.62}
  #allocation0 [shape = 'u32[]', space=smem, size = 0x4, offset = 0x4, fixed_abs, tag = 'smem constant byte address 0x4 - core index']
  #allocation1 [shape = 'u32[72,128]{1,0:T(1,128)}', space=vmem, size = 0x9000, scoped, tag = 'internal scratch']
  #allocation2 [shape = 'f32[32,256]{1,0:T(8,128)}', space=vmem, size = 0x8000, scoped, tag = 'scratch operand']
  %s0 = inlined_call_operand.vmem [shape: bf16[32,128], index: 0, kind: input, shape index: {}]
  %s1 = inlined_call_operand.vmem [shape: bf16[128,256], index: 1, kind: input, shape index: {}]
  %s2 = inlined_call_operand.vmem [shape: f32[32,256], index: 2, kind: output, shape index: {}]
  %s3 = sld [smem:[#allocation0]]
  $region26: #{forward.62} parent=0
    _
  %s5 = ssub.s32 1, %s3
  %s6 = scalar_select 0, %s5, %s3
  // Predicated region
  $region2: #{forward.62} parent=0 // pred_check
    _
  $region3: #{forward.62} parent=0 // pred_check_branch
    %8 = sbr.rel (0) target = $region5
  $region4: #{forward.62} parent=0 // pred_region
    _
  $region5: #{forward.62} parent=0 // pred_fallthru
    _
  // Predicated region
  $region6: #{forward.62} parent=0 // pred_check
    _
  $region7: #{forward.62} parent=0 // pred_check_branch
    %10 = sbr.rel (0) target = $region9
  $region8: #{forward.62} parent=0 // pred_region
    _
  $region9: #{forward.62} parent=0 // pred_fallthru
    _
  %p11 = scmp.eq.s32.totalorder 0, 0
  // Predicated region
  $region10: #{forward.62} parent=0 // pred_check
    %p12 = pneg %p11
  $region11: #{forward.62} parent=0 // pred_check_branch
    %14 = sbr.rel (%p12) target = $region13
  $region12: #{forward.62} parent=0 // pred_region
    %15 = vst [vmem:[#allocation2] sm:$0xff] 0.0
    %16 = vst [vmem:[#allocation2 + $0x8] sm:$0xff] 0.0
    %17 = vst [vmem:[#allocation2 + $0x10] sm:$0xff] 0.0
    %18 = vst [vmem:[#allocation2 + $0x18] sm:$0xff] 0.0
    %19 = vst [vmem:[#allocation2 + $0x20] sm:$0xff] 0.0
    %20 = vst [vmem:[#allocation2 + $0x28] sm:$0xff] 0.0
    %21 = vst [vmem:[#allocation2 + $0x30] sm:$0xff] 0.0
    %22 = vst [vmem:[#allocation2 + $0x38] sm:$0xff] 0.0
  $region13: #{forward.62} parent=0 // pred_fallthru
    _
  %v23 = vld [vmem:[#allocation2] sm:$0xff]
  %v24 = vld [vmem:[#allocation2 + $0x8] sm:$0xff]
  %v25 = vld [vmem:[#allocation2 + $0x10] sm:$0xff]
  %v26 = vld [vmem:[#allocation2 + $0x18] sm:$0xff]
  %v27 = vld [vmem:[#allocation2 + $0x20] sm:$0xff]
  %v28 = vld [vmem:[#allocation2 + $0x28] sm:$0xff]
  %v29 = vld [vmem:[#allocation2 + $0x30] sm:$0xff]
  %v30 = vld [vmem:[#allocation2 + $0x38] sm:$0xff]
  %v31 = vld [vmem:[%s0] sm:$0xf]
  %v32 = vld [vmem:[%s0 + $0x4] sm:$0xf]
  %v33 = vld [vmem:[%s0 + $0x8] sm:$0xf]
  %v34 = vld [vmem:[%s0 + $0xc] sm:$0xf]
  %v35 = vld [vmem:[%s1] sm:$0xff]
  %v36 = vld [vmem:[%s1 + $0x8] sm:$0xff]
  %v37 = vld [vmem:[%s1 + $0x10] sm:$0xff]
  %v38 = vld [vmem:[%s1 + $0x18] sm:$0xff]
  %v39 = vld [vmem:[%s1 + $0x20] sm:$0xff]
  %v40 = vld [vmem:[%s1 + $0x28] sm:$0xff]
  %v41 = vld [vmem:[%s1 + $0x30] sm:$0xff]
  %v42 = vld [vmem:[%s1 + $0x38] sm:$0xff]
  %v43 = vld [vmem:[%s1 + $0x40] sm:$0xff]
  %v44 = vld [vmem:[%s1 + $0x48] sm:$0xff]
  %v45 = vld [vmem:[%s1 + $0x50] sm:$0xff]
  %v46 = vld [vmem:[%s1 + $0x58] sm:$0xff]
  %v47 = vld [vmem:[%s1 + $0x60] sm:$0xff]
  %v48 = vld [vmem:[%s1 + $0x68] sm:$0xff]
  %v49 = vld [vmem:[%s1 + $0x70] sm:$0xff]
  %v50 = vld [vmem:[%s1 + $0x78] sm:$0xff]
  %v55 = vunpack.c.l.b16 %v31
  %v56 = vunpack.c.l.b16 %v32
  %v57 = vunpack.c.l.b16 %v33
  %v58 = vunpack.c.l.b16 %v34
  %v59 = vpack.c.b16 %v56, %v55
  %v60 = vpack.c.b16 %v58, %v57
  %v79 = vunpack.c.l.b16 %v35
  %v80 = vunpack.c.h.b16 %v35
  %v81 = vunpack.c.l.b16 %v36
  %v82 = vunpack.c.h.b16 %v36
  %v83 = vunpack.c.l.b16 %v37
  %v84 = vunpack.c.h.b16 %v37
  %v85 = vunpack.c.l.b16 %v38
  %v86 = vunpack.c.h.b16 %v38
  %v87 = vunpack.c.l.b16 %v39
  %v88 = vunpack.c.h.b16 %v39
  %v89 = vunpack.c.l.b16 %v40
  %v90 = vunpack.c.h.b16 %v40
  %v91 = vunpack.c.l.b16 %v41
  %v92 = vunpack.c.h.b16 %v41
  %v93 = vunpack.c.l.b16 %v42
  %v94 = vunpack.c.h.b16 %v42
  %v95 = vunpack.c.l.b16 %v43
  %v96 = vunpack.c.h.b16 %v43
  %v97 = vunpack.c.l.b16 %v44
  %v98 = vunpack.c.h.b16 %v44
  %v99 = vunpack.c.l.b16 %v45
  %v100 = vunpack.c.h.b16 %v45
  %v101 = vunpack.c.l.b16 %v46
  %v102 = vunpack.c.h.b16 %v46
  %v103 = vunpack.c.l.b16 %v47
  %v104 = vunpack.c.h.b16 %v47
  %v105 = vunpack.c.l.b16 %v48
  %v106 = vunpack.c.h.b16 %v48
  %v107 = vunpack.c.l.b16 %v49
  %v108 = vunpack.c.h.b16 %v49
  %v109 = vunpack.c.l.b16 %v50
  %v110 = vunpack.c.h.b16 %v50
  %v111 = vpack.c.b16 %v81, %v79
  %v112 = vpack.c.b16 %v82, %v80
  %v113 = vpack.c.b16 %v85, %v83
  %v114 = vpack.c.b16 %v86, %v84
  %v115 = vpack.c.b16 %v89, %v87
  %v116 = vpack.c.b16 %v90, %v88
  %v117 = vpack.c.b16 %v93, %v91
  %v118 = vpack.c.b16 %v94, %v92
  %v119 = vpack.c.b16 %v97, %v95
  %v120 = vpack.c.b16 %v98, %v96
  %v121 = vpack.c.b16 %v101, %v99
  %v122 = vpack.c.b16 %v102, %v100
  %v123 = vpack.c.b16 %v105, %v103
  %v124 = vpack.c.b16 %v106, %v104
  %v125 = vpack.c.b16 %v109, %v107
  %v126 = vpack.c.b16 %v110, %v108
  %143 = vmatpush.bf16.msra.mxu0 %v125
  %144 = vmatpush.bf16.msra.mxu0 %v123
  %145 = vmatpush.bf16.msra.mxu0 %v121
  %146 = vmatpush.bf16.msra.mxu0 %v119
  %147 = vmatpush.bf16.msra.mxu0 %v117
  %148 = vmatpush.bf16.msra.mxu0 %v115
  %149 = vmatpush.bf16.msra.mxu0 %v113
  %150 = vmatpush.bf16.msra.mxu0 %v111
  %151 = vmatmul.bf16.gmra.mxu0 %v59
  %v152 = vpop.f32.mrf.mxu0
  %v153 = vadd.f32 0.0, %v152
  %v154 = vpop.f32.mrf.mxu0
  %v155 = vadd.f32 0.0, %v154
  %156 = vmatmul.bf16.gmra.mxu0 %v60
  %v157 = vpop.f32.mrf.mxu0
  %v158 = vadd.f32 0.0, %v157
  %v159 = vpop.f32.mrf.mxu0
  %v160 = vadd.f32 0.0, %v159
  %161 = vdwg.mxu0
  %162 = vmatpush.bf16.msra.mxu0 %v126
  %163 = vmatpush.bf16.msra.mxu0 %v124
  %164 = vmatpush.bf16.msra.mxu0 %v122
  %165 = vmatpush.bf16.msra.mxu0 %v120
  %166 = vmatpush.bf16.msra.mxu0 %v118
  %167 = vmatpush.bf16.msra.mxu0 %v116
  %168 = vmatpush.bf16.msra.mxu0 %v114
  %169 = vmatpush.bf16.msra.mxu0 %v112
  %170 = vmatmul.bf16.gmra.mxu0 %v59
  %v171 = vpop.f32.mrf.mxu0
  %v172 = vadd.f32 0.0, %v171
  %v173 = vpop.f32.mrf.mxu0
  %v174 = vadd.f32 0.0, %v173
  %175 = vmatmul.bf16.gmra.mxu0 %v60
  %v176 = vpop.f32.mrf.mxu0
  %v177 = vadd.f32 0.0, %v176
  %v178 = vpop.f32.mrf.mxu0
  %v179 = vadd.f32 0.0, %v178
  %180 = vdwg.mxu0
  %v181 = vadd.f32 %v23, %v153
  %v182 = vadd.f32 %v24, %v172
  %v183 = vadd.f32 %v25, %v155
  %v184 = vadd.f32 %v26, %v174
  %v185 = vadd.f32 %v27, %v158
  %v186 = vadd.f32 %v28, %v177
  %v187 = vadd.f32 %v29, %v160
  %v188 = vadd.f32 %v30, %v179
  %189 = vst [vmem:[#allocation2] sm:$0xff] %v181
  %190 = vst [vmem:[#allocation2 + $0x8] sm:$0xff] %v182
  %191 = vst [vmem:[#allocation2 + $0x10] sm:$0xff] %v183
  %192 = vst [vmem:[#allocation2 + $0x18] sm:$0xff] %v184
  %193 = vst [vmem:[#allocation2 + $0x20] sm:$0xff] %v185
  %194 = vst [vmem:[#allocation2 + $0x28] sm:$0xff] %v186
  %195 = vst [vmem:[#allocation2 + $0x30] sm:$0xff] %v187
  %196 = vst [vmem:[#allocation2 + $0x38] sm:$0xff] %v188
  // Predicated region
  $region14: #{forward.62} parent=0 // pred_check
    %p197 = pneg %p11
  $region15: #{forward.62} parent=0 // pred_check_branch
    %199 = sbr.rel (%p197) target = $region17
  $region16: #{forward.62} parent=0 // pred_region
    %v200 = vld [vmem:[#allocation2] sm:$0xff]
    %v201 = vld [vmem:[#allocation2 + $0x8] sm:$0xff]
    %v202 = vld [vmem:[#allocation2 + $0x10] sm:$0xff]
    %v203 = vld [vmem:[#allocation2 + $0x18] sm:$0xff]
    %v204 = vld [vmem:[#allocation2 + $0x20] sm:$0xff]
    %v205 = vld [vmem:[#allocation2 + $0x28] sm:$0xff]
    %v206 = vld [vmem:[#allocation2 + $0x30] sm:$0xff]
    %v207 = vld [vmem:[#allocation2 + $0x38] sm:$0xff]
    %208 = vst [vmem:[%s2] sm:$0xff] %v200
    %209 = vst [vmem:[%s2 + $0x8] sm:$0xff] %v201
    %210 = vst [vmem:[%s2 + $0x10] sm:$0xff] %v202
    %211 = vst [vmem:[%s2 + $0x18] sm:$0xff] %v203
    %212 = vst [vmem:[%s2 + $0x20] sm:$0xff] %v204
    %213 = vst [vmem:[%s2 + $0x28] sm:$0xff] %v205
    %214 = vst [vmem:[%s2 + $0x30] sm:$0xff] %v206
    %215 = vst [vmem:[%s2 + $0x38] sm:$0xff] %v207
  $region17: #{forward.62} parent=0 // pred_fallthru
    _
  // Predicated region
  $region18: #{forward.62} parent=0 // pred_check
    _
  $region19: #{forward.62} parent=0 // pred_check_branch
    %217 = sbr.rel (0) target = $region21
  $region20: #{forward.62} parent=0 // pred_region
    _
  $region21: #{forward.62} parent=0 // pred_fallthru
    _
  // Predicated region
  $region22: #{forward.62} parent=0 // pred_check
    _
  $region23: #{forward.62} parent=0 // pred_check_branch
    %219 = sbr.rel (0) target = $region25
  $region24: #{forward.62} parent=0 // pred_region
    _
  $region25: #{forward.62} parent=0 // pred_fallthru
    _

// kernel: forward.63
$region0: #{forward.63}
  #allocation0 [shape = 'u32[]', space=smem, size = 0x4, offset = 0x4, fixed_abs, tag = 'smem constant byte address 0x4 - core index']
  #allocation1 [shape = 'u32[72,128]{1,0:T(1,128)}', space=vmem, size = 0x9000, scoped, tag = 'internal scratch']
  %s0 = inlined_call_operand.vmem [shape: f32[32,256], index: 0, kind: input, shape index: {}]
  %s1 = inlined_call_operand.vmem [shape: f32[1,256], index: 1, kind: input, shape index: {}]
  %s2 = inlined_call_operand.vmem [shape: f32[1,256], index: 2, kind: input, shape index: {}]
  %s3 = inlined_call_operand.vmem [shape: f32[32,256], index: 3, kind: output, shape index: {}]
  %s4 = sld [smem:[#allocation0]]
  $region22: #{forward.63} parent=0
    _
  %s6 = ssub.s32 1, %s4
  %s7 = scalar_select 0, %s6, %s4
  // Predicated region
  $region2: #{forward.63} parent=0 // pred_check
    _
  $region3: #{forward.63} parent=0 // pred_check_branch
    %9 = sbr.rel (0) target = $region5
  $region4: #{forward.63} parent=0 // pred_region
    _
  $region5: #{forward.63} parent=0 // pred_fallthru
    _
  // Predicated region
  $region6: #{forward.63} parent=0 // pred_check
    _
  $region7: #{forward.63} parent=0 // pred_check_branch
    %11 = sbr.rel (0) target = $region9
  $region8: #{forward.63} parent=0 // pred_region
    _
  $region9: #{forward.63} parent=0 // pred_fallthru
    _
  // Predicated region
  $region10: #{forward.63} parent=0 // pred_check
    _
  $region11: #{forward.63} parent=0 // pred_check_branch
    %13 = sbr.rel (0) target = $region13
  $region12: #{forward.63} parent=0 // pred_region
    _
  $region13: #{forward.63} parent=0 // pred_fallthru
    _
  %v14 = vld [vmem:[%s0] sm:$0xff]
  %v15 = vld [vmem:[%s0 + $0x8] sm:$0xff]
  %v16 = vld [vmem:[%s0 + $0x10] sm:$0xff]
  %v17 = vld [vmem:[%s0 + $0x18] sm:$0xff]
  %v18 = vld [vmem:[%s0 + $0x20] sm:$0xff]
  %v19 = vld [vmem:[%s0 + $0x28] sm:$0xff]
  %v20 = vld [vmem:[%s0 + $0x30] sm:$0xff]
  %v21 = vld [vmem:[%s0 + $0x38] sm:$0xff]
  %v22 = vld [vmem:[%s1] sm:$0x3]
  %v24 = vperm.slane %v22, 0
  %v25 = vperm.slane %v22, 1
  %v28 = vmul.f32 %v14, %v24
  %v29 = vmul.f32 %v15, %v25
  %v30 = vmul.f32 %v16, %v24
  %v31 = vmul.f32 %v17, %v25
  %v32 = vmul.f32 %v18, %v24
  %v33 = vmul.f32 %v19, %v25
  %v34 = vmul.f32 %v20, %v24
  %v35 = vmul.f32 %v21, %v25
  %v36 = vld [vmem:[%s2] sm:$0x3]
  %v38 = vperm.slane %v36, 0
  %v39 = vperm.slane %v36, 1
  %v42 = vadd.f32 %v28, %v38
  %v43 = vadd.f32 %v29, %v39
  %v44 = vadd.f32 %v30, %v38
  %v45 = vadd.f32 %v31, %v39
  %v46 = vadd.f32 %v32, %v38
  %v47 = vadd.f32 %v33, %v39
  %v48 = vadd.f32 %v34, %v38
  %v49 = vadd.f32 %v35, %v39
  %50 = vst [vmem:[%s3] sm:$0xff] %v42
  %51 = vst [vmem:[%s3 + $0x8] sm:$0xff] %v43
  %52 = vst [vmem:[%s3 + $0x10] sm:$0xff] %v44
  %53 = vst [vmem:[%s3 + $0x18] sm:$0xff] %v45
  %54 = vst [vmem:[%s3 + $0x20] sm:$0xff] %v46
  %55 = vst [vmem:[%s3 + $0x28] sm:$0xff] %v47
  %56 = vst [vmem:[%s3 + $0x30] sm:$0xff] %v48
  %57 = vst [vmem:[%s3 + $0x38] sm:$0xff] %v49
  // Predicated region
  $region14: #{forward.63} parent=0 // pred_check
    _
  $region15: #{forward.63} parent=0 // pred_check_branch
    %59 = sbr.rel (0) target = $region17
  $region16: #{forward.63} parent=0 // pred_region
    _
  $region17: #{forward.63} parent=0 // pred_fallthru
    _
  // Predicated region
  $region18: #{forward.63} parent=0 // pred_check
    _
  $region19: #{forward.63} parent=0 // pred_check_branch
    %61 = sbr.rel (0) target = $region21
  $region20: #{forward.63} parent=0 // pred_region
    _
  $region21: #{forward.63} parent=0 // pred_fallthru
    _

// kernel: forward.59
$region0: #{forward.59}
  #allocation0 [shape = 'u32[]', space=smem, size = 0x4, offset = 0x4, fixed_abs, tag = 'smem constant byte address 0x4 - core index']
  #allocation1 [shape = 'u32[72,128]{1,0:T(1,128)}', space=vmem, size = 0x9000, scoped, tag = 'internal scratch']
  #allocation2 [shape = 'f32[32,128]{1,0:T(8,128)}', space=vmem, size = 0x4000, scoped, tag = 'scratch operand']
  %s0 = inlined_call_operand.vmem [shape: bf16[32,384], index: 0, kind: input, shape index: {}]
  %s1 = inlined_call_operand.vmem [shape: bf16[384,128], index: 1, kind: input, shape index: {}]
  %s2 = inlined_call_operand.vmem [shape: f32[32,128], index: 2, kind: output, shape index: {}]
  %s3 = sld [smem:[#allocation0]]
  $region26: #{forward.59} parent=0
    _
  %s5 = ssub.s32 1, %s3
  %s6 = scalar_select 0, %s5, %s3
  // Predicated region
  $region2: #{forward.59} parent=0 // pred_check
    _
  $region3: #{forward.59} parent=0 // pred_check_branch
    %8 = sbr.rel (0) target = $region5
  $region4: #{forward.59} parent=0 // pred_region
    _
  $region5: #{forward.59} parent=0 // pred_fallthru
    _
  // Predicated region
  $region6: #{forward.59} parent=0 // pred_check
    _
  $region7: #{forward.59} parent=0 // pred_check_branch
    %10 = sbr.rel (0) target = $region9
  $region8: #{forward.59} parent=0 // pred_region
    _
  $region9: #{forward.59} parent=0 // pred_fallthru
    _
  %p11 = scmp.eq.s32.totalorder 0, 0
  // Predicated region
  $region10: #{forward.59} parent=0 // pred_check
    %p12 = pneg %p11
  $region11: #{forward.59} parent=0 // pred_check_branch
    %14 = sbr.rel (%p12) target = $region13
  $region12: #{forward.59} parent=0 // pred_region
    %15 = vst [vmem:[#allocation2] sm:$0xff] 0.0
    %16 = vst [vmem:[#allocation2 + $0x8] sm:$0xff] 0.0
    %17 = vst [vmem:[#allocation2 + $0x10] sm:$0xff] 0.0
    %18 = vst [vmem:[#allocation2 + $0x18] sm:$0xff] 0.0
  $region13: #{forward.59} parent=0 // pred_fallthru
    _
  %v19 = vld [vmem:[#allocation2] sm:$0xff]
  %v20 = vld [vmem:[#allocation2 + $0x8] sm:$0xff]
  %v21 = vld [vmem:[#allocation2 + $0x10] sm:$0xff]
  %v22 = vld [vmem:[#allocation2 + $0x18] sm:$0xff]
  %v23 = vld [vmem:[%s0] sm:$0xff]
  %v24 = vld [vmem:[%s0 + $0x8] sm:$0xf]
  %v25 = vld [vmem:[%s0 + $0xc] sm:$0xff]
  %v26 = vld [vmem:[%s0 + $0x14] sm:$0xf]
  %v27 = vld [vmem:[%s0 + $0x18] sm:$0xff]
  %v28 = vld [vmem:[%s0 + $0x20] sm:$0xf]
  %v29 = vld [vmem:[%s0 + $0x24] sm:$0xff]
  %v30 = vld [vmem:[%s0 + $0x2c] sm:$0xf]
  %v31 = vld [vmem:[%s1] sm:$0xf]
  %v32 = vld [vmem:[%s1 + $0x4] sm:$0xf]
  %v33 = vld [vmem:[%s1 + $0x8] sm:$0xf]
  %v34 = vld [vmem:[%s1 + $0xc] sm:$0xf]
  %v35 = vld [vmem:[%s1 + $0x10] sm:$0xf]
  %v36 = vld [vmem:[%s1 + $0x14] sm:$0xf]
  %v37 = vld [vmem:[%s1 + $0x18] sm:$0xf]
  %v38 = vld [vmem:[%s1 + $0x1c] sm:$0xf]
  %v39 = vld [vmem:[%s1 + $0x20] sm:$0xf]
  %v40 = vld [vmem:[%s1 + $0x24] sm:$0xf]
  %v41 = vld [vmem:[%s1 + $0x28] sm:$0xf]
  %v42 = vld [vmem:[%s1 + $0x2c] sm:$0xf]
  %v43 = vld [vmem:[%s1 + $0x30] sm:$0xf]
  %v44 = vld [vmem:[%s1 + $0x34] sm:$0xf]
  %v45 = vld [vmem:[%s1 + $0x38] sm:$0xf]
  %v46 = vld [vmem:[%s1 + $0x3c] sm:$0xf]
  %v47 = vld [vmem:[%s1 + $0x40] sm:$0xf]
  %v48 = vld [vmem:[%s1 + $0x44] sm:$0xf]
  %v49 = vld [vmem:[%s1 + $0x48] sm:$0xf]
  %v50 = vld [vmem:[%s1 + $0x4c] sm:$0xf]
  %v51 = vld [vmem:[%s1 + $0x50] sm:$0xf]
  %v52 = vld [vmem:[%s1 + $0x54] sm:$0xf]
  %v53 = vld [vmem:[%s1 + $0x58] sm:$0xf]
  %v54 = vld [vmem:[%s1 + $0x5c] sm:$0xf]
  %v55 = vld [vmem:[%s1 + $0x60] sm:$0xf]
  %v56 = vld [vmem:[%s1 + $0x64] sm:$0xf]
  %v57 = vld [vmem:[%s1 + $0x68] sm:$0xf]
  %v58 = vld [vmem:[%s1 + $0x6c] sm:$0xf]
  %v59 = vld [vmem:[%s1 + $0x70] sm:$0xf]
  %v60 = vld [vmem:[%s1 + $0x74] sm:$0xf]
  %v61 = vld [vmem:[%s1 + $0x78] sm:$0xf]
  %v62 = vld [vmem:[%s1 + $0x7c] sm:$0xf]
  %v63 = vld [vmem:[%s1 + $0x80] sm:$0xf]
  %v64 = vld [vmem:[%s1 + $0x84] sm:$0xf]
  %v65 = vld [vmem:[%s1 + $0x88] sm:$0xf]
  %v66 = vld [vmem:[%s1 + $0x8c] sm:$0xf]
  %v67 = vld [vmem:[%s1 + $0x90] sm:$0xf]
  %v68 = vld [vmem:[%s1 + $0x94] sm:$0xf]
  %v69 = vld [vmem:[%s1 + $0x98] sm:$0xf]
  %v70 = vld [vmem:[%s1 + $0x9c] sm:$0xf]
  %v71 = vld [vmem:[%s1 + $0xa0] sm:$0xf]
  %v72 = vld [vmem:[%s1 + $0xa4] sm:$0xf]
  %v73 = vld [vmem:[%s1 + $0xa8] sm:$0xf]
  %v74 = vld [vmem:[%s1 + $0xac] sm:$0xf]
  %v75 = vld [vmem:[%s1 + $0xb0] sm:$0xf]
  %v76 = vld [vmem:[%s1 + $0xb4] sm:$0xf]
  %v77 = vld [vmem:[%s1 + $0xb8] sm:$0xf]
  %v78 = vld [vmem:[%s1 + $0xbc] sm:$0xf]
  %v87 = vunpack.c.l.b16 %v23
  %v88 = vunpack.c.h.b16 %v23
  %v89 = vunpack.c.l.b16 %v24
  %v90 = vunpack.c.l.b16 %v25
  %v91 = vunpack.c.h.b16 %v25
  %v92 = vunpack.c.l.b16 %v26
  %v93 = vunpack.c.l.b16 %v27
  %v94 = vunpack.c.h.b16 %v27
  %v95 = vunpack.c.l.b16 %v28
  %v96 = vunpack.c.l.b16 %v29
  %v97 = vunpack.c.h.b16 %v29
  %v98 = vunpack.c.l.b16 %v30
  %v99 = vpack.c.b16 %v90, %v87
  %v100 = vpack.c.b16 %v91, %v88
  %v101 = vpack.c.b16 %v92, %v89
  %v102 = vpack.c.b16 %v96, %v93
  %v103 = vpack.c.b16 %v97, %v94
  %v104 = vpack.c.b16 %v98, %v95
  %v159 = vunpack.c.l.b16 %v31
  %v160 = vunpack.c.l.b16 %v32
  %v161 = vunpack.c.l.b16 %v33
  %v162 = vunpack.c.l.b16 %v34
  %v163 = vunpack.c.l.b16 %v35
  %v164 = vunpack.c.l.b16 %v36
  %v165 = vunpack.c.l.b16 %v37
  %v166 = vunpack.c.l.b16 %v38
  %v167 = vunpack.c.l.b16 %v39
  %v168 = vunpack.c.l.b16 %v40
  %v169 = vunpack.c.l.b16 %v41
  %v170 = vunpack.c.l.b16 %v42
  %v171 = vunpack.c.l.b16 %v43
  %v172 = vunpack.c.l.b16 %v44
  %v173 = vunpack.c.l.b16 %v45
  %v174 = vunpack.c.l.b16 %v46
  %v175 = vunpack.c.l.b16 %v47
  %v176 = vunpack.c.l.b16 %v48
  %v177 = vunpack.c.l.b16 %v49
  %v178 = vunpack.c.l.b16 %v50
  %v179 = vunpack.c.l.b16 %v51
  %v180 = vunpack.c.l.b16 %v52
  %v181 = vunpack.c.l.b16 %v53
  %v182 = vunpack.c.l.b16 %v54
  %v183 = vunpack.c.l.b16 %v55
  %v184 = vunpack.c.l.b16 %v56
  %v185 = vunpack.c.l.b16 %v57
  %v186 = vunpack.c.l.b16 %v58
  %v187 = vunpack.c.l.b16 %v59
  %v188 = vunpack.c.l.b16 %v60
  %v189 = vunpack.c.l.b16 %v61
  %v190 = vunpack.c.l.b16 %v62
  %v191 = vunpack.c.l.b16 %v63
  %v192 = vunpack.c.l.b16 %v64
  %v193 = vunpack.c.l.b16 %v65
  %v194 = vunpack.c.l.b16 %v66
  %v195 = vunpack.c.l.b16 %v67
  %v196 = vunpack.c.l.b16 %v68
  %v197 = vunpack.c.l.b16 %v69
  %v198 = vunpack.c.l.b16 %v70
  %v199 = vunpack.c.l.b16 %v71
  %v200 = vunpack.c.l.b16 %v72
  %v201 = vunpack.c.l.b16 %v73
  %v202 = vunpack.c.l.b16 %v74
  %v203 = vunpack.c.l.b16 %v75
  %v204 = vunpack.c.l.b16 %v76
  %v205 = vunpack.c.l.b16 %v77
  %v206 = vunpack.c.l.b16 %v78
  %v207 = vpack.c.b16 %v160, %v159
  %v208 = vpack.c.b16 %v162, %v161
  %v209 = vpack.c.b16 %v164, %v163
  %v210 = vpack.c.b16 %v166, %v165
  %v211 = vpack.c.b16 %v168, %v167
  %v212 = vpack.c.b16 %v170, %v169
  %v213 = vpack.c.b16 %v172, %v171
  %v214 = vpack.c.b16 %v174, %v173
  %v215 = vpack.c.b16 %v176, %v175
  %v216 = vpack.c.b16 %v178, %v177
  %v217 = vpack.c.b16 %v180, %v179
  %v218 = vpack.c.b16 %v182, %v181
  %v219 = vpack.c.b16 %v184, %v183
  %v220 = vpack.c.b16 %v186, %v185
  %v221 = vpack.c.b16 %v188, %v187
  %v222 = vpack.c.b16 %v190, %v189
  %v223 = vpack.c.b16 %v192, %v191
  %v224 = vpack.c.b16 %v194, %v193
  %v225 = vpack.c.b16 %v196, %v195
  %v226 = vpack.c.b16 %v198, %v197
  %v227 = vpack.c.b16 %v200, %v199
  %v228 = vpack.c.b16 %v202, %v201
  %v229 = vpack.c.b16 %v204, %v203
  %v230 = vpack.c.b16 %v206, %v205
  %255 = vmatpush.bf16.msra.mxu0 %v214
  %256 = vmatpush.bf16.msra.mxu0 %v213
  %257 = vmatpush.bf16.msra.mxu0 %v212
  %258 = vmatpush.bf16.msra.mxu0 %v211
  %259 = vmatpush.bf16.msra.mxu0 %v210
  %260 = vmatpush.bf16.msra.mxu0 %v209
  %261 = vmatpush.bf16.msra.mxu0 %v208
  %262 = vmatpush.bf16.msra.mxu0 %v207
  %263 = vmatmul.bf16.gmra.mxu0 %v99
  %v264 = vpop.f32.mrf.mxu0
  %v265 = vadd.f32 0.0, %v264
  %v266 = vpop.f32.mrf.mxu0
  %v267 = vadd.f32 0.0, %v266
  %268 = vmatmul.bf16.gmra.mxu0 %v102
  %v269 = vpop.f32.mrf.mxu0
  %v270 = vadd.f32 0.0, %v269
  %v271 = vpop.f32.mrf.mxu0
  %v272 = vadd.f32 0.0, %v271
  %273 = vdwg.mxu0
  %274 = vmatpush.bf16.msra.mxu0 %v222
  %275 = vmatpush.bf16.msra.mxu0 %v221
  %276 = vmatpush.bf16.msra.mxu0 %v220
  %277 = vmatpush.bf16.msra.mxu0 %v219
  %278 = vmatpush.bf16.msra.mxu0 %v218
  %279 = vmatpush.bf16.msra.mxu0 %v217
  %280 = vmatpush.bf16.msra.mxu0 %v216
  %281 = vmatpush.bf16.msra.mxu0 %v215
  %282 = vmatmul.bf16.gmra.mxu0 %v100
  %v283 = vpop.f32.mrf.mxu0
  %v284 = vadd.f32 %v265, %v283
  %v285 = vpop.f32.mrf.mxu0
  %v286 = vadd.f32 %v267, %v285
  %287 = vmatmul.bf16.gmra.mxu0 %v103
  %v288 = vpop.f32.mrf.mxu0
  %v289 = vadd.f32 %v270, %v288
  %v290 = vpop.f32.mrf.mxu0
  %v291 = vadd.f32 %v272, %v290
  %292 = vdwg.mxu0
  %293 = vmatpush.bf16.msra.mxu0 %v230
  %294 = vmatpush.bf16.msra.mxu0 %v229
  %295 = vmatpush.bf16.msra.mxu0 %v228
  %296 = vmatpush.bf16.msra.mxu0 %v227
  %297 = vmatpush.bf16.msra.mxu0 %v226
  %298 = vmatpush.bf16.msra.mxu0 %v225
  %299 = vmatpush.bf16.msra.mxu0 %v224
  %300 = vmatpush.bf16.msra.mxu0 %v223
  %301 = vmatmul.bf16.gmra.mxu0 %v101
  %v302 = vpop.f32.mrf.mxu0
  %v303 = vadd.f32 %v284, %v302
  %v304 = vpop.f32.mrf.mxu0
  %v305 = vadd.f32 %v286, %v304
  %306 = vmatmul.bf16.gmra.mxu0 %v104
  %v307 = vpop.f32.mrf.mxu0
  %v308 = vadd.f32 %v289, %v307
  %v309 = vpop.f32.mrf.mxu0
  %v310 = vadd.f32 %v291, %v309
  %311 = vdwg.mxu0
  %v312 = vadd.f32 %v19, %v303
  %v313 = vadd.f32 %v20, %v305
  %v314 = vadd.f32 %v21, %v308
  %v315 = vadd.f32 %v22, %v310
  %316 = vst [vmem:[#allocation2] sm:$0xff] %v312
  %317 = vst [vmem:[#allocation2 + $0x8] sm:$0xff] %v313
  %318 = vst [vmem:[#allocation2 + $0x10] sm:$0xff] %v314
  %319 = vst [vmem:[#allocation2 + $0x18] sm:$0xff] %v315
  // Predicated region
  $region14: #{forward.59} parent=0 // pred_check
    %p320 = pneg %p11
  $region15: #{forward.59} parent=0 // pred_check_branch
    %322 = sbr.rel (%p320) target = $region17
  $region16: #{forward.59} parent=0 // pred_region
    %v323 = vld [vmem:[#allocation2] sm:$0xff]
    %v324 = vld [vmem:[#allocation2 + $0x8] sm:$0xff]
    %v325 = vld [vmem:[#allocation2 + $0x10] sm:$0xff]
    %v326 = vld [vmem:[#allocation2 + $0x18] sm:$0xff]
    %327 = vst [vmem:[%s2] sm:$0xff] %v323
    %328 = vst [vmem:[%s2 + $0x8] sm:$0xff] %v324
    %329 = vst [vmem:[%s2 + $0x10] sm:$0xff] %v325
    %330 = vst [vmem:[%s2 + $0x18] sm:$0xff] %v326
  $region17: #{forward.59} parent=0 // pred_fallthru
    _
  // Predicated region
  $region18: #{forward.59} parent=0 // pred_check
    _
  $region19: #{forward.59} parent=0 // pred_check_branch
    %332 = sbr.rel (0) target = $region21
  $region20: #{forward.59} parent=0 // pred_region
    _
  $region21: #{forward.59} parent=0 // pred_fallthru
    _
  // Predicated region
  $region22: #{forward.59} parent=0 // pred_check
    _
  $region23: #{forward.59} parent=0 // pred_check_branch
    %334 = sbr.rel (0) target = $region25
  $region24: #{forward.59} parent=0 // pred_region
    _
  $region25: #{forward.59} parent=0 // pred_fallthru
    _

// kernel: forward.60
$region0: #{forward.60}
  #allocation0 [shape = 'u32[]', space=smem, size = 0x4, offset = 0x4, fixed_abs, tag = 'smem constant byte address 0x4 - core index']
  #allocation1 [shape = 'u32[72,128]{1,0:T(1,128)}', space=vmem, size = 0x9000, scoped, tag = 'internal scratch']
  %s0 = inlined_call_operand.vmem [shape: f32[8,128], index: 0, kind: input, shape index: {}]
  %s1 = inlined_call_operand.vmem [shape: f32[1,128], index: 1, kind: input, shape index: {}]
  %s2 = inlined_call_operand.vmem [shape: f32[1,128], index: 2, kind: input, shape index: {}]
  %s3 = inlined_call_operand.vmem [shape: f32[8,128], index: 3, kind: output, shape index: {}]
  %s4 = sld [smem:[#allocation0]]
  $region22: #{forward.60} parent=0
    _
  %s6 = ssub.s32 1, %s4
  %s7 = scalar_select 0, %s6, %s4
  // Predicated region
  $region2: #{forward.60} parent=0 // pred_check
    _
  $region3: #{forward.60} parent=0 // pred_check_branch
    %9 = sbr.rel (0) target = $region5
  $region4: #{forward.60} parent=0 // pred_region
    _
  $region5: #{forward.60} parent=0 // pred_fallthru
    _
  // Predicated region
  $region6: #{forward.60} parent=0 // pred_check
    _
  $region7: #{forward.60} parent=0 // pred_check_branch
    %11 = sbr.rel (0) target = $region9
  $region8: #{forward.60} parent=0 // pred_region
    _
  $region9: #{forward.60} parent=0 // pred_fallthru
    _
  // Predicated region
  $region10: #{forward.60} parent=0 // pred_check
    _
  $region11: #{forward.60} parent=0 // pred_check_branch
    %13 = sbr.rel (0) target = $region13
  $region12: #{forward.60} parent=0 // pred_region
    _
  $region13: #{forward.60} parent=0 // pred_fallthru
    _
  %v14 = vld [vmem:[%s0] sm:$0xff]
  %v15 = vld [vmem:[%s1] sm:$0x1]
  %v17 = vperm.slane %v15, 0
  %v19 = vmul.f32 %v14, %v17
  %v20 = vld [vmem:[%s2] sm:$0x1]
  %v22 = vperm.slane %v20, 0
  %v24 = vadd.f32 %v19, %v22
  %vm25 = vcmp.ge.f32.partialorder %v24, 0.0
  %v26 = vmul.f32 %v24, 0.2
  %v27 = vsel %vm25, %v24, %v26
  %28 = vst [vmem:[%s3] sm:$0xff] %v27
  // Predicated region
  $region14: #{forward.60} parent=0 // pred_check
    _
  $region15: #{forward.60} parent=0 // pred_check_branch
    %30 = sbr.rel (0) target = $region17
  $region16: #{forward.60} parent=0 // pred_region
    _
  $region17: #{forward.60} parent=0 // pred_fallthru
    _
  // Predicated region
  $region18: #{forward.60} parent=0 // pred_check
    _
  $region19: #{forward.60} parent=0 // pred_check_branch
    %32 = sbr.rel (0) target = $region21
  $region20: #{forward.60} parent=0 // pred_region
    _
  $region21: #{forward.60} parent=0 // pred_fallthru
    _

// kernel: forward.64
$region0: #{forward.64}
  #allocation0 [shape = 'u32[]', space=smem, size = 0x4, offset = 0x4, fixed_abs, tag = 'smem constant byte address 0x4 - core index']
  #allocation1 [shape = 'u32[72,128]{1,0:T(1,128)}', space=vmem, size = 0x9000, scoped, tag = 'internal scratch']
  %s0 = inlined_call_operand.vmem [shape: f32[32,256], index: 0, kind: input, shape index: {}]
  %s1 = inlined_call_operand.vmem [shape: f32[1,256], index: 1, kind: input, shape index: {}]
  %s2 = inlined_call_operand.vmem [shape: f32[1,256], index: 2, kind: input, shape index: {}]
  %s3 = inlined_call_operand.vmem [shape: f32[32,256], index: 3, kind: input, shape index: {}]
  %s4 = inlined_call_operand.vmem [shape: f32[32,256], index: 4, kind: output, shape index: {}]
  %s5 = sld [smem:[#allocation0]]
  $region26: #{forward.64} parent=0
    _
  %s7 = ssub.s32 1, %s5
  %s8 = scalar_select 0, %s7, %s5
  // Predicated region
  $region2: #{forward.64} parent=0 // pred_check
    _
  $region3: #{forward.64} parent=0 // pred_check_branch
    %10 = sbr.rel (0) target = $region5
  $region4: #{forward.64} parent=0 // pred_region
    _
  $region5: #{forward.64} parent=0 // pred_fallthru
    _
  // Predicated region
  $region6: #{forward.64} parent=0 // pred_check
    _
  $region7: #{forward.64} parent=0 // pred_check_branch
    %12 = sbr.rel (0) target = $region9
  $region8: #{forward.64} parent=0 // pred_region
    _
  $region9: #{forward.64} parent=0 // pred_fallthru
    _
  // Predicated region
  $region10: #{forward.64} parent=0 // pred_check
    _
  $region11: #{forward.64} parent=0 // pred_check_branch
    %14 = sbr.rel (0) target = $region13
  $region12: #{forward.64} parent=0 // pred_region
    _
  $region13: #{forward.64} parent=0 // pred_fallthru
    _
  // Predicated region
  $region14: #{forward.64} parent=0 // pred_check
    _
  $region15: #{forward.64} parent=0 // pred_check_branch
    %16 = sbr.rel (0) target = $region17
  $region16: #{forward.64} parent=0 // pred_region
    _
  $region17: #{forward.64} parent=0 // pred_fallthru
    _
  %v17 = vld [vmem:[%s0] sm:$0xff]
  %v18 = vld [vmem:[%s0 + $0x8] sm:$0xff]
  %v19 = vld [vmem:[%s0 + $0x10] sm:$0xff]
  %v20 = vld [vmem:[%s0 + $0x18] sm:$0xff]
  %v21 = vld [vmem:[%s0 + $0x20] sm:$0xff]
  %v22 = vld [vmem:[%s0 + $0x28] sm:$0xff]
  %v23 = vld [vmem:[%s0 + $0x30] sm:$0xff]
  %v24 = vld [vmem:[%s0 + $0x38] sm:$0xff]
  %v25 = vld [vmem:[%s1] sm:$0x3]
  %v27 = vperm.slane %v25, 0
  %v28 = vperm.slane %v25, 1
  %v31 = vmul.f32 %v17, %v27
  %v32 = vmul.f32 %v18, %v28
  %v33 = vmul.f32 %v19, %v27
  %v34 = vmul.f32 %v20, %v28
  %v35 = vmul.f32 %v21, %v27
  %v36 = vmul.f32 %v22, %v28
  %v37 = vmul.f32 %v23, %v27
  %v38 = vmul.f32 %v24, %v28
  %v39 = vld [vmem:[%s2] sm:$0x3]
  %v41 = vperm.slane %v39, 0
  %v42 = vperm.slane %v39, 1
  %v45 = vadd.f32 %v31, %v41
  %v46 = vadd.f32 %v32, %v42
  %v47 = vadd.f32 %v33, %v41
  %v48 = vadd.f32 %v34, %v42
  %v49 = vadd.f32 %v35, %v41
  %v50 = vadd.f32 %v36, %v42
  %v51 = vadd.f32 %v37, %v41
  %v52 = vadd.f32 %v38, %v42
  %v53 = vld [vmem:[%s3] sm:$0xff]
  %v54 = vld [vmem:[%s3 + $0x8] sm:$0xff]
  %v55 = vld [vmem:[%s3 + $0x10] sm:$0xff]
  %v56 = vld [vmem:[%s3 + $0x18] sm:$0xff]
  %v57 = vld [vmem:[%s3 + $0x20] sm:$0xff]
  %v58 = vld [vmem:[%s3 + $0x28] sm:$0xff]
  %v59 = vld [vmem:[%s3 + $0x30] sm:$0xff]
  %v60 = vld [vmem:[%s3 + $0x38] sm:$0xff]
  %v61 = vadd.f32 %v45, %v53
  %v62 = vadd.f32 %v46, %v54
  %v63 = vadd.f32 %v47, %v55
  %v64 = vadd.f32 %v48, %v56
  %v65 = vadd.f32 %v49, %v57
  %v66 = vadd.f32 %v50, %v58
  %v67 = vadd.f32 %v51, %v59
  %v68 = vadd.f32 %v52, %v60
  %vm69 = vcmp.ge.f32.partialorder %v61, 0.0
  %vm70 = vcmp.ge.f32.partialorder %v62, 0.0
  %vm71 = vcmp.ge.f32.partialorder %v63, 0.0
  %vm72 = vcmp.ge.f32.partialorder %v64, 0.0
  %vm73 = vcmp.ge.f32.partialorder %v65, 0.0
  %vm74 = vcmp.ge.f32.partialorder %v66, 0.0
  %vm75 = vcmp.ge.f32.partialorder %v67, 0.0
  %vm76 = vcmp.ge.f32.partialorder %v68, 0.0
  %v77 = vmul.f32 %v61, 0.2
  %v78 = vmul.f32 %v62, 0.2
  %v79 = vmul.f32 %v63, 0.2
  %v80 = vmul.f32 %v64, 0.2
  %v81 = vmul.f32 %v65, 0.2
  %v82 = vmul.f32 %v66, 0.2
  %v83 = vmul.f32 %v67, 0.2
  %v84 = vmul.f32 %v68, 0.2
  %v85 = vsel %vm69, %v61, %v77
  %v86 = vsel %vm70, %v62, %v78
  %v87 = vsel %vm71, %v63, %v79
  %v88 = vsel %vm72, %v64, %v80
  %v89 = vsel %vm73, %v65, %v81
  %v90 = vsel %vm74, %v66, %v82
  %v91 = vsel %vm75, %v67, %v83
  %v92 = vsel %vm76, %v68, %v84
  %93 = vst [vmem:[%s4] sm:$0xff] %v85
  %94 = vst [vmem:[%s4 + $0x8] sm:$0xff] %v86
  %95 = vst [vmem:[%s4 + $0x10] sm:$0xff] %v87
  %96 = vst [vmem:[%s4 + $0x18] sm:$0xff] %v88
  %97 = vst [vmem:[%s4 + $0x20] sm:$0xff] %v89
  %98 = vst [vmem:[%s4 + $0x28] sm:$0xff] %v90
  %99 = vst [vmem:[%s4 + $0x30] sm:$0xff] %v91
  %100 = vst [vmem:[%s4 + $0x38] sm:$0xff] %v92
  // Predicated region
  $region18: #{forward.64} parent=0 // pred_check
    _
  $region19: #{forward.64} parent=0 // pred_check_branch
    %102 = sbr.rel (0) target = $region21
  $region20: #{forward.64} parent=0 // pred_region
    _
  $region21: #{forward.64} parent=0 // pred_fallthru
    _
  // Predicated region
  $region22: #{forward.64} parent=0 // pred_check
    _
  $region23: #{forward.64} parent=0 // pred_check_branch
    %104 = sbr.rel (0) target = $region25
  $region24: #{forward.64} parent=0 // pred_region
    _
  $region25: #{forward.64} parent=0 // pred_fallthru
    _

// kernel: forward.70
$region0: #{forward.70}
  #allocation0 [shape = 'u32[]', space=smem, size = 0x4, offset = 0x4, fixed_abs, tag = 'smem constant byte address 0x4 - core index']
  #allocation1 [shape = 'u32[72,128]{1,0:T(1,128)}', space=vmem, size = 0x9000, scoped, tag = 'internal scratch']
  #allocation2 [shape = 'f32[8,256]{1,0:T(8,128)}', space=vmem, size = 0x2000, scoped, tag = 'scratch operand']
  %s0 = inlined_call_operand.vmem [shape: bf16[8,256], index: 0, kind: input, shape index: {}]
  %s1 = inlined_call_operand.vmem [shape: bf16[256,512], index: 1, kind: input, shape index: {}]
  %s2 = inlined_call_operand.vmem [shape: f32[8,512], index: 2, kind: output, shape index: {}]
  %s3 = sld [smem:[#allocation0]]
  $region87: #{forward.70} parent=0
    _
  %s5 = ssub.s32 1, %s3
  %s6 = scalar_select 0, %s5, %s3
  $region1: #{forward.70} parent=0
    #allocation3 [shape = 'u8[262144]{0}', space=vmem, size = 0x40000, scoped, tag = 'input window, operand 1']
    loop: start=0, step=1, limit=4
    $region2: #{forward.70} parent=1 // loop_pre_header
      _
    $region3: #{forward.70} parent=1 // loop_header
      %s8 = sphi 0, %s12
      %p9 = scmp.ge.s32.totalorder %s8, 4
      %s15 = sphi 0, %s34
      %s16 = sphi 0, %s30
      %s17 = sphi 0, %s26
      %s18 = sphi 0, %s15
      %s19 = sphi 0, %s16
      %s20 = sphi 0, %s17
      %s21 = sphi 0, %s18
      %s22 = sphi 0, %s19
      %s23 = sphi 0, %s20
      %s39 = sphi 0, %s41
      %s42 = sphi 0, %s39
      %s43 = sphi 0, %s42
      %s59 = sphi 0, %s43
      %s67 = sphi 0, %s69
      %s70 = sphi 0, %s67
      %s71 = sphi 0, %s70
      %s87 = sphi 0, %s71
      %s95 = sphi 0, %s97
      %s98 = sphi 0, %s95
      %s99 = sphi 0, %s98
      %s115 = sphi 0, %s99
    $region4: #{forward.70} parent=1 // loop_header_branch
      %11 = sbr.rel (%p9) target = $region8
    $region5: #{forward.70} parent=1 // loop_body
      %s13 = ssub.s32 %s8, 1
      %s14 = ssub.s32 %s8, 2
      %s24 = sadd.s32 1, %s17
      %p25 = scmp.ge.s32.totalorder %s24, 1
      %s26 = scalar_select %p25, 0, %s24
      %s27 = sadd.s32 1, %s16
      %s28 = scalar_select %p25, %s27, %s16
      %p29 = scmp.ge.s32.totalorder %s28, 2
      %s30 = scalar_select %p29, 0, %s28
      %s31 = sadd.s32 1, %s15
      %s32 = scalar_select %p29, %s31, %s15
      %p33 = scmp.ge.s32.totalorder %s32, 1
      %s34 = scalar_select %p33, 0, %s32
      %s35 = ssub.s32 %s15, %s34
      %s36 = ssub.s32 %s17, %s26
      %s37 = sor.u32 %s35, %s36
      %p38 = scmp.eq.s32.totalorder %s37, 0
      %s40 = sadd.s32 %s39, 1
      %s41 = scalar_select %p38, %s39, %s40
      %p44 = pneg %p38
      %p45 = scmp.eq.s32.totalorder %s8, 1
      %p46 = por %p44, %p45
      %p47 = scmp.ne.s32.totalorder %s39, %s42
      %p48 = scmp.eq.s32.totalorder %s8, 0
      %p49 = por %p47, %p48
      %p50 = scmp.ne.s32.totalorder %s39, %s42
      %p51 = scmp.eq.s32.totalorder %s13, 1
      %p52 = por %p50, %p51
      %p53 = scmp.ne.s32.totalorder %s42, %s43
      %p54 = scmp.eq.s32.totalorder %s13, 0
      %p55 = por %p53, %p54
      %p56 = scmp.ne.s32.totalorder %s42, %s43
      %p57 = scmp.eq.s32.totalorder %s14, 1
      %p58 = por %p56, %p57
      %p60 = scmp.ne.s32.totalorder %s43, %s59
      %p61 = scmp.eq.s32.totalorder %s14, 0
      %p62 = por %p60, %p61
      %s63 = ssub.s32 %s17, %s26
      %s64 = ssub.s32 %s16, %s30
      %s65 = sor.u32 %s63, %s64
      %p66 = scmp.eq.s32.totalorder %s65, 0
      %s68 = sadd.s32 %s67, 1
      %s69 = scalar_select %p66, %s67, %s68
      %p72 = pneg %p66
      %p73 = scmp.eq.s32.totalorder %s8, 1
      %p74 = por %p72, %p73
      %p75 = scmp.ne.s32.totalorder %s67, %s70
      %p76 = scmp.eq.s32.totalorder %s8, 0
      %p77 = por %p75, %p76
      %p78 = scmp.ne.s32.totalorder %s67, %s70
      %p79 = scmp.eq.s32.totalorder %s13, 1
      %p80 = por %p78, %p79
      %p81 = scmp.ne.s32.totalorder %s70, %s71
      %p82 = scmp.eq.s32.totalorder %s13, 0
      %p83 = por %p81, %p82
      %p84 = scmp.ne.s32.totalorder %s70, %s71
      %p85 = scmp.eq.s32.totalorder %s14, 1
      %p86 = por %p84, %p85
      %p88 = scmp.ne.s32.totalorder %s71, %s87
      %p89 = scmp.eq.s32.totalorder %s14, 0
      %p90 = por %p88, %p89
      %s91 = ssub.s32 %s15, %s34
      %s92 = ssub.s32 %s16, %s30
      %s93 = sor.u32 %s91, %s92
      %p94 = scmp.eq.s32.totalorder %s93, 0
      %s96 = sadd.s32 %s95, 1
      %s97 = scalar_select %p94, %s95, %s96
      %p100 = pneg %p94
      %p101 = scmp.eq.s32.totalorder %s8, 1
      %p102 = por %p100, %p101
      %p103 = scmp.ne.s32.totalorder %s95, %s98
      %p104 = scmp.eq.s32.totalorder %s8, 0
      %p105 = por %p103, %p104
      %p106 = scmp.ne.s32.totalorder %s95, %s98
      %p107 = scmp.eq.s32.totalorder %s13, 1
      %p108 = por %p106, %p107
      %p109 = scmp.ne.s32.totalorder %s98, %s99
      %p110 = scmp.eq.s32.totalorder %s13, 0
      %p111 = por %p109, %p110
      %p112 = scmp.ne.s32.totalorder %s98, %s99
      %p113 = scmp.eq.s32.totalorder %s14, 1
      %p114 = por %p112, %p113
      %p116 = scmp.ne.s32.totalorder %s99, %s115
      %p117 = scmp.eq.s32.totalorder %s14, 0
      %p118 = por %p116, %p117
      %p119 = scmp.le.s32.totalorder 1, %s8
      %p120 = scmp.lt.s32.totalorder %s8, 3
      %p121 = pnand %p119, %p120
      %p122 = pneg %p121
      // Predicated region
      $region9: #{forward.70} parent=5 // pred_check
        _
      $region10: #{forward.70} parent=5 // pred_check_branch
        %124 = sbr.rel (%p121) target = $region12
      $region11: #{forward.70} parent=5 // pred_region
        %s125 = ssub.s32 %s8, 1
        // Predicated region
        $region13: #{forward.70} parent=11 // pred_check
          %p126 = pneg %p55
        $region14: #{forward.70} parent=11 // pred_check_branch
          %128 = sbr.rel (%p126) target = $region16
        $region15: #{forward.70} parent=11 // pred_region
          %s129 = smul.u32 2, %s20
          %p130 = scmp.lt.s32.totalorder %s18, 0
          %s131 = scalar_select %p130, %s18, 0
          %p132 = scmp.lt.s32.totalorder %s129, 1
          %s133 = scalar_select %p132, %s129, 1
          %s134 = smul.addr %s131, 2
          %s135 = sadd.s32 %s133, %s134
          %s136 = smul.addr %s135, 4
          %s137 = scalar_lea.vmem %s0, %s136
          %s138 = smul.u32 2, %s20
        $region16: #{forward.70} parent=11 // pred_fallthru
          _
      $region12: #{forward.70} parent=5 // pred_fallthru
        _
      %p139 = scmp.lt.s32.totalorder %s8, 2
      // Predicated region
      $region17: #{forward.70} parent=5 // pred_check
        %p140 = pneg %p139
      $region18: #{forward.70} parent=5 // pred_check_branch
        %142 = sbr.rel (%p140) target = $region20
      $region19: #{forward.70} parent=5 // pred_region
        // Predicated region
        $region21: #{forward.70} parent=19 // pred_check
          %p143 = pneg %p77
        $region22: #{forward.70} parent=19 // pred_check_branch
          %145 = sbr.rel (%p143) target = $region24
        $region23: #{forward.70} parent=19 // pred_region
          %s146 = sand.u32 %s67, 1
          %s147 = sand.u32 %s67, 1
          %s148 = smul.addr %s147, 256
          %s149 = scalar_lea.vmem [#allocation3], %s148
          %s150 = smul.u32 32, %s17
          %s151 = smul.u32 2, %s16
          %s152 = smul.addr %s150, 4
          %s153 = sadd.s32 %s151, %s152
          %s154 = smul.addr %s153, 4
          %s155 = scalar_lea.vmem %s1, %s154
          // Predicated region
          $region25: #{forward.70} parent=23 // pred_check
            _
          $region26: #{forward.70} parent=23 // pred_check_branch
            %157 = sbr.rel (0) target = $region28
          $region27: #{forward.70} parent=23 // pred_region
            // Predicated region
            $region29: #{forward.70} parent=27 // pred_check
              _
            $region30: #{forward.70} parent=27 // pred_check_branch
              %159 = sbr.rel (0) target = $region32
            $region31: #{forward.70} parent=27 // pred_region
              // Predicated region
              $region44: #{forward.70} parent=31 // pred_check
                _
              $region45: #{forward.70} parent=31 // pred_check_branch
                %237 = sbr.rel (0) target = $region47
              $region46: #{forward.70} parent=31 // pred_region
                loop: start=0, step=1, limit=1
                $region48: #{forward.70} parent=46 // loop_pre_header
                  _
                $region49: #{forward.70} parent=46 // loop_header
                  %s239 = sphi 0, %s243
                  %p240 = scmp.ge.s32.totalorder %s239, 1
                  %s244 = sphi %s155, %s155
                  %s245 = sphi %s149, %s149
                $region50: #{forward.70} parent=46 // loop_header_branch
                  %242 = sbr.rel (%p240) target = $region54
                $region51: #{forward.70} parent=46 // loop_body
                  %v246 = vld [vmem:[%s244] sm:$0xff]
                  %247 = vst [vmem:[%s245] sm:$0xff] %v246
                  %v248 = vld [vmem:[%s244 + $0x10] sm:$0xff]
                  %249 = vst [vmem:[%s245 + $0x8] sm:$0xff] %v248
                  %v250 = vld [vmem:[%s244 + $0x20] sm:$0xff]
                  %251 = vst [vmem:[%s245 + $0x10] sm:$0xff] %v250
                  %v252 = vld [vmem:[%s244 + $0x30] sm:$0xff]
                  %253 = vst [vmem:[%s245 + $0x18] sm:$0xff] %v252
                  %v254 = vld [vmem:[%s244 + $0x40] sm:$0xff]
                  %255 = vst [vmem:[%s245 + $0x20] sm:$0xff] %v254
                  %v256 = vld [vmem:[%s244 + $0x50] sm:$0xff]
                  %257 = vst [vmem:[%s245 + $0x28] sm:$0xff] %v256
                  %v258 = vld [vmem:[%s244 + $0x60] sm:$0xff]
                  %259 = vst [vmem:[%s245 + $0x30] sm:$0xff] %v258
                  %v260 = vld [vmem:[%s244 + $0x70] sm:$0xff]
                  %261 = vst [vmem:[%s245 + $0x38] sm:$0xff] %v260
                  %v262 = vld [vmem:[%s244 + $0x80] sm:$0xff]
                  %263 = vst [vmem:[%s245 + $0x40] sm:$0xff] %v262
                  %v264 = vld [vmem:[%s244 + $0x90] sm:$0xff]
                  %265 = vst [vmem:[%s245 + $0x48] sm:$0xff] %v264
                  %v266 = vld [vmem:[%s244 + $0xa0] sm:$0xff]
                  %267 = vst [vmem:[%s245 + $0x50] sm:$0xff] %v266
                  %v268 = vld [vmem:[%s244 + $0xb0] sm:$0xff]
                  %269 = vst [vmem:[%s245 + $0x58] sm:$0xff] %v268
                  %v270 = vld [vmem:[%s244 + $0xc0] sm:$0xff]
                  %271 = vst [vmem:[%s245 + $0x60] sm:$0xff] %v270
                  %v272 = vld [vmem:[%s244 + $0xd0] sm:$0xff]
                  %273 = vst [vmem:[%s245 + $0x68] sm:$0xff] %v272
                  %v274 = vld [vmem:[%s244 + $0xe0] sm:$0xff]
                  %275 = vst [vmem:[%s245 + $0x70] sm:$0xff] %v274
                  %v276 = vld [vmem:[%s244 + $0xf0] sm:$0xff]
                  %277 = vst [vmem:[%s245 + $0x78] sm:$0xff] %v276
                  %v278 = vld [vmem:[%s244 + $0x100] sm:$0xff]
                  %279 = vst [vmem:[%s245 + $0x80] sm:$0xff] %v278
                  %v280 = vld [vmem:[%s244 + $0x110] sm:$0xff]
                  %281 = vst [vmem:[%s245 + $0x88] sm:$0xff] %v280
                  %v282 = vld [vmem:[%s244 + $0x120] sm:$0xff]
                  %283 = vst [vmem:[%s245 + $0x90] sm:$0xff] %v282
                  %v284 = vld [vmem:[%s244 + $0x130] sm:$0xff]
                  %285 = vst [vmem:[%s245 + $0x98] sm:$0xff] %v284
                  %v286 = vld [vmem:[%s244 + $0x140] sm:$0xff]
                  %287 = vst [vmem:[%s245 + $0xa0] sm:$0xff] %v286
                  %v288 = vld [vmem:[%s244 + $0x150] sm:$0xff]
                  %289 = vst [vmem:[%s245 + $0xa8] sm:$0xff] %v288
                  %v290 = vld [vmem:[%s244 + $0x160] sm:$0xff]
                  %291 = vst [vmem:[%s245 + $0xb0] sm:$0xff] %v290
                  %v292 = vld [vmem:[%s244 + $0x170] sm:$0xff]
                  %293 = vst [vmem:[%s245 + $0xb8] sm:$0xff] %v292
                  %v294 = vld [vmem:[%s244 + $0x180] sm:$0xff]
                  %295 = vst [vmem:[%s245 + $0xc0] sm:$0xff] %v294
                  %v296 = vld [vmem:[%s244 + $0x190] sm:$0xff]
                  %297 = vst [vmem:[%s245 + $0xc8] sm:$0xff] %v296
                  %v298 = vld [vmem:[%s244 + $0x1a0] sm:$0xff]
                  %299 = vst [vmem:[%s245 + $0xd0] sm:$0xff] %v298
                  %v300 = vld [vmem:[%s244 + $0x1b0] sm:$0xff]
                  %301 = vst [vmem:[%s245 + $0xd8] sm:$0xff] %v300
                  %v302 = vld [vmem:[%s244 + $0x1c0] sm:$0xff]
                  %303 = vst [vmem:[%s245 + $0xe0] sm:$0xff] %v302
                  %v304 = vld [vmem:[%s244 + $0x1d0] sm:$0xff]
                  %305 = vst [vmem:[%s245 + $0xe8] sm:$0xff] %v304
                  %v306 = vld [vmem:[%s244 + $0x1e0] sm:$0xff]
                  %307 = vst [vmem:[%s245 + $0xf0] sm:$0xff] %v306
                  %v308 = vld [vmem:[%s244 + $0x1f0] sm:$0xff]
                  %309 = vst [vmem:[%s245 + $0xf8] sm:$0xff] %v308
                $region52: #{forward.70} parent=46 // loop_footer
                  %s243 = sadd.s32 1, %s239
                $region53: #{forward.70} parent=46 // loop_footer_branch
                  %238 = sbr.rel target = $region49
                $region54: #{forward.70} parent=46 // loop_exit
                  _
              $region47: #{forward.70} parent=31 // pred_fallthru
                _
              // Predicated region
              $region55: #{forward.70} parent=31 // pred_check
                _
              $region56: #{forward.70} parent=31 // pred_check_branch
                %311 = sbr.rel target = $region58
              $region57: #{forward.70} parent=31 // pred_region
                _
              $region58: #{forward.70} parent=31 // pred_fallthru
                _
            $region32: #{forward.70} parent=27 // pred_fallthru
              _
            // Predicated region
            $region33: #{forward.70} parent=27 // pred_check
              _
            $region34: #{forward.70} parent=27 // pred_check_branch
              %161 = sbr.rel target = $region36
            $region35: #{forward.70} parent=27 // pred_region
              %s163 = ssub.s32 256, 1
              loop: start=0, step=1, limit=1
              $region37: #{forward.70} parent=35 // loop_pre_header
                _
              $region38: #{forward.70} parent=35 // loop_header
                %s165 = sphi 0, %s169
                %p166 = scmp.ge.s32.totalorder %s165, 1
                %s170 = sphi %s155, %s155
                %s171 = sphi %s149, %s149
              $region39: #{forward.70} parent=35 // loop_header_branch
                %168 = sbr.rel (%p166) target = $region43
              $region40: #{forward.70} parent=35 // loop_body
                %v172 = vld [vmem:[%s170] sm:%s163]
                %173 = vst [vmem:[%s171] sm:%s163] %v172
                %v174 = vld [vmem:[%s170 + $0x10] sm:%s163]
                %175 = vst [vmem:[%s171 + $0x8] sm:%s163] %v174
                %v176 = vld [vmem:[%s170 + $0x20] sm:%s163]
                %177 = vst [vmem:[%s171 + $0x10] sm:%s163] %v176
                %v178 = vld [vmem:[%s170 + $0x30] sm:%s163]
                %179 = vst [vmem:[%s171 + $0x18] sm:%s163] %v178
                %v180 = vld [vmem:[%s170 + $0x40] sm:%s163]
                %181 = vst [vmem:[%s171 + $0x20] sm:%s163] %v180
                %v182 = vld [vmem:[%s170 + $0x50] sm:%s163]
                %183 = vst [vmem:[%s171 + $0x28] sm:%s163] %v182
                %v184 = vld [vmem:[%s170 + $0x60] sm:%s163]
                %185 = vst [vmem:[%s171 + $0x30] sm:%s163] %v184
                %v186 = vld [vmem:[%s170 + $0x70] sm:%s163]
                %187 = vst [vmem:[%s171 + $0x38] sm:%s163] %v186
                %v188 = vld [vmem:[%s170 + $0x80] sm:%s163]
                %189 = vst [vmem:[%s171 + $0x40] sm:%s163] %v188
                %v190 = vld [vmem:[%s170 + $0x90] sm:%s163]
                %191 = vst [vmem:[%s171 + $0x48] sm:%s163] %v190
                %v192 = vld [vmem:[%s170 + $0xa0] sm:%s163]
                %193 = vst [vmem:[%s171 + $0x50] sm:%s163] %v192
                %v194 = vld [vmem:[%s170 + $0xb0] sm:%s163]
                %195 = vst [vmem:[%s171 + $0x58] sm:%s163] %v194
                %v196 = vld [vmem:[%s170 + $0xc0] sm:%s163]
                %197 = vst [vmem:[%s171 + $0x60] sm:%s163] %v196
                %v198 = vld [vmem:[%s170 + $0xd0] sm:%s163]
                %199 = vst [vmem:[%s171 + $0x68] sm:%s163] %v198
                %v200 = vld [vmem:[%s170 + $0xe0] sm:%s163]
                %201 = vst [vmem:[%s171 + $0x70] sm:%s163] %v200
                %v202 = vld [vmem:[%s170 + $0xf0] sm:%s163]
                %203 = vst [vmem:[%s171 + $0x78] sm:%s163] %v202
                %v204 = vld [vmem:[%s170 + $0x100] sm:%s163]
                %205 = vst [vmem:[%s171 + $0x80] sm:%s163] %v204
                %v206 = vld [vmem:[%s170 + $0x110] sm:%s163]
                %207 = vst [vmem:[%s171 + $0x88] sm:%s163] %v206
                %v208 = vld [vmem:[%s170 + $0x120] sm:%s163]
                %209 = vst [vmem:[%s171 + $0x90] sm:%s163] %v208
                %v210 = vld [vmem:[%s170 + $0x130] sm:%s163]
                %211 = vst [vmem:[%s171 + $0x98] sm:%s163] %v210
                %v212 = vld [vmem:[%s170 + $0x140] sm:%s163]
                %213 = vst [vmem:[%s171 + $0xa0] sm:%s163] %v212
                %v214 = vld [vmem:[%s170 + $0x150] sm:%s163]
                %215 = vst [vmem:[%s171 + $0xa8] sm:%s163] %v214
                %v216 = vld [vmem:[%s170 + $0x160] sm:%s163]
                %217 = vst [vmem:[%s171 + $0xb0] sm:%s163] %v216
                %v218 = vld [vmem:[%s170 + $0x170] sm:%s163]
                %219 = vst [vmem:[%s171 + $0xb8] sm:%s163] %v218
                %v220 = vld [vmem:[%s170 + $0x180] sm:%s163]
                %221 = vst [vmem:[%s171 + $0xc0] sm:%s163] %v220
                %v222 = vld [vmem:[%s170 + $0x190] sm:%s163]
                %223 = vst [vmem:[%s171 + $0xc8] sm:%s163] %v222
                %v224 = vld [vmem:[%s170 + $0x1a0] sm:%s163]
                %225 = vst [vmem:[%s171 + $0xd0] sm:%s163] %v224
                %v226 = vld [vmem:[%s170 + $0x1b0] sm:%s163]
                %227 = vst [vmem:[%s171 + $0xd8] sm:%s163] %v226
                %v228 = vld [vmem:[%s170 + $0x1c0] sm:%s163]
                %229 = vst [vmem:[%s171 + $0xe0] sm:%s163] %v228
                %v230 = vld [vmem:[%s170 + $0x1d0] sm:%s163]
                %231 = vst [vmem:[%s171 + $0xe8] sm:%s163] %v230
                %v232 = vld [vmem:[%s170 + $0x1e0] sm:%s163]
                %233 = vst [vmem:[%s171 + $0xf0] sm:%s163] %v232
                %v234 = vld [vmem:[%s170 + $0x1f0] sm:%s163]
                %235 = vst [vmem:[%s171 + $0xf8] sm:%s163] %v234
              $region41: #{forward.70} parent=35 // loop_footer
                %s169 = sadd.s32 1, %s165
              $region42: #{forward.70} parent=35 // loop_footer_branch
                %164 = sbr.rel target = $region38
              $region43: #{forward.70} parent=35 // loop_exit
                _
            $region36: #{forward.70} parent=27 // pred_fallthru
              _
          $region28: #{forward.70} parent=23 // pred_fallthru
            _
          %312 = vnop
        $region24: #{forward.70} parent=19 // pred_fallthru
          _
      $region20: #{forward.70} parent=5 // pred_fallthru
        _
      %p313 = scmp.le.s32.totalorder 1, %s8
      %p314 = scmp.lt.s32.totalorder %s8, 3
      %p315 = pnand %p313, %p314
      %p316 = pneg %p315
      // Predicated region
      $region59: #{forward.70} parent=5 // pred_check
        _
      $region60: #{forward.70} parent=5 // pred_check_branch
        %318 = sbr.rel (%p315) target = $region62
      $region61: #{forward.70} parent=5 // pred_region
        %s319 = ssub.s32 %s8, 1
        %s320 = sand.u32 %s70, 1
        %s321 = sand.u32 %s70, 1
        %s322 = smul.addr %s321, 256
        %s323 = scalar_lea.vmem [#allocation3], %s322
        // Predicated region
        $region63: #{forward.70} parent=61 // pred_check
          %p324 = pneg %p83
        $region64: #{forward.70} parent=61 // pred_check_branch
          %326 = sbr.rel (%p324) target = $region66
        $region65: #{forward.70} parent=61 // pred_region
          _
        $region66: #{forward.70} parent=61 // pred_fallthru
          _
        %s327 = smul.u32 2, %s20
        %p328 = scmp.lt.s32.totalorder %s18, 0
        %s329 = scalar_select %p328, %s18, 0
        %p330 = scmp.lt.s32.totalorder %s327, 1
        %s331 = scalar_select %p330, %s327, 1
        %s332 = smul.addr %s329, 2
        %s333 = sadd.s32 %s331, %s332
        %s334 = smul.addr %s333, 4
        %s335 = scalar_lea.vmem %s0, %s334
        %p336 = pneg %p55
        %p337 = pneg %p52
        %s338 = sand.u32 %s70, 1
        %s339 = sand.u32 %s70, 1
        %s340 = smul.addr %s339, 256
        %s341 = scalar_lea.vmem [#allocation3], %s340
        %p342 = pneg %p83
        %p343 = pneg %p80
        %p344 = pneg %p111
        %p345 = pneg %p108
        %s346 = smul.u32 2, %s19
        %p347 = scmp.lt.s32.totalorder %s18, 0
        %s348 = scalar_select %p347, %s18, 0
        %p349 = scmp.lt.s32.totalorder %s346, 3
        %s350 = scalar_select %p349, %s346, 3
        %s351 = smul.addr %s348, 4
        %s352 = sadd.s32 %s350, %s351
        %s353 = smul.addr %s352, 8
        %s354 = scalar_lea.vmem %s2, %s353
        %s355 = smul.u32 2, %s20
        %p356 = scmp.lt.s32.totalorder %s18, 0
        %s357 = scalar_select %p356, %s18, 0
        %p358 = scmp.lt.s32.totalorder %s355, 1
        %s359 = scalar_select %p358, %s355, 1
        %s360 = smul.addr %s357, 2
        %s361 = sadd.s32 %s359, %s360
        %s362 = smul.addr %s361, 4
        %s363 = scalar_lea.vmem %s0, %s362
        %s364 = smul.u32 2, %s20
        %s365 = smul.u32 32, %s20
        %s366 = smul.u32 2, %s19
        %s367 = smul.u32 2, %s19
        %p368 = scmp.lt.s32.totalorder %s18, 0
        %s369 = scalar_select %p368, %s18, 0
        %p370 = scmp.lt.s32.totalorder %s367, 3
        %s371 = scalar_select %p370, %s367, 3
        %s372 = smul.addr %s369, 4
        %s373 = sadd.s32 %s371, %s372
        %s374 = smul.addr %s373, 8
        %s375 = scalar_lea.vmem %s2, %s374
        %s376 = smul.u32 2, %s19
        %p377 = scmp.eq.s32.totalorder %s20, 0
        // Predicated region
        $region67: #{forward.70} parent=61 // pred_check
          %p378 = pneg %p377
        $region68: #{forward.70} parent=61 // pred_check_branch
          %380 = sbr.rel (%p378) target = $region70
        $region69: #{forward.70} parent=61 // pred_region
          %381 = vst [vmem:[#allocation2] sm:$0xff] 0.0
          %382 = vst [vmem:[#allocation2 + $0x8] sm:$0xff] 0.0
        $region70: #{forward.70} parent=61 // pred_fallthru
          _
        %v383 = vld [vmem:[#allocation2] sm:$0xff]
        %v384 = vld [vmem:[#allocation2 + $0x8] sm:$0xff]
        %v385 = vld [vmem:[%s363] sm:$0xff]
        %v386 = vld [vmem:[%s323] sm:$0xff]
        %v387 = vld [vmem:[%s323 + $0x8] sm:$0xff]
        %v388 = vld [vmem:[%s323 + $0x10] sm:$0xff]
        %v389 = vld [vmem:[%s323 + $0x18] sm:$0xff]
        %v390 = vld [vmem:[%s323 + $0x20] sm:$0xff]
        %v391 = vld [vmem:[%s323 + $0x28] sm:$0xff]
        %v392 = vld [vmem:[%s323 + $0x30] sm:$0xff]
        %v393 = vld [vmem:[%s323 + $0x38] sm:$0xff]
        %v394 = vld [vmem:[%s323 + $0x40] sm:$0xff]
        %v395 = vld [vmem:[%s323 + $0x48] sm:$0xff]
        %v396 = vld [vmem:[%s323 + $0x50] sm:$0xff]
        %v397 = vld [vmem:[%s323 + $0x58] sm:$0xff]
        %v398 = vld [vmem:[%s323 + $0x60] sm:$0xff]
        %v399 = vld [vmem:[%s323 + $0x68] sm:$0xff]
        %v400 = vld [vmem:[%s323 + $0x70] sm:$0xff]
        %v401 = vld [vmem:[%s323 + $0x78] sm:$0xff]
        %v402 = vld [vmem:[%s323 + $0x80] sm:$0xff]
        %v403 = vld [vmem:[%s323 + $0x88] sm:$0xff]
        %v404 = vld [vmem:[%s323 + $0x90] sm:$0xff]
        %v405 = vld [vmem:[%s323 + $0x98] sm:$0xff]
        %v406 = vld [vmem:[%s323 + $0xa0] sm:$0xff]
        %v407 = vld [vmem:[%s323 + $0xa8] sm:$0xff]
        %v408 = vld [vmem:[%s323 + $0xb0] sm:$0xff]
        %v409 = vld [vmem:[%s323 + $0xb8] sm:$0xff]
        %v410 = vld [vmem:[%s323 + $0xc0] sm:$0xff]
        %v411 = vld [vmem:[%s323 + $0xc8] sm:$0xff]
        %v412 = vld [vmem:[%s323 + $0xd0] sm:$0xff]
        %v413 = vld [vmem:[%s323 + $0xd8] sm:$0xff]
        %v414 = vld [vmem:[%s323 + $0xe0] sm:$0xff]
        %v415 = vld [vmem:[%s323 + $0xe8] sm:$0xff]
        %v416 = vld [vmem:[%s323 + $0xf0] sm:$0xff]
        %v417 = vld [vmem:[%s323 + $0xf8] sm:$0xff]
        %v419 = vunpack.c.l.b16 %v385
        %v420 = vunpack.c.h.b16 %v385
        %v421 = vpack.c.b16 %v419, %v419
        %v422 = vpack.c.b16 %v420, %v420
        %v457 = vunpack.c.l.b16 %v386
        %v458 = vunpack.c.h.b16 %v386
        %v459 = vunpack.c.l.b16 %v387
        %v460 = vunpack.c.h.b16 %v387
        %v461 = vunpack.c.l.b16 %v388
        %v462 = vunpack.c.h.b16 %v388
        %v463 = vunpack.c.l.b16 %v389
        %v464 = vunpack.c.h.b16 %v389
        %v465 = vunpack.c.l.b16 %v390
        %v466 = vunpack.c.h.b16 %v390
        %v467 = vunpack.c.l.b16 %v391
        %v468 = vunpack.c.h.b16 %v391
        %v469 = vunpack.c.l.b16 %v392
        %v470 = vunpack.c.h.b16 %v392
        %v471 = vunpack.c.l.b16 %v393
        %v472 = vunpack.c.h.b16 %v393
        %v473 = vunpack.c.l.b16 %v394
        %v474 = vunpack.c.h.b16 %v394
        %v475 = vunpack.c.l.b16 %v395
        %v476 = vunpack.c.h.b16 %v395
        %v477 = vunpack.c.l.b16 %v396
        %v478 = vunpack.c.h.b16 %v396
        %v479 = vunpack.c.l.b16 %v397
        %v480 = vunpack.c.h.b16 %v397
        %v481 = vunpack.c.l.b16 %v398
        %v482 = vunpack.c.h.b16 %v398
        %v483 = vunpack.c.l.b16 %v399
        %v484 = vunpack.c.h.b16 %v399
        %v485 = vunpack.c.l.b16 %v400
        %v486 = vunpack.c.h.b16 %v400
        %v487 = vunpack.c.l.b16 %v401
        %v488 = vunpack.c.h.b16 %v401
        %v489 = vunpack.c.l.b16 %v402
        %v490 = vunpack.c.h.b16 %v402
        %v491 = vunpack.c.l.b16 %v403
        %v492 = vunpack.c.h.b16 %v403
        %v493 = vunpack.c.l.b16 %v404
        %v494 = vunpack.c.h.b16 %v404
        %v495 = vunpack.c.l.b16 %v405
        %v496 = vunpack.c.h.b16 %v405
        %v497 = vunpack.c.l.b16 %v406
        %v498 = vunpack.c.h.b16 %v406
        %v499 = vunpack.c.l.b16 %v407
        %v500 = vunpack.c.h.b16 %v407
        %v501 = vunpack.c.l.b16 %v408
        %v502 = vunpack.c.h.b16 %v408
        %v503 = vunpack.c.l.b16 %v409
        %v504 = vunpack.c.h.b16 %v409
        %v505 = vunpack.c.l.b16 %v410
        %v506 = vunpack.c.h.b16 %v410
        %v507 = vunpack.c.l.b16 %v411
        %v508 = vunpack.c.h.b16 %v411
        %v509 = vunpack.c.l.b16 %v412
        %v510 = vunpack.c.h.b16 %v412
        %v511 = vunpack.c.l.b16 %v413
        %v512 = vunpack.c.h.b16 %v413
        %v513 = vunpack.c.l.b16 %v414
        %v514 = vunpack.c.h.b16 %v414
        %v515 = vunpack.c.l.b16 %v415
        %v516 = vunpack.c.h.b16 %v415
        %v517 = vunpack.c.l.b16 %v416
        %v518 = vunpack.c.h.b16 %v416
        %v519 = vunpack.c.l.b16 %v417
        %v520 = vunpack.c.h.b16 %v417
        %v521 = vpack.c.b16 %v459, %v457
        %v522 = vpack.c.b16 %v460, %v458
        %v523 = vpack.c.b16 %v463, %v461
        %v524 = vpack.c.b16 %v464, %v462
        %v525 = vpack.c.b16 %v467, %v465
        %v526 = vpack.c.b16 %v468, %v466
        %v527 = vpack.c.b16 %v471, %v469
        %v528 = vpack.c.b16 %v472, %v470
        %v529 = vpack.c.b16 %v475, %v473
        %v530 = vpack.c.b16 %v476, %v474
        %v531 = vpack.c.b16 %v479, %v477
        %v532 = vpack.c.b16 %v480, %v478
        %v533 = vpack.c.b16 %v483, %v481
        %v534 = vpack.c.b16 %v484, %v482
        %v535 = vpack.c.b16 %v487, %v485
        %v536 = vpack.c.b16 %v488, %v486
        %v537 = vpack.c.b16 %v491, %v489
        %v538 = vpack.c.b16 %v492, %v490
        %v539 = vpack.c.b16 %v495, %v493
        %v540 = vpack.c.b16 %v496, %v494
        %v541 = vpack.c.b16 %v499, %v497
        %v542 = vpack.c.b16 %v500, %v498
        %v543 = vpack.c.b16 %v503, %v501
        %v544 = vpack.c.b16 %v504, %v502
        %v545 = vpack.c.b16 %v507, %v505
        %v546 = vpack.c.b16 %v508, %v506
        %v547 = vpack.c.b16 %v511, %v509
        %v548 = vpack.c.b16 %v512, %v510
        %v549 = vpack.c.b16 %v515, %v513
        %v550 = vpack.c.b16 %v516, %v514
        %v551 = vpack.c.b16 %v519, %v517
        %v552 = vpack.c.b16 %v520, %v518
        %585 = vmatpush.bf16.msra.mxu0 %v535
        %586 = vmatpush.bf16.msra.mxu0 %v533
        %587 = vmatpush.bf16.msra.mxu0 %v531
        %588 = vmatpush.bf16.msra.mxu0 %v529
        %589 = vmatpush.bf16.msra.mxu0 %v527
        %590 = vmatpush.bf16.msra.mxu0 %v525
        %591 = vmatpush.bf16.msra.mxu0 %v523
        %592 = vmatpush.bf16.msra.mxu0 %v521
        %593 = vmatmul.bf16.gmra.mxu0 %v421
        %v594 = vpop.f32.mrf.mxu0
        %v595 = vadd.f32 0.0, %v594
        %v596 = vpop.f32.mrf.mxu0
        %597 = vdwg.mxu0
        %598 = vmatpush.bf16.msra.mxu0 %v551
        %599 = vmatpush.bf16.msra.mxu0 %v549
        %600 = vmatpush.bf16.msra.mxu0 %v547
        %601 = vmatpush.bf16.msra.mxu0 %v545
        %602 = vmatpush.bf16.msra.mxu0 %v543
        %603 = vmatpush.bf16.msra.mxu0 %v541
        %604 = vmatpush.bf16.msra.mxu0 %v539
        %605 = vmatpush.bf16.msra.mxu0 %v537
        %606 = vmatmul.bf16.gmra.mxu0 %v422
        %v607 = vpop.f32.mrf.mxu0
        %v608 = vadd.f32 %v595, %v607
        %v609 = vpop.f32.mrf.mxu0
        %610 = vdwg.mxu0
        %611 = vmatpush.bf16.msra.mxu0 %v536
        %612 = vmatpush.bf16.msra.mxu0 %v534
        %613 = vmatpush.bf16.msra.mxu0 %v532
        %614 = vmatpush.bf16.msra.mxu0 %v530
        %615 = vmatpush.bf16.msra.mxu0 %v528
        %616 = vmatpush.bf16.msra.mxu0 %v526
        %617 = vmatpush.bf16.msra.mxu0 %v524
        %618 = vmatpush.bf16.msra.mxu0 %v522
        %619 = vmatmul.bf16.gmra.mxu0 %v421
        %v620 = vpop.f32.mrf.mxu0
        %v621 = vadd.f32 0.0, %v620
        %v622 = vpop.f32.mrf.mxu0
        %623 = vdwg.mxu0
        %624 = vmatpush.bf16.msra.mxu0 %v552
        %625 = vmatpush.bf16.msra.mxu0 %v550
        %626 = vmatpush.bf16.msra.mxu0 %v548
        %627 = vmatpush.bf16.msra.mxu0 %v546
        %628 = vmatpush.bf16.msra.mxu0 %v544
        %629 = vmatpush.bf16.msra.mxu0 %v542
        %630 = vmatpush.bf16.msra.mxu0 %v540
        %631 = vmatpush.bf16.msra.mxu0 %v538
        %632 = vmatmul.bf16.gmra.mxu0 %v422
        %v633 = vpop.f32.mrf.mxu0
        %v634 = vadd.f32 %v621, %v633
        %v635 = vpop.f32.mrf.mxu0
        %636 = vdwg.mxu0
        %v637 = vadd.f32 %v383, %v608
        %v638 = vadd.f32 %v384, %v634
        %639 = vst [vmem:[#allocation2] sm:$0xff] %v637
        %640 = vst [vmem:[#allocation2 + $0x8] sm:$0xff] %v638
        // Predicated region
        $region71: #{forward.70} parent=61 // pred_check
          %p641 = pneg %p377
        $region72: #{forward.70} parent=61 // pred_check_branch
          %643 = sbr.rel (%p641) target = $region74
        $region73: #{forward.70} parent=61 // pred_region
          %v644 = vld [vmem:[#allocation2] sm:$0xff]
          %v645 = vld [vmem:[#allocation2 + $0x8] sm:$0xff]
          %646 = vst [vmem:[%s375] sm:$0xff] %v644
          %647 = vst [vmem:[%s375 + $0x8] sm:$0xff] %v645
        $region74: #{forward.70} parent=61 // pred_fallthru
          _
        %s648 = smul.u32 2, %s19
        %p649 = scmp.lt.s32.totalorder %s18, 0
        %s650 = scalar_select %p649, %s18, 0
        %p651 = scmp.lt.s32.totalorder %s648, 3
        %s652 = scalar_select %p651, %s648, 3
        %s653 = smul.addr %s650, 4
        %s654 = sadd.s32 %s652, %s653
        %s655 = smul.addr %s654, 8
        %s656 = scalar_lea.vmem %s2, %s655
        // Predicated region
        $region75: #{forward.70} parent=61 // pred_check
          %p657 = pneg %p108
        $region76: #{forward.70} parent=61 // pred_check_branch
          %659 = sbr.rel (%p657) target = $region78
        $region77: #{forward.70} parent=61 // pred_region
          %s660 = smul.u32 2, %s19
        $region78: #{forward.70} parent=61 // pred_fallthru
          _
      $region62: #{forward.70} parent=5 // pred_fallthru
        _
      %p661 = scmp.le.s32.totalorder 2, %s8
      // Predicated region
      $region79: #{forward.70} parent=5 // pred_check
        %p662 = pneg %p661
      $region80: #{forward.70} parent=5 // pred_check_branch
        %664 = sbr.rel (%p662) target = $region82
      $region81: #{forward.70} parent=5 // pred_region
        %s665 = ssub.s32 %s8, 2
        // Predicated region
        $region83: #{forward.70} parent=81 // pred_check
          %p666 = pneg %p114
        $region84: #{forward.70} parent=81 // pred_check_branch
          %668 = sbr.rel (%p666) target = $region86
        $region85: #{forward.70} parent=81 // pred_region
          %s669 = smul.u32 2, %s22
          %p670 = scmp.lt.s32.totalorder %s21, 0
          %s671 = scalar_select %p670, %s21, 0
          %p672 = scmp.lt.s32.totalorder %s669, 3
          %s673 = scalar_select %p672, %s669, 3
          %s674 = smul.addr %s671, 4
          %s675 = sadd.s32 %s673, %s674
          %s676 = smul.addr %s675, 8
          %s677 = scalar_lea.vmem %s2, %s676
        $region86: #{forward.70} parent=81 // pred_fallthru
          _
      $region82: #{forward.70} parent=5 // pred_fallthru
        _
    $region6: #{forward.70} parent=1 // loop_footer
      %s12 = sadd.s32 1, %s8
    $region7: #{forward.70} parent=1 // loop_footer_branch
      %7 = sbr.rel target = $region3
    $region8: #{forward.70} parent=1 // loop_exit
      _

// kernel: forward.65
$region0: #{forward.65}
  #allocation0 [shape = 'u32[]', space=smem, size = 0x4, offset = 0x4, fixed_abs, tag = 'smem constant byte address 0x4 - core index']
  #allocation1 [shape = 'u32[72,128]{1,0:T(1,128)}', space=vmem, size = 0x9000, scoped, tag = 'internal scratch']
  #allocation2 [shape = 'f32[8,128]{1,0:T(8,128)}', space=vmem, size = 0x1000, scoped, tag = 'scratch operand']
  %s0 = inlined_call_operand.vmem [shape: bf16[8,256], index: 0, kind: input, shape index: {}]
  %s1 = inlined_call_operand.vmem [shape: bf16[256,128], index: 1, kind: input, shape index: {}]
  %s2 = inlined_call_operand.vmem [shape: f32[8,128], index: 2, kind: output, shape index: {}]
  %s3 = sld [smem:[#allocation0]]
  $region26: #{forward.65} parent=0
    _
  %s5 = ssub.s32 1, %s3
  %s6 = scalar_select 0, %s5, %s3
  // Predicated region
  $region2: #{forward.65} parent=0 // pred_check
    _
  $region3: #{forward.65} parent=0 // pred_check_branch
    %8 = sbr.rel (0) target = $region5
  $region4: #{forward.65} parent=0 // pred_region
    _
  $region5: #{forward.65} parent=0 // pred_fallthru
    _
  // Predicated region
  $region6: #{forward.65} parent=0 // pred_check
    _
  $region7: #{forward.65} parent=0 // pred_check_branch
    %10 = sbr.rel (0) target = $region9
  $region8: #{forward.65} parent=0 // pred_region
    _
  $region9: #{forward.65} parent=0 // pred_fallthru
    _
  %p11 = scmp.eq.s32.totalorder 0, 0
  // Predicated region
  $region10: #{forward.65} parent=0 // pred_check
    %p12 = pneg %p11
  $region11: #{forward.65} parent=0 // pred_check_branch
    %14 = sbr.rel (%p12) target = $region13
  $region12: #{forward.65} parent=0 // pred_region
    %15 = vst [vmem:[#allocation2] sm:$0xff] 0.0
  $region13: #{forward.65} parent=0 // pred_fallthru
    _
  %v16 = vld [vmem:[#allocation2] sm:$0xff]
  %v17 = vld [vmem:[%s0] sm:$0xff]
  %v18 = vld [vmem:[%s1] sm:$0xf]
  %v19 = vld [vmem:[%s1 + $0x4] sm:$0xf]
  %v20 = vld [vmem:[%s1 + $0x8] sm:$0xf]
  %v21 = vld [vmem:[%s1 + $0xc] sm:$0xf]
  %v22 = vld [vmem:[%s1 + $0x10] sm:$0xf]
  %v23 = vld [vmem:[%s1 + $0x14] sm:$0xf]
  %v24 = vld [vmem:[%s1 + $0x18] sm:$0xf]
  %v25 = vld [vmem:[%s1 + $0x1c] sm:$0xf]
  %v26 = vld [vmem:[%s1 + $0x20] sm:$0xf]
  %v27 = vld [vmem:[%s1 + $0x24] sm:$0xf]
  %v28 = vld [vmem:[%s1 + $0x28] sm:$0xf]
  %v29 = vld [vmem:[%s1 + $0x2c] sm:$0xf]
  %v30 = vld [vmem:[%s1 + $0x30] sm:$0xf]
  %v31 = vld [vmem:[%s1 + $0x34] sm:$0xf]
  %v32 = vld [vmem:[%s1 + $0x38] sm:$0xf]
  %v33 = vld [vmem:[%s1 + $0x3c] sm:$0xf]
  %v34 = vld [vmem:[%s1 + $0x40] sm:$0xf]
  %v35 = vld [vmem:[%s1 + $0x44] sm:$0xf]
  %v36 = vld [vmem:[%s1 + $0x48] sm:$0xf]
  %v37 = vld [vmem:[%s1 + $0x4c] sm:$0xf]
  %v38 = vld [vmem:[%s1 + $0x50] sm:$0xf]
  %v39 = vld [vmem:[%s1 + $0x54] sm:$0xf]
  %v40 = vld [vmem:[%s1 + $0x58] sm:$0xf]
  %v41 = vld [vmem:[%s1 + $0x5c] sm:$0xf]
  %v42 = vld [vmem:[%s1 + $0x60] sm:$0xf]
  %v43 = vld [vmem:[%s1 + $0x64] sm:$0xf]
  %v44 = vld [vmem:[%s1 + $0x68] sm:$0xf]
  %v45 = vld [vmem:[%s1 + $0x6c] sm:$0xf]
  %v46 = vld [vmem:[%s1 + $0x70] sm:$0xf]
  %v47 = vld [vmem:[%s1 + $0x74] sm:$0xf]
  %v48 = vld [vmem:[%s1 + $0x78] sm:$0xf]
  %v49 = vld [vmem:[%s1 + $0x7c] sm:$0xf]
  %v51 = vunpack.c.l.b16 %v17
  %v52 = vunpack.c.h.b16 %v17
  %v53 = vpack.c.b16 %v51, %v51
  %v54 = vpack.c.b16 %v52, %v52
  %v89 = vunpack.c.l.b16 %v18
  %v90 = vunpack.c.l.b16 %v19
  %v91 = vunpack.c.l.b16 %v20
  %v92 = vunpack.c.l.b16 %v21
  %v93 = vunpack.c.l.b16 %v22
  %v94 = vunpack.c.l.b16 %v23
  %v95 = vunpack.c.l.b16 %v24
  %v96 = vunpack.c.l.b16 %v25
  %v97 = vunpack.c.l.b16 %v26
  %v98 = vunpack.c.l.b16 %v27
  %v99 = vunpack.c.l.b16 %v28
  %v100 = vunpack.c.l.b16 %v29
  %v101 = vunpack.c.l.b16 %v30
  %v102 = vunpack.c.l.b16 %v31
  %v103 = vunpack.c.l.b16 %v32
  %v104 = vunpack.c.l.b16 %v33
  %v105 = vunpack.c.l.b16 %v34
  %v106 = vunpack.c.l.b16 %v35
  %v107 = vunpack.c.l.b16 %v36
  %v108 = vunpack.c.l.b16 %v37
  %v109 = vunpack.c.l.b16 %v38
  %v110 = vunpack.c.l.b16 %v39
  %v111 = vunpack.c.l.b16 %v40
  %v112 = vunpack.c.l.b16 %v41
  %v113 = vunpack.c.l.b16 %v42
  %v114 = vunpack.c.l.b16 %v43
  %v115 = vunpack.c.l.b16 %v44
  %v116 = vunpack.c.l.b16 %v45
  %v117 = vunpack.c.l.b16 %v46
  %v118 = vunpack.c.l.b16 %v47
  %v119 = vunpack.c.l.b16 %v48
  %v120 = vunpack.c.l.b16 %v49
  %v121 = vpack.c.b16 %v90, %v89
  %v122 = vpack.c.b16 %v92, %v91
  %v123 = vpack.c.b16 %v94, %v93
  %v124 = vpack.c.b16 %v96, %v95
  %v125 = vpack.c.b16 %v98, %v97
  %v126 = vpack.c.b16 %v100, %v99
  %v127 = vpack.c.b16 %v102, %v101
  %v128 = vpack.c.b16 %v104, %v103
  %v129 = vpack.c.b16 %v106, %v105
  %v130 = vpack.c.b16 %v108, %v107
  %v131 = vpack.c.b16 %v110, %v109
  %v132 = vpack.c.b16 %v112, %v111
  %v133 = vpack.c.b16 %v114, %v113
  %v134 = vpack.c.b16 %v116, %v115
  %v135 = vpack.c.b16 %v118, %v117
  %v136 = vpack.c.b16 %v120, %v119
  %153 = vmatpush.bf16.msra.mxu0 %v128
  %154 = vmatpush.bf16.msra.mxu0 %v127
  %155 = vmatpush.bf16.msra.mxu0 %v126
  %156 = vmatpush.bf16.msra.mxu0 %v125
  %157 = vmatpush.bf16.msra.mxu0 %v124
  %158 = vmatpush.bf16.msra.mxu0 %v123
  %159 = vmatpush.bf16.msra.mxu0 %v122
  %160 = vmatpush.bf16.msra.mxu0 %v121
  %161 = vmatmul.bf16.gmra.mxu0 %v53
  %v162 = vpop.f32.mrf.mxu0
  %v163 = vadd.f32 0.0, %v162
  %v164 = vpop.f32.mrf.mxu0
  %165 = vdwg.mxu0
  %166 = vmatpush.bf16.msra.mxu0 %v136
  %167 = vmatpush.bf16.msra.mxu0 %v135
  %168 = vmatpush.bf16.msra.mxu0 %v134
  %169 = vmatpush.bf16.msra.mxu0 %v133
  %170 = vmatpush.bf16.msra.mxu0 %v132
  %171 = vmatpush.bf16.msra.mxu0 %v131
  %172 = vmatpush.bf16.msra.mxu0 %v130
  %173 = vmatpush.bf16.msra.mxu0 %v129
  %174 = vmatmul.bf16.gmra.mxu0 %v54
  %v175 = vpop.f32.mrf.mxu0
  %v176 = vadd.f32 %v163, %v175
  %v177 = vpop.f32.mrf.mxu0
  %178 = vdwg.mxu0
  %v179 = vadd.f32 %v16, %v176
  %180 = vst [vmem:[#allocation2] sm:$0xff] %v179
  // Predicated region
  $region14: #{forward.65} parent=0 // pred_check
    %p181 = pneg %p11
  $region15: #{forward.65} parent=0 // pred_check_branch
    %183 = sbr.rel (%p181) target = $region17
  $region16: #{forward.65} parent=0 // pred_region
    %v184 = vld [vmem:[#allocation2] sm:$0xff]
    %185 = vst [vmem:[%s2] sm:$0xff] %v184
  $region17: #{forward.65} parent=0 // pred_fallthru
    _
  // Predicated region
  $region18: #{forward.65} parent=0 // pred_check
    _
  $region19: #{forward.65} parent=0 // pred_check_branch
    %187 = sbr.rel (0) target = $region21
  $region20: #{forward.65} parent=0 // pred_region
    _
  $region21: #{forward.65} parent=0 // pred_fallthru
    _
  // Predicated region
  $region22: #{forward.65} parent=0 // pred_check
    _
  $region23: #{forward.65} parent=0 // pred_check_branch
    %189 = sbr.rel (0) target = $region25
  $region24: #{forward.65} parent=0 // pred_region
    _
  $region25: #{forward.65} parent=0 // pred_fallthru
    _

// kernel: forward.71
$region0: #{forward.71}
  #allocation0 [shape = 'u32[]', space=smem, size = 0x4, offset = 0x4, fixed_abs, tag = 'smem constant byte address 0x4 - core index']
  #allocation1 [shape = 'u32[72,128]{1,0:T(1,128)}', space=vmem, size = 0x9000, scoped, tag = 'internal scratch']
  %s0 = inlined_call_operand.vmem [shape: f32[8,512], index: 0, kind: input, shape index: {}]
  %s1 = inlined_call_operand.vmem [shape: f32[1,512], index: 1, kind: input, shape index: {}]
  %s2 = inlined_call_operand.vmem [shape: f32[1,512], index: 2, kind: input, shape index: {}]
  %s3 = inlined_call_operand.vmem [shape: f32[8,512], index: 3, kind: output, shape index: {}]
  %s4 = sld [smem:[#allocation0]]
  $region22: #{forward.71} parent=0
    _
  %s6 = ssub.s32 1, %s4
  %s7 = scalar_select 0, %s6, %s4
  // Predicated region
  $region2: #{forward.71} parent=0 // pred_check
    _
  $region3: #{forward.71} parent=0 // pred_check_branch
    %9 = sbr.rel (0) target = $region5
  $region4: #{forward.71} parent=0 // pred_region
    _
  $region5: #{forward.71} parent=0 // pred_fallthru
    _
  // Predicated region
  $region6: #{forward.71} parent=0 // pred_check
    _
  $region7: #{forward.71} parent=0 // pred_check_branch
    %11 = sbr.rel (0) target = $region9
  $region8: #{forward.71} parent=0 // pred_region
    _
  $region9: #{forward.71} parent=0 // pred_fallthru
    _
  // Predicated region
  $region10: #{forward.71} parent=0 // pred_check
    _
  $region11: #{forward.71} parent=0 // pred_check_branch
    %13 = sbr.rel (0) target = $region13
  $region12: #{forward.71} parent=0 // pred_region
    _
  $region13: #{forward.71} parent=0 // pred_fallthru
    _
  %v14 = vld [vmem:[%s0] sm:$0xff]
  %v15 = vld [vmem:[%s0 + $0x8] sm:$0xff]
  %v16 = vld [vmem:[%s0 + $0x10] sm:$0xff]
  %v17 = vld [vmem:[%s0 + $0x18] sm:$0xff]
  %v18 = vld [vmem:[%s1] sm:$0xf]
  %v20 = vperm.slane %v18, 0
  %v21 = vperm.slane %v18, 1
  %v22 = vperm.slane %v18, 2
  %v23 = vperm.slane %v18, 3
  %v28 = vmul.f32 %v14, %v20
  %v29 = vmul.f32 %v15, %v21
  %v30 = vmul.f32 %v16, %v22
  %v31 = vmul.f32 %v17, %v23
  %v32 = vld [vmem:[%s2] sm:$0xf]
  %v34 = vperm.slane %v32, 0
  %v35 = vperm.slane %v32, 1
  %v36 = vperm.slane %v32, 2
  %v37 = vperm.slane %v32, 3
  %v42 = vadd.f32 %v28, %v34
  %v43 = vadd.f32 %v29, %v35
  %v44 = vadd.f32 %v30, %v36
  %v45 = vadd.f32 %v31, %v37
  %46 = vst [vmem:[%s3] sm:$0xff] %v42
  %47 = vst [vmem:[%s3 + $0x8] sm:$0xff] %v43
  %48 = vst [vmem:[%s3 + $0x10] sm:$0xff] %v44
  %49 = vst [vmem:[%s3 + $0x18] sm:$0xff] %v45
  // Predicated region
  $region14: #{forward.71} parent=0 // pred_check
    _
  $region15: #{forward.71} parent=0 // pred_check_branch
    %51 = sbr.rel (0) target = $region17
  $region16: #{forward.71} parent=0 // pred_region
    _
  $region17: #{forward.71} parent=0 // pred_fallthru
    _
  // Predicated region
  $region18: #{forward.71} parent=0 // pred_check
    _
  $region19: #{forward.71} parent=0 // pred_check_branch
    %53 = sbr.rel (0) target = $region21
  $region20: #{forward.71} parent=0 // pred_region
    _
  $region21: #{forward.71} parent=0 // pred_fallthru
    _

// kernel: forward.69
$region0: #{forward.69}
  #allocation0 [shape = 'u32[]', space=smem, size = 0x4, offset = 0x4, fixed_abs, tag = 'smem constant byte address 0x4 - core index']
  #allocation1 [shape = 'u32[72,128]{1,0:T(1,128)}', space=vmem, size = 0x9000, scoped, tag = 'internal scratch']
  #allocation2 [shape = 'f32[8,256]{1,0:T(8,128)}', space=vmem, size = 0x2000, scoped, tag = 'scratch operand']
  %s0 = inlined_call_operand.vmem [shape: bf16[8,128], index: 0, kind: input, shape index: {}]
  %s1 = inlined_call_operand.vmem [shape: bf16[128,512], index: 1, kind: input, shape index: {}]
  %s2 = inlined_call_operand.vmem [shape: f32[8,512], index: 2, kind: output, shape index: {}]
  %s3 = sld [smem:[#allocation0]]
  $region87: #{forward.69} parent=0
    _
  %s5 = ssub.s32 1, %s3
  %s6 = scalar_select 0, %s5, %s3
  $region1: #{forward.69} parent=0
    #allocation3 [shape = 'u8[131072]{0}', space=vmem, size = 0x20000, scoped, tag = 'input window, operand 1']
    loop: start=0, step=1, limit=4
    $region2: #{forward.69} parent=1 // loop_pre_header
      _
    $region3: #{forward.69} parent=1 // loop_header
      %s8 = sphi 0, %s12
      %p9 = scmp.ge.s32.totalorder %s8, 4
      %s15 = sphi 0, %s34
      %s16 = sphi 0, %s30
      %s17 = sphi 0, %s26
      %s18 = sphi 0, %s15
      %s19 = sphi 0, %s16
      %s20 = sphi 0, %s17
      %s21 = sphi 0, %s18
      %s22 = sphi 0, %s19
      %s23 = sphi 0, %s20
      %s39 = sphi 0, %s41
      %s42 = sphi 0, %s39
      %s43 = sphi 0, %s42
      %s59 = sphi 0, %s43
      %s67 = sphi 0, %s69
      %s70 = sphi 0, %s67
      %s71 = sphi 0, %s70
      %s87 = sphi 0, %s71
      %s95 = sphi 0, %s97
      %s98 = sphi 0, %s95
      %s99 = sphi 0, %s98
      %s115 = sphi 0, %s99
    $region4: #{forward.69} parent=1 // loop_header_branch
      %11 = sbr.rel (%p9) target = $region8
    $region5: #{forward.69} parent=1 // loop_body
      %s13 = ssub.s32 %s8, 1
      %s14 = ssub.s32 %s8, 2
      %s24 = sadd.s32 1, %s17
      %p25 = scmp.ge.s32.totalorder %s24, 1
      %s26 = scalar_select %p25, 0, %s24
      %s27 = sadd.s32 1, %s16
      %s28 = scalar_select %p25, %s27, %s16
      %p29 = scmp.ge.s32.totalorder %s28, 2
      %s30 = scalar_select %p29, 0, %s28
      %s31 = sadd.s32 1, %s15
      %s32 = scalar_select %p29, %s31, %s15
      %p33 = scmp.ge.s32.totalorder %s32, 1
      %s34 = scalar_select %p33, 0, %s32
      %s35 = ssub.s32 %s15, %s34
      %s36 = ssub.s32 %s17, %s26
      %s37 = sor.u32 %s35, %s36
      %p38 = scmp.eq.s32.totalorder %s37, 0
      %s40 = sadd.s32 %s39, 1
      %s41 = scalar_select %p38, %s39, %s40
      %p44 = pneg %p38
      %p45 = scmp.eq.s32.totalorder %s8, 1
      %p46 = por %p44, %p45
      %p47 = scmp.ne.s32.totalorder %s39, %s42
      %p48 = scmp.eq.s32.totalorder %s8, 0
      %p49 = por %p47, %p48
      %p50 = scmp.ne.s32.totalorder %s39, %s42
      %p51 = scmp.eq.s32.totalorder %s13, 1
      %p52 = por %p50, %p51
      %p53 = scmp.ne.s32.totalorder %s42, %s43
      %p54 = scmp.eq.s32.totalorder %s13, 0
      %p55 = por %p53, %p54
      %p56 = scmp.ne.s32.totalorder %s42, %s43
      %p57 = scmp.eq.s32.totalorder %s14, 1
      %p58 = por %p56, %p57
      %p60 = scmp.ne.s32.totalorder %s43, %s59
      %p61 = scmp.eq.s32.totalorder %s14, 0
      %p62 = por %p60, %p61
      %s63 = ssub.s32 %s17, %s26
      %s64 = ssub.s32 %s16, %s30
      %s65 = sor.u32 %s63, %s64
      %p66 = scmp.eq.s32.totalorder %s65, 0
      %s68 = sadd.s32 %s67, 1
      %s69 = scalar_select %p66, %s67, %s68
      %p72 = pneg %p66
      %p73 = scmp.eq.s32.totalorder %s8, 1
      %p74 = por %p72, %p73
      %p75 = scmp.ne.s32.totalorder %s67, %s70
      %p76 = scmp.eq.s32.totalorder %s8, 0
      %p77 = por %p75, %p76
      %p78 = scmp.ne.s32.totalorder %s67, %s70
      %p79 = scmp.eq.s32.totalorder %s13, 1
      %p80 = por %p78, %p79
      %p81 = scmp.ne.s32.totalorder %s70, %s71
      %p82 = scmp.eq.s32.totalorder %s13, 0
      %p83 = por %p81, %p82
      %p84 = scmp.ne.s32.totalorder %s70, %s71
      %p85 = scmp.eq.s32.totalorder %s14, 1
      %p86 = por %p84, %p85
      %p88 = scmp.ne.s32.totalorder %s71, %s87
      %p89 = scmp.eq.s32.totalorder %s14, 0
      %p90 = por %p88, %p89
      %s91 = ssub.s32 %s15, %s34
      %s92 = ssub.s32 %s16, %s30
      %s93 = sor.u32 %s91, %s92
      %p94 = scmp.eq.s32.totalorder %s93, 0
      %s96 = sadd.s32 %s95, 1
      %s97 = scalar_select %p94, %s95, %s96
      %p100 = pneg %p94
      %p101 = scmp.eq.s32.totalorder %s8, 1
      %p102 = por %p100, %p101
      %p103 = scmp.ne.s32.totalorder %s95, %s98
      %p104 = scmp.eq.s32.totalorder %s8, 0
      %p105 = por %p103, %p104
      %p106 = scmp.ne.s32.totalorder %s95, %s98
      %p107 = scmp.eq.s32.totalorder %s13, 1
      %p108 = por %p106, %p107
      %p109 = scmp.ne.s32.totalorder %s98, %s99
      %p110 = scmp.eq.s32.totalorder %s13, 0
      %p111 = por %p109, %p110
      %p112 = scmp.ne.s32.totalorder %s98, %s99
      %p113 = scmp.eq.s32.totalorder %s14, 1
      %p114 = por %p112, %p113
      %p116 = scmp.ne.s32.totalorder %s99, %s115
      %p117 = scmp.eq.s32.totalorder %s14, 0
      %p118 = por %p116, %p117
      %p119 = scmp.le.s32.totalorder 1, %s8
      %p120 = scmp.lt.s32.totalorder %s8, 3
      %p121 = pnand %p119, %p120
      %p122 = pneg %p121
      // Predicated region
      $region9: #{forward.69} parent=5 // pred_check
        _
      $region10: #{forward.69} parent=5 // pred_check_branch
        %124 = sbr.rel (%p121) target = $region12
      $region11: #{forward.69} parent=5 // pred_region
        %s125 = ssub.s32 %s8, 1
        // Predicated region
        $region13: #{forward.69} parent=11 // pred_check
          %p126 = pneg %p55
        $region14: #{forward.69} parent=11 // pred_check_branch
          %128 = sbr.rel (%p126) target = $region16
        $region15: #{forward.69} parent=11 // pred_region
          %p129 = scmp.lt.s32.totalorder %s18, 0
          %s130 = scalar_select %p129, %s18, 0
          %p131 = scmp.lt.s32.totalorder %s20, 0
          %s132 = scalar_select %p131, %s20, 0
          %s133 = sadd.s32 %s132, %s130
          %s134 = smul.addr %s133, 4
          %s135 = scalar_lea.vmem %s0, %s134
        $region16: #{forward.69} parent=11 // pred_fallthru
          _
      $region12: #{forward.69} parent=5 // pred_fallthru
        _
      %p136 = scmp.lt.s32.totalorder %s8, 2
      // Predicated region
      $region17: #{forward.69} parent=5 // pred_check
        %p137 = pneg %p136
      $region18: #{forward.69} parent=5 // pred_check_branch
        %139 = sbr.rel (%p137) target = $region20
      $region19: #{forward.69} parent=5 // pred_region
        // Predicated region
        $region21: #{forward.69} parent=19 // pred_check
          %p140 = pneg %p77
        $region22: #{forward.69} parent=19 // pred_check_branch
          %142 = sbr.rel (%p140) target = $region24
        $region23: #{forward.69} parent=19 // pred_region
          %s143 = sand.u32 %s67, 1
          %s144 = sand.u32 %s67, 1
          %s145 = smul.addr %s144, 128
          %s146 = scalar_lea.vmem [#allocation3], %s145
          %s147 = smul.u32 16, %s17
          %s148 = smul.u32 2, %s16
          %s149 = smul.addr %s147, 4
          %s150 = sadd.s32 %s148, %s149
          %s151 = smul.addr %s150, 4
          %s152 = scalar_lea.vmem %s1, %s151
          // Predicated region
          $region25: #{forward.69} parent=23 // pred_check
            _
          $region26: #{forward.69} parent=23 // pred_check_branch
            %154 = sbr.rel (0) target = $region28
          $region27: #{forward.69} parent=23 // pred_region
            // Predicated region
            $region29: #{forward.69} parent=27 // pred_check
              _
            $region30: #{forward.69} parent=27 // pred_check_branch
              %156 = sbr.rel (0) target = $region32
            $region31: #{forward.69} parent=27 // pred_region
              // Predicated region
              $region44: #{forward.69} parent=31 // pred_check
                _
              $region45: #{forward.69} parent=31 // pred_check_branch
                %202 = sbr.rel (0) target = $region47
              $region46: #{forward.69} parent=31 // pred_region
                loop: start=0, step=1, limit=1
                $region48: #{forward.69} parent=46 // loop_pre_header
                  _
                $region49: #{forward.69} parent=46 // loop_header
                  %s204 = sphi 0, %s208
                  %p205 = scmp.ge.s32.totalorder %s204, 1
                  %s209 = sphi %s152, %s152
                  %s210 = sphi %s146, %s146
                $region50: #{forward.69} parent=46 // loop_header_branch
                  %207 = sbr.rel (%p205) target = $region54
                $region51: #{forward.69} parent=46 // loop_body
                  %v211 = vld [vmem:[%s209] sm:$0xff]
                  %212 = vst [vmem:[%s210] sm:$0xff] %v211
                  %v213 = vld [vmem:[%s209 + $0x10] sm:$0xff]
                  %214 = vst [vmem:[%s210 + $0x8] sm:$0xff] %v213
                  %v215 = vld [vmem:[%s209 + $0x20] sm:$0xff]
                  %216 = vst [vmem:[%s210 + $0x10] sm:$0xff] %v215
                  %v217 = vld [vmem:[%s209 + $0x30] sm:$0xff]
                  %218 = vst [vmem:[%s210 + $0x18] sm:$0xff] %v217
                  %v219 = vld [vmem:[%s209 + $0x40] sm:$0xff]
                  %220 = vst [vmem:[%s210 + $0x20] sm:$0xff] %v219
                  %v221 = vld [vmem:[%s209 + $0x50] sm:$0xff]
                  %222 = vst [vmem:[%s210 + $0x28] sm:$0xff] %v221
                  %v223 = vld [vmem:[%s209 + $0x60] sm:$0xff]
                  %224 = vst [vmem:[%s210 + $0x30] sm:$0xff] %v223
                  %v225 = vld [vmem:[%s209 + $0x70] sm:$0xff]
                  %226 = vst [vmem:[%s210 + $0x38] sm:$0xff] %v225
                  %v227 = vld [vmem:[%s209 + $0x80] sm:$0xff]
                  %228 = vst [vmem:[%s210 + $0x40] sm:$0xff] %v227
                  %v229 = vld [vmem:[%s209 + $0x90] sm:$0xff]
                  %230 = vst [vmem:[%s210 + $0x48] sm:$0xff] %v229
                  %v231 = vld [vmem:[%s209 + $0xa0] sm:$0xff]
                  %232 = vst [vmem:[%s210 + $0x50] sm:$0xff] %v231
                  %v233 = vld [vmem:[%s209 + $0xb0] sm:$0xff]
                  %234 = vst [vmem:[%s210 + $0x58] sm:$0xff] %v233
                  %v235 = vld [vmem:[%s209 + $0xc0] sm:$0xff]
                  %236 = vst [vmem:[%s210 + $0x60] sm:$0xff] %v235
                  %v237 = vld [vmem:[%s209 + $0xd0] sm:$0xff]
                  %238 = vst [vmem:[%s210 + $0x68] sm:$0xff] %v237
                  %v239 = vld [vmem:[%s209 + $0xe0] sm:$0xff]
                  %240 = vst [vmem:[%s210 + $0x70] sm:$0xff] %v239
                  %v241 = vld [vmem:[%s209 + $0xf0] sm:$0xff]
                  %242 = vst [vmem:[%s210 + $0x78] sm:$0xff] %v241
                $region52: #{forward.69} parent=46 // loop_footer
                  %s208 = sadd.s32 1, %s204
                $region53: #{forward.69} parent=46 // loop_footer_branch
                  %203 = sbr.rel target = $region49
                $region54: #{forward.69} parent=46 // loop_exit
                  _
              $region47: #{forward.69} parent=31 // pred_fallthru
                _
              // Predicated region
              $region55: #{forward.69} parent=31 // pred_check
                _
              $region56: #{forward.69} parent=31 // pred_check_branch
                %244 = sbr.rel target = $region58
              $region57: #{forward.69} parent=31 // pred_region
                _
              $region58: #{forward.69} parent=31 // pred_fallthru
                _
            $region32: #{forward.69} parent=27 // pred_fallthru
              _
            // Predicated region
            $region33: #{forward.69} parent=27 // pred_check
              _
            $region34: #{forward.69} parent=27 // pred_check_branch
              %158 = sbr.rel target = $region36
            $region35: #{forward.69} parent=27 // pred_region
              %s160 = ssub.s32 256, 1
              loop: start=0, step=1, limit=1
              $region37: #{forward.69} parent=35 // loop_pre_header
                _
              $region38: #{forward.69} parent=35 // loop_header
                %s162 = sphi 0, %s166
                %p163 = scmp.ge.s32.totalorder %s162, 1
                %s167 = sphi %s152, %s152
                %s168 = sphi %s146, %s146
              $region39: #{forward.69} parent=35 // loop_header_branch
                %165 = sbr.rel (%p163) target = $region43
              $region40: #{forward.69} parent=35 // loop_body
                %v169 = vld [vmem:[%s167] sm:%s160]
                %170 = vst [vmem:[%s168] sm:%s160] %v169
                %v171 = vld [vmem:[%s167 + $0x10] sm:%s160]
                %172 = vst [vmem:[%s168 + $0x8] sm:%s160] %v171
                %v173 = vld [vmem:[%s167 + $0x20] sm:%s160]
                %174 = vst [vmem:[%s168 + $0x10] sm:%s160] %v173
                %v175 = vld [vmem:[%s167 + $0x30] sm:%s160]
                %176 = vst [vmem:[%s168 + $0x18] sm:%s160] %v175
                %v177 = vld [vmem:[%s167 + $0x40] sm:%s160]
                %178 = vst [vmem:[%s168 + $0x20] sm:%s160] %v177
                %v179 = vld [vmem:[%s167 + $0x50] sm:%s160]
                %180 = vst [vmem:[%s168 + $0x28] sm:%s160] %v179
                %v181 = vld [vmem:[%s167 + $0x60] sm:%s160]
                %182 = vst [vmem:[%s168 + $0x30] sm:%s160] %v181
                %v183 = vld [vmem:[%s167 + $0x70] sm:%s160]
                %184 = vst [vmem:[%s168 + $0x38] sm:%s160] %v183
                %v185 = vld [vmem:[%s167 + $0x80] sm:%s160]
                %186 = vst [vmem:[%s168 + $0x40] sm:%s160] %v185
                %v187 = vld [vmem:[%s167 + $0x90] sm:%s160]
                %188 = vst [vmem:[%s168 + $0x48] sm:%s160] %v187
                %v189 = vld [vmem:[%s167 + $0xa0] sm:%s160]
                %190 = vst [vmem:[%s168 + $0x50] sm:%s160] %v189
                %v191 = vld [vmem:[%s167 + $0xb0] sm:%s160]
                %192 = vst [vmem:[%s168 + $0x58] sm:%s160] %v191
                %v193 = vld [vmem:[%s167 + $0xc0] sm:%s160]
                %194 = vst [vmem:[%s168 + $0x60] sm:%s160] %v193
                %v195 = vld [vmem:[%s167 + $0xd0] sm:%s160]
                %196 = vst [vmem:[%s168 + $0x68] sm:%s160] %v195
                %v197 = vld [vmem:[%s167 + $0xe0] sm:%s160]
                %198 = vst [vmem:[%s168 + $0x70] sm:%s160] %v197
                %v199 = vld [vmem:[%s167 + $0xf0] sm:%s160]
                %200 = vst [vmem:[%s168 + $0x78] sm:%s160] %v199
              $region41: #{forward.69} parent=35 // loop_footer
                %s166 = sadd.s32 1, %s162
              $region42: #{forward.69} parent=35 // loop_footer_branch
                %161 = sbr.rel target = $region38
              $region43: #{forward.69} parent=35 // loop_exit
                _
            $region36: #{forward.69} parent=27 // pred_fallthru
              _
          $region28: #{forward.69} parent=23 // pred_fallthru
            _
          %245 = vnop
        $region24: #{forward.69} parent=19 // pred_fallthru
          _
      $region20: #{forward.69} parent=5 // pred_fallthru
        _
      %p246 = scmp.le.s32.totalorder 1, %s8
      %p247 = scmp.lt.s32.totalorder %s8, 3
      %p248 = pnand %p246, %p247
      %p249 = pneg %p248
      // Predicated region
      $region59: #{forward.69} parent=5 // pred_check
        _
      $region60: #{forward.69} parent=5 // pred_check_branch
        %251 = sbr.rel (%p248) target = $region62
      $region61: #{forward.69} parent=5 // pred_region
        %s252 = ssub.s32 %s8, 1
        %s253 = sand.u32 %s70, 1
        %s254 = sand.u32 %s70, 1
        %s255 = smul.addr %s254, 128
        %s256 = scalar_lea.vmem [#allocation3], %s255
        // Predicated region
        $region63: #{forward.69} parent=61 // pred_check
          %p257 = pneg %p83
        $region64: #{forward.69} parent=61 // pred_check_branch
          %259 = sbr.rel (%p257) target = $region66
        $region65: #{forward.69} parent=61 // pred_region
          _
        $region66: #{forward.69} parent=61 // pred_fallthru
          _
        %p260 = scmp.lt.s32.totalorder %s18, 0
        %s261 = scalar_select %p260, %s18, 0
        %p262 = scmp.lt.s32.totalorder %s20, 0
        %s263 = scalar_select %p262, %s20, 0
        %s264 = sadd.s32 %s263, %s261
        %s265 = smul.addr %s264, 4
        %s266 = scalar_lea.vmem %s0, %s265
        %p267 = pneg %p55
        %p268 = pneg %p52
        %s269 = sand.u32 %s70, 1
        %s270 = sand.u32 %s70, 1
        %s271 = smul.addr %s270, 128
        %s272 = scalar_lea.vmem [#allocation3], %s271
        %p273 = pneg %p83
        %p274 = pneg %p80
        %p275 = pneg %p111
        %p276 = pneg %p108
        %s277 = smul.u32 2, %s19
        %p278 = scmp.lt.s32.totalorder %s18, 0
        %s279 = scalar_select %p278, %s18, 0
        %p280 = scmp.lt.s32.totalorder %s277, 3
        %s281 = scalar_select %p280, %s277, 3
        %s282 = smul.addr %s279, 4
        %s283 = sadd.s32 %s281, %s282
        %s284 = smul.addr %s283, 8
        %s285 = scalar_lea.vmem %s2, %s284
        %p286 = scmp.lt.s32.totalorder %s18, 0
        %s287 = scalar_select %p286, %s18, 0
        %p288 = scmp.lt.s32.totalorder %s20, 0
        %s289 = scalar_select %p288, %s20, 0
        %s290 = sadd.s32 %s289, %s287
        %s291 = smul.addr %s290, 4
        %s292 = scalar_lea.vmem %s0, %s291
        %s293 = smul.u32 16, %s20
        %s294 = smul.u32 2, %s19
        %s295 = smul.u32 2, %s19
        %p296 = scmp.lt.s32.totalorder %s18, 0
        %s297 = scalar_select %p296, %s18, 0
        %p298 = scmp.lt.s32.totalorder %s295, 3
        %s299 = scalar_select %p298, %s295, 3
        %s300 = smul.addr %s297, 4
        %s301 = sadd.s32 %s299, %s300
        %s302 = smul.addr %s301, 8
        %s303 = scalar_lea.vmem %s2, %s302
        %s304 = smul.u32 2, %s19
        %p305 = scmp.eq.s32.totalorder %s20, 0
        // Predicated region
        $region67: #{forward.69} parent=61 // pred_check
          %p306 = pneg %p305
        $region68: #{forward.69} parent=61 // pred_check_branch
          %308 = sbr.rel (%p306) target = $region70
        $region69: #{forward.69} parent=61 // pred_region
          %309 = vst [vmem:[#allocation2] sm:$0xff] 0.0
          %310 = vst [vmem:[#allocation2 + $0x8] sm:$0xff] 0.0
        $region70: #{forward.69} parent=61 // pred_fallthru
          _
        %v311 = vld [vmem:[#allocation2] sm:$0xff]
        %v312 = vld [vmem:[#allocation2 + $0x8] sm:$0xff]
        %v313 = vld [vmem:[%s292] sm:$0xf]
        %v314 = vld [vmem:[%s256] sm:$0xff]
        %v315 = vld [vmem:[%s256 + $0x8] sm:$0xff]
        %v316 = vld [vmem:[%s256 + $0x10] sm:$0xff]
        %v317 = vld [vmem:[%s256 + $0x18] sm:$0xff]
        %v318 = vld [vmem:[%s256 + $0x20] sm:$0xff]
        %v319 = vld [vmem:[%s256 + $0x28] sm:$0xff]
        %v320 = vld [vmem:[%s256 + $0x30] sm:$0xff]
        %v321 = vld [vmem:[%s256 + $0x38] sm:$0xff]
        %v322 = vld [vmem:[%s256 + $0x40] sm:$0xff]
        %v323 = vld [vmem:[%s256 + $0x48] sm:$0xff]
        %v324 = vld [vmem:[%s256 + $0x50] sm:$0xff]
        %v325 = vld [vmem:[%s256 + $0x58] sm:$0xff]
        %v326 = vld [vmem:[%s256 + $0x60] sm:$0xff]
        %v327 = vld [vmem:[%s256 + $0x68] sm:$0xff]
        %v328 = vld [vmem:[%s256 + $0x70] sm:$0xff]
        %v329 = vld [vmem:[%s256 + $0x78] sm:$0xff]
        %v346 = vunpack.c.l.b16 %v314
        %v347 = vunpack.c.h.b16 %v314
        %v348 = vunpack.c.l.b16 %v315
        %v349 = vunpack.c.h.b16 %v315
        %v350 = vunpack.c.l.b16 %v316
        %v351 = vunpack.c.h.b16 %v316
        %v352 = vunpack.c.l.b16 %v317
        %v353 = vunpack.c.h.b16 %v317
        %v354 = vunpack.c.l.b16 %v318
        %v355 = vunpack.c.h.b16 %v318
        %v356 = vunpack.c.l.b16 %v319
        %v357 = vunpack.c.h.b16 %v319
        %v358 = vunpack.c.l.b16 %v320
        %v359 = vunpack.c.h.b16 %v320
        %v360 = vunpack.c.l.b16 %v321
        %v361 = vunpack.c.h.b16 %v321
        %v362 = vunpack.c.l.b16 %v322
        %v363 = vunpack.c.h.b16 %v322
        %v364 = vunpack.c.l.b16 %v323
        %v365 = vunpack.c.h.b16 %v323
        %v366 = vunpack.c.l.b16 %v324
        %v367 = vunpack.c.h.b16 %v324
        %v368 = vunpack.c.l.b16 %v325
        %v369 = vunpack.c.h.b16 %v325
        %v370 = vunpack.c.l.b16 %v326
        %v371 = vunpack.c.h.b16 %v326
        %v372 = vunpack.c.l.b16 %v327
        %v373 = vunpack.c.h.b16 %v327
        %v374 = vunpack.c.l.b16 %v328
        %v375 = vunpack.c.h.b16 %v328
        %v376 = vunpack.c.l.b16 %v329
        %v377 = vunpack.c.h.b16 %v329
        %v378 = vpack.c.b16 %v348, %v346
        %v379 = vpack.c.b16 %v349, %v347
        %v380 = vpack.c.b16 %v352, %v350
        %v381 = vpack.c.b16 %v353, %v351
        %v382 = vpack.c.b16 %v356, %v354
        %v383 = vpack.c.b16 %v357, %v355
        %v384 = vpack.c.b16 %v360, %v358
        %v385 = vpack.c.b16 %v361, %v359
        %v386 = vpack.c.b16 %v364, %v362
        %v387 = vpack.c.b16 %v365, %v363
        %v388 = vpack.c.b16 %v368, %v366
        %v389 = vpack.c.b16 %v369, %v367
        %v390 = vpack.c.b16 %v372, %v370
        %v391 = vpack.c.b16 %v373, %v371
        %v392 = vpack.c.b16 %v376, %v374
        %v393 = vpack.c.b16 %v377, %v375
        %410 = vmatpush.bf16.msra.mxu0 %v392
        %411 = vmatpush.bf16.msra.mxu0 %v390
        %412 = vmatpush.bf16.msra.mxu0 %v388
        %413 = vmatpush.bf16.msra.mxu0 %v386
        %414 = vmatpush.bf16.msra.mxu0 %v384
        %415 = vmatpush.bf16.msra.mxu0 %v382
        %416 = vmatpush.bf16.msra.mxu0 %v380
        %417 = vmatpush.bf16.msra.mxu0 %v378
        %418 = vmatmul.bf16.gmra.mxu0 %v313
        %v419 = vpop.f32.mrf.mxu0
        %v420 = vadd.f32 0.0, %v419
        %v421 = vpop.f32.mrf.mxu0
        %422 = vdwg.mxu0
        %423 = vmatpush.bf16.msra.mxu0 %v393
        %424 = vmatpush.bf16.msra.mxu0 %v391
        %425 = vmatpush.bf16.msra.mxu0 %v389
        %426 = vmatpush.bf16.msra.mxu0 %v387
        %427 = vmatpush.bf16.msra.mxu0 %v385
        %428 = vmatpush.bf16.msra.mxu0 %v383
        %429 = vmatpush.bf16.msra.mxu0 %v381
        %430 = vmatpush.bf16.msra.mxu0 %v379
        %431 = vmatmul.bf16.gmra.mxu0 %v313
        %v432 = vpop.f32.mrf.mxu0
        %v433 = vadd.f32 0.0, %v432
        %v434 = vpop.f32.mrf.mxu0
        %435 = vdwg.mxu0
        %v436 = vadd.f32 %v311, %v420
        %v437 = vadd.f32 %v312, %v433
        %438 = vst [vmem:[#allocation2] sm:$0xff] %v436
        %439 = vst [vmem:[#allocation2 + $0x8] sm:$0xff] %v437
        // Predicated region
        $region71: #{forward.69} parent=61 // pred_check
          %p440 = pneg %p305
        $region72: #{forward.69} parent=61 // pred_check_branch
          %442 = sbr.rel (%p440) target = $region74
        $region73: #{forward.69} parent=61 // pred_region
          %v443 = vld [vmem:[#allocation2] sm:$0xff]
          %v444 = vld [vmem:[#allocation2 + $0x8] sm:$0xff]
          %445 = vst [vmem:[%s303] sm:$0xff] %v443
          %446 = vst [vmem:[%s303 + $0x8] sm:$0xff] %v444
        $region74: #{forward.69} parent=61 // pred_fallthru
          _
        %s447 = smul.u32 2, %s19
        %p448 = scmp.lt.s32.totalorder %s18, 0
        %s449 = scalar_select %p448, %s18, 0
        %p450 = scmp.lt.s32.totalorder %s447, 3
        %s451 = scalar_select %p450, %s447, 3
        %s452 = smul.addr %s449, 4
        %s453 = sadd.s32 %s451, %s452
        %s454 = smul.addr %s453, 8
        %s455 = scalar_lea.vmem %s2, %s454
        // Predicated region
        $region75: #{forward.69} parent=61 // pred_check
          %p456 = pneg %p108
        $region76: #{forward.69} parent=61 // pred_check_branch
          %458 = sbr.rel (%p456) target = $region78
        $region77: #{forward.69} parent=61 // pred_region
          %s459 = smul.u32 2, %s19
        $region78: #{forward.69} parent=61 // pred_fallthru
          _
      $region62: #{forward.69} parent=5 // pred_fallthru
        _
      %p460 = scmp.le.s32.totalorder 2, %s8
      // Predicated region
      $region79: #{forward.69} parent=5 // pred_check
        %p461 = pneg %p460
      $region80: #{forward.69} parent=5 // pred_check_branch
        %463 = sbr.rel (%p461) target = $region82
      $region81: #{forward.69} parent=5 // pred_region
        %s464 = ssub.s32 %s8, 2
        // Predicated region
        $region83: #{forward.69} parent=81 // pred_check
          %p465 = pneg %p114
        $region84: #{forward.69} parent=81 // pred_check_branch
          %467 = sbr.rel (%p465) target = $region86
        $region85: #{forward.69} parent=81 // pred_region
          %s468 = smul.u32 2, %s22
          %p469 = scmp.lt.s32.totalorder %s21, 0
          %s470 = scalar_select %p469, %s21, 0
          %p471 = scmp.lt.s32.totalorder %s468, 3
          %s472 = scalar_select %p471, %s468, 3
          %s473 = smul.addr %s470, 4
          %s474 = sadd.s32 %s472, %s473
          %s475 = smul.addr %s474, 8
          %s476 = scalar_lea.vmem %s2, %s475
        $region86: #{forward.69} parent=81 // pred_fallthru
          _
      $region82: #{forward.69} parent=5 // pred_fallthru
        _
    $region6: #{forward.69} parent=1 // loop_footer
      %s12 = sadd.s32 1, %s8
    $region7: #{forward.69} parent=1 // loop_footer_branch
      %7 = sbr.rel target = $region3
    $region8: #{forward.69} parent=1 // loop_exit
      _

// kernel: forward.67
$region0: #{forward.67}
  #allocation0 [shape = 'u32[]', space=smem, size = 0x4, offset = 0x4, fixed_abs, tag = 'smem constant byte address 0x4 - core index']
  #allocation1 [shape = 'u32[72,128]{1,0:T(1,128)}', space=vmem, size = 0x9000, scoped, tag = 'internal scratch']
  #allocation2 [shape = 'f32[8,128]{1,0:T(8,128)}', space=vmem, size = 0x1000, scoped, tag = 'scratch operand']
  %s0 = inlined_call_operand.vmem [shape: bf16[8,640], index: 0, kind: input, shape index: {}]
  %s1 = inlined_call_operand.vmem [shape: bf16[640,128], index: 1, kind: input, shape index: {}]
  %s2 = inlined_call_operand.vmem [shape: f32[8,128], index: 2, kind: output, shape index: {}]
  %s3 = sld [smem:[#allocation0]]
  $region26: #{forward.67} parent=0
    _
  %s5 = ssub.s32 1, %s3
  %s6 = scalar_select 0, %s5, %s3
  // Predicated region
  $region2: #{forward.67} parent=0 // pred_check
    _
  $region3: #{forward.67} parent=0 // pred_check_branch
    %8 = sbr.rel (0) target = $region5
  $region4: #{forward.67} parent=0 // pred_region
    _
  $region5: #{forward.67} parent=0 // pred_fallthru
    _
  // Predicated region
  $region6: #{forward.67} parent=0 // pred_check
    _
  $region7: #{forward.67} parent=0 // pred_check_branch
    %10 = sbr.rel (0) target = $region9
  $region8: #{forward.67} parent=0 // pred_region
    _
  $region9: #{forward.67} parent=0 // pred_fallthru
    _
  %p11 = scmp.eq.s32.totalorder 0, 0
  // Predicated region
  $region10: #{forward.67} parent=0 // pred_check
    %p12 = pneg %p11
  $region11: #{forward.67} parent=0 // pred_check_branch
    %14 = sbr.rel (%p12) target = $region13
  $region12: #{forward.67} parent=0 // pred_region
    %15 = vst [vmem:[#allocation2] sm:$0xff] 0.0
  $region13: #{forward.67} parent=0 // pred_fallthru
    _
  %v16 = vld [vmem:[#allocation2] sm:$0xff]
  %v17 = vld [vmem:[%s0] sm:$0xff]
  %v18 = vld [vmem:[%s0 + $0x8] sm:$0xff]
  %v19 = vld [vmem:[%s0 + $0x10] sm:$0xf]
  %v20 = vld [vmem:[%s1] sm:$0xf]
  %v21 = vld [vmem:[%s1 + $0x4] sm:$0xf]
  %v22 = vld [vmem:[%s1 + $0x8] sm:$0xf]
  %v23 = vld [vmem:[%s1 + $0xc] sm:$0xf]
  %v24 = vld [vmem:[%s1 + $0x10] sm:$0xf]
  %v25 = vld [vmem:[%s1 + $0x14] sm:$0xf]
  %v26 = vld [vmem:[%s1 + $0x18] sm:$0xf]
  %v27 = vld [vmem:[%s1 + $0x1c] sm:$0xf]
  %v28 = vld [vmem:[%s1 + $0x20] sm:$0xf]
  %v29 = vld [vmem:[%s1 + $0x24] sm:$0xf]
  %v30 = vld [vmem:[%s1 + $0x28] sm:$0xf]
  %v31 = vld [vmem:[%s1 + $0x2c] sm:$0xf]
  %v32 = vld [vmem:[%s1 + $0x30] sm:$0xf]
  %v33 = vld [vmem:[%s1 + $0x34] sm:$0xf]
  %v34 = vld [vmem:[%s1 + $0x38] sm:$0xf]
  %v35 = vld [vmem:[%s1 + $0x3c] sm:$0xf]
  %v36 = vld [vmem:[%s1 + $0x40] sm:$0xf]
  %v37 = vld [vmem:[%s1 + $0x44] sm:$0xf]
  %v38 = vld [vmem:[%s1 + $0x48] sm:$0xf]
  %v39 = vld [vmem:[%s1 + $0x4c] sm:$0xf]
  %v40 = vld [vmem:[%s1 + $0x50] sm:$0xf]
  %v41 = vld [vmem:[%s1 + $0x54] sm:$0xf]
  %v42 = vld [vmem:[%s1 + $0x58] sm:$0xf]
  %v43 = vld [vmem:[%s1 + $0x5c] sm:$0xf]
  %v44 = vld [vmem:[%s1 + $0x60] sm:$0xf]
  %v45 = vld [vmem:[%s1 + $0x64] sm:$0xf]
  %v46 = vld [vmem:[%s1 + $0x68] sm:$0xf]
  %v47 = vld [vmem:[%s1 + $0x6c] sm:$0xf]
  %v48 = vld [vmem:[%s1 + $0x70] sm:$0xf]
  %v49 = vld [vmem:[%s1 + $0x74] sm:$0xf]
  %v50 = vld [vmem:[%s1 + $0x78] sm:$0xf]
  %v51 = vld [vmem:[%s1 + $0x7c] sm:$0xf]
  %v52 = vld [vmem:[%s1 + $0x80] sm:$0xf]
  %v53 = vld [vmem:[%s1 + $0x84] sm:$0xf]
  %v54 = vld [vmem:[%s1 + $0x88] sm:$0xf]
  %v55 = vld [vmem:[%s1 + $0x8c] sm:$0xf]
  %v56 = vld [vmem:[%s1 + $0x90] sm:$0xf]
  %v57 = vld [vmem:[%s1 + $0x94] sm:$0xf]
  %v58 = vld [vmem:[%s1 + $0x98] sm:$0xf]
  %v59 = vld [vmem:[%s1 + $0x9c] sm:$0xf]
  %v60 = vld [vmem:[%s1 + $0xa0] sm:$0xf]
  %v61 = vld [vmem:[%s1 + $0xa4] sm:$0xf]
  %v62 = vld [vmem:[%s1 + $0xa8] sm:$0xf]
  %v63 = vld [vmem:[%s1 + $0xac] sm:$0xf]
  %v64 = vld [vmem:[%s1 + $0xb0] sm:$0xf]
  %v65 = vld [vmem:[%s1 + $0xb4] sm:$0xf]
  %v66 = vld [vmem:[%s1 + $0xb8] sm:$0xf]
  %v67 = vld [vmem:[%s1 + $0xbc] sm:$0xf]
  %v68 = vld [vmem:[%s1 + $0xc0] sm:$0xf]
  %v69 = vld [vmem:[%s1 + $0xc4] sm:$0xf]
  %v70 = vld [vmem:[%s1 + $0xc8] sm:$0xf]
  %v71 = vld [vmem:[%s1 + $0xcc] sm:$0xf]
  %v72 = vld [vmem:[%s1 + $0xd0] sm:$0xf]
  %v73 = vld [vmem:[%s1 + $0xd4] sm:$0xf]
  %v74 = vld [vmem:[%s1 + $0xd8] sm:$0xf]
  %v75 = vld [vmem:[%s1 + $0xdc] sm:$0xf]
  %v76 = vld [vmem:[%s1 + $0xe0] sm:$0xf]
  %v77 = vld [vmem:[%s1 + $0xe4] sm:$0xf]
  %v78 = vld [vmem:[%s1 + $0xe8] sm:$0xf]
  %v79 = vld [vmem:[%s1 + $0xec] sm:$0xf]
  %v80 = vld [vmem:[%s1 + $0xf0] sm:$0xf]
  %v81 = vld [vmem:[%s1 + $0xf4] sm:$0xf]
  %v82 = vld [vmem:[%s1 + $0xf8] sm:$0xf]
  %v83 = vld [vmem:[%s1 + $0xfc] sm:$0xf]
  %v84 = vld [vmem:[%s1 + $0x100] sm:$0xf]
  %v85 = vld [vmem:[%s1 + $0x104] sm:$0xf]
  %v86 = vld [vmem:[%s1 + $0x108] sm:$0xf]
  %v87 = vld [vmem:[%s1 + $0x10c] sm:$0xf]
  %v88 = vld [vmem:[%s1 + $0x110] sm:$0xf]
  %v89 = vld [vmem:[%s1 + $0x114] sm:$0xf]
  %v90 = vld [vmem:[%s1 + $0x118] sm:$0xf]
  %v91 = vld [vmem:[%s1 + $0x11c] sm:$0xf]
  %v92 = vld [vmem:[%s1 + $0x120] sm:$0xf]
  %v93 = vld [vmem:[%s1 + $0x124] sm:$0xf]
  %v94 = vld [vmem:[%s1 + $0x128] sm:$0xf]
  %v95 = vld [vmem:[%s1 + $0x12c] sm:$0xf]
  %v96 = vld [vmem:[%s1 + $0x130] sm:$0xf]
  %v97 = vld [vmem:[%s1 + $0x134] sm:$0xf]
  %v98 = vld [vmem:[%s1 + $0x138] sm:$0xf]
  %v99 = vld [vmem:[%s1 + $0x13c] sm:$0xf]
  %v103 = vunpack.c.l.b16 %v17
  %v104 = vunpack.c.h.b16 %v17
  %v105 = vunpack.c.l.b16 %v18
  %v106 = vunpack.c.h.b16 %v18
  %v107 = vunpack.c.l.b16 %v19
  %v108 = vpack.c.b16 %v103, %v103
  %v109 = vpack.c.b16 %v104, %v104
  %v110 = vpack.c.b16 %v105, %v105
  %v111 = vpack.c.b16 %v106, %v106
  %v112 = vpack.c.b16 %v107, %v107
  %v198 = vunpack.c.l.b16 %v20
  %v199 = vunpack.c.l.b16 %v21
  %v200 = vunpack.c.l.b16 %v22
  %v201 = vunpack.c.l.b16 %v23
  %v202 = vunpack.c.l.b16 %v24
  %v203 = vunpack.c.l.b16 %v25
  %v204 = vunpack.c.l.b16 %v26
  %v205 = vunpack.c.l.b16 %v27
  %v206 = vunpack.c.l.b16 %v28
  %v207 = vunpack.c.l.b16 %v29
  %v208 = vunpack.c.l.b16 %v30
  %v209 = vunpack.c.l.b16 %v31
  %v210 = vunpack.c.l.b16 %v32
  %v211 = vunpack.c.l.b16 %v33
  %v212 = vunpack.c.l.b16 %v34
  %v213 = vunpack.c.l.b16 %v35
  %v214 = vunpack.c.l.b16 %v36
  %v215 = vunpack.c.l.b16 %v37
  %v216 = vunpack.c.l.b16 %v38
  %v217 = vunpack.c.l.b16 %v39
  %v218 = vunpack.c.l.b16 %v40
  %v219 = vunpack.c.l.b16 %v41
  %v220 = vunpack.c.l.b16 %v42
  %v221 = vunpack.c.l.b16 %v43
  %v222 = vunpack.c.l.b16 %v44
  %v223 = vunpack.c.l.b16 %v45
  %v224 = vunpack.c.l.b16 %v46
  %v225 = vunpack.c.l.b16 %v47
  %v226 = vunpack.c.l.b16 %v48
  %v227 = vunpack.c.l.b16 %v49
  %v228 = vunpack.c.l.b16 %v50
  %v229 = vunpack.c.l.b16 %v51
  %v230 = vunpack.c.l.b16 %v52
  %v231 = vunpack.c.l.b16 %v53
  %v232 = vunpack.c.l.b16 %v54
  %v233 = vunpack.c.l.b16 %v55
  %v234 = vunpack.c.l.b16 %v56
  %v235 = vunpack.c.l.b16 %v57
  %v236 = vunpack.c.l.b16 %v58
  %v237 = vunpack.c.l.b16 %v59
  %v238 = vunpack.c.l.b16 %v60
  %v239 = vunpack.c.l.b16 %v61
  %v240 = vunpack.c.l.b16 %v62
  %v241 = vunpack.c.l.b16 %v63
  %v242 = vunpack.c.l.b16 %v64
  %v243 = vunpack.c.l.b16 %v65
  %v244 = vunpack.c.l.b16 %v66
  %v245 = vunpack.c.l.b16 %v67
  %v246 = vunpack.c.l.b16 %v68
  %v247 = vunpack.c.l.b16 %v69
  %v248 = vunpack.c.l.b16 %v70
  %v249 = vunpack.c.l.b16 %v71
  %v250 = vunpack.c.l.b16 %v72
  %v251 = vunpack.c.l.b16 %v73
  %v252 = vunpack.c.l.b16 %v74
  %v253 = vunpack.c.l.b16 %v75
  %v254 = vunpack.c.l.b16 %v76
  %v255 = vunpack.c.l.b16 %v77
  %v256 = vunpack.c.l.b16 %v78
  %v257 = vunpack.c.l.b16 %v79
  %v258 = vunpack.c.l.b16 %v80
  %v259 = vunpack.c.l.b16 %v81
  %v260 = vunpack.c.l.b16 %v82
  %v261 = vunpack.c.l.b16 %v83
  %v262 = vunpack.c.l.b16 %v84
  %v263 = vunpack.c.l.b16 %v85
  %v264 = vunpack.c.l.b16 %v86
  %v265 = vunpack.c.l.b16 %v87
  %v266 = vunpack.c.l.b16 %v88
  %v267 = vunpack.c.l.b16 %v89
  %v268 = vunpack.c.l.b16 %v90
  %v269 = vunpack.c.l.b16 %v91
  %v270 = vunpack.c.l.b16 %v92
  %v271 = vunpack.c.l.b16 %v93
  %v272 = vunpack.c.l.b16 %v94
  %v273 = vunpack.c.l.b16 %v95
  %v274 = vunpack.c.l.b16 %v96
  %v275 = vunpack.c.l.b16 %v97
  %v276 = vunpack.c.l.b16 %v98
  %v277 = vunpack.c.l.b16 %v99
  %v278 = vpack.c.b16 %v199, %v198
  %v279 = vpack.c.b16 %v201, %v200
  %v280 = vpack.c.b16 %v203, %v202
  %v281 = vpack.c.b16 %v205, %v204
  %v282 = vpack.c.b16 %v207, %v206
  %v283 = vpack.c.b16 %v209, %v208
  %v284 = vpack.c.b16 %v211, %v210
  %v285 = vpack.c.b16 %v213, %v212
  %v286 = vpack.c.b16 %v215, %v214
  %v287 = vpack.c.b16 %v217, %v216
  %v288 = vpack.c.b16 %v219, %v218
  %v289 = vpack.c.b16 %v221, %v220
  %v290 = vpack.c.b16 %v223, %v222
  %v291 = vpack.c.b16 %v225, %v224
  %v292 = vpack.c.b16 %v227, %v226
  %v293 = vpack.c.b16 %v229, %v228
  %v294 = vpack.c.b16 %v231, %v230
  %v295 = vpack.c.b16 %v233, %v232
  %v296 = vpack.c.b16 %v235, %v234
  %v297 = vpack.c.b16 %v237, %v236
  %v298 = vpack.c.b16 %v239, %v238
  %v299 = vpack.c.b16 %v241, %v240
  %v300 = vpack.c.b16 %v243, %v242
  %v301 = vpack.c.b16 %v245, %v244
  %v302 = vpack.c.b16 %v247, %v246
  %v303 = vpack.c.b16 %v249, %v248
  %v304 = vpack.c.b16 %v251, %v250
  %v305 = vpack.c.b16 %v253, %v252
  %v306 = vpack.c.b16 %v255, %v254
  %v307 = vpack.c.b16 %v257, %v256
  %v308 = vpack.c.b16 %v259, %v258
  %v309 = vpack.c.b16 %v261, %v260
  %v310 = vpack.c.b16 %v263, %v262
  %v311 = vpack.c.b16 %v265, %v264
  %v312 = vpack.c.b16 %v267, %v266
  %v313 = vpack.c.b16 %v269, %v268
  %v314 = vpack.c.b16 %v271, %v270
  %v315 = vpack.c.b16 %v273, %v272
  %v316 = vpack.c.b16 %v275, %v274
  %v317 = vpack.c.b16 %v277, %v276
  %358 = vmatpush.bf16.msra.mxu0 %v285
  %359 = vmatpush.bf16.msra.mxu0 %v284
  %360 = vmatpush.bf16.msra.mxu0 %v283
  %361 = vmatpush.bf16.msra.mxu0 %v282
  %362 = vmatpush.bf16.msra.mxu0 %v281
  %363 = vmatpush.bf16.msra.mxu0 %v280
  %364 = vmatpush.bf16.msra.mxu0 %v279
  %365 = vmatpush.bf16.msra.mxu0 %v278
  %366 = vmatmul.bf16.gmra.mxu0 %v108
  %v367 = vpop.f32.mrf.mxu0
  %v368 = vadd.f32 0.0, %v367
  %v369 = vpop.f32.mrf.mxu0
  %370 = vdwg.mxu0
  %371 = vmatpush.bf16.msra.mxu0 %v293
  %372 = vmatpush.bf16.msra.mxu0 %v292
  %373 = vmatpush.bf16.msra.mxu0 %v291
  %374 = vmatpush.bf16.msra.mxu0 %v290
  %375 = vmatpush.bf16.msra.mxu0 %v289
  %376 = vmatpush.bf16.msra.mxu0 %v288
  %377 = vmatpush.bf16.msra.mxu0 %v287
  %378 = vmatpush.bf16.msra.mxu0 %v286
  %379 = vmatmul.bf16.gmra.mxu0 %v109
  %v380 = vpop.f32.mrf.mxu0
  %v381 = vadd.f32 %v368, %v380
  %v382 = vpop.f32.mrf.mxu0
  %383 = vdwg.mxu0
  %384 = vmatpush.bf16.msra.mxu0 %v301
  %385 = vmatpush.bf16.msra.mxu0 %v300
  %386 = vmatpush.bf16.msra.mxu0 %v299
  %387 = vmatpush.bf16.msra.mxu0 %v298
  %388 = vmatpush.bf16.msra.mxu0 %v297
  %389 = vmatpush.bf16.msra.mxu0 %v296
  %390 = vmatpush.bf16.msra.mxu0 %v295
  %391 = vmatpush.bf16.msra.mxu0 %v294
  %392 = vmatmul.bf16.gmra.mxu0 %v110
  %v393 = vpop.f32.mrf.mxu0
  %v394 = vadd.f32 %v381, %v393
  %v395 = vpop.f32.mrf.mxu0
  %396 = vdwg.mxu0
  %397 = vmatpush.bf16.msra.mxu0 %v309
  %398 = vmatpush.bf16.msra.mxu0 %v308
  %399 = vmatpush.bf16.msra.mxu0 %v307
  %400 = vmatpush.bf16.msra.mxu0 %v306
  %401 = vmatpush.bf16.msra.mxu0 %v305
  %402 = vmatpush.bf16.msra.mxu0 %v304
  %403 = vmatpush.bf16.msra.mxu0 %v303
  %404 = vmatpush.bf16.msra.mxu0 %v302
  %405 = vmatmul.bf16.gmra.mxu0 %v111
  %v406 = vpop.f32.mrf.mxu0
  %v407 = vadd.f32 %v394, %v406
  %v408 = vpop.f32.mrf.mxu0
  %409 = vdwg.mxu0
  %410 = vmatpush.bf16.msra.mxu0 %v317
  %411 = vmatpush.bf16.msra.mxu0 %v316
  %412 = vmatpush.bf16.msra.mxu0 %v315
  %413 = vmatpush.bf16.msra.mxu0 %v314
  %414 = vmatpush.bf16.msra.mxu0 %v313
  %415 = vmatpush.bf16.msra.mxu0 %v312
  %416 = vmatpush.bf16.msra.mxu0 %v311
  %417 = vmatpush.bf16.msra.mxu0 %v310
  %418 = vmatmul.bf16.gmra.mxu0 %v112
  %v419 = vpop.f32.mrf.mxu0
  %v420 = vadd.f32 %v407, %v419
  %v421 = vpop.f32.mrf.mxu0
  %422 = vdwg.mxu0
  %v423 = vadd.f32 %v16, %v420
  %424 = vst [vmem:[#allocation2] sm:$0xff] %v423
  // Predicated region
  $region14: #{forward.67} parent=0 // pred_check
    %p425 = pneg %p11
  $region15: #{forward.67} parent=0 // pred_check_branch
    %427 = sbr.rel (%p425) target = $region17
  $region16: #{forward.67} parent=0 // pred_region
    %v428 = vld [vmem:[#allocation2] sm:$0xff]
    %429 = vst [vmem:[%s2] sm:$0xff] %v428
  $region17: #{forward.67} parent=0 // pred_fallthru
    _
  // Predicated region
  $region18: #{forward.67} parent=0 // pred_check
    _
  $region19: #{forward.67} parent=0 // pred_check_branch
    %431 = sbr.rel (0) target = $region21
  $region20: #{forward.67} parent=0 // pred_region
    _
  $region21: #{forward.67} parent=0 // pred_fallthru
    _
  // Predicated region
  $region22: #{forward.67} parent=0 // pred_check
    _
  $region23: #{forward.67} parent=0 // pred_check_branch
    %433 = sbr.rel (0) target = $region25
  $region24: #{forward.67} parent=0 // pred_region
    _
  $region25: #{forward.67} parent=0 // pred_fallthru
    _

// kernel: forward.72
$region0: #{forward.72}
  #allocation0 [shape = 'u32[]', space=smem, size = 0x4, offset = 0x4, fixed_abs, tag = 'smem constant byte address 0x4 - core index']
  #allocation1 [shape = 'u32[72,128]{1,0:T(1,128)}', space=vmem, size = 0x9000, scoped, tag = 'internal scratch']
  %s0 = inlined_call_operand.vmem [shape: f32[8,512], index: 0, kind: input, shape index: {}]
  %s1 = inlined_call_operand.vmem [shape: f32[1,512], index: 1, kind: input, shape index: {}]
  %s2 = inlined_call_operand.vmem [shape: f32[1,512], index: 2, kind: input, shape index: {}]
  %s3 = inlined_call_operand.vmem [shape: f32[8,512], index: 3, kind: input, shape index: {}]
  %s4 = inlined_call_operand.vmem [shape: f32[8,512], index: 4, kind: output, shape index: {}]
  %s5 = sld [smem:[#allocation0]]
  $region26: #{forward.72} parent=0
    _
  %s7 = ssub.s32 1, %s5
  %s8 = scalar_select 0, %s7, %s5
  // Predicated region
  $region2: #{forward.72} parent=0 // pred_check
    _
  $region3: #{forward.72} parent=0 // pred_check_branch
    %10 = sbr.rel (0) target = $region5
  $region4: #{forward.72} parent=0 // pred_region
    _
  $region5: #{forward.72} parent=0 // pred_fallthru
    _
  // Predicated region
  $region6: #{forward.72} parent=0 // pred_check
    _
  $region7: #{forward.72} parent=0 // pred_check_branch
    %12 = sbr.rel (0) target = $region9
  $region8: #{forward.72} parent=0 // pred_region
    _
  $region9: #{forward.72} parent=0 // pred_fallthru
    _
  // Predicated region
  $region10: #{forward.72} parent=0 // pred_check
    _
  $region11: #{forward.72} parent=0 // pred_check_branch
    %14 = sbr.rel (0) target = $region13
  $region12: #{forward.72} parent=0 // pred_region
    _
  $region13: #{forward.72} parent=0 // pred_fallthru
    _
  // Predicated region
  $region14: #{forward.72} parent=0 // pred_check
    _
  $region15: #{forward.72} parent=0 // pred_check_branch
    %16 = sbr.rel (0) target = $region17
  $region16: #{forward.72} parent=0 // pred_region
    _
  $region17: #{forward.72} parent=0 // pred_fallthru
    _
  %v17 = vld [vmem:[%s0] sm:$0xff]
  %v18 = vld [vmem:[%s0 + $0x8] sm:$0xff]
  %v19 = vld [vmem:[%s0 + $0x10] sm:$0xff]
  %v20 = vld [vmem:[%s0 + $0x18] sm:$0xff]
  %v21 = vld [vmem:[%s1] sm:$0xf]
  %v23 = vperm.slane %v21, 0
  %v24 = vperm.slane %v21, 1
  %v25 = vperm.slane %v21, 2
  %v26 = vperm.slane %v21, 3
  %v31 = vmul.f32 %v17, %v23
  %v32 = vmul.f32 %v18, %v24
  %v33 = vmul.f32 %v19, %v25
  %v34 = vmul.f32 %v20, %v26
  %v35 = vld [vmem:[%s2] sm:$0xf]
  %v37 = vperm.slane %v35, 0
  %v38 = vperm.slane %v35, 1
  %v39 = vperm.slane %v35, 2
  %v40 = vperm.slane %v35, 3
  %v45 = vadd.f32 %v31, %v37
  %v46 = vadd.f32 %v32, %v38
  %v47 = vadd.f32 %v33, %v39
  %v48 = vadd.f32 %v34, %v40
  %v49 = vld [vmem:[%s3] sm:$0xff]
  %v50 = vld [vmem:[%s3 + $0x8] sm:$0xff]
  %v51 = vld [vmem:[%s3 + $0x10] sm:$0xff]
  %v52 = vld [vmem:[%s3 + $0x18] sm:$0xff]
  %v53 = vadd.f32 %v45, %v49
  %v54 = vadd.f32 %v46, %v50
  %v55 = vadd.f32 %v47, %v51
  %v56 = vadd.f32 %v48, %v52
  %vm57 = vcmp.ge.f32.partialorder %v53, 0.0
  %vm58 = vcmp.ge.f32.partialorder %v54, 0.0
  %vm59 = vcmp.ge.f32.partialorder %v55, 0.0
  %vm60 = vcmp.ge.f32.partialorder %v56, 0.0
  %v61 = vmul.f32 %v53, 0.2
  %v62 = vmul.f32 %v54, 0.2
  %v63 = vmul.f32 %v55, 0.2
  %v64 = vmul.f32 %v56, 0.2
  %v65 = vsel %vm57, %v53, %v61
  %v66 = vsel %vm58, %v54, %v62
  %v67 = vsel %vm59, %v55, %v63
  %v68 = vsel %vm60, %v56, %v64
  %69 = vst [vmem:[%s4] sm:$0xff] %v65
  %70 = vst [vmem:[%s4 + $0x8] sm:$0xff] %v66
  %71 = vst [vmem:[%s4 + $0x10] sm:$0xff] %v67
  %72 = vst [vmem:[%s4 + $0x18] sm:$0xff] %v68
  // Predicated region
  $region18: #{forward.72} parent=0 // pred_check
    _
  $region19: #{forward.72} parent=0 // pred_check_branch
    %74 = sbr.rel (0) target = $region21
  $region20: #{forward.72} parent=0 // pred_region
    _
  $region21: #{forward.72} parent=0 // pred_fallthru
    _
  // Predicated region
  $region22: #{forward.72} parent=0 // pred_check
    _
  $region23: #{forward.72} parent=0 // pred_check_branch
    %76 = sbr.rel (0) target = $region25
  $region24: #{forward.72} parent=0 // pred_region
    _
  $region25: #{forward.72} parent=0 // pred_fallthru
    _

// kernel: forward.73
$region0: #{forward.73}
  #allocation0 [shape = 'u32[]', space=smem, size = 0x4, offset = 0x4, fixed_abs, tag = 'smem constant byte address 0x4 - core index']
  #allocation1 [shape = 'u32[72,128]{1,0:T(1,128)}', space=vmem, size = 0x9000, scoped, tag = 'internal scratch']
  #allocation2 [shape = 'f32[8,128]{1,0:T(8,128)}', space=vmem, size = 0x1000, scoped, tag = 'scratch operand']
  %s0 = inlined_call_operand.vmem [shape: bf16[8,26624], index: 0, kind: input, shape index: {}]
  %s1 = inlined_call_operand.vmem [shape: bf16[26624,128], index: 1, kind: input, shape index: {}]
  %s2 = inlined_call_operand.vmem [shape: f32[8,128], index: 2, kind: output, shape index: {}]
  %s3 = sld [smem:[#allocation0]]
  $region49: #{forward.73} parent=0
    _
  %s5 = ssub.s32 1, %s3
  %s6 = scalar_select 0, %s5, %s3
  loop: start=0, step=1, limit=15
  $region2: #{forward.73} parent=0 // loop_pre_header
    _
  $region3: #{forward.73} parent=0 // loop_header
    %s8 = sphi 0, %s12
    %p9 = scmp.ge.s32.totalorder %s8, 15
    %s15 = sphi 0, %s34
    %s16 = sphi 0, %s30
    %s17 = sphi 0, %s26
    %s18 = sphi 0, %s15
    %s19 = sphi 0, %s16
    %s20 = sphi 0, %s17
    %s21 = sphi 0, %s18
    %s22 = sphi 0, %s19
    %s23 = sphi 0, %s20
    %s39 = sphi 0, %s41
    %s42 = sphi 0, %s39
    %s43 = sphi 0, %s42
    %s59 = sphi 0, %s43
    %s67 = sphi 0, %s69
    %s70 = sphi 0, %s67
    %s71 = sphi 0, %s70
    %s87 = sphi 0, %s71
    %s95 = sphi 0, %s97
    %s98 = sphi 0, %s95
    %s99 = sphi 0, %s98
    %s115 = sphi 0, %s99
  $region4: #{forward.73} parent=0 // loop_header_branch
    %11 = sbr.rel (%p9) target = $region8
  $region5: #{forward.73} parent=0 // loop_body
    %s13 = ssub.s32 %s8, 1
    %s14 = ssub.s32 %s8, 2
    %s24 = sadd.s32 1, %s17
    %p25 = scmp.ge.s32.totalorder %s24, 13
    %s26 = scalar_select %p25, 0, %s24
    %s27 = sadd.s32 1, %s16
    %s28 = scalar_select %p25, %s27, %s16
    %p29 = scmp.ge.s32.totalorder %s28, 1
    %s30 = scalar_select %p29, 0, %s28
    %s31 = sadd.s32 1, %s15
    %s32 = scalar_select %p29, %s31, %s15
    %p33 = scmp.ge.s32.totalorder %s32, 1
    %s34 = scalar_select %p33, 0, %s32
    %s35 = ssub.s32 %s15, %s34
    %s36 = ssub.s32 %s17, %s26
    %s37 = sor.u32 %s35, %s36
    %p38 = scmp.eq.s32.totalorder %s37, 0
    %s40 = sadd.s32 %s39, 1
    %s41 = scalar_select %p38, %s39, %s40
    %p44 = pneg %p38
    %p45 = scmp.eq.s32.totalorder %s8, 12
    %p46 = por %p44, %p45
    %p47 = scmp.ne.s32.totalorder %s39, %s42
    %p48 = scmp.eq.s32.totalorder %s8, 0
    %p49 = por %p47, %p48
    %p50 = scmp.ne.s32.totalorder %s39, %s42
    %p51 = scmp.eq.s32.totalorder %s13, 12
    %p52 = por %p50, %p51
    %p53 = scmp.ne.s32.totalorder %s42, %s43
    %p54 = scmp.eq.s32.totalorder %s13, 0
    %p55 = por %p53, %p54
    %p56 = scmp.ne.s32.totalorder %s42, %s43
    %p57 = scmp.eq.s32.totalorder %s14, 12
    %p58 = por %p56, %p57
    %p60 = scmp.ne.s32.totalorder %s43, %s59
    %p61 = scmp.eq.s32.totalorder %s14, 0
    %p62 = por %p60, %p61
    %s63 = ssub.s32 %s17, %s26
    %s64 = ssub.s32 %s16, %s30
    %s65 = sor.u32 %s63, %s64
    %p66 = scmp.eq.s32.totalorder %s65, 0
    %s68 = sadd.s32 %s67, 1
    %s69 = scalar_select %p66, %s67, %s68
    %p72 = pneg %p66
    %p73 = scmp.eq.s32.totalorder %s8, 12
    %p74 = por %p72, %p73
    %p75 = scmp.ne.s32.totalorder %s67, %s70
    %p76 = scmp.eq.s32.totalorder %s8, 0
    %p77 = por %p75, %p76
    %p78 = scmp.ne.s32.totalorder %s67, %s70
    %p79 = scmp.eq.s32.totalorder %s13, 12
    %p80 = por %p78, %p79
    %p81 = scmp.ne.s32.totalorder %s70, %s71
    %p82 = scmp.eq.s32.totalorder %s13, 0
    %p83 = por %p81, %p82
    %p84 = scmp.ne.s32.totalorder %s70, %s71
    %p85 = scmp.eq.s32.totalorder %s14, 12
    %p86 = por %p84, %p85
    %p88 = scmp.ne.s32.totalorder %s71, %s87
    %p89 = scmp.eq.s32.totalorder %s14, 0
    %p90 = por %p88, %p89
    %s91 = ssub.s32 %s15, %s34
    %s92 = ssub.s32 %s16, %s30
    %s93 = sor.u32 %s91, %s92
    %p94 = scmp.eq.s32.totalorder %s93, 0
    %s96 = sadd.s32 %s95, 1
    %s97 = scalar_select %p94, %s95, %s96
    %p100 = pneg %p94
    %p101 = scmp.eq.s32.totalorder %s8, 12
    %p102 = por %p100, %p101
    %p103 = scmp.ne.s32.totalorder %s95, %s98
    %p104 = scmp.eq.s32.totalorder %s8, 0
    %p105 = por %p103, %p104
    %p106 = scmp.ne.s32.totalorder %s95, %s98
    %p107 = scmp.eq.s32.totalorder %s13, 12
    %p108 = por %p106, %p107
    %p109 = scmp.ne.s32.totalorder %s98, %s99
    %p110 = scmp.eq.s32.totalorder %s13, 0
    %p111 = por %p109, %p110
    %p112 = scmp.ne.s32.totalorder %s98, %s99
    %p113 = scmp.eq.s32.totalorder %s14, 12
    %p114 = por %p112, %p113
    %p116 = scmp.ne.s32.totalorder %s99, %s115
    %p117 = scmp.eq.s32.totalorder %s14, 0
    %p118 = por %p116, %p117
    %p119 = scmp.le.s32.totalorder 1, %s8
    %p120 = scmp.lt.s32.totalorder %s8, 14
    %p121 = pnand %p119, %p120
    %p122 = pneg %p121
    // Predicated region
    $region9: #{forward.73} parent=5 // pred_check
      _
    $region10: #{forward.73} parent=5 // pred_check_branch
      %124 = sbr.rel (%p121) target = $region12
    $region11: #{forward.73} parent=5 // pred_region
      %s125 = ssub.s32 %s8, 1
    $region12: #{forward.73} parent=5 // pred_fallthru
      _
    %p126 = scmp.lt.s32.totalorder %s8, 13
    // Predicated region
    $region13: #{forward.73} parent=5 // pred_check
      %p127 = pneg %p126
    $region14: #{forward.73} parent=5 // pred_check_branch
      %129 = sbr.rel (%p127) target = $region16
    $region15: #{forward.73} parent=5 // pred_region
      // Predicated region
      $region17: #{forward.73} parent=15 // pred_check
        %p130 = pneg %p49
      $region18: #{forward.73} parent=15 // pred_check_branch
        %132 = sbr.rel (%p130) target = $region20
      $region19: #{forward.73} parent=15 // pred_region
        %s133 = smul.u32 16, %s17
        %p134 = scmp.lt.s32.totalorder %s15, 0
        %s135 = scalar_select %p134, %s15, 0
        %p136 = scmp.lt.s32.totalorder %s133, 207
        %s137 = scalar_select %p136, %s133, 207
        %s138 = smul.addr %s135, 208
        %s139 = sadd.s32 %s137, %s138
        %s140 = smul.addr %s139, 4
        %s141 = scalar_lea.vmem %s0, %s140
        %s142 = smul.u32 16, %s17
      $region20: #{forward.73} parent=15 // pred_fallthru
        _
      // Predicated region
      $region21: #{forward.73} parent=15 // pred_check
        %p143 = pneg %p77
      $region22: #{forward.73} parent=15 // pred_check_branch
        %145 = sbr.rel (%p143) target = $region24
      $region23: #{forward.73} parent=15 // pred_region
        %s146 = smul.u32 256, %s17
        %p147 = scmp.lt.s32.totalorder %s146, 3327
        %s148 = scalar_select %p147, %s146, 3327
        %p149 = scmp.lt.s32.totalorder %s16, 0
        %s150 = scalar_select %p149, %s16, 0
        %s151 = sadd.s32 %s150, %s148
        %s152 = smul.addr %s151, 4
        %s153 = scalar_lea.vmem %s1, %s152
        %s154 = smul.u32 256, %s17
      $region24: #{forward.73} parent=15 // pred_fallthru
        _
    $region16: #{forward.73} parent=5 // pred_fallthru
      _
    %p155 = scmp.le.s32.totalorder 1, %s8
    %p156 = scmp.lt.s32.totalorder %s8, 14
    %p157 = pnand %p155, %p156
    %p158 = pneg %p157
    // Predicated region
    $region25: #{forward.73} parent=5 // pred_check
      _
    $region26: #{forward.73} parent=5 // pred_check_branch
      %160 = sbr.rel (%p157) target = $region28
    $region27: #{forward.73} parent=5 // pred_region
      %s161 = ssub.s32 %s8, 1
      %s162 = smul.u32 16, %s20
      %p163 = scmp.lt.s32.totalorder %s18, 0
      %s164 = scalar_select %p163, %s18, 0
      %p165 = scmp.lt.s32.totalorder %s162, 207
      %s166 = scalar_select %p165, %s162, 207
      %s167 = smul.addr %s164, 208
      %s168 = sadd.s32 %s166, %s167
      %s169 = smul.addr %s168, 4
      %s170 = scalar_lea.vmem %s0, %s169
      %p171 = pneg %p55
      %p172 = pneg %p52
      %s173 = smul.u32 256, %s20
      %p174 = scmp.lt.s32.totalorder %s173, 3327
      %s175 = scalar_select %p174, %s173, 3327
      %p176 = scmp.lt.s32.totalorder %s19, 0
      %s177 = scalar_select %p176, %s19, 0
      %s178 = sadd.s32 %s177, %s175
      %s179 = smul.addr %s178, 4
      %s180 = scalar_lea.vmem %s1, %s179
      %p181 = pneg %p83
      %p182 = pneg %p80
      %p183 = pneg %p111
      %p184 = pneg %p108
      %p185 = scmp.lt.s32.totalorder %s18, 0
      %s186 = scalar_select %p185, %s18, 0
      %p187 = scmp.lt.s32.totalorder %s19, 0
      %s188 = scalar_select %p187, %s19, 0
      %s189 = sadd.s32 %s188, %s186
      %s190 = smul.addr %s189, 8
      %s191 = scalar_lea.vmem %s2, %s190
      %s192 = smul.u32 16, %s20
      %p193 = scmp.lt.s32.totalorder %s18, 0
      %s194 = scalar_select %p193, %s18, 0
      %p195 = scmp.lt.s32.totalorder %s192, 207
      %s196 = scalar_select %p195, %s192, 207
      %s197 = smul.addr %s194, 208
      %s198 = sadd.s32 %s196, %s197
      %s199 = smul.addr %s198, 4
      %s200 = scalar_lea.vmem %s0, %s199
      %s201 = smul.u32 16, %s20
      %s202 = smul.u32 256, %s20
      %p203 = scmp.lt.s32.totalorder %s202, 3327
      %s204 = scalar_select %p203, %s202, 3327
      %p205 = scmp.lt.s32.totalorder %s19, 0
      %s206 = scalar_select %p205, %s19, 0
      %s207 = sadd.s32 %s206, %s204
      %s208 = smul.addr %s207, 4
      %s209 = scalar_lea.vmem %s1, %s208
      %s210 = smul.u32 256, %s20
      %p211 = scmp.lt.s32.totalorder %s18, 0
      %s212 = scalar_select %p211, %s18, 0
      %p213 = scmp.lt.s32.totalorder %s19, 0
      %s214 = scalar_select %p213, %s19, 0
      %s215 = sadd.s32 %s214, %s212
      %s216 = smul.addr %s215, 8
      %s217 = scalar_lea.vmem %s2, %s216
      %p218 = scmp.eq.s32.totalorder %s20, 0
      // Predicated region
      $region29: #{forward.73} parent=27 // pred_check
        %p219 = pneg %p218
      $region30: #{forward.73} parent=27 // pred_check_branch
        %221 = sbr.rel (%p219) target = $region32
      $region31: #{forward.73} parent=27 // pred_region
        %222 = vst [vmem:[#allocation2] sm:$0xff] 0.0
      $region32: #{forward.73} parent=27 // pred_fallthru
        _
      %v223 = vld [vmem:[#allocation2] sm:$0xff]
      %v224 = vld [vmem:[%s200] sm:$0xff]
      %v225 = vld [vmem:[%s200 + $0x8] sm:$0xff]
      %v226 = vld [vmem:[%s200 + $0x10] sm:$0xff]
      %v227 = vld [vmem:[%s200 + $0x18] sm:$0xff]
      %v228 = vld [vmem:[%s200 + $0x20] sm:$0xff]
      %v229 = vld [vmem:[%s200 + $0x28] sm:$0xff]
      %v230 = vld [vmem:[%s200 + $0x30] sm:$0xff]
      %v231 = vld [vmem:[%s200 + $0x38] sm:$0xff]
      %v232 = vld [vmem:[%s209] sm:$0xf]
      %v233 = vld [vmem:[%s209 + $0x4] sm:$0xf]
      %v234 = vld [vmem:[%s209 + $0x8] sm:$0xf]
      %v235 = vld [vmem:[%s209 + $0xc] sm:$0xf]
      %v236 = vld [vmem:[%s209 + $0x10] sm:$0xf]
      %v237 = vld [vmem:[%s209 + $0x14] sm:$0xf]
      %v238 = vld [vmem:[%s209 + $0x18] sm:$0xf]
      %v239 = vld [vmem:[%s209 + $0x1c] sm:$0xf]
      %v240 = vld [vmem:[%s209 + $0x20] sm:$0xf]
      %v241 = vld [vmem:[%s209 + $0x24] sm:$0xf]
      %v242 = vld [vmem:[%s209 + $0x28] sm:$0xf]
      %v243 = vld [vmem:[%s209 + $0x2c] sm:$0xf]
      %v244 = vld [vmem:[%s209 + $0x30] sm:$0xf]
      %v245 = vld [vmem:[%s209 + $0x34] sm:$0xf]
      %v246 = vld [vmem:[%s209 + $0x38] sm:$0xf]
      %v247 = vld [vmem:[%s209 + $0x3c] sm:$0xf]
      %v248 = vld [vmem:[%s209 + $0x40] sm:$0xf]
      %v249 = vld [vmem:[%s209 + $0x44] sm:$0xf]
      %v250 = vld [vmem:[%s209 + $0x48] sm:$0xf]
      %v251 = vld [vmem:[%s209 + $0x4c] sm:$0xf]
      %v252 = vld [vmem:[%s209 + $0x50] sm:$0xf]
      %v253 = vld [vmem:[%s209 + $0x54] sm:$0xf]
      %v254 = vld [vmem:[%s209 + $0x58] sm:$0xf]
      %v255 = vld [vmem:[%s209 + $0x5c] sm:$0xf]
      %v256 = vld [vmem:[%s209 + $0x60] sm:$0xf]
      %v257 = vld [vmem:[%s209 + $0x64] sm:$0xf]
      %v258 = vld [vmem:[%s209 + $0x68] sm:$0xf]
      %v259 = vld [vmem:[%s209 + $0x6c] sm:$0xf]
      %v260 = vld [vmem:[%s209 + $0x70] sm:$0xf]
      %v261 = vld [vmem:[%s209 + $0x74] sm:$0xf]
      %v262 = vld [vmem:[%s209 + $0x78] sm:$0xf]
      %v263 = vld [vmem:[%s209 + $0x7c] sm:$0xf]
      %v264 = vld [vmem:[%s209 + $0x80] sm:$0xf]
      %v265 = vld [vmem:[%s209 + $0x84] sm:$0xf]
      %v266 = vld [vmem:[%s209 + $0x88] sm:$0xf]
      %v267 = vld [vmem:[%s209 + $0x8c] sm:$0xf]
      %v268 = vld [vmem:[%s209 + $0x90] sm:$0xf]
      %v269 = vld [vmem:[%s209 + $0x94] sm:$0xf]
      %v270 = vld [vmem:[%s209 + $0x98] sm:$0xf]
      %v271 = vld [vmem:[%s209 + $0x9c] sm:$0xf]
      %v272 = vld [vmem:[%s209 + $0xa0] sm:$0xf]
      %v273 = vld [vmem:[%s209 + $0xa4] sm:$0xf]
      %v274 = vld [vmem:[%s209 + $0xa8] sm:$0xf]
      %v275 = vld [vmem:[%s209 + $0xac] sm:$0xf]
      %v276 = vld [vmem:[%s209 + $0xb0] sm:$0xf]
      %v277 = vld [vmem:[%s209 + $0xb4] sm:$0xf]
      %v278 = vld [vmem:[%s209 + $0xb8] sm:$0xf]
      %v279 = vld [vmem:[%s209 + $0xbc] sm:$0xf]
      %v280 = vld [vmem:[%s209 + $0xc0] sm:$0xf]
      %v281 = vld [vmem:[%s209 + $0xc4] sm:$0xf]
      %v282 = vld [vmem:[%s209 + $0xc8] sm:$0xf]
      %v283 = vld [vmem:[%s209 + $0xcc] sm:$0xf]
      %v284 = vld [vmem:[%s209 + $0xd0] sm:$0xf]
      %v285 = vld [vmem:[%s209 + $0xd4] sm:$0xf]
      %v286 = vld [vmem:[%s209 + $0xd8] sm:$0xf]
      %v287 = vld [vmem:[%s209 + $0xdc] sm:$0xf]
      %v288 = vld [vmem:[%s209 + $0xe0] sm:$0xf]
      %v289 = vld [vmem:[%s209 + $0xe4] sm:$0xf]
      %v290 = vld [vmem:[%s209 + $0xe8] sm:$0xf]
      %v291 = vld [vmem:[%s209 + $0xec] sm:$0xf]
      %v292 = vld [vmem:[%s209 + $0xf0] sm:$0xf]
      %v293 = vld [vmem:[%s209 + $0xf4] sm:$0xf]
      %v294 = vld [vmem:[%s209 + $0xf8] sm:$0xf]
      %v295 = vld [vmem:[%s209 + $0xfc] sm:$0xf]
      %v296 = vld [vmem:[%s209 + $0x100] sm:$0xf]
      %v297 = vld [vmem:[%s209 + $0x104] sm:$0xf]
      %v298 = vld [vmem:[%s209 + $0x108] sm:$0xf]
      %v299 = vld [vmem:[%s209 + $0x10c] sm:$0xf]
      %v300 = vld [vmem:[%s209 + $0x110] sm:$0xf]
      %v301 = vld [vmem:[%s209 + $0x114] sm:$0xf]
      %v302 = vld [vmem:[%s209 + $0x118] sm:$0xf]
      %v303 = vld [vmem:[%s209 + $0x11c] sm:$0xf]
      %v304 = vld [vmem:[%s209 + $0x120] sm:$0xf]
      %v305 = vld [vmem:[%s209 + $0x124] sm:$0xf]
      %v306 = vld [vmem:[%s209 + $0x128] sm:$0xf]
      %v307 = vld [vmem:[%s209 + $0x12c] sm:$0xf]
      %v308 = vld [vmem:[%s209 + $0x130] sm:$0xf]
      %v309 = vld [vmem:[%s209 + $0x134] sm:$0xf]
      %v310 = vld [vmem:[%s209 + $0x138] sm:$0xf]
      %v311 = vld [vmem:[%s209 + $0x13c] sm:$0xf]
      %v312 = vld [vmem:[%s209 + $0x140] sm:$0xf]
      %v313 = vld [vmem:[%s209 + $0x144] sm:$0xf]
      %v314 = vld [vmem:[%s209 + $0x148] sm:$0xf]
      %v315 = vld [vmem:[%s209 + $0x14c] sm:$0xf]
      %v316 = vld [vmem:[%s209 + $0x150] sm:$0xf]
      %v317 = vld [vmem:[%s209 + $0x154] sm:$0xf]
      %v318 = vld [vmem:[%s209 + $0x158] sm:$0xf]
      %v319 = vld [vmem:[%s209 + $0x15c] sm:$0xf]
      %v320 = vld [vmem:[%s209 + $0x160] sm:$0xf]
      %v321 = vld [vmem:[%s209 + $0x164] sm:$0xf]
      %v322 = vld [vmem:[%s209 + $0x168] sm:$0xf]
      %v323 = vld [vmem:[%s209 + $0x16c] sm:$0xf]
      %v324 = vld [vmem:[%s209 + $0x170] sm:$0xf]
      %v325 = vld [vmem:[%s209 + $0x174] sm:$0xf]
      %v326 = vld [vmem:[%s209 + $0x178] sm:$0xf]
      %v327 = vld [vmem:[%s209 + $0x17c] sm:$0xf]
      %v328 = vld [vmem:[%s209 + $0x180] sm:$0xf]
      %v329 = vld [vmem:[%s209 + $0x184] sm:$0xf]
      %v330 = vld [vmem:[%s209 + $0x188] sm:$0xf]
      %v331 = vld [vmem:[%s209 + $0x18c] sm:$0xf]
      %v332 = vld [vmem:[%s209 + $0x190] sm:$0xf]
      %v333 = vld [vmem:[%s209 + $0x194] sm:$0xf]
      %v334 = vld [vmem:[%s209 + $0x198] sm:$0xf]
      %v335 = vld [vmem:[%s209 + $0x19c] sm:$0xf]
      %v336 = vld [vmem:[%s209 + $0x1a0] sm:$0xf]
      %v337 = vld [vmem:[%s209 + $0x1a4] sm:$0xf]
      %v338 = vld [vmem:[%s209 + $0x1a8] sm:$0xf]
      %v339 = vld [vmem:[%s209 + $0x1ac] sm:$0xf]
      %v340 = vld [vmem:[%s209 + $0x1b0] sm:$0xf]
      %v341 = vld [vmem:[%s209 + $0x1b4] sm:$0xf]
      %v342 = vld [vmem:[%s209 + $0x1b8] sm:$0xf]
      %v343 = vld [vmem:[%s209 + $0x1bc] sm:$0xf]
      %v344 = vld [vmem:[%s209 + $0x1c0] sm:$0xf]
      %v345 = vld [vmem:[%s209 + $0x1c4] sm:$0xf]
      %v346 = vld [vmem:[%s209 + $0x1c8] sm:$0xf]
      %v347 = vld [vmem:[%s209 + $0x1cc] sm:$0xf]
      %v348 = vld [vmem:[%s209 + $0x1d0] sm:$0xf]
      %v349 = vld [vmem:[%s209 + $0x1d4] sm:$0xf]
      %v350 = vld [vmem:[%s209 + $0x1d8] sm:$0xf]
      %v351 = vld [vmem:[%s209 + $0x1dc] sm:$0xf]
      %v352 = vld [vmem:[%s209 + $0x1e0] sm:$0xf]
      %v353 = vld [vmem:[%s209 + $0x1e4] sm:$0xf]
      %v354 = vld [vmem:[%s209 + $0x1e8] sm:$0xf]
      %v355 = vld [vmem:[%s209 + $0x1ec] sm:$0xf]
      %v356 = vld [vmem:[%s209 + $0x1f0] sm:$0xf]
      %v357 = vld [vmem:[%s209 + $0x1f4] sm:$0xf]
      %v358 = vld [vmem:[%s209 + $0x1f8] sm:$0xf]
      %v359 = vld [vmem:[%s209 + $0x1fc] sm:$0xf]
      %v360 = vld [vmem:[%s209 + $0x200] sm:$0xf]
      %v361 = vld [vmem:[%s209 + $0x204] sm:$0xf]
      %v362 = vld [vmem:[%s209 + $0x208] sm:$0xf]
      %v363 = vld [vmem:[%s209 + $0x20c] sm:$0xf]
      %v364 = vld [vmem:[%s209 + $0x210] sm:$0xf]
      %v365 = vld [vmem:[%s209 + $0x214] sm:$0xf]
      %v366 = vld [vmem:[%s209 + $0x218] sm:$0xf]
      %v367 = vld [vmem:[%s209 + $0x21c] sm:$0xf]
      %v368 = vld [vmem:[%s209 + $0x220] sm:$0xf]
      %v369 = vld [vmem:[%s209 + $0x224] sm:$0xf]
      %v370 = vld [vmem:[%s209 + $0x228] sm:$0xf]
      %v371 = vld [vmem:[%s209 + $0x22c] sm:$0xf]
      %v372 = vld [vmem:[%s209 + $0x230] sm:$0xf]
      %v373 = vld [vmem:[%s209 + $0x234] sm:$0xf]
      %v374 = vld [vmem:[%s209 + $0x238] sm:$0xf]
      %v375 = vld [vmem:[%s209 + $0x23c] sm:$0xf]
      %v376 = vld [vmem:[%s209 + $0x240] sm:$0xf]
      %v377 = vld [vmem:[%s209 + $0x244] sm:$0xf]
      %v378 = vld [vmem:[%s209 + $0x248] sm:$0xf]
      %v379 = vld [vmem:[%s209 + $0x24c] sm:$0xf]
      %v380 = vld [vmem:[%s209 + $0x250] sm:$0xf]
      %v381 = vld [vmem:[%s209 + $0x254] sm:$0xf]
      %v382 = vld [vmem:[%s209 + $0x258] sm:$0xf]
      %v383 = vld [vmem:[%s209 + $0x25c] sm:$0xf]
      %v384 = vld [vmem:[%s209 + $0x260] sm:$0xf]
      %v385 = vld [vmem:[%s209 + $0x264] sm:$0xf]
      %v386 = vld [vmem:[%s209 + $0x268] sm:$0xf]
      %v387 = vld [vmem:[%s209 + $0x26c] sm:$0xf]
      %v388 = vld [vmem:[%s209 + $0x270] sm:$0xf]
      %v389 = vld [vmem:[%s209 + $0x274] sm:$0xf]
      %v390 = vld [vmem:[%s209 + $0x278] sm:$0xf]
      %v391 = vld [vmem:[%s209 + $0x27c] sm:$0xf]
      %v392 = vld [vmem:[%s209 + $0x280] sm:$0xf]
      %v393 = vld [vmem:[%s209 + $0x284] sm:$0xf]
      %v394 = vld [vmem:[%s209 + $0x288] sm:$0xf]
      %v395 = vld [vmem:[%s209 + $0x28c] sm:$0xf]
      %v396 = vld [vmem:[%s209 + $0x290] sm:$0xf]
      %v397 = vld [vmem:[%s209 + $0x294] sm:$0xf]
      %v398 = vld [vmem:[%s209 + $0x298] sm:$0xf]
      %v399 = vld [vmem:[%s209 + $0x29c] sm:$0xf]
      %v400 = vld [vmem:[%s209 + $0x2a0] sm:$0xf]
      %v401 = vld [vmem:[%s209 + $0x2a4] sm:$0xf]
      %v402 = vld [vmem:[%s209 + $0x2a8] sm:$0xf]
      %v403 = vld [vmem:[%s209 + $0x2ac] sm:$0xf]
      %v404 = vld [vmem:[%s209 + $0x2b0] sm:$0xf]
      %v405 = vld [vmem:[%s209 + $0x2b4] sm:$0xf]
      %v406 = vld [vmem:[%s209 + $0x2b8] sm:$0xf]
      %v407 = vld [vmem:[%s209 + $0x2bc] sm:$0xf]
      %v408 = vld [vmem:[%s209 + $0x2c0] sm:$0xf]
      %v409 = vld [vmem:[%s209 + $0x2c4] sm:$0xf]
      %v410 = vld [vmem:[%s209 + $0x2c8] sm:$0xf]
      %v411 = vld [vmem:[%s209 + $0x2cc] sm:$0xf]
      %v412 = vld [vmem:[%s209 + $0x2d0] sm:$0xf]
      %v413 = vld [vmem:[%s209 + $0x2d4] sm:$0xf]
      %v414 = vld [vmem:[%s209 + $0x2d8] sm:$0xf]
      %v415 = vld [vmem:[%s209 + $0x2dc] sm:$0xf]
      %v416 = vld [vmem:[%s209 + $0x2e0] sm:$0xf]
      %v417 = vld [vmem:[%s209 + $0x2e4] sm:$0xf]
      %v418 = vld [vmem:[%s209 + $0x2e8] sm:$0xf]
      %v419 = vld [vmem:[%s209 + $0x2ec] sm:$0xf]
      %v420 = vld [vmem:[%s209 + $0x2f0] sm:$0xf]
      %v421 = vld [vmem:[%s209 + $0x2f4] sm:$0xf]
      %v422 = vld [vmem:[%s209 + $0x2f8] sm:$0xf]
      %v423 = vld [vmem:[%s209 + $0x2fc] sm:$0xf]
      %v424 = vld [vmem:[%s209 + $0x300] sm:$0xf]
      %v425 = vld [vmem:[%s209 + $0x304] sm:$0xf]
      %v426 = vld [vmem:[%s209 + $0x308] sm:$0xf]
      %v427 = vld [vmem:[%s209 + $0x30c] sm:$0xf]
      %v428 = vld [vmem:[%s209 + $0x310] sm:$0xf]
      %v429 = vld [vmem:[%s209 + $0x314] sm:$0xf]
      %v430 = vld [vmem:[%s209 + $0x318] sm:$0xf]
      %v431 = vld [vmem:[%s209 + $0x31c] sm:$0xf]
      %v432 = vld [vmem:[%s209 + $0x320] sm:$0xf]
      %v433 = vld [vmem:[%s209 + $0x324] sm:$0xf]
      %v434 = vld [vmem:[%s209 + $0x328] sm:$0xf]
      %v435 = vld [vmem:[%s209 + $0x32c] sm:$0xf]
      %v436 = vld [vmem:[%s209 + $0x330] sm:$0xf]
      %v437 = vld [vmem:[%s209 + $0x334] sm:$0xf]
      %v438 = vld [vmem:[%s209 + $0x338] sm:$0xf]
      %v439 = vld [vmem:[%s209 + $0x33c] sm:$0xf]
      %v440 = vld [vmem:[%s209 + $0x340] sm:$0xf]
      %v441 = vld [vmem:[%s209 + $0x344] sm:$0xf]
      %v442 = vld [vmem:[%s209 + $0x348] sm:$0xf]
      %v443 = vld [vmem:[%s209 + $0x34c] sm:$0xf]
      %v444 = vld [vmem:[%s209 + $0x350] sm:$0xf]
      %v445 = vld [vmem:[%s209 + $0x354] sm:$0xf]
      %v446 = vld [vmem:[%s209 + $0x358] sm:$0xf]
      %v447 = vld [vmem:[%s209 + $0x35c] sm:$0xf]
      %v448 = vld [vmem:[%s209 + $0x360] sm:$0xf]
      %v449 = vld [vmem:[%s209 + $0x364] sm:$0xf]
      %v450 = vld [vmem:[%s209 + $0x368] sm:$0xf]
      %v451 = vld [vmem:[%s209 + $0x36c] sm:$0xf]
      %v452 = vld [vmem:[%s209 + $0x370] sm:$0xf]
      %v453 = vld [vmem:[%s209 + $0x374] sm:$0xf]
      %v454 = vld [vmem:[%s209 + $0x378] sm:$0xf]
      %v455 = vld [vmem:[%s209 + $0x37c] sm:$0xf]
      %v456 = vld [vmem:[%s209 + $0x380] sm:$0xf]
      %v457 = vld [vmem:[%s209 + $0x384] sm:$0xf]
      %v458 = vld [vmem:[%s209 + $0x388] sm:$0xf]
      %v459 = vld [vmem:[%s209 + $0x38c] sm:$0xf]
      %v460 = vld [vmem:[%s209 + $0x390] sm:$0xf]
      %v461 = vld [vmem:[%s209 + $0x394] sm:$0xf]
      %v462 = vld [vmem:[%s209 + $0x398] sm:$0xf]
      %v463 = vld [vmem:[%s209 + $0x39c] sm:$0xf]
      %v464 = vld [vmem:[%s209 + $0x3a0] sm:$0xf]
      %v465 = vld [vmem:[%s209 + $0x3a4] sm:$0xf]
      %v466 = vld [vmem:[%s209 + $0x3a8] sm:$0xf]
      %v467 = vld [vmem:[%s209 + $0x3ac] sm:$0xf]
      %v468 = vld [vmem:[%s209 + $0x3b0] sm:$0xf]
      %v469 = vld [vmem:[%s209 + $0x3b4] sm:$0xf]
      %v470 = vld [vmem:[%s209 + $0x3b8] sm:$0xf]
      %v471 = vld [vmem:[%s209 + $0x3bc] sm:$0xf]
      %v472 = vld [vmem:[%s209 + $0x3c0] sm:$0xf]
      %v473 = vld [vmem:[%s209 + $0x3c4] sm:$0xf]
      %v474 = vld [vmem:[%s209 + $0x3c8] sm:$0xf]
      %v475 = vld [vmem:[%s209 + $0x3cc] sm:$0xf]
      %v476 = vld [vmem:[%s209 + $0x3d0] sm:$0xf]
      %v477 = vld [vmem:[%s209 + $0x3d4] sm:$0xf]
      %v478 = vld [vmem:[%s209 + $0x3d8] sm:$0xf]
      %v479 = vld [vmem:[%s209 + $0x3dc] sm:$0xf]
      %v480 = vld [vmem:[%s209 + $0x3e0] sm:$0xf]
      %v481 = vld [vmem:[%s209 + $0x3e4] sm:$0xf]
      %v482 = vld [vmem:[%s209 + $0x3e8] sm:$0xf]
      %v483 = vld [vmem:[%s209 + $0x3ec] sm:$0xf]
      %v484 = vld [vmem:[%s209 + $0x3f0] sm:$0xf]
      %v485 = vld [vmem:[%s209 + $0x3f4] sm:$0xf]
      %v486 = vld [vmem:[%s209 + $0x3f8] sm:$0xf]
      %v487 = vld [vmem:[%s209 + $0x3fc] sm:$0xf]
      %v496 = vunpack.c.l.b16 %v224
      %v497 = vunpack.c.h.b16 %v224
      %v498 = vunpack.c.l.b16 %v225
      %v499 = vunpack.c.h.b16 %v225
      %v500 = vunpack.c.l.b16 %v226
      %v501 = vunpack.c.h.b16 %v226
      %v502 = vunpack.c.l.b16 %v227
      %v503 = vunpack.c.h.b16 %v227
      %v504 = vunpack.c.l.b16 %v228
      %v505 = vunpack.c.h.b16 %v228
      %v506 = vunpack.c.l.b16 %v229
      %v507 = vunpack.c.h.b16 %v229
      %v508 = vunpack.c.l.b16 %v230
      %v509 = vunpack.c.h.b16 %v230
      %v510 = vunpack.c.l.b16 %v231
      %v511 = vunpack.c.h.b16 %v231
      %v512 = vpack.c.b16 %v496, %v496
      %v513 = vpack.c.b16 %v497, %v497
      %v514 = vpack.c.b16 %v498, %v498
      %v515 = vpack.c.b16 %v499, %v499
      %v516 = vpack.c.b16 %v500, %v500
      %v517 = vpack.c.b16 %v501, %v501
      %v518 = vpack.c.b16 %v502, %v502
      %v519 = vpack.c.b16 %v503, %v503
      %v520 = vpack.c.b16 %v504, %v504
      %v521 = vpack.c.b16 %v505, %v505
      %v522 = vpack.c.b16 %v506, %v506
      %v523 = vpack.c.b16 %v507, %v507
      %v524 = vpack.c.b16 %v508, %v508
      %v525 = vpack.c.b16 %v509, %v509
      %v526 = vpack.c.b16 %v510, %v510
      %v527 = vpack.c.b16 %v511, %v511
      %v800 = vunpack.c.l.b16 %v232
      %v801 = vunpack.c.l.b16 %v233
      %v802 = vunpack.c.l.b16 %v234
      %v803 = vunpack.c.l.b16 %v235
      %v804 = vunpack.c.l.b16 %v236
      %v805 = vunpack.c.l.b16 %v237
      %v806 = vunpack.c.l.b16 %v238
      %v807 = vunpack.c.l.b16 %v239
      %v808 = vunpack.c.l.b16 %v240
      %v809 = vunpack.c.l.b16 %v241
      %v810 = vunpack.c.l.b16 %v242
      %v811 = vunpack.c.l.b16 %v243
      %v812 = vunpack.c.l.b16 %v244
      %v813 = vunpack.c.l.b16 %v245
      %v814 = vunpack.c.l.b16 %v246
      %v815 = vunpack.c.l.b16 %v247
      %v816 = vunpack.c.l.b16 %v248
      %v817 = vunpack.c.l.b16 %v249
      %v818 = vunpack.c.l.b16 %v250
      %v819 = vunpack.c.l.b16 %v251
      %v820 = vunpack.c.l.b16 %v252
      %v821 = vunpack.c.l.b16 %v253
      %v822 = vunpack.c.l.b16 %v254
      %v823 = vunpack.c.l.b16 %v255
      %v824 = vunpack.c.l.b16 %v256
      %v825 = vunpack.c.l.b16 %v257
      %v826 = vunpack.c.l.b16 %v258
      %v827 = vunpack.c.l.b16 %v259
      %v828 = vunpack.c.l.b16 %v260
      %v829 = vunpack.c.l.b16 %v261
      %v830 = vunpack.c.l.b16 %v262
      %v831 = vunpack.c.l.b16 %v263
      %v832 = vunpack.c.l.b16 %v264
      %v833 = vunpack.c.l.b16 %v265
      %v834 = vunpack.c.l.b16 %v266
      %v835 = vunpack.c.l.b16 %v267
      %v836 = vunpack.c.l.b16 %v268
      %v837 = vunpack.c.l.b16 %v269
      %v838 = vunpack.c.l.b16 %v270
      %v839 = vunpack.c.l.b16 %v271
      %v840 = vunpack.c.l.b16 %v272
      %v841 = vunpack.c.l.b16 %v273
      %v842 = vunpack.c.l.b16 %v274
      %v843 = vunpack.c.l.b16 %v275
      %v844 = vunpack.c.l.b16 %v276
      %v845 = vunpack.c.l.b16 %v277
      %v846 = vunpack.c.l.b16 %v278
      %v847 = vunpack.c.l.b16 %v279
      %v848 = vunpack.c.l.b16 %v280
      %v849 = vunpack.c.l.b16 %v281
      %v850 = vunpack.c.l.b16 %v282
      %v851 = vunpack.c.l.b16 %v283
      %v852 = vunpack.c.l.b16 %v284
      %v853 = vunpack.c.l.b16 %v285
      %v854 = vunpack.c.l.b16 %v286
      %v855 = vunpack.c.l.b16 %v287
      %v856 = vunpack.c.l.b16 %v288
      %v857 = vunpack.c.l.b16 %v289
      %v858 = vunpack.c.l.b16 %v290
      %v859 = vunpack.c.l.b16 %v291
      %v860 = vunpack.c.l.b16 %v292
      %v861 = vunpack.c.l.b16 %v293
      %v862 = vunpack.c.l.b16 %v294
      %v863 = vunpack.c.l.b16 %v295
      %v864 = vunpack.c.l.b16 %v296
      %v865 = vunpack.c.l.b16 %v297
      %v866 = vunpack.c.l.b16 %v298
      %v867 = vunpack.c.l.b16 %v299
      %v868 = vunpack.c.l.b16 %v300
      %v869 = vunpack.c.l.b16 %v301
      %v870 = vunpack.c.l.b16 %v302
      %v871 = vunpack.c.l.b16 %v303
      %v872 = vunpack.c.l.b16 %v304
      %v873 = vunpack.c.l.b16 %v305
      %v874 = vunpack.c.l.b16 %v306
      %v875 = vunpack.c.l.b16 %v307
      %v876 = vunpack.c.l.b16 %v308
      %v877 = vunpack.c.l.b16 %v309
      %v878 = vunpack.c.l.b16 %v310
      %v879 = vunpack.c.l.b16 %v311
      %v880 = vunpack.c.l.b16 %v312
      %v881 = vunpack.c.l.b16 %v313
      %v882 = vunpack.c.l.b16 %v314
      %v883 = vunpack.c.l.b16 %v315
      %v884 = vunpack.c.l.b16 %v316
      %v885 = vunpack.c.l.b16 %v317
      %v886 = vunpack.c.l.b16 %v318
      %v887 = vunpack.c.l.b16 %v319
      %v888 = vunpack.c.l.b16 %v320
      %v889 = vunpack.c.l.b16 %v321
      %v890 = vunpack.c.l.b16 %v322
      %v891 = vunpack.c.l.b16 %v323
      %v892 = vunpack.c.l.b16 %v324
      %v893 = vunpack.c.l.b16 %v325
      %v894 = vunpack.c.l.b16 %v326
      %v895 = vunpack.c.l.b16 %v327
      %v896 = vunpack.c.l.b16 %v328
      %v897 = vunpack.c.l.b16 %v329
      %v898 = vunpack.c.l.b16 %v330
      %v899 = vunpack.c.l.b16 %v331
      %v900 = vunpack.c.l.b16 %v332
      %v901 = vunpack.c.l.b16 %v333
      %v902 = vunpack.c.l.b16 %v334
      %v903 = vunpack.c.l.b16 %v335
      %v904 = vunpack.c.l.b16 %v336
      %v905 = vunpack.c.l.b16 %v337
      %v906 = vunpack.c.l.b16 %v338
      %v907 = vunpack.c.l.b16 %v339
      %v908 = vunpack.c.l.b16 %v340
      %v909 = vunpack.c.l.b16 %v341
      %v910 = vunpack.c.l.b16 %v342
      %v911 = vunpack.c.l.b16 %v343
      %v912 = vunpack.c.l.b16 %v344
      %v913 = vunpack.c.l.b16 %v345
      %v914 = vunpack.c.l.b16 %v346
      %v915 = vunpack.c.l.b16 %v347
      %v916 = vunpack.c.l.b16 %v348
      %v917 = vunpack.c.l.b16 %v349
      %v918 = vunpack.c.l.b16 %v350
      %v919 = vunpack.c.l.b16 %v351
      %v920 = vunpack.c.l.b16 %v352
      %v921 = vunpack.c.l.b16 %v353
      %v922 = vunpack.c.l.b16 %v354
      %v923 = vunpack.c.l.b16 %v355
      %v924 = vunpack.c.l.b16 %v356
      %v925 = vunpack.c.l.b16 %v357
      %v926 = vunpack.c.l.b16 %v358
      %v927 = vunpack.c.l.b16 %v359
      %v928 = vunpack.c.l.b16 %v360
      %v929 = vunpack.c.l.b16 %v361
      %v930 = vunpack.c.l.b16 %v362
      %v931 = vunpack.c.l.b16 %v363
      %v932 = vunpack.c.l.b16 %v364
      %v933 = vunpack.c.l.b16 %v365
      %v934 = vunpack.c.l.b16 %v366
      %v935 = vunpack.c.l.b16 %v367
      %v936 = vunpack.c.l.b16 %v368
      %v937 = vunpack.c.l.b16 %v369
      %v938 = vunpack.c.l.b16 %v370
      %v939 = vunpack.c.l.b16 %v371
      %v940 = vunpack.c.l.b16 %v372
      %v941 = vunpack.c.l.b16 %v373
      %v942 = vunpack.c.l.b16 %v374
      %v943 = vunpack.c.l.b16 %v375
      %v944 = vunpack.c.l.b16 %v376
      %v945 = vunpack.c.l.b16 %v377
      %v946 = vunpack.c.l.b16 %v378
      %v947 = vunpack.c.l.b16 %v379
      %v948 = vunpack.c.l.b16 %v380
      %v949 = vunpack.c.l.b16 %v381
      %v950 = vunpack.c.l.b16 %v382
      %v951 = vunpack.c.l.b16 %v383
      %v952 = vunpack.c.l.b16 %v384
      %v953 = vunpack.c.l.b16 %v385
      %v954 = vunpack.c.l.b16 %v386
      %v955 = vunpack.c.l.b16 %v387
      %v956 = vunpack.c.l.b16 %v388
      %v957 = vunpack.c.l.b16 %v389
      %v958 = vunpack.c.l.b16 %v390
      %v959 = vunpack.c.l.b16 %v391
      %v960 = vunpack.c.l.b16 %v392
      %v961 = vunpack.c.l.b16 %v393
      %v962 = vunpack.c.l.b16 %v394
      %v963 = vunpack.c.l.b16 %v395
      %v964 = vunpack.c.l.b16 %v396
      %v965 = vunpack.c.l.b16 %v397
      %v966 = vunpack.c.l.b16 %v398
      %v967 = vunpack.c.l.b16 %v399
      %v968 = vunpack.c.l.b16 %v400
      %v969 = vunpack.c.l.b16 %v401
      %v970 = vunpack.c.l.b16 %v402
      %v971 = vunpack.c.l.b16 %v403
      %v972 = vunpack.c.l.b16 %v404
      %v973 = vunpack.c.l.b16 %v405
      %v974 = vunpack.c.l.b16 %v406
      %v975 = vunpack.c.l.b16 %v407
      %v976 = vunpack.c.l.b16 %v408
      %v977 = vunpack.c.l.b16 %v409
      %v978 = vunpack.c.l.b16 %v410
      %v979 = vunpack.c.l.b16 %v411
      %v980 = vunpack.c.l.b16 %v412
      %v981 = vunpack.c.l.b16 %v413
      %v982 = vunpack.c.l.b16 %v414
      %v983 = vunpack.c.l.b16 %v415
      %v984 = vunpack.c.l.b16 %v416
      %v985 = vunpack.c.l.b16 %v417
      %v986 = vunpack.c.l.b16 %v418
      %v987 = vunpack.c.l.b16 %v419
      %v988 = vunpack.c.l.b16 %v420
      %v989 = vunpack.c.l.b16 %v421
      %v990 = vunpack.c.l.b16 %v422
      %v991 = vunpack.c.l.b16 %v423
      %v992 = vunpack.c.l.b16 %v424
      %v993 = vunpack.c.l.b16 %v425
      %v994 = vunpack.c.l.b16 %v426
      %v995 = vunpack.c.l.b16 %v427
      %v996 = vunpack.c.l.b16 %v428
      %v997 = vunpack.c.l.b16 %v429
      %v998 = vunpack.c.l.b16 %v430
      %v999 = vunpack.c.l.b16 %v431
      %v1000 = vunpack.c.l.b16 %v432
      %v1001 = vunpack.c.l.b16 %v433
      %v1002 = vunpack.c.l.b16 %v434
      %v1003 = vunpack.c.l.b16 %v435
      %v1004 = vunpack.c.l.b16 %v436
      %v1005 = vunpack.c.l.b16 %v437
      %v1006 = vunpack.c.l.b16 %v438
      %v1007 = vunpack.c.l.b16 %v439
      %v1008 = vunpack.c.l.b16 %v440
      %v1009 = vunpack.c.l.b16 %v441
      %v1010 = vunpack.c.l.b16 %v442
      %v1011 = vunpack.c.l.b16 %v443
      %v1012 = vunpack.c.l.b16 %v444
      %v1013 = vunpack.c.l.b16 %v445
      %v1014 = vunpack.c.l.b16 %v446
      %v1015 = vunpack.c.l.b16 %v447
      %v1016 = vunpack.c.l.b16 %v448
      %v1017 = vunpack.c.l.b16 %v449
      %v1018 = vunpack.c.l.b16 %v450
      %v1019 = vunpack.c.l.b16 %v451
      %v1020 = vunpack.c.l.b16 %v452
      %v1021 = vunpack.c.l.b16 %v453
      %v1022 = vunpack.c.l.b16 %v454
      %v1023 = vunpack.c.l.b16 %v455
      %v1024 = vunpack.c.l.b16 %v456
      %v1025 = vunpack.c.l.b16 %v457
      %v1026 = vunpack.c.l.b16 %v458
      %v1027 = vunpack.c.l.b16 %v459
      %v1028 = vunpack.c.l.b16 %v460
      %v1029 = vunpack.c.l.b16 %v461
      %v1030 = vunpack.c.l.b16 %v462
      %v1031 = vunpack.c.l.b16 %v463
      %v1032 = vunpack.c.l.b16 %v464
      %v1033 = vunpack.c.l.b16 %v465
      %v1034 = vunpack.c.l.b16 %v466
      %v1035 = vunpack.c.l.b16 %v467
      %v1036 = vunpack.c.l.b16 %v468
      %v1037 = vunpack.c.l.b16 %v469
      %v1038 = vunpack.c.l.b16 %v470
      %v1039 = vunpack.c.l.b16 %v471
      %v1040 = vunpack.c.l.b16 %v472
      %v1041 = vunpack.c.l.b16 %v473
      %v1042 = vunpack.c.l.b16 %v474
      %v1043 = vunpack.c.l.b16 %v475
      %v1044 = vunpack.c.l.b16 %v476
      %v1045 = vunpack.c.l.b16 %v477
      %v1046 = vunpack.c.l.b16 %v478
      %v1047 = vunpack.c.l.b16 %v479
      %v1048 = vunpack.c.l.b16 %v480
      %v1049 = vunpack.c.l.b16 %v481
      %v1050 = vunpack.c.l.b16 %v482
      %v1051 = vunpack.c.l.b16 %v483
      %v1052 = vunpack.c.l.b16 %v484
      %v1053 = vunpack.c.l.b16 %v485
      %v1054 = vunpack.c.l.b16 %v486
      %v1055 = vunpack.c.l.b16 %v487
      %v1056 = vpack.c.b16 %v801, %v800
      %v1057 = vpack.c.b16 %v803, %v802
      %v1058 = vpack.c.b16 %v805, %v804
      %v1059 = vpack.c.b16 %v807, %v806
      %v1060 = vpack.c.b16 %v809, %v808
      %v1061 = vpack.c.b16 %v811, %v810
      %v1062 = vpack.c.b16 %v813, %v812
      %v1063 = vpack.c.b16 %v815, %v814
      %v1064 = vpack.c.b16 %v817, %v816
      %v1065 = vpack.c.b16 %v819, %v818
      %v1066 = vpack.c.b16 %v821, %v820
      %v1067 = vpack.c.b16 %v823, %v822
      %v1068 = vpack.c.b16 %v825, %v824
      %v1069 = vpack.c.b16 %v827, %v826
      %v1070 = vpack.c.b16 %v829, %v828
      %v1071 = vpack.c.b16 %v831, %v830
      %v1072 = vpack.c.b16 %v833, %v832
      %v1073 = vpack.c.b16 %v835, %v834
      %v1074 = vpack.c.b16 %v837, %v836
      %v1075 = vpack.c.b16 %v839, %v838
      %v1076 = vpack.c.b16 %v841, %v840
      %v1077 = vpack.c.b16 %v843, %v842
      %v1078 = vpack.c.b16 %v845, %v844
      %v1079 = vpack.c.b16 %v847, %v846
      %v1080 = vpack.c.b16 %v849, %v848
      %v1081 = vpack.c.b16 %v851, %v850
      %v1082 = vpack.c.b16 %v853, %v852
      %v1083 = vpack.c.b16 %v855, %v854
      %v1084 = vpack.c.b16 %v857, %v856
      %v1085 = vpack.c.b16 %v859, %v858
      %v1086 = vpack.c.b16 %v861, %v860
      %v1087 = vpack.c.b16 %v863, %v862
      %v1088 = vpack.c.b16 %v865, %v864
      %v1089 = vpack.c.b16 %v867, %v866
      %v1090 = vpack.c.b16 %v869, %v868
      %v1091 = vpack.c.b16 %v871, %v870
      %v1092 = vpack.c.b16 %v873, %v872
      %v1093 = vpack.c.b16 %v875, %v874
      %v1094 = vpack.c.b16 %v877, %v876
      %v1095 = vpack.c.b16 %v879, %v878
      %v1096 = vpack.c.b16 %v881, %v880
      %v1097 = vpack.c.b16 %v883, %v882
      %v1098 = vpack.c.b16 %v885, %v884
      %v1099 = vpack.c.b16 %v887, %v886
      %v1100 = vpack.c.b16 %v889, %v888
      %v1101 = vpack.c.b16 %v891, %v890
      %v1102 = vpack.c.b16 %v893, %v892
      %v1103 = vpack.c.b16 %v895, %v894
      %v1104 = vpack.c.b16 %v897, %v896
      %v1105 = vpack.c.b16 %v899, %v898
      %v1106 = vpack.c.b16 %v901, %v900
      %v1107 = vpack.c.b16 %v903, %v902
      %v1108 = vpack.c.b16 %v905, %v904
      %v1109 = vpack.c.b16 %v907, %v906
      %v1110 = vpack.c.b16 %v909, %v908
      %v1111 = vpack.c.b16 %v911, %v910
      %v1112 = vpack.c.b16 %v913, %v912
      %v1113 = vpack.c.b16 %v915, %v914
      %v1114 = vpack.c.b16 %v917, %v916
      %v1115 = vpack.c.b16 %v919, %v918
      %v1116 = vpack.c.b16 %v921, %v920
      %v1117 = vpack.c.b16 %v923, %v922
      %v1118 = vpack.c.b16 %v925, %v924
      %v1119 = vpack.c.b16 %v927, %v926
      %v1120 = vpack.c.b16 %v929, %v928
      %v1121 = vpack.c.b16 %v931, %v930
      %v1122 = vpack.c.b16 %v933, %v932
      %v1123 = vpack.c.b16 %v935, %v934
      %v1124 = vpack.c.b16 %v937, %v936
      %v1125 = vpack.c.b16 %v939, %v938
      %v1126 = vpack.c.b16 %v941, %v940
      %v1127 = vpack.c.b16 %v943, %v942
      %v1128 = vpack.c.b16 %v945, %v944
      %v1129 = vpack.c.b16 %v947, %v946
      %v1130 = vpack.c.b16 %v949, %v948
      %v1131 = vpack.c.b16 %v951, %v950
      %v1132 = vpack.c.b16 %v953, %v952
      %v1133 = vpack.c.b16 %v955, %v954
      %v1134 = vpack.c.b16 %v957, %v956
      %v1135 = vpack.c.b16 %v959, %v958
      %v1136 = vpack.c.b16 %v961, %v960
      %v1137 = vpack.c.b16 %v963, %v962
      %v1138 = vpack.c.b16 %v965, %v964
      %v1139 = vpack.c.b16 %v967, %v966
      %v1140 = vpack.c.b16 %v969, %v968
      %v1141 = vpack.c.b16 %v971, %v970
      %v1142 = vpack.c.b16 %v973, %v972
      %v1143 = vpack.c.b16 %v975, %v974
      %v1144 = vpack.c.b16 %v977, %v976
      %v1145 = vpack.c.b16 %v979, %v978
      %v1146 = vpack.c.b16 %v981, %v980
      %v1147 = vpack.c.b16 %v983, %v982
      %v1148 = vpack.c.b16 %v985, %v984
      %v1149 = vpack.c.b16 %v987, %v986
      %v1150 = vpack.c.b16 %v989, %v988
      %v1151 = vpack.c.b16 %v991, %v990
      %v1152 = vpack.c.b16 %v993, %v992
      %v1153 = vpack.c.b16 %v995, %v994
      %v1154 = vpack.c.b16 %v997, %v996
      %v1155 = vpack.c.b16 %v999, %v998
      %v1156 = vpack.c.b16 %v1001, %v1000
      %v1157 = vpack.c.b16 %v1003, %v1002
      %v1158 = vpack.c.b16 %v1005, %v1004
      %v1159 = vpack.c.b16 %v1007, %v1006
      %v1160 = vpack.c.b16 %v1009, %v1008
      %v1161 = vpack.c.b16 %v1011, %v1010
      %v1162 = vpack.c.b16 %v1013, %v1012
      %v1163 = vpack.c.b16 %v1015, %v1014
      %v1164 = vpack.c.b16 %v1017, %v1016
      %v1165 = vpack.c.b16 %v1019, %v1018
      %v1166 = vpack.c.b16 %v1021, %v1020
      %v1167 = vpack.c.b16 %v1023, %v1022
      %v1168 = vpack.c.b16 %v1025, %v1024
      %v1169 = vpack.c.b16 %v1027, %v1026
      %v1170 = vpack.c.b16 %v1029, %v1028
      %v1171 = vpack.c.b16 %v1031, %v1030
      %v1172 = vpack.c.b16 %v1033, %v1032
      %v1173 = vpack.c.b16 %v1035, %v1034
      %v1174 = vpack.c.b16 %v1037, %v1036
      %v1175 = vpack.c.b16 %v1039, %v1038
      %v1176 = vpack.c.b16 %v1041, %v1040
      %v1177 = vpack.c.b16 %v1043, %v1042
      %v1178 = vpack.c.b16 %v1045, %v1044
      %v1179 = vpack.c.b16 %v1047, %v1046
      %v1180 = vpack.c.b16 %v1049, %v1048
      %v1181 = vpack.c.b16 %v1051, %v1050
      %v1182 = vpack.c.b16 %v1053, %v1052
      %v1183 = vpack.c.b16 %v1055, %v1054
      %1312 = vmatpush.bf16.msra.mxu0 %v1063
      %1313 = vmatpush.bf16.msra.mxu0 %v1062
      %1314 = vmatpush.bf16.msra.mxu0 %v1061
      %1315 = vmatpush.bf16.msra.mxu0 %v1060
      %1316 = vmatpush.bf16.msra.mxu0 %v1059
      %1317 = vmatpush.bf16.msra.mxu0 %v1058
      %1318 = vmatpush.bf16.msra.mxu0 %v1057
      %1319 = vmatpush.bf16.msra.mxu0 %v1056
      %1320 = vmatmul.bf16.gmra.mxu0 %v512
      %v1321 = vpop.f32.mrf.mxu0
      %v1322 = vadd.f32 0.0, %v1321
      %v1323 = vpop.f32.mrf.mxu0
      %1324 = vdwg.mxu0
      %1325 = vmatpush.bf16.msra.mxu0 %v1071
      %1326 = vmatpush.bf16.msra.mxu0 %v1070
      %1327 = vmatpush.bf16.msra.mxu0 %v1069
      %1328 = vmatpush.bf16.msra.mxu0 %v1068
      %1329 = vmatpush.bf16.msra.mxu0 %v1067
      %1330 = vmatpush.bf16.msra.mxu0 %v1066
      %1331 = vmatpush.bf16.msra.mxu0 %v1065
      %1332 = vmatpush.bf16.msra.mxu0 %v1064
      %1333 = vmatmul.bf16.gmra.mxu0 %v513
      %v1334 = vpop.f32.mrf.mxu0
      %v1335 = vadd.f32 %v1322, %v1334
      %v1336 = vpop.f32.mrf.mxu0
      %1337 = vdwg.mxu0
      %1338 = vmatpush.bf16.msra.mxu0 %v1079
      %1339 = vmatpush.bf16.msra.mxu0 %v1078
      %1340 = vmatpush.bf16.msra.mxu0 %v1077
      %1341 = vmatpush.bf16.msra.mxu0 %v1076
      %1342 = vmatpush.bf16.msra.mxu0 %v1075
      %1343 = vmatpush.bf16.msra.mxu0 %v1074
      %1344 = vmatpush.bf16.msra.mxu0 %v1073
      %1345 = vmatpush.bf16.msra.mxu0 %v1072
      %1346 = vmatmul.bf16.gmra.mxu0 %v514
      %v1347 = vpop.f32.mrf.mxu0
      %v1348 = vadd.f32 %v1335, %v1347
      %v1349 = vpop.f32.mrf.mxu0
      %1350 = vdwg.mxu0
      %1351 = vmatpush.bf16.msra.mxu0 %v1087
      %1352 = vmatpush.bf16.msra.mxu0 %v1086
      %1353 = vmatpush.bf16.msra.mxu0 %v1085
      %1354 = vmatpush.bf16.msra.mxu0 %v1084
      %1355 = vmatpush.bf16.msra.mxu0 %v1083
      %1356 = vmatpush.bf16.msra.mxu0 %v1082
      %1357 = vmatpush.bf16.msra.mxu0 %v1081
      %1358 = vmatpush.bf16.msra.mxu0 %v1080
      %1359 = vmatmul.bf16.gmra.mxu0 %v515
      %v1360 = vpop.f32.mrf.mxu0
      %v1361 = vadd.f32 %v1348, %v1360
      %v1362 = vpop.f32.mrf.mxu0
      %1363 = vdwg.mxu0
      %1364 = vmatpush.bf16.msra.mxu0 %v1095
      %1365 = vmatpush.bf16.msra.mxu0 %v1094
      %1366 = vmatpush.bf16.msra.mxu0 %v1093
      %1367 = vmatpush.bf16.msra.mxu0 %v1092
      %1368 = vmatpush.bf16.msra.mxu0 %v1091
      %1369 = vmatpush.bf16.msra.mxu0 %v1090
      %1370 = vmatpush.bf16.msra.mxu0 %v1089
      %1371 = vmatpush.bf16.msra.mxu0 %v1088
      %1372 = vmatmul.bf16.gmra.mxu0 %v516
      %v1373 = vpop.f32.mrf.mxu0
      %v1374 = vadd.f32 %v1361, %v1373
      %v1375 = vpop.f32.mrf.mxu0
      %1376 = vdwg.mxu0
      %1377 = vmatpush.bf16.msra.mxu0 %v1103
      %1378 = vmatpush.bf16.msra.mxu0 %v1102
      %1379 = vmatpush.bf16.msra.mxu0 %v1101
      %1380 = vmatpush.bf16.msra.mxu0 %v1100
      %1381 = vmatpush.bf16.msra.mxu0 %v1099
      %1382 = vmatpush.bf16.msra.mxu0 %v1098
      %1383 = vmatpush.bf16.msra.mxu0 %v1097
      %1384 = vmatpush.bf16.msra.mxu0 %v1096
      %1385 = vmatmul.bf16.gmra.mxu0 %v517
      %v1386 = vpop.f32.mrf.mxu0
      %v1387 = vadd.f32 %v1374, %v1386
      %v1388 = vpop.f32.mrf.mxu0
      %1389 = vdwg.mxu0
      %1390 = vmatpush.bf16.msra.mxu0 %v1111
      %1391 = vmatpush.bf16.msra.mxu0 %v1110
      %1392 = vmatpush.bf16.msra.mxu0 %v1109
      %1393 = vmatpush.bf16.msra.mxu0 %v1108
      %1394 = vmatpush.bf16.msra.mxu0 %v1107
      %1395 = vmatpush.bf16.msra.mxu0 %v1106
      %1396 = vmatpush.bf16.msra.mxu0 %v1105
      %1397 = vmatpush.bf16.msra.mxu0 %v1104
      %1398 = vmatmul.bf16.gmra.mxu0 %v518
      %v1399 = vpop.f32.mrf.mxu0
      %v1400 = vadd.f32 %v1387, %v1399
      %v1401 = vpop.f32.mrf.mxu0
      %1402 = vdwg.mxu0
      %1403 = vmatpush.bf16.msra.mxu0 %v1119
      %1404 = vmatpush.bf16.msra.mxu0 %v1118
      %1405 = vmatpush.bf16.msra.mxu0 %v1117
      %1406 = vmatpush.bf16.msra.mxu0 %v1116
      %1407 = vmatpush.bf16.msra.mxu0 %v1115
      %1408 = vmatpush.bf16.msra.mxu0 %v1114
      %1409 = vmatpush.bf16.msra.mxu0 %v1113
      %1410 = vmatpush.bf16.msra.mxu0 %v1112
      %1411 = vmatmul.bf16.gmra.mxu0 %v519
      %v1412 = vpop.f32.mrf.mxu0
      %v1413 = vadd.f32 %v1400, %v1412
      %v1414 = vpop.f32.mrf.mxu0
      %1415 = vdwg.mxu0
      %1416 = vmatpush.bf16.msra.mxu0 %v1127
      %1417 = vmatpush.bf16.msra.mxu0 %v1126
      %1418 = vmatpush.bf16.msra.mxu0 %v1125
      %1419 = vmatpush.bf16.msra.mxu0 %v1124
      %1420 = vmatpush.bf16.msra.mxu0 %v1123
      %1421 = vmatpush.bf16.msra.mxu0 %v1122
      %1422 = vmatpush.bf16.msra.mxu0 %v1121
      %1423 = vmatpush.bf16.msra.mxu0 %v1120
      %1424 = vmatmul.bf16.gmra.mxu0 %v520
      %v1425 = vpop.f32.mrf.mxu0
      %v1426 = vadd.f32 %v1413, %v1425
      %v1427 = vpop.f32.mrf.mxu0
      %1428 = vdwg.mxu0
      %1429 = vmatpush.bf16.msra.mxu0 %v1135
      %1430 = vmatpush.bf16.msra.mxu0 %v1134
      %1431 = vmatpush.bf16.msra.mxu0 %v1133
      %1432 = vmatpush.bf16.msra.mxu0 %v1132
      %1433 = vmatpush.bf16.msra.mxu0 %v1131
      %1434 = vmatpush.bf16.msra.mxu0 %v1130
      %1435 = vmatpush.bf16.msra.mxu0 %v1129
      %1436 = vmatpush.bf16.msra.mxu0 %v1128
      %1437 = vmatmul.bf16.gmra.mxu0 %v521
      %v1438 = vpop.f32.mrf.mxu0
      %v1439 = vadd.f32 %v1426, %v1438
      %v1440 = vpop.f32.mrf.mxu0
      %1441 = vdwg.mxu0
      %1442 = vmatpush.bf16.msra.mxu0 %v1143
      %1443 = vmatpush.bf16.msra.mxu0 %v1142
      %1444 = vmatpush.bf16.msra.mxu0 %v1141
      %1445 = vmatpush.bf16.msra.mxu0 %v1140
      %1446 = vmatpush.bf16.msra.mxu0 %v1139
      %1447 = vmatpush.bf16.msra.mxu0 %v1138
      %1448 = vmatpush.bf16.msra.mxu0 %v1137
      %1449 = vmatpush.bf16.msra.mxu0 %v1136
      %1450 = vmatmul.bf16.gmra.mxu0 %v522
      %v1451 = vpop.f32.mrf.mxu0
      %v1452 = vadd.f32 %v1439, %v1451
      %v1453 = vpop.f32.mrf.mxu0
      %1454 = vdwg.mxu0
      %1455 = vmatpush.bf16.msra.mxu0 %v1151
      %1456 = vmatpush.bf16.msra.mxu0 %v1150
      %1457 = vmatpush.bf16.msra.mxu0 %v1149
      %1458 = vmatpush.bf16.msra.mxu0 %v1148
      %1459 = vmatpush.bf16.msra.mxu0 %v1147
      %1460 = vmatpush.bf16.msra.mxu0 %v1146
      %1461 = vmatpush.bf16.msra.mxu0 %v1145
      %1462 = vmatpush.bf16.msra.mxu0 %v1144
      %1463 = vmatmul.bf16.gmra.mxu0 %v523
      %v1464 = vpop.f32.mrf.mxu0
      %v1465 = vadd.f32 %v1452, %v1464
      %v1466 = vpop.f32.mrf.mxu0
      %1467 = vdwg.mxu0
      %1468 = vmatpush.bf16.msra.mxu0 %v1159
      %1469 = vmatpush.bf16.msra.mxu0 %v1158
      %1470 = vmatpush.bf16.msra.mxu0 %v1157
      %1471 = vmatpush.bf16.msra.mxu0 %v1156
      %1472 = vmatpush.bf16.msra.mxu0 %v1155
      %1473 = vmatpush.bf16.msra.mxu0 %v1154
      %1474 = vmatpush.bf16.msra.mxu0 %v1153
      %1475 = vmatpush.bf16.msra.mxu0 %v1152
      %1476 = vmatmul.bf16.gmra.mxu0 %v524
      %v1477 = vpop.f32.mrf.mxu0
      %v1478 = vadd.f32 %v1465, %v1477
      %v1479 = vpop.f32.mrf.mxu0
      %1480 = vdwg.mxu0
      %1481 = vmatpush.bf16.msra.mxu0 %v1167
      %1482 = vmatpush.bf16.msra.mxu0 %v1166
      %1483 = vmatpush.bf16.msra.mxu0 %v1165
      %1484 = vmatpush.bf16.msra.mxu0 %v1164
      %1485 = vmatpush.bf16.msra.mxu0 %v1163
      %1486 = vmatpush.bf16.msra.mxu0 %v1162
      %1487 = vmatpush.bf16.msra.mxu0 %v1161
      %1488 = vmatpush.bf16.msra.mxu0 %v1160
      %1489 = vmatmul.bf16.gmra.mxu0 %v525
      %v1490 = vpop.f32.mrf.mxu0
      %v1491 = vadd.f32 %v1478, %v1490
      %v1492 = vpop.f32.mrf.mxu0
      %1493 = vdwg.mxu0
      %1494 = vmatpush.bf16.msra.mxu0 %v1175
      %1495 = vmatpush.bf16.msra.mxu0 %v1174
      %1496 = vmatpush.bf16.msra.mxu0 %v1173
      %1497 = vmatpush.bf16.msra.mxu0 %v1172
      %1498 = vmatpush.bf16.msra.mxu0 %v1171
      %1499 = vmatpush.bf16.msra.mxu0 %v1170
      %1500 = vmatpush.bf16.msra.mxu0 %v1169
      %1501 = vmatpush.bf16.msra.mxu0 %v1168
      %1502 = vmatmul.bf16.gmra.mxu0 %v526
      %v1503 = vpop.f32.mrf.mxu0
      %v1504 = vadd.f32 %v1491, %v1503
      %v1505 = vpop.f32.mrf.mxu0
      %1506 = vdwg.mxu0
      %1507 = vmatpush.bf16.msra.mxu0 %v1183
      %1508 = vmatpush.bf16.msra.mxu0 %v1182
      %1509 = vmatpush.bf16.msra.mxu0 %v1181
      %1510 = vmatpush.bf16.msra.mxu0 %v1180
      %1511 = vmatpush.bf16.msra.mxu0 %v1179
      %1512 = vmatpush.bf16.msra.mxu0 %v1178
      %1513 = vmatpush.bf16.msra.mxu0 %v1177
      %1514 = vmatpush.bf16.msra.mxu0 %v1176
      %1515 = vmatmul.bf16.gmra.mxu0 %v527
      %v1516 = vpop.f32.mrf.mxu0
      %v1517 = vadd.f32 %v1504, %v1516
      %v1518 = vpop.f32.mrf.mxu0
      %1519 = vdwg.mxu0
      %v1520 = vadd.f32 %v223, %v1517
      %1521 = vst [vmem:[#allocation2] sm:$0xff] %v1520
      %p1522 = scmp.eq.s32.totalorder %s20, 12
      // Predicated region
      $region33: #{forward.73} parent=27 // pred_check
        %p1523 = pneg %p1522
      $region34: #{forward.73} parent=27 // pred_check_branch
        %1525 = sbr.rel (%p1523) target = $region36
      $region35: #{forward.73} parent=27 // pred_region
        %v1526 = vld [vmem:[#allocation2] sm:$0xff]
        %1527 = vst [vmem:[%s217] sm:$0xff] %v1526
      $region36: #{forward.73} parent=27 // pred_fallthru
        _
      %p1528 = scmp.lt.s32.totalorder %s18, 0
      %s1529 = scalar_select %p1528, %s18, 0
      %p1530 = scmp.lt.s32.totalorder %s19, 0
      %s1531 = scalar_select %p1530, %s19, 0
      %s1532 = sadd.s32 %s1531, %s1529
      %s1533 = smul.addr %s1532, 8
      %s1534 = scalar_lea.vmem %s2, %s1533
      // Predicated region
      $region37: #{forward.73} parent=27 // pred_check
        %p1535 = pneg %p108
      $region38: #{forward.73} parent=27 // pred_check_branch
        %1537 = sbr.rel (%p1535) target = $region40
      $region39: #{forward.73} parent=27 // pred_region
        _
      $region40: #{forward.73} parent=27 // pred_fallthru
        _
      // Predicated region
      $region41: #{forward.73} parent=27 // pred_check
        %p1538 = pneg %p108
      $region42: #{forward.73} parent=27 // pred_check_branch
        %1540 = sbr.rel (%p1538) target = $region44
      $region43: #{forward.73} parent=27 // pred_region
        %p1541 = scmp.lt.s32.totalorder %s18, 0
        %s1542 = scalar_select %p1541, %s18, 0
        %p1543 = scmp.lt.s32.totalorder %s19, 0
        %s1544 = scalar_select %p1543, %s19, 0
        %s1545 = sadd.s32 %s1544, %s1542
        %s1546 = smul.addr %s1545, 8
        %s1547 = scalar_lea.vmem %s2, %s1546
      $region44: #{forward.73} parent=27 // pred_fallthru
        _
    $region28: #{forward.73} parent=5 // pred_fallthru
      _
    %p1548 = scmp.le.s32.totalorder 2, %s8
    // Predicated region
    $region45: #{forward.73} parent=5 // pred_check
      %p1549 = pneg %p1548
    $region46: #{forward.73} parent=5 // pred_check_branch
      %1551 = sbr.rel (%p1549) target = $region48
    $region47: #{forward.73} parent=5 // pred_region
      %s1552 = ssub.s32 %s8, 2
    $region48: #{forward.73} parent=5 // pred_fallthru
      _
  $region6: #{forward.73} parent=0 // loop_footer
    %s12 = sadd.s32 1, %s8
  $region7: #{forward.73} parent=0 // loop_footer_branch
    %7 = sbr.rel target = $region3
  $region8: #{forward.73} parent=0 // loop_exit
    _

</llo_original>
